<compile_context>
chip_gen: v7x
topology: tpu7x:2x2x1
jax: 0.10.0
libtpu: 0.0.40
codegen_flags: <defaults>
</compile_context>

<pallas_src>
import jax
import jax.numpy as jnp
from jax.experimental import pallas as pl
from jax.experimental.pallas import tpu as pltpu

EPS = 1e-5


# --------------------------------- kernel ---------------------------------------
def _conv_bn_relu_stage(patches_ref, w_ref, gamma, beta, src, H, W, C):
    """One fused 3x3 SAME conv + training-mode BatchNorm + ReLU stage.

    patches_ref: VMEM scratch (N, H, W, Kp) f32, Kp >= 9*C (K zero-padded to mult of 8)
    w_ref:       (Kp, Cout) bf16 weight slab, rows ordered (ky, kx, cin)
    gamma/beta:  (1, Cout) f32 BN affine params
    src:         (N, H, W, C) input -- a VMEM ref (stage 1) or a value (stage 2)
    returns:     (N*H*W, Cout) f32 activation
    """
    N = src.shape[0]

    # im2col: zero-init (provides the SAME-padding halo and the K-pad lanes), then
    # scatter the 9 shifted taps into lane slices [t*C, (t+1)*C).
    patches_ref[...] = jnp.zeros(patches_ref.shape, patches_ref.dtype)
    t = 0
    for dy in (-1, 0, 1):
        h0, h1 = max(0, -dy), min(H, H - dy)
        for dx in (-1, 0, 1):
            w0, w1 = max(0, -dx), min(W, W - dx)
            patches_ref[:, h0:h1, w0:w1, t * C:(t + 1) * C] = \
                src[:, h0 + dy:h1 + dy, w0 + dx:w1 + dx, :]
            t += 1

    kp = patches_ref.shape[-1]
    m = N * H * W

    # Single deep MXU matmul: bf16 inputs, f32 accumulation.
    a = patches_ref[...].reshape(m, kp).astype(jnp.bfloat16)
    acc = jnp.dot(a, w_ref[...], preferred_element_type=jnp.float32)  # (m, Cout) f32

    # Training-mode BatchNorm2d (batch statistics, biased variance), folded into a
    # single per-channel FMA over the big tensor. No conv bias: it cancels exactly
    # against the mean subtraction.
    mean = jnp.mean(acc, axis=0, keepdims=True)
    var = jnp.mean((acc - mean) ** 2, axis=0, keepdims=True)
    scale = gamma * jax.lax.rsqrt(var + EPS)
    shift = beta - mean * scale
    return jnp.maximum(acc * scale + shift, 0.0)


def unet_block_kernel(x_ref, w1_ref, w2_ref, g1_ref, be1_ref, g2_ref, be2_ref,
                      o_ref, p1_ref, p2_ref):
    """Fused UNetBlock forward. x_ref: (N,H,W,Cin) f32, o_ref: (N,Cout,H*W) f32."""
    N, H, W, Cin = x_ref.shape
    Cout = o_ref.shape[1]
    hw = H * W

    # Stage 1: conv1 + bn1 + relu (result stays in VMEM / vregs only).
    y1 = _conv_bn_relu_stage(p1_ref, w1_ref, g1_ref[...], be1_ref[...],
                             x_ref, H, W, Cin)
    y1 = y1.reshape(N, H, W, Cout)

    # Stage 2: conv2 + bn2 + relu, consuming the VMEM-resident intermediate.
    y2 = _conv_bn_relu_stage(p2_ref, w2_ref, g2_ref[...], be2_ref[...],
                             y1, H, W, Cout)

    # Lane-dense store: (N, Cout, H*W) puts H*W (= 256 here) on the lane axis so the
    # writeback uses unmasked full-width stores instead of 8/128 masked ones.
    for n in range(N):  # N is small & static; 2-D transposes run on the XLU.
        o_ref[n, :, :] = y2[n * hw:(n + 1) * hw, :].T


# --------------------------------- wrapper ---------------------------------------
def _round_up(x, m):
    return (x + m - 1) // m * m


def oihw_to_slab(w_oihw):
    """PyTorch (Cout, Cin, 3, 3) -> (Kp, Cout) bf16 slab, K = 9*Cin padded to mult of 8."""
    co, ci, kh, kw = w_oihw.shape
    k = kh * kw * ci
    kp = _round_up(k, 8)
    w = jnp.transpose(w_oihw, (2, 3, 1, 0)).reshape(k, co)   # rows: (ky, kx, cin)
    w = jnp.pad(w, ((0, kp - k), (0, 0)))
    return w.astype(jnp.bfloat16)


@jax.jit
def unet_block_forward(x_nchw, params):
    """Equivalent of UNetBlock.forward: (N, Cin, H, W) -> (N, Cout, H, W)."""
    N, Cin, H, W = x_nchw.shape
    w1, w2 = params["w1"], params["w2"]
    Cout = w1.shape[-1]

    # Layout plumbing only: channels-last so Cin/Cout sit on the lane axis.
    x_nhwc = jnp.transpose(x_nchw, (0, 2, 3, 1))

    vmem_spec = pl.BlockSpec(memory_space=pltpu.MemorySpace.VMEM)
    out = pl.pallas_call(
        unet_block_kernel,
        out_shape=jax.ShapeDtypeStruct((N, Cout, H * W), jnp.float32),
        in_specs=[vmem_spec] * 7,
        out_specs=vmem_spec,
        scratch_shapes=[
            pltpu.VMEM((N, H, W, w1.shape[0]), jnp.float32),  # im2col patches, stage 1
            pltpu.VMEM((N, H, W, w2.shape[0]), jnp.float32),  # im2col patches, stage 2
        ],
        compiler_params=pltpu.CompilerParams(
            # Whole fused block is VMEM-resident; stays well inside the 64 MiB of
            # v7x (128 MiB on v5e/v6e).
            vmem_limit_bytes=32 * 1024 * 1024,
        ),
    )(x_nhwc, w1, w2, params["g1"], params["be1"], params["g2"], params["be2"])

    return out.reshape(N, Cout, H, W)  # free reshape; no output transpose needed


# ---------------------- pure-JAX references for verification ----------------------
def _ref_stage(x_nhwc, w_oihw, bias, gamma, beta, bf16_matmul):
    w_hwio = jnp.transpose(w_oihw, (2, 3, 1, 0))
    if bf16_matmul:
        y = jax.lax.conv_general_dilated(
            x_nhwc.astype(jnp.bfloat16), w_hwio.astype(jnp.bfloat16),
            window_strides=(1, 1), padding="SAME",
            dimension_numbers=("NHWC", "HWIO", "NHWC"),
            preferred_element_type=jnp.float32)
    else:
        y = jax.lax.conv_general_dilated(
            x_nhwc, w_hwio, window_strides=(1, 1), padding="SAME",
            dimension_numbers=("NHWC", "HWIO", "NHWC"))
    y = y + bias.reshape(1, 1, 1, -1)
    mean = jnp.mean(y, axis=(0, 1, 2), keepdims=True)
    var = jnp.mean((y - mean) ** 2, axis=(0, 1, 2), keepdims=True)
    y = (y - mean) * jax.lax.rsqrt(var + EPS)
    y = y * gamma.reshape(1, 1, 1, -1) + beta.reshape(1, 1, 1, -1)
    return jnp.maximum(y, 0.0)


def unet_block_reference(x_nchw, raw, bf16_matmul=False):
    x = jnp.transpose(x_nchw, (0, 2, 3, 1))
    x = _ref_stage(x, raw["w1_oihw"], raw["b1"], raw["g1"], raw["be1"], bf16_matmul)
    x = _ref_stage(x, raw["w2_oihw"], raw["b2"], raw["g2"], raw["be2"], bf16_matmul)
    return jnp.transpose(x, (0, 3, 1, 2))


# ------------------------------------ main ----------------------------------------
if __name__ == "__main__":
    N, Cin, Cout, H, W = 2, 4, 8, 16, 16

    key = jax.random.PRNGKey(0)
    kx_, k1, k2, k3, k4 = jax.random.split(key, 5)

    # Deterministic synthetic parameters (shapes from nn.Conv2d / nn.BatchNorm2d).
    x = jax.random.normal(kx_, (N, Cin, H, W), jnp.float32)
    w1_oihw = 0.1 * jax.random.normal(k1, (Cout, Cin, 3, 3), jnp.float32)
    b1 = 0.1 * jax.random.normal(k2, (Cout,), jnp.float32)
    w2_oihw = 0.1 * jax.random.normal(k3, (Cout, Cout, 3, 3), jnp.float32)
    b2 = 0.1 * jax.random.normal(k4, (Cout,), jnp.float32)
    g1 = jnp.ones((Cout,), jnp.float32)    # BatchNorm2d default init
    be1 = jnp.zeros((Cout,), jnp.float32)
    g2 = jnp.ones((Cout,), jnp.float32)
    be2 = jnp.zeros((Cout,), jnp.float32)

    params = dict(
        w1=oihw_to_slab(w1_oihw), w2=oihw_to_slab(w2_oihw),
        g1=g1.reshape(1, Cout), be1=be1.reshape(1, Cout),
        g2=g2.reshape(1, Cout), be2=be2.reshape(1, Cout),
    )
    raw = dict(w1_oihw=w1_oihw, b1=b1, g1=g1, be1=be1,
               w2_oihw=w2_oihw, b2=b2, g2=g2, be2=be2)

    out = jax.block_until_ready(unet_block_forward(x, params))
    assert out.shape == (N, Cout, H, W)

    # (1) Tight check vs a reference that uses the same bf16-in / f32-acc convs
    #     (isolates layout / fusion / bias-drop correctness from bf16 rounding).
    ref_bf16 = jax.block_until_ready(unet_block_reference(x, raw, bf16_matmul=True))
    err_bf16 = float(jnp.max(jnp.abs(out - ref_bf16)))
    assert jnp.allclose(out, ref_bf16, rtol=5e-3, atol=5e-3), err_bf16

    # (2) Loose check vs the full-f32 module semantics (bf16 MXU rounding only).
    ref_f32 = jax.block_until_ready(unet_block_reference(x, raw, bf16_matmul=False))
    err_f32 = float(jnp.max(jnp.abs(out - ref_f32)))
    assert jnp.allclose(out, ref_f32, rtol=5e-2, atol=5e-2), err_f32

    print("KERNEL_OK")
</pallas_src>

<mosaic_0001>
module attributes {stable_mosaic.version = 11 : i64} {
  func.func @unet_block_kernel(%arg0: memref<2x16x16x4xf32, #tpu.memory_space<vmem>>, %arg1: memref<40x8xbf16, #tpu.memory_space<vmem>>, %arg2: memref<72x8xbf16, #tpu.memory_space<vmem>>, %arg3: memref<1x8xf32, #tpu.memory_space<vmem>>, %arg4: memref<1x8xf32, #tpu.memory_space<vmem>>, %arg5: memref<1x8xf32, #tpu.memory_space<vmem>>, %arg6: memref<1x8xf32, #tpu.memory_space<vmem>>, %arg7: memref<2x8x256xf32, #tpu.memory_space<vmem>>, %arg8: memref<2x16x16x40xf32, #tpu.memory_space<vmem>>, %arg9: memref<2x16x16x72xf32, #tpu.memory_space<vmem>>) attributes {dimension_semantics = [], scalar_prefetch = 0 : i64, scratch_operands = 2 : i64, tpu.core_type = #tpu.core_type<tc>} {
    %c0 = arith.constant 0 : index
    %c0_0 = arith.constant 0 : index
    %0 = vector.load %arg3[%c0, %c0_0] : memref<1x8xf32, #tpu.memory_space<vmem>>, vector<1x8xf32>
    %c0_1 = arith.constant 0 : index
    %c0_2 = arith.constant 0 : index
    %1 = vector.load %arg4[%c0_1, %c0_2] : memref<1x8xf32, #tpu.memory_space<vmem>>, vector<1x8xf32>
    %cst = arith.constant 0.000000e+00 : f32
    %2 = vector.broadcast %cst : f32 to vector<2x16x16x40xf32>
    %c0_3 = arith.constant 0 : index
    %c0_4 = arith.constant 0 : index
    %c0_5 = arith.constant 0 : index
    %c0_6 = arith.constant 0 : index
    %3 = vector.load %arg8[%c0_3, %c0_4, %c0_5, %c0_6] : memref<2x16x16x40xf32, #tpu.memory_space<vmem>>, vector<2x16x16x40xf32>
    tpu.vector_store %arg8[%c0_3, %c0_4, %c0_5, %c0_6], %2 {strides = array<i32>} : memref<2x16x16x40xf32, #tpu.memory_space<vmem>>, vector<2x16x16x40xf32>,
    %c0_7 = arith.constant 0 : index
    %c0_8 = arith.constant 0 : index
    %c0_9 = arith.constant 0 : index
    %c0_10 = arith.constant 0 : index
    %4 = vector.load %arg0[%c0_7, %c0_8, %c0_9, %c0_10] : memref<2x16x16x4xf32, #tpu.memory_space<vmem>>, vector<2x15x15x4xf32>
    %c0_11 = arith.constant 0 : index
    %c1 = arith.constant 1 : index
    %c1_12 = arith.constant 1 : index
    %c0_13 = arith.constant 0 : index
    %5 = vector.load %arg8[%c0_11, %c1, %c1_12, %c0_13] : memref<2x16x16x40xf32, #tpu.memory_space<vmem>>, vector<2x15x15x4xf32>
    tpu.vector_store %arg8[%c0_11, %c1, %c1_12, %c0_13], %4 {strides = array<i32>} : memref<2x16x16x40xf32, #tpu.memory_space<vmem>>, vector<2x15x15x4xf32>,
    %c0_14 = arith.constant 0 : index
    %c0_15 = arith.constant 0 : index
    %c0_16 = arith.constant 0 : index
    %c0_17 = arith.constant 0 : index
    %6 = vector.load %arg0[%c0_14, %c0_15, %c0_16, %c0_17] : memref<2x16x16x4xf32, #tpu.memory_space<vmem>>, vector<2x15x16x4xf32>
    %c0_18 = arith.constant 0 : index
    %c1_19 = arith.constant 1 : index
    %c0_20 = arith.constant 0 : index
    %c4 = arith.constant 4 : index
    %7 = vector.load %arg8[%c0_18, %c1_19, %c0_20, %c4] : memref<2x16x16x40xf32, #tpu.memory_space<vmem>>, vector<2x15x16x4xf32>
    tpu.vector_store %arg8[%c0_18, %c1_19, %c0_20, %c4], %6 {strides = array<i32>} : memref<2x16x16x40xf32, #tpu.memory_space<vmem>>, vector<2x15x16x4xf32>,
    %c0_21 = arith.constant 0 : index
    %c0_22 = arith.constant 0 : index
    %c1_23 = arith.constant 1 : index
    %c0_24 = arith.constant 0 : index
    %8 = vector.load %arg0[%c0_21, %c0_22, %c1_23, %c0_24] : memref<2x16x16x4xf32, #tpu.memory_space<vmem>>, vector<2x15x15x4xf32>
    %c0_25 = arith.constant 0 : index
    %c1_26 = arith.constant 1 : index
    %c0_27 = arith.constant 0 : index
    %c8 = arith.constant 8 : index
    %9 = vector.load %arg8[%c0_25, %c1_26, %c0_27, %c8] : memref<2x16x16x40xf32, #tpu.memory_space<vmem>>, vector<2x15x15x4xf32>
    tpu.vector_store %arg8[%c0_25, %c1_26, %c0_27, %c8], %8 {strides = array<i32>} : memref<2x16x16x40xf32, #tpu.memory_space<vmem>>, vector<2x15x15x4xf32>,
    %c0_28 = arith.constant 0 : index
    %c0_29 = arith.constant 0 : index
    %c0_30 = arith.constant 0 : index
    %c0_31 = arith.constant 0 : index
    %10 = vector.load %arg0[%c0_28, %c0_29, %c0_30, %c0_31] : memref<2x16x16x4xf32, #tpu.memory_space<vmem>>, vector<2x16x15x4xf32>
    %c0_32 = arith.constant 0 : index
    %c0_33 = arith.constant 0 : index
    %c1_34 = arith.constant 1 : index
    %c12 = arith.constant 12 : index
    %11 = vector.load %arg8[%c0_32, %c0_33, %c1_34, %c12] : memref<2x16x16x40xf32, #tpu.memory_space<vmem>>, vector<2x16x15x4xf32>
    tpu.vector_store %arg8[%c0_32, %c0_33, %c1_34, %c12], %10 {strides = array<i32>} : memref<2x16x16x40xf32, #tpu.memory_space<vmem>>, vector<2x16x15x4xf32>,
    %c0_35 = arith.constant 0 : index
    %c0_36 = arith.constant 0 : index
    %c0_37 = arith.constant 0 : index
    %c0_38 = arith.constant 0 : index
    %12 = vector.load %arg0[%c0_35, %c0_36, %c0_37, %c0_38] : memref<2x16x16x4xf32, #tpu.memory_space<vmem>>, vector<2x16x16x4xf32>
    %c0_39 = arith.constant 0 : index
    %c0_40 = arith.constant 0 : index
    %c0_41 = arith.constant 0 : index
    %c16 = arith.constant 16 : index
    %13 = vector.load %arg8[%c0_39, %c0_40, %c0_41, %c16] : memref<2x16x16x40xf32, #tpu.memory_space<vmem>>, vector<2x16x16x4xf32>
    tpu.vector_store %arg8[%c0_39, %c0_40, %c0_41, %c16], %12 {strides = array<i32>} : memref<2x16x16x40xf32, #tpu.memory_space<vmem>>, vector<2x16x16x4xf32>,
    %c0_42 = arith.constant 0 : index
    %c0_43 = arith.constant 0 : index
    %c1_44 = arith.constant 1 : index
    %c0_45 = arith.constant 0 : index
    %14 = vector.load %arg0[%c0_42, %c0_43, %c1_44, %c0_45] : memref<2x16x16x4xf32, #tpu.memory_space<vmem>>, vector<2x16x15x4xf32>
    %c0_46 = arith.constant 0 : index
    %c0_47 = arith.constant 0 : index
    %c0_48 = arith.constant 0 : index
    %c20 = arith.constant 20 : index
    %15 = vector.load %arg8[%c0_46, %c0_47, %c0_48, %c20] : memref<2x16x16x40xf32, #tpu.memory_space<vmem>>, vector<2x16x15x4xf32>
    tpu.vector_store %arg8[%c0_46, %c0_47, %c0_48, %c20], %14 {strides = array<i32>} : memref<2x16x16x40xf32, #tpu.memory_space<vmem>>, vector<2x16x15x4xf32>,
    %c0_49 = arith.constant 0 : index
    %c1_50 = arith.constant 1 : index
    %c0_51 = arith.constant 0 : index
    %c0_52 = arith.constant 0 : index
    %16 = vector.load %arg0[%c0_49, %c1_50, %c0_51, %c0_52] : memref<2x16x16x4xf32, #tpu.memory_space<vmem>>, vector<2x15x15x4xf32>
    %c0_53 = arith.constant 0 : index
    %c0_54 = arith.constant 0 : index
    %c1_55 = arith.constant 1 : index
    %c24 = arith.constant 24 : index
    %17 = vector.load %arg8[%c0_53, %c0_54, %c1_55, %c24] : memref<2x16x16x40xf32, #tpu.memory_space<vmem>>, vector<2x15x15x4xf32>
    tpu.vector_store %arg8[%c0_53, %c0_54, %c1_55, %c24], %16 {strides = array<i32>} : memref<2x16x16x40xf32, #tpu.memory_space<vmem>>, vector<2x15x15x4xf32>,
    %c0_56 = arith.constant 0 : index
    %c1_57 = arith.constant 1 : index
    %c0_58 = arith.constant 0 : index
    %c0_59 = arith.constant 0 : index
    %18 = vector.load %arg0[%c0_56, %c1_57, %c0_58, %c0_59] : memref<2x16x16x4xf32, #tpu.memory_space<vmem>>, vector<2x15x16x4xf32>
    %c0_60 = arith.constant 0 : index
    %c0_61 = arith.constant 0 : index
    %c0_62 = arith.constant 0 : index
    %c28 = arith.constant 28 : index
    %19 = vector.load %arg8[%c0_60, %c0_61, %c0_62, %c28] : memref<2x16x16x40xf32, #tpu.memory_space<vmem>>, vector<2x15x16x4xf32>
    tpu.vector_store %arg8[%c0_60, %c0_61, %c0_62, %c28], %18 {strides = array<i32>} : memref<2x16x16x40xf32, #tpu.memory_space<vmem>>, vector<2x15x16x4xf32>,
    %c0_63 = arith.constant 0 : index
    %c1_64 = arith.constant 1 : index
    %c1_65 = arith.constant 1 : index
    %c0_66 = arith.constant 0 : index
    %20 = vector.load %arg0[%c0_63, %c1_64, %c1_65, %c0_66] : memref<2x16x16x4xf32, #tpu.memory_space<vmem>>, vector<2x15x15x4xf32>
    %c0_67 = arith.constant 0 : index
    %c0_68 = arith.constant 0 : index
    %c0_69 = arith.constant 0 : index
    %c32 = arith.constant 32 : index
    %21 = vector.load %arg8[%c0_67, %c0_68, %c0_69, %c32] : memref<2x16x16x40xf32, #tpu.memory_space<vmem>>, vector<2x15x15x4xf32>
    tpu.vector_store %arg8[%c0_67, %c0_68, %c0_69, %c32], %20 {strides = array<i32>} : memref<2x16x16x40xf32, #tpu.memory_space<vmem>>, vector<2x15x15x4xf32>,
    %c0_70 = arith.constant 0 : index
    %c0_71 = arith.constant 0 : index
    %c0_72 = arith.constant 0 : index
    %c0_73 = arith.constant 0 : index
    %22 = vector.load %arg8[%c0_70, %c0_71, %c0_72, %c0_73] : memref<2x16x16x40xf32, #tpu.memory_space<vmem>>, vector<2x16x16x40xf32>
    %23 = vector.shape_cast %22 : vector<2x16x16x40xf32> to vector<512x40xf32>
    %24 = arith.truncf %23 : vector<512x40xf32> to vector<512x40xbf16>
    %c0_74 = arith.constant 0 : index
    %c0_75 = arith.constant 0 : index
    %25 = vector.load %arg1[%c0_74, %c0_75] : memref<40x8xbf16, #tpu.memory_space<vmem>>, vector<40x8xbf16>
    %cst_76 = arith.constant dense<0.000000e+00> : vector<512x8xf32>
    %26 = tpu.matmul %24, %25, %cst_76 {dimension_numbers = #tpu.dot_dimension_numbers<[1], [0], [0], [1], [0, 0, 1, 1], [], []>} : vector<512x40xbf16>, vector<40x8xbf16>, vector<512x8xf32> -> vector<512x8xf32>
    %cst_77 = arith.constant dense<0.000000e+00> : vector<8xf32>
    %27 = vector.multi_reduction <add>, %26, %cst_77 [0] : vector<512x8xf32> to vector<8xf32>
    %28 = vector.shape_cast %27 : vector<8xf32> to vector<1x8xf32>
    %cst_78 = arith.constant 5.120000e+02 : f32
    %29 = vector.broadcast %cst_78 : f32 to vector<1x8xf32>
    %30 = arith.divf %28, %29 : vector<1x8xf32>
    %31 = vector.broadcast %30 : vector<1x8xf32> to vector<512x8xf32>
    %32 = arith.subf %26, %31 : vector<512x8xf32>
    %33 = arith.mulf %32, %32 : vector<512x8xf32>
    %cst_79 = arith.constant dense<0.000000e+00> : vector<8xf32>
    %34 = vector.multi_reduction <add>, %33, %cst_79 [0] : vector<512x8xf32> to vector<8xf32>
    %35 = vector.shape_cast %34 : vector<8xf32> to vector<1x8xf32>
    %cst_80 = arith.constant 5.120000e+02 : f32
    %36 = vector.broadcast %cst_80 : f32 to vector<1x8xf32>
    %37 = arith.divf %35, %36 : vector<1x8xf32>
    %cst_81 = arith.constant 9.99999974E-6 : f32
    %38 = vector.broadcast %cst_81 : f32 to vector<1x8xf32>
    %39 = arith.addf %37, %38 : vector<1x8xf32>
    %40 = math.rsqrt %39 : vector<1x8xf32>
    %41 = arith.mulf %0, %40 : vector<1x8xf32>
    %42 = arith.mulf %30, %41 : vector<1x8xf32>
    %43 = arith.subf %1, %42 : vector<1x8xf32>
    %44 = vector.broadcast %41 : vector<1x8xf32> to vector<512x8xf32>
    %45 = arith.mulf %26, %44 : vector<512x8xf32>
    %46 = vector.broadcast %43 : vector<1x8xf32> to vector<512x8xf32>
    %47 = arith.addf %45, %46 : vector<512x8xf32>
    %cst_82 = arith.constant 0.000000e+00 : f32
    %48 = vector.broadcast %cst_82 : f32 to vector<512x8xf32>
    %49 = arith.maximumf %47, %48 : vector<512x8xf32>
    %50 = vector.shape_cast %49 : vector<512x8xf32> to vector<2x16x16x8xf32>
    %c0_83 = arith.constant 0 : index
    %c0_84 = arith.constant 0 : index
    %51 = vector.load %arg5[%c0_83, %c0_84] : memref<1x8xf32, #tpu.memory_space<vmem>>, vector<1x8xf32>
    %c0_85 = arith.constant 0 : index
    %c0_86 = arith.constant 0 : index
    %52 = vector.load %arg6[%c0_85, %c0_86] : memref<1x8xf32, #tpu.memory_space<vmem>>, vector<1x8xf32>
    %cst_87 = arith.constant 0.000000e+00 : f32
    %53 = vector.broadcast %cst_87 : f32 to vector<2x16x16x72xf32>
    %c0_88 = arith.constant 0 : index
    %c0_89 = arith.constant 0 : index
    %c0_90 = arith.constant 0 : index
    %c0_91 = arith.constant 0 : index
    %54 = vector.load %arg9[%c0_88, %c0_89, %c0_90, %c0_91] : memref<2x16x16x72xf32, #tpu.memory_space<vmem>>, vector<2x16x16x72xf32>
    tpu.vector_store %arg9[%c0_88, %c0_89, %c0_90, %c0_91], %53 {strides = array<i32>} : memref<2x16x16x72xf32, #tpu.memory_space<vmem>>, vector<2x16x16x72xf32>,
    %55 = vector.extract_strided_slice %50 {offsets = [0, 0, 0, 0], sizes = [2, 15, 15, 8], strides = [1, 1, 1, 1]} : vector<2x16x16x8xf32> to vector<2x15x15x8xf32>
    %c0_92 = arith.constant 0 : index
    %c1_93 = arith.constant 1 : index
    %c1_94 = arith.constant 1 : index
    %c0_95 = arith.constant 0 : index
    %56 = vector.load %arg9[%c0_92, %c1_93, %c1_94, %c0_95] : memref<2x16x16x72xf32, #tpu.memory_space<vmem>>, vector<2x15x15x8xf32>
    tpu.vector_store %arg9[%c0_92, %c1_93, %c1_94, %c0_95], %55 {strides = array<i32>} : memref<2x16x16x72xf32, #tpu.memory_space<vmem>>, vector<2x15x15x8xf32>,
    %57 = vector.extract_strided_slice %50 {offsets = [0, 0, 0, 0], sizes = [2, 15, 16, 8], strides = [1, 1, 1, 1]} : vector<2x16x16x8xf32> to vector<2x15x16x8xf32>
    %c0_96 = arith.constant 0 : index
    %c1_97 = arith.constant 1 : index
    %c0_98 = arith.constant 0 : index
    %c8_99 = arith.constant 8 : index
    %58 = vector.load %arg9[%c0_96, %c1_97, %c0_98, %c8_99] : memref<2x16x16x72xf32, #tpu.memory_space<vmem>>, vector<2x15x16x8xf32>
    tpu.vector_store %arg9[%c0_96, %c1_97, %c0_98, %c8_99], %57 {strides = array<i32>} : memref<2x16x16x72xf32, #tpu.memory_space<vmem>>, vector<2x15x16x8xf32>,
    %59 = vector.extract_strided_slice %50 {offsets = [0, 0, 1, 0], sizes = [2, 15, 15, 8], strides = [1, 1, 1, 1]} : vector<2x16x16x8xf32> to vector<2x15x15x8xf32>
    %c0_100 = arith.constant 0 : index
    %c1_101 = arith.constant 1 : index
    %c0_102 = arith.constant 0 : index
    %c16_103 = arith.constant 16 : index
    %60 = vector.load %arg9[%c0_100, %c1_101, %c0_102, %c16_103] : memref<2x16x16x72xf32, #tpu.memory_space<vmem>>, vector<2x15x15x8xf32>
    tpu.vector_store %arg9[%c0_100, %c1_101, %c0_102, %c16_103], %59 {strides = array<i32>} : memref<2x16x16x72xf32, #tpu.memory_space<vmem>>, vector<2x15x15x8xf32>,
    %61 = vector.extract_strided_slice %50 {offsets = [0, 0, 0, 0], sizes = [2, 16, 15, 8], strides = [1, 1, 1, 1]} : vector<2x16x16x8xf32> to vector<2x16x15x8xf32>
    %c0_104 = arith.constant 0 : index
    %c0_105 = arith.constant 0 : index
    %c1_106 = arith.constant 1 : index
    %c24_107 = arith.constant 24 : index
    %62 = vector.load %arg9[%c0_104, %c0_105, %c1_106, %c24_107] : memref<2x16x16x72xf32, #tpu.memory_space<vmem>>, vector<2x16x15x8xf32>
    tpu.vector_store %arg9[%c0_104, %c0_105, %c1_106, %c24_107], %61 {strides = array<i32>} : memref<2x16x16x72xf32, #tpu.memory_space<vmem>>, vector<2x16x15x8xf32>,
    %c0_108 = arith.constant 0 : index
    %c0_109 = arith.constant 0 : index
    %c0_110 = arith.constant 0 : index
    %c32_111 = arith.constant 32 : index
    %63 = vector.load %arg9[%c0_108, %c0_109, %c0_110, %c32_111] : memref<2x16x16x72xf32, #tpu.memory_space<vmem>>, vector<2x16x16x8xf32>
    tpu.vector_store %arg9[%c0_108, %c0_109, %c0_110, %c32_111], %50 {strides = array<i32>} : memref<2x16x16x72xf32, #tpu.memory_space<vmem>>, vector<2x16x16x8xf32>,
    %64 = vector.extract_strided_slice %50 {offsets = [0, 0, 1, 0], sizes = [2, 16, 15, 8], strides = [1, 1, 1, 1]} : vector<2x16x16x8xf32> to vector<2x16x15x8xf32>
    %c0_112 = arith.constant 0 : index
    %c0_113 = arith.constant 0 : index
    %c0_114 = arith.constant 0 : index
    %c40 = arith.constant 40 : index
    %65 = vector.load %arg9[%c0_112, %c0_113, %c0_114, %c40] : memref<2x16x16x72xf32, #tpu.memory_space<vmem>>, vector<2x16x15x8xf32>
    tpu.vector_store %arg9[%c0_112, %c0_113, %c0_114, %c40], %64 {strides = array<i32>} : memref<2x16x16x72xf32, #tpu.memory_space<vmem>>, vector<2x16x15x8xf32>,
    %66 = vector.extract_strided_slice %50 {offsets = [0, 1, 0, 0], sizes = [2, 15, 15, 8], strides = [1, 1, 1, 1]} : vector<2x16x16x8xf32> to vector<2x15x15x8xf32>
    %c0_115 = arith.constant 0 : index
    %c0_116 = arith.constant 0 : index
    %c1_117 = arith.constant 1 : index
    %c48 = arith.constant 48 : index
    %67 = vector.load %arg9[%c0_115, %c0_116, %c1_117, %c48] : memref<2x16x16x72xf32, #tpu.memory_space<vmem>>, vector<2x15x15x8xf32>
    tpu.vector_store %arg9[%c0_115, %c0_116, %c1_117, %c48], %66 {strides = array<i32>} : memref<2x16x16x72xf32, #tpu.memory_space<vmem>>, vector<2x15x15x8xf32>,
    %68 = vector.extract_strided_slice %50 {offsets = [0, 1, 0, 0], sizes = [2, 15, 16, 8], strides = [1, 1, 1, 1]} : vector<2x16x16x8xf32> to vector<2x15x16x8xf32>
    %c0_118 = arith.constant 0 : index
    %c0_119 = arith.constant 0 : index
    %c0_120 = arith.constant 0 : index
    %c56 = arith.constant 56 : index
    %69 = vector.load %arg9[%c0_118, %c0_119, %c0_120, %c56] : memref<2x16x16x72xf32, #tpu.memory_space<vmem>>, vector<2x15x16x8xf32>
    tpu.vector_store %arg9[%c0_118, %c0_119, %c0_120, %c56], %68 {strides = array<i32>} : memref<2x16x16x72xf32, #tpu.memory_space<vmem>>, vector<2x15x16x8xf32>,
    %70 = vector.extract_strided_slice %50 {offsets = [0, 1, 1, 0], sizes = [2, 15, 15, 8], strides = [1, 1, 1, 1]} : vector<2x16x16x8xf32> to vector<2x15x15x8xf32>
    %c0_121 = arith.constant 0 : index
    %c0_122 = arith.constant 0 : index
    %c0_123 = arith.constant 0 : index
    %c64 = arith.constant 64 : index
    %71 = vector.load %arg9[%c0_121, %c0_122, %c0_123, %c64] : memref<2x16x16x72xf32, #tpu.memory_space<vmem>>, vector<2x15x15x8xf32>
    tpu.vector_store %arg9[%c0_121, %c0_122, %c0_123, %c64], %70 {strides = array<i32>} : memref<2x16x16x72xf32, #tpu.memory_space<vmem>>, vector<2x15x15x8xf32>,
    %c0_124 = arith.constant 0 : index
    %c0_125 = arith.constant 0 : index
    %c0_126 = arith.constant 0 : index
    %c0_127 = arith.constant 0 : index
    %72 = vector.load %arg9[%c0_124, %c0_125, %c0_126, %c0_127] : memref<2x16x16x72xf32, #tpu.memory_space<vmem>>, vector<2x16x16x72xf32>
    %73 = vector.shape_cast %72 : vector<2x16x16x72xf32> to vector<512x72xf32>
    %74 = arith.truncf %73 : vector<512x72xf32> to vector<512x72xbf16>
    %c0_128 = arith.constant 0 : index
    %c0_129 = arith.constant 0 : index
    %75 = vector.load %arg2[%c0_128, %c0_129] : memref<72x8xbf16, #tpu.memory_space<vmem>>, vector<72x8xbf16>
    %cst_130 = arith.constant dense<0.000000e+00> : vector<512x8xf32>
    %76 = tpu.matmul %74, %75, %cst_130 {dimension_numbers = #tpu.dot_dimension_numbers<[1], [0], [0], [1], [0, 0, 1, 1], [], []>} : vector<512x72xbf16>, vector<72x8xbf16>, vector<512x8xf32> -> vector<512x8xf32>
    %cst_131 = arith.constant dense<0.000000e+00> : vector<8xf32>
    %77 = vector.multi_reduction <add>, %76, %cst_131 [0] : vector<512x8xf32> to vector<8xf32>
    %78 = vector.shape_cast %77 : vector<8xf32> to vector<1x8xf32>
    %cst_132 = arith.constant 5.120000e+02 : f32
    %79 = vector.broadcast %cst_132 : f32 to vector<1x8xf32>
    %80 = arith.divf %78, %79 : vector<1x8xf32>
    %81 = vector.broadcast %80 : vector<1x8xf32> to vector<512x8xf32>
    %82 = arith.subf %76, %81 : vector<512x8xf32>
    %83 = arith.mulf %82, %82 : vector<512x8xf32>
    %cst_133 = arith.constant dense<0.000000e+00> : vector<8xf32>
    %84 = vector.multi_reduction <add>, %83, %cst_133 [0] : vector<512x8xf32> to vector<8xf32>
    %85 = vector.shape_cast %84 : vector<8xf32> to vector<1x8xf32>
    %cst_134 = arith.constant 5.120000e+02 : f32
    %86 = vector.broadcast %cst_134 : f32 to vector<1x8xf32>
    %87 = arith.divf %85, %86 : vector<1x8xf32>
    %cst_135 = arith.constant 9.99999974E-6 : f32
    %88 = vector.broadcast %cst_135 : f32 to vector<1x8xf32>
    %89 = arith.addf %87, %88 : vector<1x8xf32>
    %90 = math.rsqrt %89 : vector<1x8xf32>
    %91 = arith.mulf %51, %90 : vector<1x8xf32>
    %92 = arith.mulf %80, %91 : vector<1x8xf32>
    %93 = arith.subf %52, %92 : vector<1x8xf32>
    %94 = vector.broadcast %91 : vector<1x8xf32> to vector<512x8xf32>
    %95 = arith.mulf %76, %94 : vector<512x8xf32>
    %96 = vector.broadcast %93 : vector<1x8xf32> to vector<512x8xf32>
    %97 = arith.addf %95, %96 : vector<512x8xf32>
    %cst_136 = arith.constant 0.000000e+00 : f32
    %98 = vector.broadcast %cst_136 : f32 to vector<512x8xf32>
    %99 = arith.maximumf %97, %98 : vector<512x8xf32>
    %100 = vector.extract_strided_slice %99 {offsets = [0, 0], sizes = [256, 8], strides = [1, 1]} : vector<512x8xf32> to vector<256x8xf32>
    %101 = tpu.transpose %100, [1, 0] : vector<256x8xf32> -> vector<8x256xf32>
    %c0_137 = arith.constant 0 : index
    %c0_138 = arith.constant 0 : index
    %c0_139 = arith.constant 0 : index
    %102 = vector.load %arg7[%c0_137, %c0_138, %c0_139] : memref<2x8x256xf32, #tpu.memory_space<vmem>>, vector<1x8x256xf32>
    %103 = vector.shape_cast %102 : vector<1x8x256xf32> to vector<8x256xf32>
    %104 = vector.shape_cast %101 : vector<8x256xf32> to vector<1x8x256xf32>
    tpu.vector_store %arg7[%c0_137, %c0_138, %c0_139], %104 {strides = array<i32>} : memref<2x8x256xf32, #tpu.memory_space<vmem>>, vector<1x8x256xf32>,
    %105 = vector.extract_strided_slice %99 {offsets = [256, 0], sizes = [256, 8], strides = [1, 1]} : vector<512x8xf32> to vector<256x8xf32>
    %106 = tpu.transpose %105, [1, 0] : vector<256x8xf32> -> vector<8x256xf32>
    %c1_140 = arith.constant 1 : index
    %c0_141 = arith.constant 0 : index
    %c0_142 = arith.constant 0 : index
    %107 = vector.load %arg7[%c1_140, %c0_141, %c0_142] : memref<2x8x256xf32, #tpu.memory_space<vmem>>, vector<1x8x256xf32>
    %108 = vector.shape_cast %107 : vector<1x8x256xf32> to vector<8x256xf32>
    %109 = vector.shape_cast %106 : vector<8x256xf32> to vector<1x8x256xf32>
    tpu.vector_store %arg7[%c1_140, %c0_141, %c0_142], %109 {strides = array<i32>} : memref<2x8x256xf32, #tpu.memory_space<vmem>>, vector<1x8x256xf32>,
    return
  }
}

</mosaic_0001>

<llo_original>
// kernel: unet_block_forward.1
$region0: #{unet_block_forward.1}
  #allocation0 [shape = 'u32[]', space=smem, size = 0x4, offset = 0x4, fixed_abs, tag = 'smem constant byte address 0x4 - core index']
  #allocation1 [shape = 'u32[144,128]{1,0:T(1,128)}', space=vmem, size = 0x12000, scoped, tag = 'internal scratch']
  #allocation2 [shape = 'f32[2,16,16,40]{3,2,1,0:T(8,128)}', space=vmem, size = 0x40000, scoped, tag = 'scratch operand']
  #allocation3 [shape = 'f32[2,16,16,72]{3,2,1,0:T(8,128)}', space=vmem, size = 0x40000, scoped, tag = 'scratch operand']
  %s0 = inlined_call_operand.vmem [shape: f32[2,16,16,4], index: 0, kind: input, shape index: {}]
  %s1 = inlined_call_operand.vmem [shape: bf16[40,8], index: 1, kind: input, shape index: {}]
  %s2 = inlined_call_operand.vmem [shape: bf16[72,8], index: 2, kind: input, shape index: {}]
  %s3 = inlined_call_operand.vmem [shape: f32[1,8], index: 3, kind: input, shape index: {}]
  %s4 = inlined_call_operand.vmem [shape: f32[1,8], index: 4, kind: input, shape index: {}]
  %s5 = inlined_call_operand.vmem [shape: f32[1,8], index: 5, kind: input, shape index: {}]
  %s6 = inlined_call_operand.vmem [shape: f32[1,8], index: 6, kind: input, shape index: {}]
  %s7 = inlined_call_operand.vmem [shape: f32[2,8,256], index: 7, kind: output, shape index: {}]
  %s8 = sld [smem:[#allocation0]]
  $region38: #{unet_block_forward.1} parent=0
    _
  %s10 = ssub.s32 1, %s8
  %s11 = scalar_select 0, %s10, %s8
  // Predicated region
  $region2: #{unet_block_forward.1} parent=0 // pred_check
    _
  $region3: #{unet_block_forward.1} parent=0 // pred_check_branch
    %13 = sbr.rel (0) target = $region5
  $region4: #{unet_block_forward.1} parent=0 // pred_region
    _
  $region5: #{unet_block_forward.1} parent=0 // pred_fallthru
    _
  // Predicated region
  $region6: #{unet_block_forward.1} parent=0 // pred_check
    _
  $region7: #{unet_block_forward.1} parent=0 // pred_check_branch
    %15 = sbr.rel (0) target = $region9
  $region8: #{unet_block_forward.1} parent=0 // pred_region
    _
  $region9: #{unet_block_forward.1} parent=0 // pred_fallthru
    _
  // Predicated region
  $region10: #{unet_block_forward.1} parent=0 // pred_check
    _
  $region11: #{unet_block_forward.1} parent=0 // pred_check_branch
    %17 = sbr.rel (0) target = $region13
  $region12: #{unet_block_forward.1} parent=0 // pred_region
    _
  $region13: #{unet_block_forward.1} parent=0 // pred_fallthru
    _
  // Predicated region
  $region14: #{unet_block_forward.1} parent=0 // pred_check
    _
  $region15: #{unet_block_forward.1} parent=0 // pred_check_branch
    %19 = sbr.rel (0) target = $region17
  $region16: #{unet_block_forward.1} parent=0 // pred_region
    _
  $region17: #{unet_block_forward.1} parent=0 // pred_fallthru
    _
  // Predicated region
  $region18: #{unet_block_forward.1} parent=0 // pred_check
    _
  $region19: #{unet_block_forward.1} parent=0 // pred_check_branch
    %21 = sbr.rel (0) target = $region21
  $region20: #{unet_block_forward.1} parent=0 // pred_region
    _
  $region21: #{unet_block_forward.1} parent=0 // pred_fallthru
    _
  // Predicated region
  $region22: #{unet_block_forward.1} parent=0 // pred_check
    _
  $region23: #{unet_block_forward.1} parent=0 // pred_check_branch
    %23 = sbr.rel (0) target = $region25
  $region24: #{unet_block_forward.1} parent=0 // pred_region
    _
  $region25: #{unet_block_forward.1} parent=0 // pred_fallthru
    _
  // Predicated region
  $region26: #{unet_block_forward.1} parent=0 // pred_check
    _
  $region27: #{unet_block_forward.1} parent=0 // pred_check_branch
    %25 = sbr.rel (0) target = $region29
  $region28: #{unet_block_forward.1} parent=0 // pred_region
    _
  $region29: #{unet_block_forward.1} parent=0 // pred_fallthru
    _
  %v27 = vld [vmem:[%s3] sm:$0x1]
  %v28 = vld [vmem:[%s4] sm:$0x1]
  %vm29 = vcmask 326656
  %30 = vst.msk [vmem:[#allocation2] sm:$0xff] %vm29, 0.0
  %31 = vst.msk [vmem:[#allocation2 + $0x8] sm:$0xff] %vm29, 0.0
  %32 = vst.msk [vmem:[#allocation2 + $0x10] sm:$0xff] %vm29, 0.0
  %33 = vst.msk [vmem:[#allocation2 + $0x18] sm:$0xff] %vm29, 0.0
  %34 = vst.msk [vmem:[#allocation2 + $0x20] sm:$0xff] %vm29, 0.0
  %35 = vst.msk [vmem:[#allocation2 + $0x28] sm:$0xff] %vm29, 0.0
  %36 = vst.msk [vmem:[#allocation2 + $0x30] sm:$0xff] %vm29, 0.0
  %37 = vst.msk [vmem:[#allocation2 + $0x38] sm:$0xff] %vm29, 0.0
  %38 = vst.msk [vmem:[#allocation2 + $0x40] sm:$0xff] %vm29, 0.0
  %39 = vst.msk [vmem:[#allocation2 + $0x48] sm:$0xff] %vm29, 0.0
  %40 = vst.msk [vmem:[#allocation2 + $0x50] sm:$0xff] %vm29, 0.0
  %41 = vst.msk [vmem:[#allocation2 + $0x58] sm:$0xff] %vm29, 0.0
  %42 = vst.msk [vmem:[#allocation2 + $0x60] sm:$0xff] %vm29, 0.0
  %43 = vst.msk [vmem:[#allocation2 + $0x68] sm:$0xff] %vm29, 0.0
  %44 = vst.msk [vmem:[#allocation2 + $0x70] sm:$0xff] %vm29, 0.0
  %45 = vst.msk [vmem:[#allocation2 + $0x78] sm:$0xff] %vm29, 0.0
  %46 = vst.msk [vmem:[#allocation2 + $0x80] sm:$0xff] %vm29, 0.0
  %47 = vst.msk [vmem:[#allocation2 + $0x88] sm:$0xff] %vm29, 0.0
  %48 = vst.msk [vmem:[#allocation2 + $0x90] sm:$0xff] %vm29, 0.0
  %49 = vst.msk [vmem:[#allocation2 + $0x98] sm:$0xff] %vm29, 0.0
  %50 = vst.msk [vmem:[#allocation2 + $0xa0] sm:$0xff] %vm29, 0.0
  %51 = vst.msk [vmem:[#allocation2 + $0xa8] sm:$0xff] %vm29, 0.0
  %52 = vst.msk [vmem:[#allocation2 + $0xb0] sm:$0xff] %vm29, 0.0
  %53 = vst.msk [vmem:[#allocation2 + $0xb8] sm:$0xff] %vm29, 0.0
  %54 = vst.msk [vmem:[#allocation2 + $0xc0] sm:$0xff] %vm29, 0.0
  %55 = vst.msk [vmem:[#allocation2 + $0xc8] sm:$0xff] %vm29, 0.0
  %56 = vst.msk [vmem:[#allocation2 + $0xd0] sm:$0xff] %vm29, 0.0
  %57 = vst.msk [vmem:[#allocation2 + $0xd8] sm:$0xff] %vm29, 0.0
  %58 = vst.msk [vmem:[#allocation2 + $0xe0] sm:$0xff] %vm29, 0.0
  %59 = vst.msk [vmem:[#allocation2 + $0xe8] sm:$0xff] %vm29, 0.0
  %60 = vst.msk [vmem:[#allocation2 + $0xf0] sm:$0xff] %vm29, 0.0
  %61 = vst.msk [vmem:[#allocation2 + $0xf8] sm:$0xff] %vm29, 0.0
  %62 = vst.msk [vmem:[#allocation2 + $0x100] sm:$0xff] %vm29, 0.0
  %63 = vst.msk [vmem:[#allocation2 + $0x108] sm:$0xff] %vm29, 0.0
  %64 = vst.msk [vmem:[#allocation2 + $0x110] sm:$0xff] %vm29, 0.0
  %65 = vst.msk [vmem:[#allocation2 + $0x118] sm:$0xff] %vm29, 0.0
  %66 = vst.msk [vmem:[#allocation2 + $0x120] sm:$0xff] %vm29, 0.0
  %67 = vst.msk [vmem:[#allocation2 + $0x128] sm:$0xff] %vm29, 0.0
  %68 = vst.msk [vmem:[#allocation2 + $0x130] sm:$0xff] %vm29, 0.0
  %69 = vst.msk [vmem:[#allocation2 + $0x138] sm:$0xff] %vm29, 0.0
  %70 = vst.msk [vmem:[#allocation2 + $0x140] sm:$0xff] %vm29, 0.0
  %71 = vst.msk [vmem:[#allocation2 + $0x148] sm:$0xff] %vm29, 0.0
  %72 = vst.msk [vmem:[#allocation2 + $0x150] sm:$0xff] %vm29, 0.0
  %73 = vst.msk [vmem:[#allocation2 + $0x158] sm:$0xff] %vm29, 0.0
  %74 = vst.msk [vmem:[#allocation2 + $0x160] sm:$0xff] %vm29, 0.0
  %75 = vst.msk [vmem:[#allocation2 + $0x168] sm:$0xff] %vm29, 0.0
  %76 = vst.msk [vmem:[#allocation2 + $0x170] sm:$0xff] %vm29, 0.0
  %77 = vst.msk [vmem:[#allocation2 + $0x178] sm:$0xff] %vm29, 0.0
  %78 = vst.msk [vmem:[#allocation2 + $0x180] sm:$0xff] %vm29, 0.0
  %79 = vst.msk [vmem:[#allocation2 + $0x188] sm:$0xff] %vm29, 0.0
  %80 = vst.msk [vmem:[#allocation2 + $0x190] sm:$0xff] %vm29, 0.0
  %81 = vst.msk [vmem:[#allocation2 + $0x198] sm:$0xff] %vm29, 0.0
  %82 = vst.msk [vmem:[#allocation2 + $0x1a0] sm:$0xff] %vm29, 0.0
  %83 = vst.msk [vmem:[#allocation2 + $0x1a8] sm:$0xff] %vm29, 0.0
  %84 = vst.msk [vmem:[#allocation2 + $0x1b0] sm:$0xff] %vm29, 0.0
  %85 = vst.msk [vmem:[#allocation2 + $0x1b8] sm:$0xff] %vm29, 0.0
  %86 = vst.msk [vmem:[#allocation2 + $0x1c0] sm:$0xff] %vm29, 0.0
  %87 = vst.msk [vmem:[#allocation2 + $0x1c8] sm:$0xff] %vm29, 0.0
  %88 = vst.msk [vmem:[#allocation2 + $0x1d0] sm:$0xff] %vm29, 0.0
  %89 = vst.msk [vmem:[#allocation2 + $0x1d8] sm:$0xff] %vm29, 0.0
  %90 = vst.msk [vmem:[#allocation2 + $0x1e0] sm:$0xff] %vm29, 0.0
  %91 = vst.msk [vmem:[#allocation2 + $0x1e8] sm:$0xff] %vm29, 0.0
  %92 = vst.msk [vmem:[#allocation2 + $0x1f0] sm:$0xff] %vm29, 0.0
  %93 = vst.msk [vmem:[#allocation2 + $0x1f8] sm:$0xff] %vm29, 0.0
  %v94 = vld [vmem:[%s0] sm:$0xff]
  %v95 = vld [vmem:[%s0 + $0x8] sm:$0x7f]
  %v96 = vld [vmem:[%s0 + $0x10] sm:$0xff]
  %v97 = vld [vmem:[%s0 + $0x18] sm:$0x7f]
  %v98 = vld [vmem:[%s0 + $0x20] sm:$0xff]
  %v99 = vld [vmem:[%s0 + $0x28] sm:$0x7f]
  %v100 = vld [vmem:[%s0 + $0x30] sm:$0xff]
  %v101 = vld [vmem:[%s0 + $0x38] sm:$0x7f]
  %v102 = vld [vmem:[%s0 + $0x40] sm:$0xff]
  %v103 = vld [vmem:[%s0 + $0x48] sm:$0x7f]
  %v104 = vld [vmem:[%s0 + $0x50] sm:$0xff]
  %v105 = vld [vmem:[%s0 + $0x58] sm:$0x7f]
  %v106 = vld [vmem:[%s0 + $0x60] sm:$0xff]
  %v107 = vld [vmem:[%s0 + $0x68] sm:$0x7f]
  %v108 = vld [vmem:[%s0 + $0x70] sm:$0xff]
  %v109 = vld [vmem:[%s0 + $0x78] sm:$0x7f]
  %v110 = vld [vmem:[%s0 + $0x80] sm:$0xff]
  %v111 = vld [vmem:[%s0 + $0x88] sm:$0x7f]
  %v112 = vld [vmem:[%s0 + $0x90] sm:$0xff]
  %v113 = vld [vmem:[%s0 + $0x98] sm:$0x7f]
  %v114 = vld [vmem:[%s0 + $0xa0] sm:$0xff]
  %v115 = vld [vmem:[%s0 + $0xa8] sm:$0x7f]
  %v116 = vld [vmem:[%s0 + $0xb0] sm:$0xff]
  %v117 = vld [vmem:[%s0 + $0xb8] sm:$0x7f]
  %v118 = vld [vmem:[%s0 + $0xc0] sm:$0xff]
  %v119 = vld [vmem:[%s0 + $0xc8] sm:$0x7f]
  %v120 = vld [vmem:[%s0 + $0xd0] sm:$0xff]
  %v121 = vld [vmem:[%s0 + $0xd8] sm:$0x7f]
  %v122 = vld [vmem:[%s0 + $0xe0] sm:$0xff]
  %v123 = vld [vmem:[%s0 + $0xe8] sm:$0x7f]
  %v124 = vld [vmem:[%s0 + $0x100] sm:$0xff]
  %v125 = vld [vmem:[%s0 + $0x108] sm:$0x7f]
  %v126 = vld [vmem:[%s0 + $0x110] sm:$0xff]
  %v127 = vld [vmem:[%s0 + $0x118] sm:$0x7f]
  %v128 = vld [vmem:[%s0 + $0x120] sm:$0xff]
  %v129 = vld [vmem:[%s0 + $0x128] sm:$0x7f]
  %v130 = vld [vmem:[%s0 + $0x130] sm:$0xff]
  %v131 = vld [vmem:[%s0 + $0x138] sm:$0x7f]
  %v132 = vld [vmem:[%s0 + $0x140] sm:$0xff]
  %v133 = vld [vmem:[%s0 + $0x148] sm:$0x7f]
  %v134 = vld [vmem:[%s0 + $0x150] sm:$0xff]
  %v135 = vld [vmem:[%s0 + $0x158] sm:$0x7f]
  %v136 = vld [vmem:[%s0 + $0x160] sm:$0xff]
  %v137 = vld [vmem:[%s0 + $0x168] sm:$0x7f]
  %v138 = vld [vmem:[%s0 + $0x170] sm:$0xff]
  %v139 = vld [vmem:[%s0 + $0x178] sm:$0x7f]
  %v140 = vld [vmem:[%s0 + $0x180] sm:$0xff]
  %v141 = vld [vmem:[%s0 + $0x188] sm:$0x7f]
  %v142 = vld [vmem:[%s0 + $0x190] sm:$0xff]
  %v143 = vld [vmem:[%s0 + $0x198] sm:$0x7f]
  %v144 = vld [vmem:[%s0 + $0x1a0] sm:$0xff]
  %v145 = vld [vmem:[%s0 + $0x1a8] sm:$0x7f]
  %v146 = vld [vmem:[%s0 + $0x1b0] sm:$0xff]
  %v147 = vld [vmem:[%s0 + $0x1b8] sm:$0x7f]
  %v148 = vld [vmem:[%s0 + $0x1c0] sm:$0xff]
  %v149 = vld [vmem:[%s0 + $0x1c8] sm:$0x7f]
  %v150 = vld [vmem:[%s0 + $0x1d0] sm:$0xff]
  %v151 = vld [vmem:[%s0 + $0x1d8] sm:$0x7f]
  %v152 = vld [vmem:[%s0 + $0x1e0] sm:$0xff]
  %v153 = vld [vmem:[%s0 + $0x1e8] sm:$0x7f]
  %s154 = scalar_lea.vmem [#allocation2], 16
  %vm155 = vcmask 31744
  %156 = vst.msk [vmem:[%s154 + $0x1] sm:$0xff] %vm155, %v94
  %vm157 = vcmask 30720
  %158 = vst.msk [vmem:[%s154 + $0x9] sm:$0x7f] %vm157, %v95
  %159 = vst.msk [vmem:[%s154 + $0x11] sm:$0xff] %vm155, %v96
  %160 = vst.msk [vmem:[%s154 + $0x19] sm:$0x7f] %vm157, %v97
  %161 = vst.msk [vmem:[%s154 + $0x21] sm:$0xff] %vm155, %v98
  %162 = vst.msk [vmem:[%s154 + $0x29] sm:$0x7f] %vm157, %v99
  %163 = vst.msk [vmem:[%s154 + $0x31] sm:$0xff] %vm155, %v100
  %164 = vst.msk [vmem:[%s154 + $0x39] sm:$0x7f] %vm157, %v101
  %165 = vst.msk [vmem:[%s154 + $0x41] sm:$0xff] %vm155, %v102
  %166 = vst.msk [vmem:[%s154 + $0x49] sm:$0x7f] %vm157, %v103
  %167 = vst.msk [vmem:[%s154 + $0x51] sm:$0xff] %vm155, %v104
  %168 = vst.msk [vmem:[%s154 + $0x59] sm:$0x7f] %vm157, %v105
  %169 = vst.msk [vmem:[%s154 + $0x61] sm:$0xff] %vm155, %v106
  %170 = vst.msk [vmem:[%s154 + $0x69] sm:$0x7f] %vm157, %v107
  %171 = vst.msk [vmem:[%s154 + $0x71] sm:$0xff] %vm155, %v108
  %172 = vst.msk [vmem:[%s154 + $0x79] sm:$0x7f] %vm157, %v109
  %173 = vst.msk [vmem:[%s154 + $0x81] sm:$0xff] %vm155, %v110
  %174 = vst.msk [vmem:[%s154 + $0x89] sm:$0x7f] %vm157, %v111
  %175 = vst.msk [vmem:[%s154 + $0x91] sm:$0xff] %vm155, %v112
  %176 = vst.msk [vmem:[%s154 + $0x99] sm:$0x7f] %vm157, %v113
  %177 = vst.msk [vmem:[%s154 + $0xa1] sm:$0xff] %vm155, %v114
  %178 = vst.msk [vmem:[%s154 + $0xa9] sm:$0x7f] %vm157, %v115
  %179 = vst.msk [vmem:[%s154 + $0xb1] sm:$0xff] %vm155, %v116
  %180 = vst.msk [vmem:[%s154 + $0xb9] sm:$0x7f] %vm157, %v117
  %181 = vst.msk [vmem:[%s154 + $0xc1] sm:$0xff] %vm155, %v118
  %182 = vst.msk [vmem:[%s154 + $0xc9] sm:$0x7f] %vm157, %v119
  %183 = vst.msk [vmem:[%s154 + $0xd1] sm:$0xff] %vm155, %v120
  %184 = vst.msk [vmem:[%s154 + $0xd9] sm:$0x7f] %vm157, %v121
  %185 = vst.msk [vmem:[%s154 + $0xe1] sm:$0xff] %vm155, %v122
  %186 = vst.msk [vmem:[%s154 + $0xe9] sm:$0x7f] %vm157, %v123
  %187 = vst.msk [vmem:[%s154 + $0x101] sm:$0xff] %vm155, %v124
  %188 = vst.msk [vmem:[%s154 + $0x109] sm:$0x7f] %vm157, %v125
  %189 = vst.msk [vmem:[%s154 + $0x111] sm:$0xff] %vm155, %v126
  %190 = vst.msk [vmem:[%s154 + $0x119] sm:$0x7f] %vm157, %v127
  %191 = vst.msk [vmem:[%s154 + $0x121] sm:$0xff] %vm155, %v128
  %192 = vst.msk [vmem:[%s154 + $0x129] sm:$0x7f] %vm157, %v129
  %193 = vst.msk [vmem:[%s154 + $0x131] sm:$0xff] %vm155, %v130
  %194 = vst.msk [vmem:[%s154 + $0x139] sm:$0x7f] %vm157, %v131
  %195 = vst.msk [vmem:[%s154 + $0x141] sm:$0xff] %vm155, %v132
  %196 = vst.msk [vmem:[%s154 + $0x149] sm:$0x7f] %vm157, %v133
  %197 = vst.msk [vmem:[%s154 + $0x151] sm:$0xff] %vm155, %v134
  %198 = vst.msk [vmem:[%s154 + $0x159] sm:$0x7f] %vm157, %v135
  %199 = vst.msk [vmem:[%s154 + $0x161] sm:$0xff] %vm155, %v136
  %200 = vst.msk [vmem:[%s154 + $0x169] sm:$0x7f] %vm157, %v137
  %201 = vst.msk [vmem:[%s154 + $0x171] sm:$0xff] %vm155, %v138
  %202 = vst.msk [vmem:[%s154 + $0x179] sm:$0x7f] %vm157, %v139
  %203 = vst.msk [vmem:[%s154 + $0x181] sm:$0xff] %vm155, %v140
  %204 = vst.msk [vmem:[%s154 + $0x189] sm:$0x7f] %vm157, %v141
  %205 = vst.msk [vmem:[%s154 + $0x191] sm:$0xff] %vm155, %v142
  %206 = vst.msk [vmem:[%s154 + $0x199] sm:$0x7f] %vm157, %v143
  %207 = vst.msk [vmem:[%s154 + $0x1a1] sm:$0xff] %vm155, %v144
  %208 = vst.msk [vmem:[%s154 + $0x1a9] sm:$0x7f] %vm157, %v145
  %209 = vst.msk [vmem:[%s154 + $0x1b1] sm:$0xff] %vm155, %v146
  %210 = vst.msk [vmem:[%s154 + $0x1b9] sm:$0x7f] %vm157, %v147
  %211 = vst.msk [vmem:[%s154 + $0x1c1] sm:$0xff] %vm155, %v148
  %212 = vst.msk [vmem:[%s154 + $0x1c9] sm:$0x7f] %vm157, %v149
  %213 = vst.msk [vmem:[%s154 + $0x1d1] sm:$0xff] %vm155, %v150
  %214 = vst.msk [vmem:[%s154 + $0x1d9] sm:$0x7f] %vm157, %v151
  %215 = vst.msk [vmem:[%s154 + $0x1e1] sm:$0xff] %vm155, %v152
  %216 = vst.msk [vmem:[%s154 + $0x1e9] sm:$0x7f] %vm157, %v153
  %v217 = vld [vmem:[%s0] sm:$0xff]
  %v218 = vld [vmem:[%s0 + $0x8] sm:$0xff]
  %v219 = vld [vmem:[%s0 + $0x10] sm:$0xff]
  %v220 = vld [vmem:[%s0 + $0x18] sm:$0xff]
  %v221 = vld [vmem:[%s0 + $0x20] sm:$0xff]
  %v222 = vld [vmem:[%s0 + $0x28] sm:$0xff]
  %v223 = vld [vmem:[%s0 + $0x30] sm:$0xff]
  %v224 = vld [vmem:[%s0 + $0x38] sm:$0xff]
  %v225 = vld [vmem:[%s0 + $0x40] sm:$0xff]
  %v226 = vld [vmem:[%s0 + $0x48] sm:$0xff]
  %v227 = vld [vmem:[%s0 + $0x50] sm:$0xff]
  %v228 = vld [vmem:[%s0 + $0x58] sm:$0xff]
  %v229 = vld [vmem:[%s0 + $0x60] sm:$0xff]
  %v230 = vld [vmem:[%s0 + $0x68] sm:$0xff]
  %v231 = vld [vmem:[%s0 + $0x70] sm:$0xff]
  %v232 = vld [vmem:[%s0 + $0x78] sm:$0xff]
  %v233 = vld [vmem:[%s0 + $0x80] sm:$0xff]
  %v234 = vld [vmem:[%s0 + $0x88] sm:$0xff]
  %v235 = vld [vmem:[%s0 + $0x90] sm:$0xff]
  %v236 = vld [vmem:[%s0 + $0x98] sm:$0xff]
  %v237 = vld [vmem:[%s0 + $0xa0] sm:$0xff]
  %v238 = vld [vmem:[%s0 + $0xa8] sm:$0xff]
  %v239 = vld [vmem:[%s0 + $0xb0] sm:$0xff]
  %v240 = vld [vmem:[%s0 + $0xb8] sm:$0xff]
  %v241 = vld [vmem:[%s0 + $0xc0] sm:$0xff]
  %v242 = vld [vmem:[%s0 + $0xc8] sm:$0xff]
  %v243 = vld [vmem:[%s0 + $0xd0] sm:$0xff]
  %v244 = vld [vmem:[%s0 + $0xd8] sm:$0xff]
  %v245 = vld [vmem:[%s0 + $0xe0] sm:$0xff]
  %v246 = vld [vmem:[%s0 + $0xe8] sm:$0xff]
  %v247 = vld [vmem:[%s0 + $0x100] sm:$0xff]
  %v248 = vld [vmem:[%s0 + $0x108] sm:$0xff]
  %v249 = vld [vmem:[%s0 + $0x110] sm:$0xff]
  %v250 = vld [vmem:[%s0 + $0x118] sm:$0xff]
  %v251 = vld [vmem:[%s0 + $0x120] sm:$0xff]
  %v252 = vld [vmem:[%s0 + $0x128] sm:$0xff]
  %v253 = vld [vmem:[%s0 + $0x130] sm:$0xff]
  %v254 = vld [vmem:[%s0 + $0x138] sm:$0xff]
  %v255 = vld [vmem:[%s0 + $0x140] sm:$0xff]
  %v256 = vld [vmem:[%s0 + $0x148] sm:$0xff]
  %v257 = vld [vmem:[%s0 + $0x150] sm:$0xff]
  %v258 = vld [vmem:[%s0 + $0x158] sm:$0xff]
  %v259 = vld [vmem:[%s0 + $0x160] sm:$0xff]
  %v260 = vld [vmem:[%s0 + $0x168] sm:$0xff]
  %v261 = vld [vmem:[%s0 + $0x170] sm:$0xff]
  %v262 = vld [vmem:[%s0 + $0x178] sm:$0xff]
  %v263 = vld [vmem:[%s0 + $0x180] sm:$0xff]
  %v264 = vld [vmem:[%s0 + $0x188] sm:$0xff]
  %v265 = vld [vmem:[%s0 + $0x190] sm:$0xff]
  %v266 = vld [vmem:[%s0 + $0x198] sm:$0xff]
  %v267 = vld [vmem:[%s0 + $0x1a0] sm:$0xff]
  %v268 = vld [vmem:[%s0 + $0x1a8] sm:$0xff]
  %v269 = vld [vmem:[%s0 + $0x1b0] sm:$0xff]
  %v270 = vld [vmem:[%s0 + $0x1b8] sm:$0xff]
  %v271 = vld [vmem:[%s0 + $0x1c0] sm:$0xff]
  %v272 = vld [vmem:[%s0 + $0x1c8] sm:$0xff]
  %v273 = vld [vmem:[%s0 + $0x1d0] sm:$0xff]
  %v274 = vld [vmem:[%s0 + $0x1d8] sm:$0xff]
  %v275 = vld [vmem:[%s0 + $0x1e0] sm:$0xff]
  %v276 = vld [vmem:[%s0 + $0x1e8] sm:$0xff]
  %337 = vrot.lane.b32.xlu0 %v217, 4
  %v338 = vpop.permute.xlu0 %337
  %339 = vrot.lane.b32.xlu0 %v218, 4
  %v340 = vpop.permute.xlu0 %339
  %341 = vrot.lane.b32.xlu0 %v219, 4
  %v342 = vpop.permute.xlu0 %341
  %343 = vrot.lane.b32.xlu0 %v220, 4
  %v344 = vpop.permute.xlu0 %343
  %345 = vrot.lane.b32.xlu0 %v221, 4
  %v346 = vpop.permute.xlu0 %345
  %347 = vrot.lane.b32.xlu0 %v222, 4
  %v348 = vpop.permute.xlu0 %347
  %349 = vrot.lane.b32.xlu0 %v223, 4
  %v350 = vpop.permute.xlu0 %349
  %351 = vrot.lane.b32.xlu0 %v224, 4
  %v352 = vpop.permute.xlu0 %351
  %353 = vrot.lane.b32.xlu0 %v225, 4
  %v354 = vpop.permute.xlu0 %353
  %355 = vrot.lane.b32.xlu0 %v226, 4
  %v356 = vpop.permute.xlu0 %355
  %357 = vrot.lane.b32.xlu0 %v227, 4
  %v358 = vpop.permute.xlu0 %357
  %359 = vrot.lane.b32.xlu0 %v228, 4
  %v360 = vpop.permute.xlu0 %359
  %361 = vrot.lane.b32.xlu0 %v229, 4
  %v362 = vpop.permute.xlu0 %361
  %363 = vrot.lane.b32.xlu0 %v230, 4
  %v364 = vpop.permute.xlu0 %363
  %365 = vrot.lane.b32.xlu0 %v231, 4
  %v366 = vpop.permute.xlu0 %365
  %367 = vrot.lane.b32.xlu0 %v232, 4
  %v368 = vpop.permute.xlu0 %367
  %369 = vrot.lane.b32.xlu0 %v233, 4
  %v370 = vpop.permute.xlu0 %369
  %371 = vrot.lane.b32.xlu0 %v234, 4
  %v372 = vpop.permute.xlu0 %371
  %373 = vrot.lane.b32.xlu0 %v235, 4
  %v374 = vpop.permute.xlu0 %373
  %375 = vrot.lane.b32.xlu0 %v236, 4
  %v376 = vpop.permute.xlu0 %375
  %377 = vrot.lane.b32.xlu0 %v237, 4
  %v378 = vpop.permute.xlu0 %377
  %379 = vrot.lane.b32.xlu0 %v238, 4
  %v380 = vpop.permute.xlu0 %379
  %381 = vrot.lane.b32.xlu0 %v239, 4
  %v382 = vpop.permute.xlu0 %381
  %383 = vrot.lane.b32.xlu0 %v240, 4
  %v384 = vpop.permute.xlu0 %383
  %385 = vrot.lane.b32.xlu0 %v241, 4
  %v386 = vpop.permute.xlu0 %385
  %387 = vrot.lane.b32.xlu0 %v242, 4
  %v388 = vpop.permute.xlu0 %387
  %389 = vrot.lane.b32.xlu0 %v243, 4
  %v390 = vpop.permute.xlu0 %389
  %391 = vrot.lane.b32.xlu0 %v244, 4
  %v392 = vpop.permute.xlu0 %391
  %393 = vrot.lane.b32.xlu0 %v245, 4
  %v394 = vpop.permute.xlu0 %393
  %395 = vrot.lane.b32.xlu0 %v246, 4
  %v396 = vpop.permute.xlu0 %395
  %397 = vrot.lane.b32.xlu0 %v247, 4
  %v398 = vpop.permute.xlu0 %397
  %399 = vrot.lane.b32.xlu0 %v248, 4
  %v400 = vpop.permute.xlu0 %399
  %401 = vrot.lane.b32.xlu0 %v249, 4
  %v402 = vpop.permute.xlu0 %401
  %403 = vrot.lane.b32.xlu0 %v250, 4
  %v404 = vpop.permute.xlu0 %403
  %405 = vrot.lane.b32.xlu0 %v251, 4
  %v406 = vpop.permute.xlu0 %405
  %407 = vrot.lane.b32.xlu0 %v252, 4
  %v408 = vpop.permute.xlu0 %407
  %409 = vrot.lane.b32.xlu0 %v253, 4
  %v410 = vpop.permute.xlu0 %409
  %411 = vrot.lane.b32.xlu0 %v254, 4
  %v412 = vpop.permute.xlu0 %411
  %413 = vrot.lane.b32.xlu0 %v255, 4
  %v414 = vpop.permute.xlu0 %413
  %415 = vrot.lane.b32.xlu0 %v256, 4
  %v416 = vpop.permute.xlu0 %415
  %417 = vrot.lane.b32.xlu0 %v257, 4
  %v418 = vpop.permute.xlu0 %417
  %419 = vrot.lane.b32.xlu0 %v258, 4
  %v420 = vpop.permute.xlu0 %419
  %421 = vrot.lane.b32.xlu0 %v259, 4
  %v422 = vpop.permute.xlu0 %421
  %423 = vrot.lane.b32.xlu0 %v260, 4
  %v424 = vpop.permute.xlu0 %423
  %425 = vrot.lane.b32.xlu0 %v261, 4
  %v426 = vpop.permute.xlu0 %425
  %427 = vrot.lane.b32.xlu0 %v262, 4
  %v428 = vpop.permute.xlu0 %427
  %429 = vrot.lane.b32.xlu0 %v263, 4
  %v430 = vpop.permute.xlu0 %429
  %431 = vrot.lane.b32.xlu0 %v264, 4
  %v432 = vpop.permute.xlu0 %431
  %433 = vrot.lane.b32.xlu0 %v265, 4
  %v434 = vpop.permute.xlu0 %433
  %435 = vrot.lane.b32.xlu0 %v266, 4
  %v436 = vpop.permute.xlu0 %435
  %437 = vrot.lane.b32.xlu0 %v267, 4
  %v438 = vpop.permute.xlu0 %437
  %439 = vrot.lane.b32.xlu0 %v268, 4
  %v440 = vpop.permute.xlu0 %439
  %441 = vrot.lane.b32.xlu0 %v269, 4
  %v442 = vpop.permute.xlu0 %441
  %443 = vrot.lane.b32.xlu0 %v270, 4
  %v444 = vpop.permute.xlu0 %443
  %445 = vrot.lane.b32.xlu0 %v271, 4
  %v446 = vpop.permute.xlu0 %445
  %447 = vrot.lane.b32.xlu0 %v272, 4
  %v448 = vpop.permute.xlu0 %447
  %449 = vrot.lane.b32.xlu0 %v273, 4
  %v450 = vpop.permute.xlu0 %449
  %451 = vrot.lane.b32.xlu0 %v274, 4
  %v452 = vpop.permute.xlu0 %451
  %453 = vrot.lane.b32.xlu0 %v275, 4
  %v454 = vpop.permute.xlu0 %453
  %455 = vrot.lane.b32.xlu0 %v276, 4
  %v456 = vpop.permute.xlu0 %455
  %vm517 = vcmask 64544
  %518 = vst.msk [vmem:[%s154] sm:$0xff] %vm517, %v338
  %519 = vst.msk [vmem:[%s154 + $0x8] sm:$0xff] %vm517, %v340
  %520 = vst.msk [vmem:[%s154 + $0x10] sm:$0xff] %vm517, %v342
  %521 = vst.msk [vmem:[%s154 + $0x18] sm:$0xff] %vm517, %v344
  %522 = vst.msk [vmem:[%s154 + $0x20] sm:$0xff] %vm517, %v346
  %523 = vst.msk [vmem:[%s154 + $0x28] sm:$0xff] %vm517, %v348
  %524 = vst.msk [vmem:[%s154 + $0x30] sm:$0xff] %vm517, %v350
  %525 = vst.msk [vmem:[%s154 + $0x38] sm:$0xff] %vm517, %v352
  %526 = vst.msk [vmem:[%s154 + $0x40] sm:$0xff] %vm517, %v354
  %527 = vst.msk [vmem:[%s154 + $0x48] sm:$0xff] %vm517, %v356
  %528 = vst.msk [vmem:[%s154 + $0x50] sm:$0xff] %vm517, %v358
  %529 = vst.msk [vmem:[%s154 + $0x58] sm:$0xff] %vm517, %v360
  %530 = vst.msk [vmem:[%s154 + $0x60] sm:$0xff] %vm517, %v362
  %531 = vst.msk [vmem:[%s154 + $0x68] sm:$0xff] %vm517, %v364
  %532 = vst.msk [vmem:[%s154 + $0x70] sm:$0xff] %vm517, %v366
  %533 = vst.msk [vmem:[%s154 + $0x78] sm:$0xff] %vm517, %v368
  %534 = vst.msk [vmem:[%s154 + $0x80] sm:$0xff] %vm517, %v370
  %535 = vst.msk [vmem:[%s154 + $0x88] sm:$0xff] %vm517, %v372
  %536 = vst.msk [vmem:[%s154 + $0x90] sm:$0xff] %vm517, %v374
  %537 = vst.msk [vmem:[%s154 + $0x98] sm:$0xff] %vm517, %v376
  %538 = vst.msk [vmem:[%s154 + $0xa0] sm:$0xff] %vm517, %v378
  %539 = vst.msk [vmem:[%s154 + $0xa8] sm:$0xff] %vm517, %v380
  %540 = vst.msk [vmem:[%s154 + $0xb0] sm:$0xff] %vm517, %v382
  %541 = vst.msk [vmem:[%s154 + $0xb8] sm:$0xff] %vm517, %v384
  %542 = vst.msk [vmem:[%s154 + $0xc0] sm:$0xff] %vm517, %v386
  %543 = vst.msk [vmem:[%s154 + $0xc8] sm:$0xff] %vm517, %v388
  %544 = vst.msk [vmem:[%s154 + $0xd0] sm:$0xff] %vm517, %v390
  %545 = vst.msk [vmem:[%s154 + $0xd8] sm:$0xff] %vm517, %v392
  %546 = vst.msk [vmem:[%s154 + $0xe0] sm:$0xff] %vm517, %v394
  %547 = vst.msk [vmem:[%s154 + $0xe8] sm:$0xff] %vm517, %v396
  %548 = vst.msk [vmem:[%s154 + $0x100] sm:$0xff] %vm517, %v398
  %549 = vst.msk [vmem:[%s154 + $0x108] sm:$0xff] %vm517, %v400
  %550 = vst.msk [vmem:[%s154 + $0x110] sm:$0xff] %vm517, %v402
  %551 = vst.msk [vmem:[%s154 + $0x118] sm:$0xff] %vm517, %v404
  %552 = vst.msk [vmem:[%s154 + $0x120] sm:$0xff] %vm517, %v406
  %553 = vst.msk [vmem:[%s154 + $0x128] sm:$0xff] %vm517, %v408
  %554 = vst.msk [vmem:[%s154 + $0x130] sm:$0xff] %vm517, %v410
  %555 = vst.msk [vmem:[%s154 + $0x138] sm:$0xff] %vm517, %v412
  %556 = vst.msk [vmem:[%s154 + $0x140] sm:$0xff] %vm517, %v414
  %557 = vst.msk [vmem:[%s154 + $0x148] sm:$0xff] %vm517, %v416
  %558 = vst.msk [vmem:[%s154 + $0x150] sm:$0xff] %vm517, %v418
  %559 = vst.msk [vmem:[%s154 + $0x158] sm:$0xff] %vm517, %v420
  %560 = vst.msk [vmem:[%s154 + $0x160] sm:$0xff] %vm517, %v422
  %561 = vst.msk [vmem:[%s154 + $0x168] sm:$0xff] %vm517, %v424
  %562 = vst.msk [vmem:[%s154 + $0x170] sm:$0xff] %vm517, %v426
  %563 = vst.msk [vmem:[%s154 + $0x178] sm:$0xff] %vm517, %v428
  %564 = vst.msk [vmem:[%s154 + $0x180] sm:$0xff] %vm517, %v430
  %565 = vst.msk [vmem:[%s154 + $0x188] sm:$0xff] %vm517, %v432
  %566 = vst.msk [vmem:[%s154 + $0x190] sm:$0xff] %vm517, %v434
  %567 = vst.msk [vmem:[%s154 + $0x198] sm:$0xff] %vm517, %v436
  %568 = vst.msk [vmem:[%s154 + $0x1a0] sm:$0xff] %vm517, %v438
  %569 = vst.msk [vmem:[%s154 + $0x1a8] sm:$0xff] %vm517, %v440
  %570 = vst.msk [vmem:[%s154 + $0x1b0] sm:$0xff] %vm517, %v442
  %571 = vst.msk [vmem:[%s154 + $0x1b8] sm:$0xff] %vm517, %v444
  %572 = vst.msk [vmem:[%s154 + $0x1c0] sm:$0xff] %vm517, %v446
  %573 = vst.msk [vmem:[%s154 + $0x1c8] sm:$0xff] %vm517, %v448
  %574 = vst.msk [vmem:[%s154 + $0x1d0] sm:$0xff] %vm517, %v450
  %575 = vst.msk [vmem:[%s154 + $0x1d8] sm:$0xff] %vm517, %v452
  %576 = vst.msk [vmem:[%s154 + $0x1e0] sm:$0xff] %vm517, %v454
  %577 = vst.msk [vmem:[%s154 + $0x1e8] sm:$0xff] %vm517, %v456
  %v578 = vld [vmem:[%s0 + $0x1] sm:$0xff]
  %v579 = vld [vmem:[%s0 + $0x9] sm:$0x7f]
  %v580 = vld [vmem:[%s0 + $0x11] sm:$0xff]
  %v581 = vld [vmem:[%s0 + $0x19] sm:$0x7f]
  %v582 = vld [vmem:[%s0 + $0x21] sm:$0xff]
  %v583 = vld [vmem:[%s0 + $0x29] sm:$0x7f]
  %v584 = vld [vmem:[%s0 + $0x31] sm:$0xff]
  %v585 = vld [vmem:[%s0 + $0x39] sm:$0x7f]
  %v586 = vld [vmem:[%s0 + $0x41] sm:$0xff]
  %v587 = vld [vmem:[%s0 + $0x49] sm:$0x7f]
  %v588 = vld [vmem:[%s0 + $0x51] sm:$0xff]
  %v589 = vld [vmem:[%s0 + $0x59] sm:$0x7f]
  %v590 = vld [vmem:[%s0 + $0x61] sm:$0xff]
  %v591 = vld [vmem:[%s0 + $0x69] sm:$0x7f]
  %v592 = vld [vmem:[%s0 + $0x71] sm:$0xff]
  %v593 = vld [vmem:[%s0 + $0x79] sm:$0x7f]
  %v594 = vld [vmem:[%s0 + $0x81] sm:$0xff]
  %v595 = vld [vmem:[%s0 + $0x89] sm:$0x7f]
  %v596 = vld [vmem:[%s0 + $0x91] sm:$0xff]
  %v597 = vld [vmem:[%s0 + $0x99] sm:$0x7f]
  %v598 = vld [vmem:[%s0 + $0xa1] sm:$0xff]
  %v599 = vld [vmem:[%s0 + $0xa9] sm:$0x7f]
  %v600 = vld [vmem:[%s0 + $0xb1] sm:$0xff]
  %v601 = vld [vmem:[%s0 + $0xb9] sm:$0x7f]
  %v602 = vld [vmem:[%s0 + $0xc1] sm:$0xff]
  %v603 = vld [vmem:[%s0 + $0xc9] sm:$0x7f]
  %v604 = vld [vmem:[%s0 + $0xd1] sm:$0xff]
  %v605 = vld [vmem:[%s0 + $0xd9] sm:$0x7f]
  %v606 = vld [vmem:[%s0 + $0xe1] sm:$0xff]
  %v607 = vld [vmem:[%s0 + $0xe9] sm:$0x7f]
  %v608 = vld [vmem:[%s0 + $0x101] sm:$0xff]
  %v609 = vld [vmem:[%s0 + $0x109] sm:$0x7f]
  %v610 = vld [vmem:[%s0 + $0x111] sm:$0xff]
  %v611 = vld [vmem:[%s0 + $0x119] sm:$0x7f]
  %v612 = vld [vmem:[%s0 + $0x121] sm:$0xff]
  %v613 = vld [vmem:[%s0 + $0x129] sm:$0x7f]
  %v614 = vld [vmem:[%s0 + $0x131] sm:$0xff]
  %v615 = vld [vmem:[%s0 + $0x139] sm:$0x7f]
  %v616 = vld [vmem:[%s0 + $0x141] sm:$0xff]
  %v617 = vld [vmem:[%s0 + $0x149] sm:$0x7f]
  %v618 = vld [vmem:[%s0 + $0x151] sm:$0xff]
  %v619 = vld [vmem:[%s0 + $0x159] sm:$0x7f]
  %v620 = vld [vmem:[%s0 + $0x161] sm:$0xff]
  %v621 = vld [vmem:[%s0 + $0x169] sm:$0x7f]
  %v622 = vld [vmem:[%s0 + $0x171] sm:$0xff]
  %v623 = vld [vmem:[%s0 + $0x179] sm:$0x7f]
  %v624 = vld [vmem:[%s0 + $0x181] sm:$0xff]
  %v625 = vld [vmem:[%s0 + $0x189] sm:$0x7f]
  %v626 = vld [vmem:[%s0 + $0x191] sm:$0xff]
  %v627 = vld [vmem:[%s0 + $0x199] sm:$0x7f]
  %v628 = vld [vmem:[%s0 + $0x1a1] sm:$0xff]
  %v629 = vld [vmem:[%s0 + $0x1a9] sm:$0x7f]
  %v630 = vld [vmem:[%s0 + $0x1b1] sm:$0xff]
  %v631 = vld [vmem:[%s0 + $0x1b9] sm:$0x7f]
  %v632 = vld [vmem:[%s0 + $0x1c1] sm:$0xff]
  %v633 = vld [vmem:[%s0 + $0x1c9] sm:$0x7f]
  %v634 = vld [vmem:[%s0 + $0x1d1] sm:$0xff]
  %v635 = vld [vmem:[%s0 + $0x1d9] sm:$0x7f]
  %v636 = vld [vmem:[%s0 + $0x1e1] sm:$0xff]
  %v637 = vld [vmem:[%s0 + $0x1e9] sm:$0x7f]
  %698 = vrot.lane.b32.xlu0 %v578, 8
  %v699 = vpop.permute.xlu0 %698
  %700 = vrot.lane.b32.xlu0 %v579, 8
  %v701 = vpop.permute.xlu0 %700
  %702 = vrot.lane.b32.xlu0 %v580, 8
  %v703 = vpop.permute.xlu0 %702
  %704 = vrot.lane.b32.xlu0 %v581, 8
  %v705 = vpop.permute.xlu0 %704
  %706 = vrot.lane.b32.xlu0 %v582, 8
  %v707 = vpop.permute.xlu0 %706
  %708 = vrot.lane.b32.xlu0 %v583, 8
  %v709 = vpop.permute.xlu0 %708
  %710 = vrot.lane.b32.xlu0 %v584, 8
  %v711 = vpop.permute.xlu0 %710
  %712 = vrot.lane.b32.xlu0 %v585, 8
  %v713 = vpop.permute.xlu0 %712
  %714 = vrot.lane.b32.xlu0 %v586, 8
  %v715 = vpop.permute.xlu0 %714
  %716 = vrot.lane.b32.xlu0 %v587, 8
  %v717 = vpop.permute.xlu0 %716
  %718 = vrot.lane.b32.xlu0 %v588, 8
  %v719 = vpop.permute.xlu0 %718
  %720 = vrot.lane.b32.xlu0 %v589, 8
  %v721 = vpop.permute.xlu0 %720
  %722 = vrot.lane.b32.xlu0 %v590, 8
  %v723 = vpop.permute.xlu0 %722
  %724 = vrot.lane.b32.xlu0 %v591, 8
  %v725 = vpop.permute.xlu0 %724
  %726 = vrot.lane.b32.xlu0 %v592, 8
  %v727 = vpop.permute.xlu0 %726
  %728 = vrot.lane.b32.xlu0 %v593, 8
  %v729 = vpop.permute.xlu0 %728
  %730 = vrot.lane.b32.xlu0 %v594, 8
  %v731 = vpop.permute.xlu0 %730
  %732 = vrot.lane.b32.xlu0 %v595, 8
  %v733 = vpop.permute.xlu0 %732
  %734 = vrot.lane.b32.xlu0 %v596, 8
  %v735 = vpop.permute.xlu0 %734
  %736 = vrot.lane.b32.xlu0 %v597, 8
  %v737 = vpop.permute.xlu0 %736
  %738 = vrot.lane.b32.xlu0 %v598, 8
  %v739 = vpop.permute.xlu0 %738
  %740 = vrot.lane.b32.xlu0 %v599, 8
  %v741 = vpop.permute.xlu0 %740
  %742 = vrot.lane.b32.xlu0 %v600, 8
  %v743 = vpop.permute.xlu0 %742
  %744 = vrot.lane.b32.xlu0 %v601, 8
  %v745 = vpop.permute.xlu0 %744
  %746 = vrot.lane.b32.xlu0 %v602, 8
  %v747 = vpop.permute.xlu0 %746
  %748 = vrot.lane.b32.xlu0 %v603, 8
  %v749 = vpop.permute.xlu0 %748
  %750 = vrot.lane.b32.xlu0 %v604, 8
  %v751 = vpop.permute.xlu0 %750
  %752 = vrot.lane.b32.xlu0 %v605, 8
  %v753 = vpop.permute.xlu0 %752
  %754 = vrot.lane.b32.xlu0 %v606, 8
  %v755 = vpop.permute.xlu0 %754
  %756 = vrot.lane.b32.xlu0 %v607, 8
  %v757 = vpop.permute.xlu0 %756
  %758 = vrot.lane.b32.xlu0 %v608, 8
  %v759 = vpop.permute.xlu0 %758
  %760 = vrot.lane.b32.xlu0 %v609, 8
  %v761 = vpop.permute.xlu0 %760
  %762 = vrot.lane.b32.xlu0 %v610, 8
  %v763 = vpop.permute.xlu0 %762
  %764 = vrot.lane.b32.xlu0 %v611, 8
  %v765 = vpop.permute.xlu0 %764
  %766 = vrot.lane.b32.xlu0 %v612, 8
  %v767 = vpop.permute.xlu0 %766
  %768 = vrot.lane.b32.xlu0 %v613, 8
  %v769 = vpop.permute.xlu0 %768
  %770 = vrot.lane.b32.xlu0 %v614, 8
  %v771 = vpop.permute.xlu0 %770
  %772 = vrot.lane.b32.xlu0 %v615, 8
  %v773 = vpop.permute.xlu0 %772
  %774 = vrot.lane.b32.xlu0 %v616, 8
  %v775 = vpop.permute.xlu0 %774
  %776 = vrot.lane.b32.xlu0 %v617, 8
  %v777 = vpop.permute.xlu0 %776
  %778 = vrot.lane.b32.xlu0 %v618, 8
  %v779 = vpop.permute.xlu0 %778
  %780 = vrot.lane.b32.xlu0 %v619, 8
  %v781 = vpop.permute.xlu0 %780
  %782 = vrot.lane.b32.xlu0 %v620, 8
  %v783 = vpop.permute.xlu0 %782
  %784 = vrot.lane.b32.xlu0 %v621, 8
  %v785 = vpop.permute.xlu0 %784
  %786 = vrot.lane.b32.xlu0 %v622, 8
  %v787 = vpop.permute.xlu0 %786
  %788 = vrot.lane.b32.xlu0 %v623, 8
  %v789 = vpop.permute.xlu0 %788
  %790 = vrot.lane.b32.xlu0 %v624, 8
  %v791 = vpop.permute.xlu0 %790
  %792 = vrot.lane.b32.xlu0 %v625, 8
  %v793 = vpop.permute.xlu0 %792
  %794 = vrot.lane.b32.xlu0 %v626, 8
  %v795 = vpop.permute.xlu0 %794
  %796 = vrot.lane.b32.xlu0 %v627, 8
  %v797 = vpop.permute.xlu0 %796
  %798 = vrot.lane.b32.xlu0 %v628, 8
  %v799 = vpop.permute.xlu0 %798
  %800 = vrot.lane.b32.xlu0 %v629, 8
  %v801 = vpop.permute.xlu0 %800
  %802 = vrot.lane.b32.xlu0 %v630, 8
  %v803 = vpop.permute.xlu0 %802
  %804 = vrot.lane.b32.xlu0 %v631, 8
  %v805 = vpop.permute.xlu0 %804
  %806 = vrot.lane.b32.xlu0 %v632, 8
  %v807 = vpop.permute.xlu0 %806
  %808 = vrot.lane.b32.xlu0 %v633, 8
  %v809 = vpop.permute.xlu0 %808
  %810 = vrot.lane.b32.xlu0 %v634, 8
  %v811 = vpop.permute.xlu0 %810
  %812 = vrot.lane.b32.xlu0 %v635, 8
  %v813 = vpop.permute.xlu0 %812
  %814 = vrot.lane.b32.xlu0 %v636, 8
  %v815 = vpop.permute.xlu0 %814
  %816 = vrot.lane.b32.xlu0 %v637, 8
  %v817 = vpop.permute.xlu0 %816
  %vm878 = vcmask 97344
  %879 = vst.msk [vmem:[%s154] sm:$0xff] %vm878, %v699
  %vm880 = vcmask 96320
  %881 = vst.msk [vmem:[%s154 + $0x8] sm:$0x7f] %vm880, %v701
  %882 = vst.msk [vmem:[%s154 + $0x10] sm:$0xff] %vm878, %v703
  %883 = vst.msk [vmem:[%s154 + $0x18] sm:$0x7f] %vm880, %v705
  %884 = vst.msk [vmem:[%s154 + $0x20] sm:$0xff] %vm878, %v707
  %885 = vst.msk [vmem:[%s154 + $0x28] sm:$0x7f] %vm880, %v709
  %886 = vst.msk [vmem:[%s154 + $0x30] sm:$0xff] %vm878, %v711
  %887 = vst.msk [vmem:[%s154 + $0x38] sm:$0x7f] %vm880, %v713
  %888 = vst.msk [vmem:[%s154 + $0x40] sm:$0xff] %vm878, %v715
  %889 = vst.msk [vmem:[%s154 + $0x48] sm:$0x7f] %vm880, %v717
  %890 = vst.msk [vmem:[%s154 + $0x50] sm:$0xff] %vm878, %v719
  %891 = vst.msk [vmem:[%s154 + $0x58] sm:$0x7f] %vm880, %v721
  %892 = vst.msk [vmem:[%s154 + $0x60] sm:$0xff] %vm878, %v723
  %893 = vst.msk [vmem:[%s154 + $0x68] sm:$0x7f] %vm880, %v725
  %894 = vst.msk [vmem:[%s154 + $0x70] sm:$0xff] %vm878, %v727
  %895 = vst.msk [vmem:[%s154 + $0x78] sm:$0x7f] %vm880, %v729
  %896 = vst.msk [vmem:[%s154 + $0x80] sm:$0xff] %vm878, %v731
  %897 = vst.msk [vmem:[%s154 + $0x88] sm:$0x7f] %vm880, %v733
  %898 = vst.msk [vmem:[%s154 + $0x90] sm:$0xff] %vm878, %v735
  %899 = vst.msk [vmem:[%s154 + $0x98] sm:$0x7f] %vm880, %v737
  %900 = vst.msk [vmem:[%s154 + $0xa0] sm:$0xff] %vm878, %v739
  %901 = vst.msk [vmem:[%s154 + $0xa8] sm:$0x7f] %vm880, %v741
  %902 = vst.msk [vmem:[%s154 + $0xb0] sm:$0xff] %vm878, %v743
  %903 = vst.msk [vmem:[%s154 + $0xb8] sm:$0x7f] %vm880, %v745
  %904 = vst.msk [vmem:[%s154 + $0xc0] sm:$0xff] %vm878, %v747
  %905 = vst.msk [vmem:[%s154 + $0xc8] sm:$0x7f] %vm880, %v749
  %906 = vst.msk [vmem:[%s154 + $0xd0] sm:$0xff] %vm878, %v751
  %907 = vst.msk [vmem:[%s154 + $0xd8] sm:$0x7f] %vm880, %v753
  %908 = vst.msk [vmem:[%s154 + $0xe0] sm:$0xff] %vm878, %v755
  %909 = vst.msk [vmem:[%s154 + $0xe8] sm:$0x7f] %vm880, %v757
  %910 = vst.msk [vmem:[%s154 + $0x100] sm:$0xff] %vm878, %v759
  %911 = vst.msk [vmem:[%s154 + $0x108] sm:$0x7f] %vm880, %v761
  %912 = vst.msk [vmem:[%s154 + $0x110] sm:$0xff] %vm878, %v763
  %913 = vst.msk [vmem:[%s154 + $0x118] sm:$0x7f] %vm880, %v765
  %914 = vst.msk [vmem:[%s154 + $0x120] sm:$0xff] %vm878, %v767
  %915 = vst.msk [vmem:[%s154 + $0x128] sm:$0x7f] %vm880, %v769
  %916 = vst.msk [vmem:[%s154 + $0x130] sm:$0xff] %vm878, %v771
  %917 = vst.msk [vmem:[%s154 + $0x138] sm:$0x7f] %vm880, %v773
  %918 = vst.msk [vmem:[%s154 + $0x140] sm:$0xff] %vm878, %v775
  %919 = vst.msk [vmem:[%s154 + $0x148] sm:$0x7f] %vm880, %v777
  %920 = vst.msk [vmem:[%s154 + $0x150] sm:$0xff] %vm878, %v779
  %921 = vst.msk [vmem:[%s154 + $0x158] sm:$0x7f] %vm880, %v781
  %922 = vst.msk [vmem:[%s154 + $0x160] sm:$0xff] %vm878, %v783
  %923 = vst.msk [vmem:[%s154 + $0x168] sm:$0x7f] %vm880, %v785
  %924 = vst.msk [vmem:[%s154 + $0x170] sm:$0xff] %vm878, %v787
  %925 = vst.msk [vmem:[%s154 + $0x178] sm:$0x7f] %vm880, %v789
  %926 = vst.msk [vmem:[%s154 + $0x180] sm:$0xff] %vm878, %v791
  %927 = vst.msk [vmem:[%s154 + $0x188] sm:$0x7f] %vm880, %v793
  %928 = vst.msk [vmem:[%s154 + $0x190] sm:$0xff] %vm878, %v795
  %929 = vst.msk [vmem:[%s154 + $0x198] sm:$0x7f] %vm880, %v797
  %930 = vst.msk [vmem:[%s154 + $0x1a0] sm:$0xff] %vm878, %v799
  %931 = vst.msk [vmem:[%s154 + $0x1a8] sm:$0x7f] %vm880, %v801
  %932 = vst.msk [vmem:[%s154 + $0x1b0] sm:$0xff] %vm878, %v803
  %933 = vst.msk [vmem:[%s154 + $0x1b8] sm:$0x7f] %vm880, %v805
  %934 = vst.msk [vmem:[%s154 + $0x1c0] sm:$0xff] %vm878, %v807
  %935 = vst.msk [vmem:[%s154 + $0x1c8] sm:$0x7f] %vm880, %v809
  %936 = vst.msk [vmem:[%s154 + $0x1d0] sm:$0xff] %vm878, %v811
  %937 = vst.msk [vmem:[%s154 + $0x1d8] sm:$0x7f] %vm880, %v813
  %938 = vst.msk [vmem:[%s154 + $0x1e0] sm:$0xff] %vm878, %v815
  %939 = vst.msk [vmem:[%s154 + $0x1e8] sm:$0x7f] %vm880, %v817
  %v940 = vld [vmem:[%s0] sm:$0xff]
  %v941 = vld [vmem:[%s0 + $0x8] sm:$0x7f]
  %v942 = vld [vmem:[%s0 + $0x10] sm:$0xff]
  %v943 = vld [vmem:[%s0 + $0x18] sm:$0x7f]
  %v944 = vld [vmem:[%s0 + $0x20] sm:$0xff]
  %v945 = vld [vmem:[%s0 + $0x28] sm:$0x7f]
  %v946 = vld [vmem:[%s0 + $0x30] sm:$0xff]
  %v947 = vld [vmem:[%s0 + $0x38] sm:$0x7f]
  %v948 = vld [vmem:[%s0 + $0x40] sm:$0xff]
  %v949 = vld [vmem:[%s0 + $0x48] sm:$0x7f]
  %v950 = vld [vmem:[%s0 + $0x50] sm:$0xff]
  %v951 = vld [vmem:[%s0 + $0x58] sm:$0x7f]
  %v952 = vld [vmem:[%s0 + $0x60] sm:$0xff]
  %v953 = vld [vmem:[%s0 + $0x68] sm:$0x7f]
  %v954 = vld [vmem:[%s0 + $0x70] sm:$0xff]
  %v955 = vld [vmem:[%s0 + $0x78] sm:$0x7f]
  %v956 = vld [vmem:[%s0 + $0x80] sm:$0xff]
  %v957 = vld [vmem:[%s0 + $0x88] sm:$0x7f]
  %v958 = vld [vmem:[%s0 + $0x90] sm:$0xff]
  %v959 = vld [vmem:[%s0 + $0x98] sm:$0x7f]
  %v960 = vld [vmem:[%s0 + $0xa0] sm:$0xff]
  %v961 = vld [vmem:[%s0 + $0xa8] sm:$0x7f]
  %v962 = vld [vmem:[%s0 + $0xb0] sm:$0xff]
  %v963 = vld [vmem:[%s0 + $0xb8] sm:$0x7f]
  %v964 = vld [vmem:[%s0 + $0xc0] sm:$0xff]
  %v965 = vld [vmem:[%s0 + $0xc8] sm:$0x7f]
  %v966 = vld [vmem:[%s0 + $0xd0] sm:$0xff]
  %v967 = vld [vmem:[%s0 + $0xd8] sm:$0x7f]
  %v968 = vld [vmem:[%s0 + $0xe0] sm:$0xff]
  %v969 = vld [vmem:[%s0 + $0xe8] sm:$0x7f]
  %v970 = vld [vmem:[%s0 + $0xf0] sm:$0xff]
  %v971 = vld [vmem:[%s0 + $0xf8] sm:$0x7f]
  %v972 = vld [vmem:[%s0 + $0x100] sm:$0xff]
  %v973 = vld [vmem:[%s0 + $0x108] sm:$0x7f]
  %v974 = vld [vmem:[%s0 + $0x110] sm:$0xff]
  %v975 = vld [vmem:[%s0 + $0x118] sm:$0x7f]
  %v976 = vld [vmem:[%s0 + $0x120] sm:$0xff]
  %v977 = vld [vmem:[%s0 + $0x128] sm:$0x7f]
  %v978 = vld [vmem:[%s0 + $0x130] sm:$0xff]
  %v979 = vld [vmem:[%s0 + $0x138] sm:$0x7f]
  %v980 = vld [vmem:[%s0 + $0x140] sm:$0xff]
  %v981 = vld [vmem:[%s0 + $0x148] sm:$0x7f]
  %v982 = vld [vmem:[%s0 + $0x150] sm:$0xff]
  %v983 = vld [vmem:[%s0 + $0x158] sm:$0x7f]
  %v984 = vld [vmem:[%s0 + $0x160] sm:$0xff]
  %v985 = vld [vmem:[%s0 + $0x168] sm:$0x7f]
  %v986 = vld [vmem:[%s0 + $0x170] sm:$0xff]
  %v987 = vld [vmem:[%s0 + $0x178] sm:$0x7f]
  %v988 = vld [vmem:[%s0 + $0x180] sm:$0xff]
  %v989 = vld [vmem:[%s0 + $0x188] sm:$0x7f]
  %v990 = vld [vmem:[%s0 + $0x190] sm:$0xff]
  %v991 = vld [vmem:[%s0 + $0x198] sm:$0x7f]
  %v992 = vld [vmem:[%s0 + $0x1a0] sm:$0xff]
  %v993 = vld [vmem:[%s0 + $0x1a8] sm:$0x7f]
  %v994 = vld [vmem:[%s0 + $0x1b0] sm:$0xff]
  %v995 = vld [vmem:[%s0 + $0x1b8] sm:$0x7f]
  %v996 = vld [vmem:[%s0 + $0x1c0] sm:$0xff]
  %v997 = vld [vmem:[%s0 + $0x1c8] sm:$0x7f]
  %v998 = vld [vmem:[%s0 + $0x1d0] sm:$0xff]
  %v999 = vld [vmem:[%s0 + $0x1d8] sm:$0x7f]
  %v1000 = vld [vmem:[%s0 + $0x1e0] sm:$0xff]
  %v1001 = vld [vmem:[%s0 + $0x1e8] sm:$0x7f]
  %v1002 = vld [vmem:[%s0 + $0x1f0] sm:$0xff]
  %v1003 = vld [vmem:[%s0 + $0x1f8] sm:$0x7f]
  %1068 = vrot.lane.b32.xlu0 %v940, 12
  %v1069 = vpop.permute.xlu0 %1068
  %1070 = vrot.lane.b32.xlu0 %v941, 12
  %v1071 = vpop.permute.xlu0 %1070
  %1072 = vrot.lane.b32.xlu0 %v942, 12
  %v1073 = vpop.permute.xlu0 %1072
  %1074 = vrot.lane.b32.xlu0 %v943, 12
  %v1075 = vpop.permute.xlu0 %1074
  %1076 = vrot.lane.b32.xlu0 %v944, 12
  %v1077 = vpop.permute.xlu0 %1076
  %1078 = vrot.lane.b32.xlu0 %v945, 12
  %v1079 = vpop.permute.xlu0 %1078
  %1080 = vrot.lane.b32.xlu0 %v946, 12
  %v1081 = vpop.permute.xlu0 %1080
  %1082 = vrot.lane.b32.xlu0 %v947, 12
  %v1083 = vpop.permute.xlu0 %1082
  %1084 = vrot.lane.b32.xlu0 %v948, 12
  %v1085 = vpop.permute.xlu0 %1084
  %1086 = vrot.lane.b32.xlu0 %v949, 12
  %v1087 = vpop.permute.xlu0 %1086
  %1088 = vrot.lane.b32.xlu0 %v950, 12
  %v1089 = vpop.permute.xlu0 %1088
  %1090 = vrot.lane.b32.xlu0 %v951, 12
  %v1091 = vpop.permute.xlu0 %1090
  %1092 = vrot.lane.b32.xlu0 %v952, 12
  %v1093 = vpop.permute.xlu0 %1092
  %1094 = vrot.lane.b32.xlu0 %v953, 12
  %v1095 = vpop.permute.xlu0 %1094
  %1096 = vrot.lane.b32.xlu0 %v954, 12
  %v1097 = vpop.permute.xlu0 %1096
  %1098 = vrot.lane.b32.xlu0 %v955, 12
  %v1099 = vpop.permute.xlu0 %1098
  %1100 = vrot.lane.b32.xlu0 %v956, 12
  %v1101 = vpop.permute.xlu0 %1100
  %1102 = vrot.lane.b32.xlu0 %v957, 12
  %v1103 = vpop.permute.xlu0 %1102
  %1104 = vrot.lane.b32.xlu0 %v958, 12
  %v1105 = vpop.permute.xlu0 %1104
  %1106 = vrot.lane.b32.xlu0 %v959, 12
  %v1107 = vpop.permute.xlu0 %1106
  %1108 = vrot.lane.b32.xlu0 %v960, 12
  %v1109 = vpop.permute.xlu0 %1108
  %1110 = vrot.lane.b32.xlu0 %v961, 12
  %v1111 = vpop.permute.xlu0 %1110
  %1112 = vrot.lane.b32.xlu0 %v962, 12
  %v1113 = vpop.permute.xlu0 %1112
  %1114 = vrot.lane.b32.xlu0 %v963, 12
  %v1115 = vpop.permute.xlu0 %1114
  %1116 = vrot.lane.b32.xlu0 %v964, 12
  %v1117 = vpop.permute.xlu0 %1116
  %1118 = vrot.lane.b32.xlu0 %v965, 12
  %v1119 = vpop.permute.xlu0 %1118
  %1120 = vrot.lane.b32.xlu0 %v966, 12
  %v1121 = vpop.permute.xlu0 %1120
  %1122 = vrot.lane.b32.xlu0 %v967, 12
  %v1123 = vpop.permute.xlu0 %1122
  %1124 = vrot.lane.b32.xlu0 %v968, 12
  %v1125 = vpop.permute.xlu0 %1124
  %1126 = vrot.lane.b32.xlu0 %v969, 12
  %v1127 = vpop.permute.xlu0 %1126
  %1128 = vrot.lane.b32.xlu0 %v970, 12
  %v1129 = vpop.permute.xlu0 %1128
  %1130 = vrot.lane.b32.xlu0 %v971, 12
  %v1131 = vpop.permute.xlu0 %1130
  %1132 = vrot.lane.b32.xlu0 %v972, 12
  %v1133 = vpop.permute.xlu0 %1132
  %1134 = vrot.lane.b32.xlu0 %v973, 12
  %v1135 = vpop.permute.xlu0 %1134
  %1136 = vrot.lane.b32.xlu0 %v974, 12
  %v1137 = vpop.permute.xlu0 %1136
  %1138 = vrot.lane.b32.xlu0 %v975, 12
  %v1139 = vpop.permute.xlu0 %1138
  %1140 = vrot.lane.b32.xlu0 %v976, 12
  %v1141 = vpop.permute.xlu0 %1140
  %1142 = vrot.lane.b32.xlu0 %v977, 12
  %v1143 = vpop.permute.xlu0 %1142
  %1144 = vrot.lane.b32.xlu0 %v978, 12
  %v1145 = vpop.permute.xlu0 %1144
  %1146 = vrot.lane.b32.xlu0 %v979, 12
  %v1147 = vpop.permute.xlu0 %1146
  %1148 = vrot.lane.b32.xlu0 %v980, 12
  %v1149 = vpop.permute.xlu0 %1148
  %1150 = vrot.lane.b32.xlu0 %v981, 12
  %v1151 = vpop.permute.xlu0 %1150
  %1152 = vrot.lane.b32.xlu0 %v982, 12
  %v1153 = vpop.permute.xlu0 %1152
  %1154 = vrot.lane.b32.xlu0 %v983, 12
  %v1155 = vpop.permute.xlu0 %1154
  %1156 = vrot.lane.b32.xlu0 %v984, 12
  %v1157 = vpop.permute.xlu0 %1156
  %1158 = vrot.lane.b32.xlu0 %v985, 12
  %v1159 = vpop.permute.xlu0 %1158
  %1160 = vrot.lane.b32.xlu0 %v986, 12
  %v1161 = vpop.permute.xlu0 %1160
  %1162 = vrot.lane.b32.xlu0 %v987, 12
  %v1163 = vpop.permute.xlu0 %1162
  %1164 = vrot.lane.b32.xlu0 %v988, 12
  %v1165 = vpop.permute.xlu0 %1164
  %1166 = vrot.lane.b32.xlu0 %v989, 12
  %v1167 = vpop.permute.xlu0 %1166
  %1168 = vrot.lane.b32.xlu0 %v990, 12
  %v1169 = vpop.permute.xlu0 %1168
  %1170 = vrot.lane.b32.xlu0 %v991, 12
  %v1171 = vpop.permute.xlu0 %1170
  %1172 = vrot.lane.b32.xlu0 %v992, 12
  %v1173 = vpop.permute.xlu0 %1172
  %1174 = vrot.lane.b32.xlu0 %v993, 12
  %v1175 = vpop.permute.xlu0 %1174
  %1176 = vrot.lane.b32.xlu0 %v994, 12
  %v1177 = vpop.permute.xlu0 %1176
  %1178 = vrot.lane.b32.xlu0 %v995, 12
  %v1179 = vpop.permute.xlu0 %1178
  %1180 = vrot.lane.b32.xlu0 %v996, 12
  %v1181 = vpop.permute.xlu0 %1180
  %1182 = vrot.lane.b32.xlu0 %v997, 12
  %v1183 = vpop.permute.xlu0 %1182
  %1184 = vrot.lane.b32.xlu0 %v998, 12
  %v1185 = vpop.permute.xlu0 %1184
  %1186 = vrot.lane.b32.xlu0 %v999, 12
  %v1187 = vpop.permute.xlu0 %1186
  %1188 = vrot.lane.b32.xlu0 %v1000, 12
  %v1189 = vpop.permute.xlu0 %1188
  %1190 = vrot.lane.b32.xlu0 %v1001, 12
  %v1191 = vpop.permute.xlu0 %1190
  %1192 = vrot.lane.b32.xlu0 %v1002, 12
  %v1193 = vpop.permute.xlu0 %1192
  %1194 = vrot.lane.b32.xlu0 %v1003, 12
  %v1195 = vpop.permute.xlu0 %1194
  %vm1260 = vcmask 130144
  %1261 = vst.msk [vmem:[#allocation2 + $0x1] sm:$0xff] %vm1260, %v1069
  %vm1262 = vcmask 129120
  %1263 = vst.msk [vmem:[#allocation2 + $0x9] sm:$0x7f] %vm1262, %v1071
  %1264 = vst.msk [vmem:[#allocation2 + $0x11] sm:$0xff] %vm1260, %v1073
  %1265 = vst.msk [vmem:[#allocation2 + $0x19] sm:$0x7f] %vm1262, %v1075
  %1266 = vst.msk [vmem:[#allocation2 + $0x21] sm:$0xff] %vm1260, %v1077
  %1267 = vst.msk [vmem:[#allocation2 + $0x29] sm:$0x7f] %vm1262, %v1079
  %1268 = vst.msk [vmem:[#allocation2 + $0x31] sm:$0xff] %vm1260, %v1081
  %1269 = vst.msk [vmem:[#allocation2 + $0x39] sm:$0x7f] %vm1262, %v1083
  %1270 = vst.msk [vmem:[#allocation2 + $0x41] sm:$0xff] %vm1260, %v1085
  %1271 = vst.msk [vmem:[#allocation2 + $0x49] sm:$0x7f] %vm1262, %v1087
  %1272 = vst.msk [vmem:[#allocation2 + $0x51] sm:$0xff] %vm1260, %v1089
  %1273 = vst.msk [vmem:[#allocation2 + $0x59] sm:$0x7f] %vm1262, %v1091
  %1274 = vst.msk [vmem:[#allocation2 + $0x61] sm:$0xff] %vm1260, %v1093
  %1275 = vst.msk [vmem:[#allocation2 + $0x69] sm:$0x7f] %vm1262, %v1095
  %1276 = vst.msk [vmem:[#allocation2 + $0x71] sm:$0xff] %vm1260, %v1097
  %1277 = vst.msk [vmem:[#allocation2 + $0x79] sm:$0x7f] %vm1262, %v1099
  %1278 = vst.msk [vmem:[#allocation2 + $0x81] sm:$0xff] %vm1260, %v1101
  %1279 = vst.msk [vmem:[#allocation2 + $0x89] sm:$0x7f] %vm1262, %v1103
  %1280 = vst.msk [vmem:[#allocation2 + $0x91] sm:$0xff] %vm1260, %v1105
  %1281 = vst.msk [vmem:[#allocation2 + $0x99] sm:$0x7f] %vm1262, %v1107
  %1282 = vst.msk [vmem:[#allocation2 + $0xa1] sm:$0xff] %vm1260, %v1109
  %1283 = vst.msk [vmem:[#allocation2 + $0xa9] sm:$0x7f] %vm1262, %v1111
  %1284 = vst.msk [vmem:[#allocation2 + $0xb1] sm:$0xff] %vm1260, %v1113
  %1285 = vst.msk [vmem:[#allocation2 + $0xb9] sm:$0x7f] %vm1262, %v1115
  %1286 = vst.msk [vmem:[#allocation2 + $0xc1] sm:$0xff] %vm1260, %v1117
  %1287 = vst.msk [vmem:[#allocation2 + $0xc9] sm:$0x7f] %vm1262, %v1119
  %1288 = vst.msk [vmem:[#allocation2 + $0xd1] sm:$0xff] %vm1260, %v1121
  %1289 = vst.msk [vmem:[#allocation2 + $0xd9] sm:$0x7f] %vm1262, %v1123
  %1290 = vst.msk [vmem:[#allocation2 + $0xe1] sm:$0xff] %vm1260, %v1125
  %1291 = vst.msk [vmem:[#allocation2 + $0xe9] sm:$0x7f] %vm1262, %v1127
  %1292 = vst.msk [vmem:[#allocation2 + $0xf1] sm:$0xff] %vm1260, %v1129
  %1293 = vst.msk [vmem:[#allocation2 + $0xf9] sm:$0x7f] %vm1262, %v1131
  %1294 = vst.msk [vmem:[#allocation2 + $0x101] sm:$0xff] %vm1260, %v1133
  %1295 = vst.msk [vmem:[#allocation2 + $0x109] sm:$0x7f] %vm1262, %v1135
  %1296 = vst.msk [vmem:[#allocation2 + $0x111] sm:$0xff] %vm1260, %v1137
  %1297 = vst.msk [vmem:[#allocation2 + $0x119] sm:$0x7f] %vm1262, %v1139
  %1298 = vst.msk [vmem:[#allocation2 + $0x121] sm:$0xff] %vm1260, %v1141
  %1299 = vst.msk [vmem:[#allocation2 + $0x129] sm:$0x7f] %vm1262, %v1143
  %1300 = vst.msk [vmem:[#allocation2 + $0x131] sm:$0xff] %vm1260, %v1145
  %1301 = vst.msk [vmem:[#allocation2 + $0x139] sm:$0x7f] %vm1262, %v1147
  %1302 = vst.msk [vmem:[#allocation2 + $0x141] sm:$0xff] %vm1260, %v1149
  %1303 = vst.msk [vmem:[#allocation2 + $0x149] sm:$0x7f] %vm1262, %v1151
  %1304 = vst.msk [vmem:[#allocation2 + $0x151] sm:$0xff] %vm1260, %v1153
  %1305 = vst.msk [vmem:[#allocation2 + $0x159] sm:$0x7f] %vm1262, %v1155
  %1306 = vst.msk [vmem:[#allocation2 + $0x161] sm:$0xff] %vm1260, %v1157
  %1307 = vst.msk [vmem:[#allocation2 + $0x169] sm:$0x7f] %vm1262, %v1159
  %1308 = vst.msk [vmem:[#allocation2 + $0x171] sm:$0xff] %vm1260, %v1161
  %1309 = vst.msk [vmem:[#allocation2 + $0x179] sm:$0x7f] %vm1262, %v1163
  %1310 = vst.msk [vmem:[#allocation2 + $0x181] sm:$0xff] %vm1260, %v1165
  %1311 = vst.msk [vmem:[#allocation2 + $0x189] sm:$0x7f] %vm1262, %v1167
  %1312 = vst.msk [vmem:[#allocation2 + $0x191] sm:$0xff] %vm1260, %v1169
  %1313 = vst.msk [vmem:[#allocation2 + $0x199] sm:$0x7f] %vm1262, %v1171
  %1314 = vst.msk [vmem:[#allocation2 + $0x1a1] sm:$0xff] %vm1260, %v1173
  %1315 = vst.msk [vmem:[#allocation2 + $0x1a9] sm:$0x7f] %vm1262, %v1175
  %1316 = vst.msk [vmem:[#allocation2 + $0x1b1] sm:$0xff] %vm1260, %v1177
  %1317 = vst.msk [vmem:[#allocation2 + $0x1b9] sm:$0x7f] %vm1262, %v1179
  %1318 = vst.msk [vmem:[#allocation2 + $0x1c1] sm:$0xff] %vm1260, %v1181
  %1319 = vst.msk [vmem:[#allocation2 + $0x1c9] sm:$0x7f] %vm1262, %v1183
  %1320 = vst.msk [vmem:[#allocation2 + $0x1d1] sm:$0xff] %vm1260, %v1185
  %1321 = vst.msk [vmem:[#allocation2 + $0x1d9] sm:$0x7f] %vm1262, %v1187
  %1322 = vst.msk [vmem:[#allocation2 + $0x1e1] sm:$0xff] %vm1260, %v1189
  %1323 = vst.msk [vmem:[#allocation2 + $0x1e9] sm:$0x7f] %vm1262, %v1191
  %1324 = vst.msk [vmem:[#allocation2 + $0x1f1] sm:$0xff] %vm1260, %v1193
  %1325 = vst.msk [vmem:[#allocation2 + $0x1f9] sm:$0x7f] %vm1262, %v1195
  %v1326 = vld [vmem:[%s0] sm:$0xff]
  %v1327 = vld [vmem:[%s0 + $0x8] sm:$0xff]
  %v1328 = vld [vmem:[%s0 + $0x10] sm:$0xff]
  %v1329 = vld [vmem:[%s0 + $0x18] sm:$0xff]
  %v1330 = vld [vmem:[%s0 + $0x20] sm:$0xff]
  %v1331 = vld [vmem:[%s0 + $0x28] sm:$0xff]
  %v1332 = vld [vmem:[%s0 + $0x30] sm:$0xff]
  %v1333 = vld [vmem:[%s0 + $0x38] sm:$0xff]
  %v1334 = vld [vmem:[%s0 + $0x40] sm:$0xff]
  %v1335 = vld [vmem:[%s0 + $0x48] sm:$0xff]
  %v1336 = vld [vmem:[%s0 + $0x50] sm:$0xff]
  %v1337 = vld [vmem:[%s0 + $0x58] sm:$0xff]
  %v1338 = vld [vmem:[%s0 + $0x60] sm:$0xff]
  %v1339 = vld [vmem:[%s0 + $0x68] sm:$0xff]
  %v1340 = vld [vmem:[%s0 + $0x70] sm:$0xff]
  %v1341 = vld [vmem:[%s0 + $0x78] sm:$0xff]
  %v1342 = vld [vmem:[%s0 + $0x80] sm:$0xff]
  %v1343 = vld [vmem:[%s0 + $0x88] sm:$0xff]
  %v1344 = vld [vmem:[%s0 + $0x90] sm:$0xff]
  %v1345 = vld [vmem:[%s0 + $0x98] sm:$0xff]
  %v1346 = vld [vmem:[%s0 + $0xa0] sm:$0xff]
  %v1347 = vld [vmem:[%s0 + $0xa8] sm:$0xff]
  %v1348 = vld [vmem:[%s0 + $0xb0] sm:$0xff]
  %v1349 = vld [vmem:[%s0 + $0xb8] sm:$0xff]
  %v1350 = vld [vmem:[%s0 + $0xc0] sm:$0xff]
  %v1351 = vld [vmem:[%s0 + $0xc8] sm:$0xff]
  %v1352 = vld [vmem:[%s0 + $0xd0] sm:$0xff]
  %v1353 = vld [vmem:[%s0 + $0xd8] sm:$0xff]
  %v1354 = vld [vmem:[%s0 + $0xe0] sm:$0xff]
  %v1355 = vld [vmem:[%s0 + $0xe8] sm:$0xff]
  %v1356 = vld [vmem:[%s0 + $0xf0] sm:$0xff]
  %v1357 = vld [vmem:[%s0 + $0xf8] sm:$0xff]
  %v1358 = vld [vmem:[%s0 + $0x100] sm:$0xff]
  %v1359 = vld [vmem:[%s0 + $0x108] sm:$0xff]
  %v1360 = vld [vmem:[%s0 + $0x110] sm:$0xff]
  %v1361 = vld [vmem:[%s0 + $0x118] sm:$0xff]
  %v1362 = vld [vmem:[%s0 + $0x120] sm:$0xff]
  %v1363 = vld [vmem:[%s0 + $0x128] sm:$0xff]
  %v1364 = vld [vmem:[%s0 + $0x130] sm:$0xff]
  %v1365 = vld [vmem:[%s0 + $0x138] sm:$0xff]
  %v1366 = vld [vmem:[%s0 + $0x140] sm:$0xff]
  %v1367 = vld [vmem:[%s0 + $0x148] sm:$0xff]
  %v1368 = vld [vmem:[%s0 + $0x150] sm:$0xff]
  %v1369 = vld [vmem:[%s0 + $0x158] sm:$0xff]
  %v1370 = vld [vmem:[%s0 + $0x160] sm:$0xff]
  %v1371 = vld [vmem:[%s0 + $0x168] sm:$0xff]
  %v1372 = vld [vmem:[%s0 + $0x170] sm:$0xff]
  %v1373 = vld [vmem:[%s0 + $0x178] sm:$0xff]
  %v1374 = vld [vmem:[%s0 + $0x180] sm:$0xff]
  %v1375 = vld [vmem:[%s0 + $0x188] sm:$0xff]
  %v1376 = vld [vmem:[%s0 + $0x190] sm:$0xff]
  %v1377 = vld [vmem:[%s0 + $0x198] sm:$0xff]
  %v1378 = vld [vmem:[%s0 + $0x1a0] sm:$0xff]
  %v1379 = vld [vmem:[%s0 + $0x1a8] sm:$0xff]
  %v1380 = vld [vmem:[%s0 + $0x1b0] sm:$0xff]
  %v1381 = vld [vmem:[%s0 + $0x1b8] sm:$0xff]
  %v1382 = vld [vmem:[%s0 + $0x1c0] sm:$0xff]
  %v1383 = vld [vmem:[%s0 + $0x1c8] sm:$0xff]
  %v1384 = vld [vmem:[%s0 + $0x1d0] sm:$0xff]
  %v1385 = vld [vmem:[%s0 + $0x1d8] sm:$0xff]
  %v1386 = vld [vmem:[%s0 + $0x1e0] sm:$0xff]
  %v1387 = vld [vmem:[%s0 + $0x1e8] sm:$0xff]
  %v1388 = vld [vmem:[%s0 + $0x1f0] sm:$0xff]
  %v1389 = vld [vmem:[%s0 + $0x1f8] sm:$0xff]
  %1454 = vrot.lane.b32.xlu0 %v1326, 16
  %v1455 = vpop.permute.xlu0 %1454
  %1456 = vrot.lane.b32.xlu0 %v1327, 16
  %v1457 = vpop.permute.xlu0 %1456
  %1458 = vrot.lane.b32.xlu0 %v1328, 16
  %v1459 = vpop.permute.xlu0 %1458
  %1460 = vrot.lane.b32.xlu0 %v1329, 16
  %v1461 = vpop.permute.xlu0 %1460
  %1462 = vrot.lane.b32.xlu0 %v1330, 16
  %v1463 = vpop.permute.xlu0 %1462
  %1464 = vrot.lane.b32.xlu0 %v1331, 16
  %v1465 = vpop.permute.xlu0 %1464
  %1466 = vrot.lane.b32.xlu0 %v1332, 16
  %v1467 = vpop.permute.xlu0 %1466
  %1468 = vrot.lane.b32.xlu0 %v1333, 16
  %v1469 = vpop.permute.xlu0 %1468
  %1470 = vrot.lane.b32.xlu0 %v1334, 16
  %v1471 = vpop.permute.xlu0 %1470
  %1472 = vrot.lane.b32.xlu0 %v1335, 16
  %v1473 = vpop.permute.xlu0 %1472
  %1474 = vrot.lane.b32.xlu0 %v1336, 16
  %v1475 = vpop.permute.xlu0 %1474
  %1476 = vrot.lane.b32.xlu0 %v1337, 16
  %v1477 = vpop.permute.xlu0 %1476
  %1478 = vrot.lane.b32.xlu0 %v1338, 16
  %v1479 = vpop.permute.xlu0 %1478
  %1480 = vrot.lane.b32.xlu0 %v1339, 16
  %v1481 = vpop.permute.xlu0 %1480
  %1482 = vrot.lane.b32.xlu0 %v1340, 16
  %v1483 = vpop.permute.xlu0 %1482
  %1484 = vrot.lane.b32.xlu0 %v1341, 16
  %v1485 = vpop.permute.xlu0 %1484
  %1486 = vrot.lane.b32.xlu0 %v1342, 16
  %v1487 = vpop.permute.xlu0 %1486
  %1488 = vrot.lane.b32.xlu0 %v1343, 16
  %v1489 = vpop.permute.xlu0 %1488
  %1490 = vrot.lane.b32.xlu0 %v1344, 16
  %v1491 = vpop.permute.xlu0 %1490
  %1492 = vrot.lane.b32.xlu0 %v1345, 16
  %v1493 = vpop.permute.xlu0 %1492
  %1494 = vrot.lane.b32.xlu0 %v1346, 16
  %v1495 = vpop.permute.xlu0 %1494
  %1496 = vrot.lane.b32.xlu0 %v1347, 16
  %v1497 = vpop.permute.xlu0 %1496
  %1498 = vrot.lane.b32.xlu0 %v1348, 16
  %v1499 = vpop.permute.xlu0 %1498
  %1500 = vrot.lane.b32.xlu0 %v1349, 16
  %v1501 = vpop.permute.xlu0 %1500
  %1502 = vrot.lane.b32.xlu0 %v1350, 16
  %v1503 = vpop.permute.xlu0 %1502
  %1504 = vrot.lane.b32.xlu0 %v1351, 16
  %v1505 = vpop.permute.xlu0 %1504
  %1506 = vrot.lane.b32.xlu0 %v1352, 16
  %v1507 = vpop.permute.xlu0 %1506
  %1508 = vrot.lane.b32.xlu0 %v1353, 16
  %v1509 = vpop.permute.xlu0 %1508
  %1510 = vrot.lane.b32.xlu0 %v1354, 16
  %v1511 = vpop.permute.xlu0 %1510
  %1512 = vrot.lane.b32.xlu0 %v1355, 16
  %v1513 = vpop.permute.xlu0 %1512
  %1514 = vrot.lane.b32.xlu0 %v1356, 16
  %v1515 = vpop.permute.xlu0 %1514
  %1516 = vrot.lane.b32.xlu0 %v1357, 16
  %v1517 = vpop.permute.xlu0 %1516
  %1518 = vrot.lane.b32.xlu0 %v1358, 16
  %v1519 = vpop.permute.xlu0 %1518
  %1520 = vrot.lane.b32.xlu0 %v1359, 16
  %v1521 = vpop.permute.xlu0 %1520
  %1522 = vrot.lane.b32.xlu0 %v1360, 16
  %v1523 = vpop.permute.xlu0 %1522
  %1524 = vrot.lane.b32.xlu0 %v1361, 16
  %v1525 = vpop.permute.xlu0 %1524
  %1526 = vrot.lane.b32.xlu0 %v1362, 16
  %v1527 = vpop.permute.xlu0 %1526
  %1528 = vrot.lane.b32.xlu0 %v1363, 16
  %v1529 = vpop.permute.xlu0 %1528
  %1530 = vrot.lane.b32.xlu0 %v1364, 16
  %v1531 = vpop.permute.xlu0 %1530
  %1532 = vrot.lane.b32.xlu0 %v1365, 16
  %v1533 = vpop.permute.xlu0 %1532
  %1534 = vrot.lane.b32.xlu0 %v1366, 16
  %v1535 = vpop.permute.xlu0 %1534
  %1536 = vrot.lane.b32.xlu0 %v1367, 16
  %v1537 = vpop.permute.xlu0 %1536
  %1538 = vrot.lane.b32.xlu0 %v1368, 16
  %v1539 = vpop.permute.xlu0 %1538
  %1540 = vrot.lane.b32.xlu0 %v1369, 16
  %v1541 = vpop.permute.xlu0 %1540
  %1542 = vrot.lane.b32.xlu0 %v1370, 16
  %v1543 = vpop.permute.xlu0 %1542
  %1544 = vrot.lane.b32.xlu0 %v1371, 16
  %v1545 = vpop.permute.xlu0 %1544
  %1546 = vrot.lane.b32.xlu0 %v1372, 16
  %v1547 = vpop.permute.xlu0 %1546
  %1548 = vrot.lane.b32.xlu0 %v1373, 16
  %v1549 = vpop.permute.xlu0 %1548
  %1550 = vrot.lane.b32.xlu0 %v1374, 16
  %v1551 = vpop.permute.xlu0 %1550
  %1552 = vrot.lane.b32.xlu0 %v1375, 16
  %v1553 = vpop.permute.xlu0 %1552
  %1554 = vrot.lane.b32.xlu0 %v1376, 16
  %v1555 = vpop.permute.xlu0 %1554
  %1556 = vrot.lane.b32.xlu0 %v1377, 16
  %v1557 = vpop.permute.xlu0 %1556
  %1558 = vrot.lane.b32.xlu0 %v1378, 16
  %v1559 = vpop.permute.xlu0 %1558
  %1560 = vrot.lane.b32.xlu0 %v1379, 16
  %v1561 = vpop.permute.xlu0 %1560
  %1562 = vrot.lane.b32.xlu0 %v1380, 16
  %v1563 = vpop.permute.xlu0 %1562
  %1564 = vrot.lane.b32.xlu0 %v1381, 16
  %v1565 = vpop.permute.xlu0 %1564
  %1566 = vrot.lane.b32.xlu0 %v1382, 16
  %v1567 = vpop.permute.xlu0 %1566
  %1568 = vrot.lane.b32.xlu0 %v1383, 16
  %v1569 = vpop.permute.xlu0 %1568
  %1570 = vrot.lane.b32.xlu0 %v1384, 16
  %v1571 = vpop.permute.xlu0 %1570
  %1572 = vrot.lane.b32.xlu0 %v1385, 16
  %v1573 = vpop.permute.xlu0 %1572
  %1574 = vrot.lane.b32.xlu0 %v1386, 16
  %v1575 = vpop.permute.xlu0 %1574
  %1576 = vrot.lane.b32.xlu0 %v1387, 16
  %v1577 = vpop.permute.xlu0 %1576
  %1578 = vrot.lane.b32.xlu0 %v1388, 16
  %v1579 = vpop.permute.xlu0 %1578
  %1580 = vrot.lane.b32.xlu0 %v1389, 16
  %v1581 = vpop.permute.xlu0 %1580
  %vm1646 = vcmask 162944
  %1647 = vst.msk [vmem:[#allocation2] sm:$0xff] %vm1646, %v1455
  %1648 = vst.msk [vmem:[#allocation2 + $0x8] sm:$0xff] %vm1646, %v1457
  %1649 = vst.msk [vmem:[#allocation2 + $0x10] sm:$0xff] %vm1646, %v1459
  %1650 = vst.msk [vmem:[#allocation2 + $0x18] sm:$0xff] %vm1646, %v1461
  %1651 = vst.msk [vmem:[#allocation2 + $0x20] sm:$0xff] %vm1646, %v1463
  %1652 = vst.msk [vmem:[#allocation2 + $0x28] sm:$0xff] %vm1646, %v1465
  %1653 = vst.msk [vmem:[#allocation2 + $0x30] sm:$0xff] %vm1646, %v1467
  %1654 = vst.msk [vmem:[#allocation2 + $0x38] sm:$0xff] %vm1646, %v1469
  %1655 = vst.msk [vmem:[#allocation2 + $0x40] sm:$0xff] %vm1646, %v1471
  %1656 = vst.msk [vmem:[#allocation2 + $0x48] sm:$0xff] %vm1646, %v1473
  %1657 = vst.msk [vmem:[#allocation2 + $0x50] sm:$0xff] %vm1646, %v1475
  %1658 = vst.msk [vmem:[#allocation2 + $0x58] sm:$0xff] %vm1646, %v1477
  %1659 = vst.msk [vmem:[#allocation2 + $0x60] sm:$0xff] %vm1646, %v1479
  %1660 = vst.msk [vmem:[#allocation2 + $0x68] sm:$0xff] %vm1646, %v1481
  %1661 = vst.msk [vmem:[#allocation2 + $0x70] sm:$0xff] %vm1646, %v1483
  %1662 = vst.msk [vmem:[#allocation2 + $0x78] sm:$0xff] %vm1646, %v1485
  %1663 = vst.msk [vmem:[#allocation2 + $0x80] sm:$0xff] %vm1646, %v1487
  %1664 = vst.msk [vmem:[#allocation2 + $0x88] sm:$0xff] %vm1646, %v1489
  %1665 = vst.msk [vmem:[#allocation2 + $0x90] sm:$0xff] %vm1646, %v1491
  %1666 = vst.msk [vmem:[#allocation2 + $0x98] sm:$0xff] %vm1646, %v1493
  %1667 = vst.msk [vmem:[#allocation2 + $0xa0] sm:$0xff] %vm1646, %v1495
  %1668 = vst.msk [vmem:[#allocation2 + $0xa8] sm:$0xff] %vm1646, %v1497
  %1669 = vst.msk [vmem:[#allocation2 + $0xb0] sm:$0xff] %vm1646, %v1499
  %1670 = vst.msk [vmem:[#allocation2 + $0xb8] sm:$0xff] %vm1646, %v1501
  %1671 = vst.msk [vmem:[#allocation2 + $0xc0] sm:$0xff] %vm1646, %v1503
  %1672 = vst.msk [vmem:[#allocation2 + $0xc8] sm:$0xff] %vm1646, %v1505
  %1673 = vst.msk [vmem:[#allocation2 + $0xd0] sm:$0xff] %vm1646, %v1507
  %1674 = vst.msk [vmem:[#allocation2 + $0xd8] sm:$0xff] %vm1646, %v1509
  %1675 = vst.msk [vmem:[#allocation2 + $0xe0] sm:$0xff] %vm1646, %v1511
  %1676 = vst.msk [vmem:[#allocation2 + $0xe8] sm:$0xff] %vm1646, %v1513
  %1677 = vst.msk [vmem:[#allocation2 + $0xf0] sm:$0xff] %vm1646, %v1515
  %1678 = vst.msk [vmem:[#allocation2 + $0xf8] sm:$0xff] %vm1646, %v1517
  %1679 = vst.msk [vmem:[#allocation2 + $0x100] sm:$0xff] %vm1646, %v1519
  %1680 = vst.msk [vmem:[#allocation2 + $0x108] sm:$0xff] %vm1646, %v1521
  %1681 = vst.msk [vmem:[#allocation2 + $0x110] sm:$0xff] %vm1646, %v1523
  %1682 = vst.msk [vmem:[#allocation2 + $0x118] sm:$0xff] %vm1646, %v1525
  %1683 = vst.msk [vmem:[#allocation2 + $0x120] sm:$0xff] %vm1646, %v1527
  %1684 = vst.msk [vmem:[#allocation2 + $0x128] sm:$0xff] %vm1646, %v1529
  %1685 = vst.msk [vmem:[#allocation2 + $0x130] sm:$0xff] %vm1646, %v1531
  %1686 = vst.msk [vmem:[#allocation2 + $0x138] sm:$0xff] %vm1646, %v1533
  %1687 = vst.msk [vmem:[#allocation2 + $0x140] sm:$0xff] %vm1646, %v1535
  %1688 = vst.msk [vmem:[#allocation2 + $0x148] sm:$0xff] %vm1646, %v1537
  %1689 = vst.msk [vmem:[#allocation2 + $0x150] sm:$0xff] %vm1646, %v1539
  %1690 = vst.msk [vmem:[#allocation2 + $0x158] sm:$0xff] %vm1646, %v1541
  %1691 = vst.msk [vmem:[#allocation2 + $0x160] sm:$0xff] %vm1646, %v1543
  %1692 = vst.msk [vmem:[#allocation2 + $0x168] sm:$0xff] %vm1646, %v1545
  %1693 = vst.msk [vmem:[#allocation2 + $0x170] sm:$0xff] %vm1646, %v1547
  %1694 = vst.msk [vmem:[#allocation2 + $0x178] sm:$0xff] %vm1646, %v1549
  %1695 = vst.msk [vmem:[#allocation2 + $0x180] sm:$0xff] %vm1646, %v1551
  %1696 = vst.msk [vmem:[#allocation2 + $0x188] sm:$0xff] %vm1646, %v1553
  %1697 = vst.msk [vmem:[#allocation2 + $0x190] sm:$0xff] %vm1646, %v1555
  %1698 = vst.msk [vmem:[#allocation2 + $0x198] sm:$0xff] %vm1646, %v1557
  %1699 = vst.msk [vmem:[#allocation2 + $0x1a0] sm:$0xff] %vm1646, %v1559
  %1700 = vst.msk [vmem:[#allocation2 + $0x1a8] sm:$0xff] %vm1646, %v1561
  %1701 = vst.msk [vmem:[#allocation2 + $0x1b0] sm:$0xff] %vm1646, %v1563
  %1702 = vst.msk [vmem:[#allocation2 + $0x1b8] sm:$0xff] %vm1646, %v1565
  %1703 = vst.msk [vmem:[#allocation2 + $0x1c0] sm:$0xff] %vm1646, %v1567
  %1704 = vst.msk [vmem:[#allocation2 + $0x1c8] sm:$0xff] %vm1646, %v1569
  %1705 = vst.msk [vmem:[#allocation2 + $0x1d0] sm:$0xff] %vm1646, %v1571
  %1706 = vst.msk [vmem:[#allocation2 + $0x1d8] sm:$0xff] %vm1646, %v1573
  %1707 = vst.msk [vmem:[#allocation2 + $0x1e0] sm:$0xff] %vm1646, %v1575
  %1708 = vst.msk [vmem:[#allocation2 + $0x1e8] sm:$0xff] %vm1646, %v1577
  %1709 = vst.msk [vmem:[#allocation2 + $0x1f0] sm:$0xff] %vm1646, %v1579
  %1710 = vst.msk [vmem:[#allocation2 + $0x1f8] sm:$0xff] %vm1646, %v1581
  %v1711 = vld [vmem:[%s0 + $0x1] sm:$0xff]
  %v1712 = vld [vmem:[%s0 + $0x9] sm:$0x7f]
  %v1713 = vld [vmem:[%s0 + $0x11] sm:$0xff]
  %v1714 = vld [vmem:[%s0 + $0x19] sm:$0x7f]
  %v1715 = vld [vmem:[%s0 + $0x21] sm:$0xff]
  %v1716 = vld [vmem:[%s0 + $0x29] sm:$0x7f]
  %v1717 = vld [vmem:[%s0 + $0x31] sm:$0xff]
  %v1718 = vld [vmem:[%s0 + $0x39] sm:$0x7f]
  %v1719 = vld [vmem:[%s0 + $0x41] sm:$0xff]
  %v1720 = vld [vmem:[%s0 + $0x49] sm:$0x7f]
  %v1721 = vld [vmem:[%s0 + $0x51] sm:$0xff]
  %v1722 = vld [vmem:[%s0 + $0x59] sm:$0x7f]
  %v1723 = vld [vmem:[%s0 + $0x61] sm:$0xff]
  %v1724 = vld [vmem:[%s0 + $0x69] sm:$0x7f]
  %v1725 = vld [vmem:[%s0 + $0x71] sm:$0xff]
  %v1726 = vld [vmem:[%s0 + $0x79] sm:$0x7f]
  %v1727 = vld [vmem:[%s0 + $0x81] sm:$0xff]
  %v1728 = vld [vmem:[%s0 + $0x89] sm:$0x7f]
  %v1729 = vld [vmem:[%s0 + $0x91] sm:$0xff]
  %v1730 = vld [vmem:[%s0 + $0x99] sm:$0x7f]
  %v1731 = vld [vmem:[%s0 + $0xa1] sm:$0xff]
  %v1732 = vld [vmem:[%s0 + $0xa9] sm:$0x7f]
  %v1733 = vld [vmem:[%s0 + $0xb1] sm:$0xff]
  %v1734 = vld [vmem:[%s0 + $0xb9] sm:$0x7f]
  %v1735 = vld [vmem:[%s0 + $0xc1] sm:$0xff]
  %v1736 = vld [vmem:[%s0 + $0xc9] sm:$0x7f]
  %v1737 = vld [vmem:[%s0 + $0xd1] sm:$0xff]
  %v1738 = vld [vmem:[%s0 + $0xd9] sm:$0x7f]
  %v1739 = vld [vmem:[%s0 + $0xe1] sm:$0xff]
  %v1740 = vld [vmem:[%s0 + $0xe9] sm:$0x7f]
  %v1741 = vld [vmem:[%s0 + $0xf1] sm:$0xff]
  %v1742 = vld [vmem:[%s0 + $0xf9] sm:$0x7f]
  %v1743 = vld [vmem:[%s0 + $0x101] sm:$0xff]
  %v1744 = vld [vmem:[%s0 + $0x109] sm:$0x7f]
  %v1745 = vld [vmem:[%s0 + $0x111] sm:$0xff]
  %v1746 = vld [vmem:[%s0 + $0x119] sm:$0x7f]
  %v1747 = vld [vmem:[%s0 + $0x121] sm:$0xff]
  %v1748 = vld [vmem:[%s0 + $0x129] sm:$0x7f]
  %v1749 = vld [vmem:[%s0 + $0x131] sm:$0xff]
  %v1750 = vld [vmem:[%s0 + $0x139] sm:$0x7f]
  %v1751 = vld [vmem:[%s0 + $0x141] sm:$0xff]
  %v1752 = vld [vmem:[%s0 + $0x149] sm:$0x7f]
  %v1753 = vld [vmem:[%s0 + $0x151] sm:$0xff]
  %v1754 = vld [vmem:[%s0 + $0x159] sm:$0x7f]
  %v1755 = vld [vmem:[%s0 + $0x161] sm:$0xff]
  %v1756 = vld [vmem:[%s0 + $0x169] sm:$0x7f]
  %v1757 = vld [vmem:[%s0 + $0x171] sm:$0xff]
  %v1758 = vld [vmem:[%s0 + $0x179] sm:$0x7f]
  %v1759 = vld [vmem:[%s0 + $0x181] sm:$0xff]
  %v1760 = vld [vmem:[%s0 + $0x189] sm:$0x7f]
  %v1761 = vld [vmem:[%s0 + $0x191] sm:$0xff]
  %v1762 = vld [vmem:[%s0 + $0x199] sm:$0x7f]
  %v1763 = vld [vmem:[%s0 + $0x1a1] sm:$0xff]
  %v1764 = vld [vmem:[%s0 + $0x1a9] sm:$0x7f]
  %v1765 = vld [vmem:[%s0 + $0x1b1] sm:$0xff]
  %v1766 = vld [vmem:[%s0 + $0x1b9] sm:$0x7f]
  %v1767 = vld [vmem:[%s0 + $0x1c1] sm:$0xff]
  %v1768 = vld [vmem:[%s0 + $0x1c9] sm:$0x7f]
  %v1769 = vld [vmem:[%s0 + $0x1d1] sm:$0xff]
  %v1770 = vld [vmem:[%s0 + $0x1d9] sm:$0x7f]
  %v1771 = vld [vmem:[%s0 + $0x1e1] sm:$0xff]
  %v1772 = vld [vmem:[%s0 + $0x1e9] sm:$0x7f]
  %v1773 = vld [vmem:[%s0 + $0x1f1] sm:$0xff]
  %v1774 = vld [vmem:[%s0 + $0x1f9] sm:$0x7f]
  %1839 = vrot.lane.b32.xlu0 %v1711, 20
  %v1840 = vpop.permute.xlu0 %1839
  %1841 = vrot.lane.b32.xlu0 %v1712, 20
  %v1842 = vpop.permute.xlu0 %1841
  %1843 = vrot.lane.b32.xlu0 %v1713, 20
  %v1844 = vpop.permute.xlu0 %1843
  %1845 = vrot.lane.b32.xlu0 %v1714, 20
  %v1846 = vpop.permute.xlu0 %1845
  %1847 = vrot.lane.b32.xlu0 %v1715, 20
  %v1848 = vpop.permute.xlu0 %1847
  %1849 = vrot.lane.b32.xlu0 %v1716, 20
  %v1850 = vpop.permute.xlu0 %1849
  %1851 = vrot.lane.b32.xlu0 %v1717, 20
  %v1852 = vpop.permute.xlu0 %1851
  %1853 = vrot.lane.b32.xlu0 %v1718, 20
  %v1854 = vpop.permute.xlu0 %1853
  %1855 = vrot.lane.b32.xlu0 %v1719, 20
  %v1856 = vpop.permute.xlu0 %1855
  %1857 = vrot.lane.b32.xlu0 %v1720, 20
  %v1858 = vpop.permute.xlu0 %1857
  %1859 = vrot.lane.b32.xlu0 %v1721, 20
  %v1860 = vpop.permute.xlu0 %1859
  %1861 = vrot.lane.b32.xlu0 %v1722, 20
  %v1862 = vpop.permute.xlu0 %1861
  %1863 = vrot.lane.b32.xlu0 %v1723, 20
  %v1864 = vpop.permute.xlu0 %1863
  %1865 = vrot.lane.b32.xlu0 %v1724, 20
  %v1866 = vpop.permute.xlu0 %1865
  %1867 = vrot.lane.b32.xlu0 %v1725, 20
  %v1868 = vpop.permute.xlu0 %1867
  %1869 = vrot.lane.b32.xlu0 %v1726, 20
  %v1870 = vpop.permute.xlu0 %1869
  %1871 = vrot.lane.b32.xlu0 %v1727, 20
  %v1872 = vpop.permute.xlu0 %1871
  %1873 = vrot.lane.b32.xlu0 %v1728, 20
  %v1874 = vpop.permute.xlu0 %1873
  %1875 = vrot.lane.b32.xlu0 %v1729, 20
  %v1876 = vpop.permute.xlu0 %1875
  %1877 = vrot.lane.b32.xlu0 %v1730, 20
  %v1878 = vpop.permute.xlu0 %1877
  %1879 = vrot.lane.b32.xlu0 %v1731, 20
  %v1880 = vpop.permute.xlu0 %1879
  %1881 = vrot.lane.b32.xlu0 %v1732, 20
  %v1882 = vpop.permute.xlu0 %1881
  %1883 = vrot.lane.b32.xlu0 %v1733, 20
  %v1884 = vpop.permute.xlu0 %1883
  %1885 = vrot.lane.b32.xlu0 %v1734, 20
  %v1886 = vpop.permute.xlu0 %1885
  %1887 = vrot.lane.b32.xlu0 %v1735, 20
  %v1888 = vpop.permute.xlu0 %1887
  %1889 = vrot.lane.b32.xlu0 %v1736, 20
  %v1890 = vpop.permute.xlu0 %1889
  %1891 = vrot.lane.b32.xlu0 %v1737, 20
  %v1892 = vpop.permute.xlu0 %1891
  %1893 = vrot.lane.b32.xlu0 %v1738, 20
  %v1894 = vpop.permute.xlu0 %1893
  %1895 = vrot.lane.b32.xlu0 %v1739, 20
  %v1896 = vpop.permute.xlu0 %1895
  %1897 = vrot.lane.b32.xlu0 %v1740, 20
  %v1898 = vpop.permute.xlu0 %1897
  %1899 = vrot.lane.b32.xlu0 %v1741, 20
  %v1900 = vpop.permute.xlu0 %1899
  %1901 = vrot.lane.b32.xlu0 %v1742, 20
  %v1902 = vpop.permute.xlu0 %1901
  %1903 = vrot.lane.b32.xlu0 %v1743, 20
  %v1904 = vpop.permute.xlu0 %1903
  %1905 = vrot.lane.b32.xlu0 %v1744, 20
  %v1906 = vpop.permute.xlu0 %1905
  %1907 = vrot.lane.b32.xlu0 %v1745, 20
  %v1908 = vpop.permute.xlu0 %1907
  %1909 = vrot.lane.b32.xlu0 %v1746, 20
  %v1910 = vpop.permute.xlu0 %1909
  %1911 = vrot.lane.b32.xlu0 %v1747, 20
  %v1912 = vpop.permute.xlu0 %1911
  %1913 = vrot.lane.b32.xlu0 %v1748, 20
  %v1914 = vpop.permute.xlu0 %1913
  %1915 = vrot.lane.b32.xlu0 %v1749, 20
  %v1916 = vpop.permute.xlu0 %1915
  %1917 = vrot.lane.b32.xlu0 %v1750, 20
  %v1918 = vpop.permute.xlu0 %1917
  %1919 = vrot.lane.b32.xlu0 %v1751, 20
  %v1920 = vpop.permute.xlu0 %1919
  %1921 = vrot.lane.b32.xlu0 %v1752, 20
  %v1922 = vpop.permute.xlu0 %1921
  %1923 = vrot.lane.b32.xlu0 %v1753, 20
  %v1924 = vpop.permute.xlu0 %1923
  %1925 = vrot.lane.b32.xlu0 %v1754, 20
  %v1926 = vpop.permute.xlu0 %1925
  %1927 = vrot.lane.b32.xlu0 %v1755, 20
  %v1928 = vpop.permute.xlu0 %1927
  %1929 = vrot.lane.b32.xlu0 %v1756, 20
  %v1930 = vpop.permute.xlu0 %1929
  %1931 = vrot.lane.b32.xlu0 %v1757, 20
  %v1932 = vpop.permute.xlu0 %1931
  %1933 = vrot.lane.b32.xlu0 %v1758, 20
  %v1934 = vpop.permute.xlu0 %1933
  %1935 = vrot.lane.b32.xlu0 %v1759, 20
  %v1936 = vpop.permute.xlu0 %1935
  %1937 = vrot.lane.b32.xlu0 %v1760, 20
  %v1938 = vpop.permute.xlu0 %1937
  %1939 = vrot.lane.b32.xlu0 %v1761, 20
  %v1940 = vpop.permute.xlu0 %1939
  %1941 = vrot.lane.b32.xlu0 %v1762, 20
  %v1942 = vpop.permute.xlu0 %1941
  %1943 = vrot.lane.b32.xlu0 %v1763, 20
  %v1944 = vpop.permute.xlu0 %1943
  %1945 = vrot.lane.b32.xlu0 %v1764, 20
  %v1946 = vpop.permute.xlu0 %1945
  %1947 = vrot.lane.b32.xlu0 %v1765, 20
  %v1948 = vpop.permute.xlu0 %1947
  %1949 = vrot.lane.b32.xlu0 %v1766, 20
  %v1950 = vpop.permute.xlu0 %1949
  %1951 = vrot.lane.b32.xlu0 %v1767, 20
  %v1952 = vpop.permute.xlu0 %1951
  %1953 = vrot.lane.b32.xlu0 %v1768, 20
  %v1954 = vpop.permute.xlu0 %1953
  %1955 = vrot.lane.b32.xlu0 %v1769, 20
  %v1956 = vpop.permute.xlu0 %1955
  %1957 = vrot.lane.b32.xlu0 %v1770, 20
  %v1958 = vpop.permute.xlu0 %1957
  %1959 = vrot.lane.b32.xlu0 %v1771, 20
  %v1960 = vpop.permute.xlu0 %1959
  %1961 = vrot.lane.b32.xlu0 %v1772, 20
  %v1962 = vpop.permute.xlu0 %1961
  %1963 = vrot.lane.b32.xlu0 %v1773, 20
  %v1964 = vpop.permute.xlu0 %1963
  %1965 = vrot.lane.b32.xlu0 %v1774, 20
  %v1966 = vpop.permute.xlu0 %1965
  %vm2031 = vcmask 195744
  %2032 = vst.msk [vmem:[#allocation2] sm:$0xff] %vm2031, %v1840
  %vm2033 = vcmask 194720
  %2034 = vst.msk [vmem:[#allocation2 + $0x8] sm:$0x7f] %vm2033, %v1842
  %2035 = vst.msk [vmem:[#allocation2 + $0x10] sm:$0xff] %vm2031, %v1844
  %2036 = vst.msk [vmem:[#allocation2 + $0x18] sm:$0x7f] %vm2033, %v1846
  %2037 = vst.msk [vmem:[#allocation2 + $0x20] sm:$0xff] %vm2031, %v1848
  %2038 = vst.msk [vmem:[#allocation2 + $0x28] sm:$0x7f] %vm2033, %v1850
  %2039 = vst.msk [vmem:[#allocation2 + $0x30] sm:$0xff] %vm2031, %v1852
  %2040 = vst.msk [vmem:[#allocation2 + $0x38] sm:$0x7f] %vm2033, %v1854
  %2041 = vst.msk [vmem:[#allocation2 + $0x40] sm:$0xff] %vm2031, %v1856
  %2042 = vst.msk [vmem:[#allocation2 + $0x48] sm:$0x7f] %vm2033, %v1858
  %2043 = vst.msk [vmem:[#allocation2 + $0x50] sm:$0xff] %vm2031, %v1860
  %2044 = vst.msk [vmem:[#allocation2 + $0x58] sm:$0x7f] %vm2033, %v1862
  %2045 = vst.msk [vmem:[#allocation2 + $0x60] sm:$0xff] %vm2031, %v1864
  %2046 = vst.msk [vmem:[#allocation2 + $0x68] sm:$0x7f] %vm2033, %v1866
  %2047 = vst.msk [vmem:[#allocation2 + $0x70] sm:$0xff] %vm2031, %v1868
  %2048 = vst.msk [vmem:[#allocation2 + $0x78] sm:$0x7f] %vm2033, %v1870
  %2049 = vst.msk [vmem:[#allocation2 + $0x80] sm:$0xff] %vm2031, %v1872
  %2050 = vst.msk [vmem:[#allocation2 + $0x88] sm:$0x7f] %vm2033, %v1874
  %2051 = vst.msk [vmem:[#allocation2 + $0x90] sm:$0xff] %vm2031, %v1876
  %2052 = vst.msk [vmem:[#allocation2 + $0x98] sm:$0x7f] %vm2033, %v1878
  %2053 = vst.msk [vmem:[#allocation2 + $0xa0] sm:$0xff] %vm2031, %v1880
  %2054 = vst.msk [vmem:[#allocation2 + $0xa8] sm:$0x7f] %vm2033, %v1882
  %2055 = vst.msk [vmem:[#allocation2 + $0xb0] sm:$0xff] %vm2031, %v1884
  %2056 = vst.msk [vmem:[#allocation2 + $0xb8] sm:$0x7f] %vm2033, %v1886
  %2057 = vst.msk [vmem:[#allocation2 + $0xc0] sm:$0xff] %vm2031, %v1888
  %2058 = vst.msk [vmem:[#allocation2 + $0xc8] sm:$0x7f] %vm2033, %v1890
  %2059 = vst.msk [vmem:[#allocation2 + $0xd0] sm:$0xff] %vm2031, %v1892
  %2060 = vst.msk [vmem:[#allocation2 + $0xd8] sm:$0x7f] %vm2033, %v1894
  %2061 = vst.msk [vmem:[#allocation2 + $0xe0] sm:$0xff] %vm2031, %v1896
  %2062 = vst.msk [vmem:[#allocation2 + $0xe8] sm:$0x7f] %vm2033, %v1898
  %2063 = vst.msk [vmem:[#allocation2 + $0xf0] sm:$0xff] %vm2031, %v1900
  %2064 = vst.msk [vmem:[#allocation2 + $0xf8] sm:$0x7f] %vm2033, %v1902
  %2065 = vst.msk [vmem:[#allocation2 + $0x100] sm:$0xff] %vm2031, %v1904
  %2066 = vst.msk [vmem:[#allocation2 + $0x108] sm:$0x7f] %vm2033, %v1906
  %2067 = vst.msk [vmem:[#allocation2 + $0x110] sm:$0xff] %vm2031, %v1908
  %2068 = vst.msk [vmem:[#allocation2 + $0x118] sm:$0x7f] %vm2033, %v1910
  %2069 = vst.msk [vmem:[#allocation2 + $0x120] sm:$0xff] %vm2031, %v1912
  %2070 = vst.msk [vmem:[#allocation2 + $0x128] sm:$0x7f] %vm2033, %v1914
  %2071 = vst.msk [vmem:[#allocation2 + $0x130] sm:$0xff] %vm2031, %v1916
  %2072 = vst.msk [vmem:[#allocation2 + $0x138] sm:$0x7f] %vm2033, %v1918
  %2073 = vst.msk [vmem:[#allocation2 + $0x140] sm:$0xff] %vm2031, %v1920
  %2074 = vst.msk [vmem:[#allocation2 + $0x148] sm:$0x7f] %vm2033, %v1922
  %2075 = vst.msk [vmem:[#allocation2 + $0x150] sm:$0xff] %vm2031, %v1924
  %2076 = vst.msk [vmem:[#allocation2 + $0x158] sm:$0x7f] %vm2033, %v1926
  %2077 = vst.msk [vmem:[#allocation2 + $0x160] sm:$0xff] %vm2031, %v1928
  %2078 = vst.msk [vmem:[#allocation2 + $0x168] sm:$0x7f] %vm2033, %v1930
  %2079 = vst.msk [vmem:[#allocation2 + $0x170] sm:$0xff] %vm2031, %v1932
  %2080 = vst.msk [vmem:[#allocation2 + $0x178] sm:$0x7f] %vm2033, %v1934
  %2081 = vst.msk [vmem:[#allocation2 + $0x180] sm:$0xff] %vm2031, %v1936
  %2082 = vst.msk [vmem:[#allocation2 + $0x188] sm:$0x7f] %vm2033, %v1938
  %2083 = vst.msk [vmem:[#allocation2 + $0x190] sm:$0xff] %vm2031, %v1940
  %2084 = vst.msk [vmem:[#allocation2 + $0x198] sm:$0x7f] %vm2033, %v1942
  %2085 = vst.msk [vmem:[#allocation2 + $0x1a0] sm:$0xff] %vm2031, %v1944
  %2086 = vst.msk [vmem:[#allocation2 + $0x1a8] sm:$0x7f] %vm2033, %v1946
  %2087 = vst.msk [vmem:[#allocation2 + $0x1b0] sm:$0xff] %vm2031, %v1948
  %2088 = vst.msk [vmem:[#allocation2 + $0x1b8] sm:$0x7f] %vm2033, %v1950
  %2089 = vst.msk [vmem:[#allocation2 + $0x1c0] sm:$0xff] %vm2031, %v1952
  %2090 = vst.msk [vmem:[#allocation2 + $0x1c8] sm:$0x7f] %vm2033, %v1954
  %2091 = vst.msk [vmem:[#allocation2 + $0x1d0] sm:$0xff] %vm2031, %v1956
  %2092 = vst.msk [vmem:[#allocation2 + $0x1d8] sm:$0x7f] %vm2033, %v1958
  %2093 = vst.msk [vmem:[#allocation2 + $0x1e0] sm:$0xff] %vm2031, %v1960
  %2094 = vst.msk [vmem:[#allocation2 + $0x1e8] sm:$0x7f] %vm2033, %v1962
  %2095 = vst.msk [vmem:[#allocation2 + $0x1f0] sm:$0xff] %vm2031, %v1964
  %2096 = vst.msk [vmem:[#allocation2 + $0x1f8] sm:$0x7f] %vm2033, %v1966
  %s2097 = scalar_lea.vmem %s0, 16
  %v2098 = vld [vmem:[%s2097] sm:$0xff]
  %v2099 = vld [vmem:[%s2097 + $0x8] sm:$0x7f]
  %v2100 = vld [vmem:[%s2097 + $0x10] sm:$0xff]
  %v2101 = vld [vmem:[%s2097 + $0x18] sm:$0x7f]
  %v2102 = vld [vmem:[%s2097 + $0x20] sm:$0xff]
  %v2103 = vld [vmem:[%s2097 + $0x28] sm:$0x7f]
  %v2104 = vld [vmem:[%s2097 + $0x30] sm:$0xff]
  %v2105 = vld [vmem:[%s2097 + $0x38] sm:$0x7f]
  %v2106 = vld [vmem:[%s2097 + $0x40] sm:$0xff]
  %v2107 = vld [vmem:[%s2097 + $0x48] sm:$0x7f]
  %v2108 = vld [vmem:[%s2097 + $0x50] sm:$0xff]
  %v2109 = vld [vmem:[%s2097 + $0x58] sm:$0x7f]
  %v2110 = vld [vmem:[%s2097 + $0x60] sm:$0xff]
  %v2111 = vld [vmem:[%s2097 + $0x68] sm:$0x7f]
  %v2112 = vld [vmem:[%s2097 + $0x70] sm:$0xff]
  %v2113 = vld [vmem:[%s2097 + $0x78] sm:$0x7f]
  %v2114 = vld [vmem:[%s2097 + $0x80] sm:$0xff]
  %v2115 = vld [vmem:[%s2097 + $0x88] sm:$0x7f]
  %v2116 = vld [vmem:[%s2097 + $0x90] sm:$0xff]
  %v2117 = vld [vmem:[%s2097 + $0x98] sm:$0x7f]
  %v2118 = vld [vmem:[%s2097 + $0xa0] sm:$0xff]
  %v2119 = vld [vmem:[%s2097 + $0xa8] sm:$0x7f]
  %v2120 = vld [vmem:[%s2097 + $0xb0] sm:$0xff]
  %v2121 = vld [vmem:[%s2097 + $0xb8] sm:$0x7f]
  %v2122 = vld [vmem:[%s2097 + $0xc0] sm:$0xff]
  %v2123 = vld [vmem:[%s2097 + $0xc8] sm:$0x7f]
  %v2124 = vld [vmem:[%s2097 + $0xd0] sm:$0xff]
  %v2125 = vld [vmem:[%s2097 + $0xd8] sm:$0x7f]
  %v2126 = vld [vmem:[%s2097 + $0xe0] sm:$0xff]
  %v2127 = vld [vmem:[%s2097 + $0xe8] sm:$0x7f]
  %v2128 = vld [vmem:[%s2097 + $0x100] sm:$0xff]
  %v2129 = vld [vmem:[%s2097 + $0x108] sm:$0x7f]
  %v2130 = vld [vmem:[%s2097 + $0x110] sm:$0xff]
  %v2131 = vld [vmem:[%s2097 + $0x118] sm:$0x7f]
  %v2132 = vld [vmem:[%s2097 + $0x120] sm:$0xff]
  %v2133 = vld [vmem:[%s2097 + $0x128] sm:$0x7f]
  %v2134 = vld [vmem:[%s2097 + $0x130] sm:$0xff]
  %v2135 = vld [vmem:[%s2097 + $0x138] sm:$0x7f]
  %v2136 = vld [vmem:[%s2097 + $0x140] sm:$0xff]
  %v2137 = vld [vmem:[%s2097 + $0x148] sm:$0x7f]
  %v2138 = vld [vmem:[%s2097 + $0x150] sm:$0xff]
  %v2139 = vld [vmem:[%s2097 + $0x158] sm:$0x7f]
  %v2140 = vld [vmem:[%s2097 + $0x160] sm:$0xff]
  %v2141 = vld [vmem:[%s2097 + $0x168] sm:$0x7f]
  %v2142 = vld [vmem:[%s2097 + $0x170] sm:$0xff]
  %v2143 = vld [vmem:[%s2097 + $0x178] sm:$0x7f]
  %v2144 = vld [vmem:[%s2097 + $0x180] sm:$0xff]
  %v2145 = vld [vmem:[%s2097 + $0x188] sm:$0x7f]
  %v2146 = vld [vmem:[%s2097 + $0x190] sm:$0xff]
  %v2147 = vld [vmem:[%s2097 + $0x198] sm:$0x7f]
  %v2148 = vld [vmem:[%s2097 + $0x1a0] sm:$0xff]
  %v2149 = vld [vmem:[%s2097 + $0x1a8] sm:$0x7f]
  %v2150 = vld [vmem:[%s2097 + $0x1b0] sm:$0xff]
  %v2151 = vld [vmem:[%s2097 + $0x1b8] sm:$0x7f]
  %v2152 = vld [vmem:[%s2097 + $0x1c0] sm:$0xff]
  %v2153 = vld [vmem:[%s2097 + $0x1c8] sm:$0x7f]
  %v2154 = vld [vmem:[%s2097 + $0x1d0] sm:$0xff]
  %v2155 = vld [vmem:[%s2097 + $0x1d8] sm:$0x7f]
  %v2156 = vld [vmem:[%s2097 + $0x1e0] sm:$0xff]
  %v2157 = vld [vmem:[%s2097 + $0x1e8] sm:$0x7f]
  %2218 = vrot.lane.b32.xlu0 %v2098, 24
  %v2219 = vpop.permute.xlu0 %2218
  %2220 = vrot.lane.b32.xlu0 %v2099, 24
  %v2221 = vpop.permute.xlu0 %2220
  %2222 = vrot.lane.b32.xlu0 %v2100, 24
  %v2223 = vpop.permute.xlu0 %2222
  %2224 = vrot.lane.b32.xlu0 %v2101, 24
  %v2225 = vpop.permute.xlu0 %2224
  %2226 = vrot.lane.b32.xlu0 %v2102, 24
  %v2227 = vpop.permute.xlu0 %2226
  %2228 = vrot.lane.b32.xlu0 %v2103, 24
  %v2229 = vpop.permute.xlu0 %2228
  %2230 = vrot.lane.b32.xlu0 %v2104, 24
  %v2231 = vpop.permute.xlu0 %2230
  %2232 = vrot.lane.b32.xlu0 %v2105, 24
  %v2233 = vpop.permute.xlu0 %2232
  %2234 = vrot.lane.b32.xlu0 %v2106, 24
  %v2235 = vpop.permute.xlu0 %2234
  %2236 = vrot.lane.b32.xlu0 %v2107, 24
  %v2237 = vpop.permute.xlu0 %2236
  %2238 = vrot.lane.b32.xlu0 %v2108, 24
  %v2239 = vpop.permute.xlu0 %2238
  %2240 = vrot.lane.b32.xlu0 %v2109, 24
  %v2241 = vpop.permute.xlu0 %2240
  %2242 = vrot.lane.b32.xlu0 %v2110, 24
  %v2243 = vpop.permute.xlu0 %2242
  %2244 = vrot.lane.b32.xlu0 %v2111, 24
  %v2245 = vpop.permute.xlu0 %2244
  %2246 = vrot.lane.b32.xlu0 %v2112, 24
  %v2247 = vpop.permute.xlu0 %2246
  %2248 = vrot.lane.b32.xlu0 %v2113, 24
  %v2249 = vpop.permute.xlu0 %2248
  %2250 = vrot.lane.b32.xlu0 %v2114, 24
  %v2251 = vpop.permute.xlu0 %2250
  %2252 = vrot.lane.b32.xlu0 %v2115, 24
  %v2253 = vpop.permute.xlu0 %2252
  %2254 = vrot.lane.b32.xlu0 %v2116, 24
  %v2255 = vpop.permute.xlu0 %2254
  %2256 = vrot.lane.b32.xlu0 %v2117, 24
  %v2257 = vpop.permute.xlu0 %2256
  %2258 = vrot.lane.b32.xlu0 %v2118, 24
  %v2259 = vpop.permute.xlu0 %2258
  %2260 = vrot.lane.b32.xlu0 %v2119, 24
  %v2261 = vpop.permute.xlu0 %2260
  %2262 = vrot.lane.b32.xlu0 %v2120, 24
  %v2263 = vpop.permute.xlu0 %2262
  %2264 = vrot.lane.b32.xlu0 %v2121, 24
  %v2265 = vpop.permute.xlu0 %2264
  %2266 = vrot.lane.b32.xlu0 %v2122, 24
  %v2267 = vpop.permute.xlu0 %2266
  %2268 = vrot.lane.b32.xlu0 %v2123, 24
  %v2269 = vpop.permute.xlu0 %2268
  %2270 = vrot.lane.b32.xlu0 %v2124, 24
  %v2271 = vpop.permute.xlu0 %2270
  %2272 = vrot.lane.b32.xlu0 %v2125, 24
  %v2273 = vpop.permute.xlu0 %2272
  %2274 = vrot.lane.b32.xlu0 %v2126, 24
  %v2275 = vpop.permute.xlu0 %2274
  %2276 = vrot.lane.b32.xlu0 %v2127, 24
  %v2277 = vpop.permute.xlu0 %2276
  %2278 = vrot.lane.b32.xlu0 %v2128, 24
  %v2279 = vpop.permute.xlu0 %2278
  %2280 = vrot.lane.b32.xlu0 %v2129, 24
  %v2281 = vpop.permute.xlu0 %2280
  %2282 = vrot.lane.b32.xlu0 %v2130, 24
  %v2283 = vpop.permute.xlu0 %2282
  %2284 = vrot.lane.b32.xlu0 %v2131, 24
  %v2285 = vpop.permute.xlu0 %2284
  %2286 = vrot.lane.b32.xlu0 %v2132, 24
  %v2287 = vpop.permute.xlu0 %2286
  %2288 = vrot.lane.b32.xlu0 %v2133, 24
  %v2289 = vpop.permute.xlu0 %2288
  %2290 = vrot.lane.b32.xlu0 %v2134, 24
  %v2291 = vpop.permute.xlu0 %2290
  %2292 = vrot.lane.b32.xlu0 %v2135, 24
  %v2293 = vpop.permute.xlu0 %2292
  %2294 = vrot.lane.b32.xlu0 %v2136, 24
  %v2295 = vpop.permute.xlu0 %2294
  %2296 = vrot.lane.b32.xlu0 %v2137, 24
  %v2297 = vpop.permute.xlu0 %2296
  %2298 = vrot.lane.b32.xlu0 %v2138, 24
  %v2299 = vpop.permute.xlu0 %2298
  %2300 = vrot.lane.b32.xlu0 %v2139, 24
  %v2301 = vpop.permute.xlu0 %2300
  %2302 = vrot.lane.b32.xlu0 %v2140, 24
  %v2303 = vpop.permute.xlu0 %2302
  %2304 = vrot.lane.b32.xlu0 %v2141, 24
  %v2305 = vpop.permute.xlu0 %2304
  %2306 = vrot.lane.b32.xlu0 %v2142, 24
  %v2307 = vpop.permute.xlu0 %2306
  %2308 = vrot.lane.b32.xlu0 %v2143, 24
  %v2309 = vpop.permute.xlu0 %2308
  %2310 = vrot.lane.b32.xlu0 %v2144, 24
  %v2311 = vpop.permute.xlu0 %2310
  %2312 = vrot.lane.b32.xlu0 %v2145, 24
  %v2313 = vpop.permute.xlu0 %2312
  %2314 = vrot.lane.b32.xlu0 %v2146, 24
  %v2315 = vpop.permute.xlu0 %2314
  %2316 = vrot.lane.b32.xlu0 %v2147, 24
  %v2317 = vpop.permute.xlu0 %2316
  %2318 = vrot.lane.b32.xlu0 %v2148, 24
  %v2319 = vpop.permute.xlu0 %2318
  %2320 = vrot.lane.b32.xlu0 %v2149, 24
  %v2321 = vpop.permute.xlu0 %2320
  %2322 = vrot.lane.b32.xlu0 %v2150, 24
  %v2323 = vpop.permute.xlu0 %2322
  %2324 = vrot.lane.b32.xlu0 %v2151, 24
  %v2325 = vpop.permute.xlu0 %2324
  %2326 = vrot.lane.b32.xlu0 %v2152, 24
  %v2327 = vpop.permute.xlu0 %2326
  %2328 = vrot.lane.b32.xlu0 %v2153, 24
  %v2329 = vpop.permute.xlu0 %2328
  %2330 = vrot.lane.b32.xlu0 %v2154, 24
  %v2331 = vpop.permute.xlu0 %2330
  %2332 = vrot.lane.b32.xlu0 %v2155, 24
  %v2333 = vpop.permute.xlu0 %2332
  %2334 = vrot.lane.b32.xlu0 %v2156, 24
  %v2335 = vpop.permute.xlu0 %2334
  %2336 = vrot.lane.b32.xlu0 %v2157, 24
  %v2337 = vpop.permute.xlu0 %2336
  %vm2398 = vcmask 228544
  %2399 = vst.msk [vmem:[#allocation2 + $0x1] sm:$0xff] %vm2398, %v2219
  %vm2400 = vcmask 227520
  %2401 = vst.msk [vmem:[#allocation2 + $0x9] sm:$0x7f] %vm2400, %v2221
  %2402 = vst.msk [vmem:[#allocation2 + $0x11] sm:$0xff] %vm2398, %v2223
  %2403 = vst.msk [vmem:[#allocation2 + $0x19] sm:$0x7f] %vm2400, %v2225
  %2404 = vst.msk [vmem:[#allocation2 + $0x21] sm:$0xff] %vm2398, %v2227
  %2405 = vst.msk [vmem:[#allocation2 + $0x29] sm:$0x7f] %vm2400, %v2229
  %2406 = vst.msk [vmem:[#allocation2 + $0x31] sm:$0xff] %vm2398, %v2231
  %2407 = vst.msk [vmem:[#allocation2 + $0x39] sm:$0x7f] %vm2400, %v2233
  %2408 = vst.msk [vmem:[#allocation2 + $0x41] sm:$0xff] %vm2398, %v2235
  %2409 = vst.msk [vmem:[#allocation2 + $0x49] sm:$0x7f] %vm2400, %v2237
  %2410 = vst.msk [vmem:[#allocation2 + $0x51] sm:$0xff] %vm2398, %v2239
  %2411 = vst.msk [vmem:[#allocation2 + $0x59] sm:$0x7f] %vm2400, %v2241
  %2412 = vst.msk [vmem:[#allocation2 + $0x61] sm:$0xff] %vm2398, %v2243
  %2413 = vst.msk [vmem:[#allocation2 + $0x69] sm:$0x7f] %vm2400, %v2245
  %2414 = vst.msk [vmem:[#allocation2 + $0x71] sm:$0xff] %vm2398, %v2247
  %2415 = vst.msk [vmem:[#allocation2 + $0x79] sm:$0x7f] %vm2400, %v2249
  %2416 = vst.msk [vmem:[#allocation2 + $0x81] sm:$0xff] %vm2398, %v2251
  %2417 = vst.msk [vmem:[#allocation2 + $0x89] sm:$0x7f] %vm2400, %v2253
  %2418 = vst.msk [vmem:[#allocation2 + $0x91] sm:$0xff] %vm2398, %v2255
  %2419 = vst.msk [vmem:[#allocation2 + $0x99] sm:$0x7f] %vm2400, %v2257
  %2420 = vst.msk [vmem:[#allocation2 + $0xa1] sm:$0xff] %vm2398, %v2259
  %2421 = vst.msk [vmem:[#allocation2 + $0xa9] sm:$0x7f] %vm2400, %v2261
  %2422 = vst.msk [vmem:[#allocation2 + $0xb1] sm:$0xff] %vm2398, %v2263
  %2423 = vst.msk [vmem:[#allocation2 + $0xb9] sm:$0x7f] %vm2400, %v2265
  %2424 = vst.msk [vmem:[#allocation2 + $0xc1] sm:$0xff] %vm2398, %v2267
  %2425 = vst.msk [vmem:[#allocation2 + $0xc9] sm:$0x7f] %vm2400, %v2269
  %2426 = vst.msk [vmem:[#allocation2 + $0xd1] sm:$0xff] %vm2398, %v2271
  %2427 = vst.msk [vmem:[#allocation2 + $0xd9] sm:$0x7f] %vm2400, %v2273
  %2428 = vst.msk [vmem:[#allocation2 + $0xe1] sm:$0xff] %vm2398, %v2275
  %2429 = vst.msk [vmem:[#allocation2 + $0xe9] sm:$0x7f] %vm2400, %v2277
  %2430 = vst.msk [vmem:[#allocation2 + $0x101] sm:$0xff] %vm2398, %v2279
  %2431 = vst.msk [vmem:[#allocation2 + $0x109] sm:$0x7f] %vm2400, %v2281
  %2432 = vst.msk [vmem:[#allocation2 + $0x111] sm:$0xff] %vm2398, %v2283
  %2433 = vst.msk [vmem:[#allocation2 + $0x119] sm:$0x7f] %vm2400, %v2285
  %2434 = vst.msk [vmem:[#allocation2 + $0x121] sm:$0xff] %vm2398, %v2287
  %2435 = vst.msk [vmem:[#allocation2 + $0x129] sm:$0x7f] %vm2400, %v2289
  %2436 = vst.msk [vmem:[#allocation2 + $0x131] sm:$0xff] %vm2398, %v2291
  %2437 = vst.msk [vmem:[#allocation2 + $0x139] sm:$0x7f] %vm2400, %v2293
  %2438 = vst.msk [vmem:[#allocation2 + $0x141] sm:$0xff] %vm2398, %v2295
  %2439 = vst.msk [vmem:[#allocation2 + $0x149] sm:$0x7f] %vm2400, %v2297
  %2440 = vst.msk [vmem:[#allocation2 + $0x151] sm:$0xff] %vm2398, %v2299
  %2441 = vst.msk [vmem:[#allocation2 + $0x159] sm:$0x7f] %vm2400, %v2301
  %2442 = vst.msk [vmem:[#allocation2 + $0x161] sm:$0xff] %vm2398, %v2303
  %2443 = vst.msk [vmem:[#allocation2 + $0x169] sm:$0x7f] %vm2400, %v2305
  %2444 = vst.msk [vmem:[#allocation2 + $0x171] sm:$0xff] %vm2398, %v2307
  %2445 = vst.msk [vmem:[#allocation2 + $0x179] sm:$0x7f] %vm2400, %v2309
  %2446 = vst.msk [vmem:[#allocation2 + $0x181] sm:$0xff] %vm2398, %v2311
  %2447 = vst.msk [vmem:[#allocation2 + $0x189] sm:$0x7f] %vm2400, %v2313
  %2448 = vst.msk [vmem:[#allocation2 + $0x191] sm:$0xff] %vm2398, %v2315
  %2449 = vst.msk [vmem:[#allocation2 + $0x199] sm:$0x7f] %vm2400, %v2317
  %2450 = vst.msk [vmem:[#allocation2 + $0x1a1] sm:$0xff] %vm2398, %v2319
  %2451 = vst.msk [vmem:[#allocation2 + $0x1a9] sm:$0x7f] %vm2400, %v2321
  %2452 = vst.msk [vmem:[#allocation2 + $0x1b1] sm:$0xff] %vm2398, %v2323
  %2453 = vst.msk [vmem:[#allocation2 + $0x1b9] sm:$0x7f] %vm2400, %v2325
  %2454 = vst.msk [vmem:[#allocation2 + $0x1c1] sm:$0xff] %vm2398, %v2327
  %2455 = vst.msk [vmem:[#allocation2 + $0x1c9] sm:$0x7f] %vm2400, %v2329
  %2456 = vst.msk [vmem:[#allocation2 + $0x1d1] sm:$0xff] %vm2398, %v2331
  %2457 = vst.msk [vmem:[#allocation2 + $0x1d9] sm:$0x7f] %vm2400, %v2333
  %2458 = vst.msk [vmem:[#allocation2 + $0x1e1] sm:$0xff] %vm2398, %v2335
  %2459 = vst.msk [vmem:[#allocation2 + $0x1e9] sm:$0x7f] %vm2400, %v2337
  %v2460 = vld [vmem:[%s2097] sm:$0xff]
  %v2461 = vld [vmem:[%s2097 + $0x8] sm:$0xff]
  %v2462 = vld [vmem:[%s2097 + $0x10] sm:$0xff]
  %v2463 = vld [vmem:[%s2097 + $0x18] sm:$0xff]
  %v2464 = vld [vmem:[%s2097 + $0x20] sm:$0xff]
  %v2465 = vld [vmem:[%s2097 + $0x28] sm:$0xff]
  %v2466 = vld [vmem:[%s2097 + $0x30] sm:$0xff]
  %v2467 = vld [vmem:[%s2097 + $0x38] sm:$0xff]
  %v2468 = vld [vmem:[%s2097 + $0x40] sm:$0xff]
  %v2469 = vld [vmem:[%s2097 + $0x48] sm:$0xff]
  %v2470 = vld [vmem:[%s2097 + $0x50] sm:$0xff]
  %v2471 = vld [vmem:[%s2097 + $0x58] sm:$0xff]
  %v2472 = vld [vmem:[%s2097 + $0x60] sm:$0xff]
  %v2473 = vld [vmem:[%s2097 + $0x68] sm:$0xff]
  %v2474 = vld [vmem:[%s2097 + $0x70] sm:$0xff]
  %v2475 = vld [vmem:[%s2097 + $0x78] sm:$0xff]
  %v2476 = vld [vmem:[%s2097 + $0x80] sm:$0xff]
  %v2477 = vld [vmem:[%s2097 + $0x88] sm:$0xff]
  %v2478 = vld [vmem:[%s2097 + $0x90] sm:$0xff]
  %v2479 = vld [vmem:[%s2097 + $0x98] sm:$0xff]
  %v2480 = vld [vmem:[%s2097 + $0xa0] sm:$0xff]
  %v2481 = vld [vmem:[%s2097 + $0xa8] sm:$0xff]
  %v2482 = vld [vmem:[%s2097 + $0xb0] sm:$0xff]
  %v2483 = vld [vmem:[%s2097 + $0xb8] sm:$0xff]
  %v2484 = vld [vmem:[%s2097 + $0xc0] sm:$0xff]
  %v2485 = vld [vmem:[%s2097 + $0xc8] sm:$0xff]
  %v2486 = vld [vmem:[%s2097 + $0xd0] sm:$0xff]
  %v2487 = vld [vmem:[%s2097 + $0xd8] sm:$0xff]
  %v2488 = vld [vmem:[%s2097 + $0xe0] sm:$0xff]
  %v2489 = vld [vmem:[%s2097 + $0xe8] sm:$0xff]
  %v2490 = vld [vmem:[%s2097 + $0x100] sm:$0xff]
  %v2491 = vld [vmem:[%s2097 + $0x108] sm:$0xff]
  %v2492 = vld [vmem:[%s2097 + $0x110] sm:$0xff]
  %v2493 = vld [vmem:[%s2097 + $0x118] sm:$0xff]
  %v2494 = vld [vmem:[%s2097 + $0x120] sm:$0xff]
  %v2495 = vld [vmem:[%s2097 + $0x128] sm:$0xff]
  %v2496 = vld [vmem:[%s2097 + $0x130] sm:$0xff]
  %v2497 = vld [vmem:[%s2097 + $0x138] sm:$0xff]
  %v2498 = vld [vmem:[%s2097 + $0x140] sm:$0xff]
  %v2499 = vld [vmem:[%s2097 + $0x148] sm:$0xff]
  %v2500 = vld [vmem:[%s2097 + $0x150] sm:$0xff]
  %v2501 = vld [vmem:[%s2097 + $0x158] sm:$0xff]
  %v2502 = vld [vmem:[%s2097 + $0x160] sm:$0xff]
  %v2503 = vld [vmem:[%s2097 + $0x168] sm:$0xff]
  %v2504 = vld [vmem:[%s2097 + $0x170] sm:$0xff]
  %v2505 = vld [vmem:[%s2097 + $0x178] sm:$0xff]
  %v2506 = vld [vmem:[%s2097 + $0x180] sm:$0xff]
  %v2507 = vld [vmem:[%s2097 + $0x188] sm:$0xff]
  %v2508 = vld [vmem:[%s2097 + $0x190] sm:$0xff]
  %v2509 = vld [vmem:[%s2097 + $0x198] sm:$0xff]
  %v2510 = vld [vmem:[%s2097 + $0x1a0] sm:$0xff]
  %v2511 = vld [vmem:[%s2097 + $0x1a8] sm:$0xff]
  %v2512 = vld [vmem:[%s2097 + $0x1b0] sm:$0xff]
  %v2513 = vld [vmem:[%s2097 + $0x1b8] sm:$0xff]
  %v2514 = vld [vmem:[%s2097 + $0x1c0] sm:$0xff]
  %v2515 = vld [vmem:[%s2097 + $0x1c8] sm:$0xff]
  %v2516 = vld [vmem:[%s2097 + $0x1d0] sm:$0xff]
  %v2517 = vld [vmem:[%s2097 + $0x1d8] sm:$0xff]
  %v2518 = vld [vmem:[%s2097 + $0x1e0] sm:$0xff]
  %v2519 = vld [vmem:[%s2097 + $0x1e8] sm:$0xff]
  %2580 = vrot.lane.b32.xlu0 %v2460, 28
  %v2581 = vpop.permute.xlu0 %2580
  %2582 = vrot.lane.b32.xlu0 %v2461, 28
  %v2583 = vpop.permute.xlu0 %2582
  %2584 = vrot.lane.b32.xlu0 %v2462, 28
  %v2585 = vpop.permute.xlu0 %2584
  %2586 = vrot.lane.b32.xlu0 %v2463, 28
  %v2587 = vpop.permute.xlu0 %2586
  %2588 = vrot.lane.b32.xlu0 %v2464, 28
  %v2589 = vpop.permute.xlu0 %2588
  %2590 = vrot.lane.b32.xlu0 %v2465, 28
  %v2591 = vpop.permute.xlu0 %2590
  %2592 = vrot.lane.b32.xlu0 %v2466, 28
  %v2593 = vpop.permute.xlu0 %2592
  %2594 = vrot.lane.b32.xlu0 %v2467, 28
  %v2595 = vpop.permute.xlu0 %2594
  %2596 = vrot.lane.b32.xlu0 %v2468, 28
  %v2597 = vpop.permute.xlu0 %2596
  %2598 = vrot.lane.b32.xlu0 %v2469, 28
  %v2599 = vpop.permute.xlu0 %2598
  %2600 = vrot.lane.b32.xlu0 %v2470, 28
  %v2601 = vpop.permute.xlu0 %2600
  %2602 = vrot.lane.b32.xlu0 %v2471, 28
  %v2603 = vpop.permute.xlu0 %2602
  %2604 = vrot.lane.b32.xlu0 %v2472, 28
  %v2605 = vpop.permute.xlu0 %2604
  %2606 = vrot.lane.b32.xlu0 %v2473, 28
  %v2607 = vpop.permute.xlu0 %2606
  %2608 = vrot.lane.b32.xlu0 %v2474, 28
  %v2609 = vpop.permute.xlu0 %2608
  %2610 = vrot.lane.b32.xlu0 %v2475, 28
  %v2611 = vpop.permute.xlu0 %2610
  %2612 = vrot.lane.b32.xlu0 %v2476, 28
  %v2613 = vpop.permute.xlu0 %2612
  %2614 = vrot.lane.b32.xlu0 %v2477, 28
  %v2615 = vpop.permute.xlu0 %2614
  %2616 = vrot.lane.b32.xlu0 %v2478, 28
  %v2617 = vpop.permute.xlu0 %2616
  %2618 = vrot.lane.b32.xlu0 %v2479, 28
  %v2619 = vpop.permute.xlu0 %2618
  %2620 = vrot.lane.b32.xlu0 %v2480, 28
  %v2621 = vpop.permute.xlu0 %2620
  %2622 = vrot.lane.b32.xlu0 %v2481, 28
  %v2623 = vpop.permute.xlu0 %2622
  %2624 = vrot.lane.b32.xlu0 %v2482, 28
  %v2625 = vpop.permute.xlu0 %2624
  %2626 = vrot.lane.b32.xlu0 %v2483, 28
  %v2627 = vpop.permute.xlu0 %2626
  %2628 = vrot.lane.b32.xlu0 %v2484, 28
  %v2629 = vpop.permute.xlu0 %2628
  %2630 = vrot.lane.b32.xlu0 %v2485, 28
  %v2631 = vpop.permute.xlu0 %2630
  %2632 = vrot.lane.b32.xlu0 %v2486, 28
  %v2633 = vpop.permute.xlu0 %2632
  %2634 = vrot.lane.b32.xlu0 %v2487, 28
  %v2635 = vpop.permute.xlu0 %2634
  %2636 = vrot.lane.b32.xlu0 %v2488, 28
  %v2637 = vpop.permute.xlu0 %2636
  %2638 = vrot.lane.b32.xlu0 %v2489, 28
  %v2639 = vpop.permute.xlu0 %2638
  %2640 = vrot.lane.b32.xlu0 %v2490, 28
  %v2641 = vpop.permute.xlu0 %2640
  %2642 = vrot.lane.b32.xlu0 %v2491, 28
  %v2643 = vpop.permute.xlu0 %2642
  %2644 = vrot.lane.b32.xlu0 %v2492, 28
  %v2645 = vpop.permute.xlu0 %2644
  %2646 = vrot.lane.b32.xlu0 %v2493, 28
  %v2647 = vpop.permute.xlu0 %2646
  %2648 = vrot.lane.b32.xlu0 %v2494, 28
  %v2649 = vpop.permute.xlu0 %2648
  %2650 = vrot.lane.b32.xlu0 %v2495, 28
  %v2651 = vpop.permute.xlu0 %2650
  %2652 = vrot.lane.b32.xlu0 %v2496, 28
  %v2653 = vpop.permute.xlu0 %2652
  %2654 = vrot.lane.b32.xlu0 %v2497, 28
  %v2655 = vpop.permute.xlu0 %2654
  %2656 = vrot.lane.b32.xlu0 %v2498, 28
  %v2657 = vpop.permute.xlu0 %2656
  %2658 = vrot.lane.b32.xlu0 %v2499, 28
  %v2659 = vpop.permute.xlu0 %2658
  %2660 = vrot.lane.b32.xlu0 %v2500, 28
  %v2661 = vpop.permute.xlu0 %2660
  %2662 = vrot.lane.b32.xlu0 %v2501, 28
  %v2663 = vpop.permute.xlu0 %2662
  %2664 = vrot.lane.b32.xlu0 %v2502, 28
  %v2665 = vpop.permute.xlu0 %2664
  %2666 = vrot.lane.b32.xlu0 %v2503, 28
  %v2667 = vpop.permute.xlu0 %2666
  %2668 = vrot.lane.b32.xlu0 %v2504, 28
  %v2669 = vpop.permute.xlu0 %2668
  %2670 = vrot.lane.b32.xlu0 %v2505, 28
  %v2671 = vpop.permute.xlu0 %2670
  %2672 = vrot.lane.b32.xlu0 %v2506, 28
  %v2673 = vpop.permute.xlu0 %2672
  %2674 = vrot.lane.b32.xlu0 %v2507, 28
  %v2675 = vpop.permute.xlu0 %2674
  %2676 = vrot.lane.b32.xlu0 %v2508, 28
  %v2677 = vpop.permute.xlu0 %2676
  %2678 = vrot.lane.b32.xlu0 %v2509, 28
  %v2679 = vpop.permute.xlu0 %2678
  %2680 = vrot.lane.b32.xlu0 %v2510, 28
  %v2681 = vpop.permute.xlu0 %2680
  %2682 = vrot.lane.b32.xlu0 %v2511, 28
  %v2683 = vpop.permute.xlu0 %2682
  %2684 = vrot.lane.b32.xlu0 %v2512, 28
  %v2685 = vpop.permute.xlu0 %2684
  %2686 = vrot.lane.b32.xlu0 %v2513, 28
  %v2687 = vpop.permute.xlu0 %2686
  %2688 = vrot.lane.b32.xlu0 %v2514, 28
  %v2689 = vpop.permute.xlu0 %2688
  %2690 = vrot.lane.b32.xlu0 %v2515, 28
  %v2691 = vpop.permute.xlu0 %2690
  %2692 = vrot.lane.b32.xlu0 %v2516, 28
  %v2693 = vpop.permute.xlu0 %2692
  %2694 = vrot.lane.b32.xlu0 %v2517, 28
  %v2695 = vpop.permute.xlu0 %2694
  %2696 = vrot.lane.b32.xlu0 %v2518, 28
  %v2697 = vpop.permute.xlu0 %2696
  %2698 = vrot.lane.b32.xlu0 %v2519, 28
  %v2699 = vpop.permute.xlu0 %2698
  %vm2760 = vcmask 261344
  %2761 = vst.msk [vmem:[#allocation2] sm:$0xff] %vm2760, %v2581
  %2762 = vst.msk [vmem:[#allocation2 + $0x8] sm:$0xff] %vm2760, %v2583
  %2763 = vst.msk [vmem:[#allocation2 + $0x10] sm:$0xff] %vm2760, %v2585
  %2764 = vst.msk [vmem:[#allocation2 + $0x18] sm:$0xff] %vm2760, %v2587
  %2765 = vst.msk [vmem:[#allocation2 + $0x20] sm:$0xff] %vm2760, %v2589
  %2766 = vst.msk [vmem:[#allocation2 + $0x28] sm:$0xff] %vm2760, %v2591
  %2767 = vst.msk [vmem:[#allocation2 + $0x30] sm:$0xff] %vm2760, %v2593
  %2768 = vst.msk [vmem:[#allocation2 + $0x38] sm:$0xff] %vm2760, %v2595
  %2769 = vst.msk [vmem:[#allocation2 + $0x40] sm:$0xff] %vm2760, %v2597
  %2770 = vst.msk [vmem:[#allocation2 + $0x48] sm:$0xff] %vm2760, %v2599
  %2771 = vst.msk [vmem:[#allocation2 + $0x50] sm:$0xff] %vm2760, %v2601
  %2772 = vst.msk [vmem:[#allocation2 + $0x58] sm:$0xff] %vm2760, %v2603
  %2773 = vst.msk [vmem:[#allocation2 + $0x60] sm:$0xff] %vm2760, %v2605
  %2774 = vst.msk [vmem:[#allocation2 + $0x68] sm:$0xff] %vm2760, %v2607
  %2775 = vst.msk [vmem:[#allocation2 + $0x70] sm:$0xff] %vm2760, %v2609
  %2776 = vst.msk [vmem:[#allocation2 + $0x78] sm:$0xff] %vm2760, %v2611
  %2777 = vst.msk [vmem:[#allocation2 + $0x80] sm:$0xff] %vm2760, %v2613
  %2778 = vst.msk [vmem:[#allocation2 + $0x88] sm:$0xff] %vm2760, %v2615
  %2779 = vst.msk [vmem:[#allocation2 + $0x90] sm:$0xff] %vm2760, %v2617
  %2780 = vst.msk [vmem:[#allocation2 + $0x98] sm:$0xff] %vm2760, %v2619
  %2781 = vst.msk [vmem:[#allocation2 + $0xa0] sm:$0xff] %vm2760, %v2621
  %2782 = vst.msk [vmem:[#allocation2 + $0xa8] sm:$0xff] %vm2760, %v2623
  %2783 = vst.msk [vmem:[#allocation2 + $0xb0] sm:$0xff] %vm2760, %v2625
  %2784 = vst.msk [vmem:[#allocation2 + $0xb8] sm:$0xff] %vm2760, %v2627
  %2785 = vst.msk [vmem:[#allocation2 + $0xc0] sm:$0xff] %vm2760, %v2629
  %2786 = vst.msk [vmem:[#allocation2 + $0xc8] sm:$0xff] %vm2760, %v2631
  %2787 = vst.msk [vmem:[#allocation2 + $0xd0] sm:$0xff] %vm2760, %v2633
  %2788 = vst.msk [vmem:[#allocation2 + $0xd8] sm:$0xff] %vm2760, %v2635
  %2789 = vst.msk [vmem:[#allocation2 + $0xe0] sm:$0xff] %vm2760, %v2637
  %2790 = vst.msk [vmem:[#allocation2 + $0xe8] sm:$0xff] %vm2760, %v2639
  %2791 = vst.msk [vmem:[#allocation2 + $0x100] sm:$0xff] %vm2760, %v2641
  %2792 = vst.msk [vmem:[#allocation2 + $0x108] sm:$0xff] %vm2760, %v2643
  %2793 = vst.msk [vmem:[#allocation2 + $0x110] sm:$0xff] %vm2760, %v2645
  %2794 = vst.msk [vmem:[#allocation2 + $0x118] sm:$0xff] %vm2760, %v2647
  %2795 = vst.msk [vmem:[#allocation2 + $0x120] sm:$0xff] %vm2760, %v2649
  %2796 = vst.msk [vmem:[#allocation2 + $0x128] sm:$0xff] %vm2760, %v2651
  %2797 = vst.msk [vmem:[#allocation2 + $0x130] sm:$0xff] %vm2760, %v2653
  %2798 = vst.msk [vmem:[#allocation2 + $0x138] sm:$0xff] %vm2760, %v2655
  %2799 = vst.msk [vmem:[#allocation2 + $0x140] sm:$0xff] %vm2760, %v2657
  %2800 = vst.msk [vmem:[#allocation2 + $0x148] sm:$0xff] %vm2760, %v2659
  %2801 = vst.msk [vmem:[#allocation2 + $0x150] sm:$0xff] %vm2760, %v2661
  %2802 = vst.msk [vmem:[#allocation2 + $0x158] sm:$0xff] %vm2760, %v2663
  %2803 = vst.msk [vmem:[#allocation2 + $0x160] sm:$0xff] %vm2760, %v2665
  %2804 = vst.msk [vmem:[#allocation2 + $0x168] sm:$0xff] %vm2760, %v2667
  %2805 = vst.msk [vmem:[#allocation2 + $0x170] sm:$0xff] %vm2760, %v2669
  %2806 = vst.msk [vmem:[#allocation2 + $0x178] sm:$0xff] %vm2760, %v2671
  %2807 = vst.msk [vmem:[#allocation2 + $0x180] sm:$0xff] %vm2760, %v2673
  %2808 = vst.msk [vmem:[#allocation2 + $0x188] sm:$0xff] %vm2760, %v2675
  %2809 = vst.msk [vmem:[#allocation2 + $0x190] sm:$0xff] %vm2760, %v2677
  %2810 = vst.msk [vmem:[#allocation2 + $0x198] sm:$0xff] %vm2760, %v2679
  %2811 = vst.msk [vmem:[#allocation2 + $0x1a0] sm:$0xff] %vm2760, %v2681
  %2812 = vst.msk [vmem:[#allocation2 + $0x1a8] sm:$0xff] %vm2760, %v2683
  %2813 = vst.msk [vmem:[#allocation2 + $0x1b0] sm:$0xff] %vm2760, %v2685
  %2814 = vst.msk [vmem:[#allocation2 + $0x1b8] sm:$0xff] %vm2760, %v2687
  %2815 = vst.msk [vmem:[#allocation2 + $0x1c0] sm:$0xff] %vm2760, %v2689
  %2816 = vst.msk [vmem:[#allocation2 + $0x1c8] sm:$0xff] %vm2760, %v2691
  %2817 = vst.msk [vmem:[#allocation2 + $0x1d0] sm:$0xff] %vm2760, %v2693
  %2818 = vst.msk [vmem:[#allocation2 + $0x1d8] sm:$0xff] %vm2760, %v2695
  %2819 = vst.msk [vmem:[#allocation2 + $0x1e0] sm:$0xff] %vm2760, %v2697
  %2820 = vst.msk [vmem:[#allocation2 + $0x1e8] sm:$0xff] %vm2760, %v2699
  %v2821 = vld [vmem:[%s2097 + $0x1] sm:$0xff]
  %v2822 = vld [vmem:[%s2097 + $0x9] sm:$0x7f]
  %v2823 = vld [vmem:[%s2097 + $0x11] sm:$0xff]
  %v2824 = vld [vmem:[%s2097 + $0x19] sm:$0x7f]
  %v2825 = vld [vmem:[%s2097 + $0x21] sm:$0xff]
  %v2826 = vld [vmem:[%s2097 + $0x29] sm:$0x7f]
  %v2827 = vld [vmem:[%s2097 + $0x31] sm:$0xff]
  %v2828 = vld [vmem:[%s2097 + $0x39] sm:$0x7f]
  %v2829 = vld [vmem:[%s2097 + $0x41] sm:$0xff]
  %v2830 = vld [vmem:[%s2097 + $0x49] sm:$0x7f]
  %v2831 = vld [vmem:[%s2097 + $0x51] sm:$0xff]
  %v2832 = vld [vmem:[%s2097 + $0x59] sm:$0x7f]
  %v2833 = vld [vmem:[%s2097 + $0x61] sm:$0xff]
  %v2834 = vld [vmem:[%s2097 + $0x69] sm:$0x7f]
  %v2835 = vld [vmem:[%s2097 + $0x71] sm:$0xff]
  %v2836 = vld [vmem:[%s2097 + $0x79] sm:$0x7f]
  %v2837 = vld [vmem:[%s2097 + $0x81] sm:$0xff]
  %v2838 = vld [vmem:[%s2097 + $0x89] sm:$0x7f]
  %v2839 = vld [vmem:[%s2097 + $0x91] sm:$0xff]
  %v2840 = vld [vmem:[%s2097 + $0x99] sm:$0x7f]
  %v2841 = vld [vmem:[%s2097 + $0xa1] sm:$0xff]
  %v2842 = vld [vmem:[%s2097 + $0xa9] sm:$0x7f]
  %v2843 = vld [vmem:[%s2097 + $0xb1] sm:$0xff]
  %v2844 = vld [vmem:[%s2097 + $0xb9] sm:$0x7f]
  %v2845 = vld [vmem:[%s2097 + $0xc1] sm:$0xff]
  %v2846 = vld [vmem:[%s2097 + $0xc9] sm:$0x7f]
  %v2847 = vld [vmem:[%s2097 + $0xd1] sm:$0xff]
  %v2848 = vld [vmem:[%s2097 + $0xd9] sm:$0x7f]
  %v2849 = vld [vmem:[%s2097 + $0xe1] sm:$0xff]
  %v2850 = vld [vmem:[%s2097 + $0xe9] sm:$0x7f]
  %v2851 = vld [vmem:[%s2097 + $0x101] sm:$0xff]
  %v2852 = vld [vmem:[%s2097 + $0x109] sm:$0x7f]
  %v2853 = vld [vmem:[%s2097 + $0x111] sm:$0xff]
  %v2854 = vld [vmem:[%s2097 + $0x119] sm:$0x7f]
  %v2855 = vld [vmem:[%s2097 + $0x121] sm:$0xff]
  %v2856 = vld [vmem:[%s2097 + $0x129] sm:$0x7f]
  %v2857 = vld [vmem:[%s2097 + $0x131] sm:$0xff]
  %v2858 = vld [vmem:[%s2097 + $0x139] sm:$0x7f]
  %v2859 = vld [vmem:[%s2097 + $0x141] sm:$0xff]
  %v2860 = vld [vmem:[%s2097 + $0x149] sm:$0x7f]
  %v2861 = vld [vmem:[%s2097 + $0x151] sm:$0xff]
  %v2862 = vld [vmem:[%s2097 + $0x159] sm:$0x7f]
  %v2863 = vld [vmem:[%s2097 + $0x161] sm:$0xff]
  %v2864 = vld [vmem:[%s2097 + $0x169] sm:$0x7f]
  %v2865 = vld [vmem:[%s2097 + $0x171] sm:$0xff]
  %v2866 = vld [vmem:[%s2097 + $0x179] sm:$0x7f]
  %v2867 = vld [vmem:[%s2097 + $0x181] sm:$0xff]
  %v2868 = vld [vmem:[%s2097 + $0x189] sm:$0x7f]
  %v2869 = vld [vmem:[%s2097 + $0x191] sm:$0xff]
  %v2870 = vld [vmem:[%s2097 + $0x199] sm:$0x7f]
  %v2871 = vld [vmem:[%s2097 + $0x1a1] sm:$0xff]
  %v2872 = vld [vmem:[%s2097 + $0x1a9] sm:$0x7f]
  %v2873 = vld [vmem:[%s2097 + $0x1b1] sm:$0xff]
  %v2874 = vld [vmem:[%s2097 + $0x1b9] sm:$0x7f]
  %v2875 = vld [vmem:[%s2097 + $0x1c1] sm:$0xff]
  %v2876 = vld [vmem:[%s2097 + $0x1c9] sm:$0x7f]
  %v2877 = vld [vmem:[%s2097 + $0x1d1] sm:$0xff]
  %v2878 = vld [vmem:[%s2097 + $0x1d9] sm:$0x7f]
  %v2879 = vld [vmem:[%s2097 + $0x1e1] sm:$0xff]
  %v2880 = vld [vmem:[%s2097 + $0x1e9] sm:$0x7f]
  %2941 = vrot.lane.b32.xlu0 %v2821, 32
  %v2942 = vpop.permute.xlu0 %2941
  %2943 = vrot.lane.b32.xlu0 %v2822, 32
  %v2944 = vpop.permute.xlu0 %2943
  %2945 = vrot.lane.b32.xlu0 %v2823, 32
  %v2946 = vpop.permute.xlu0 %2945
  %2947 = vrot.lane.b32.xlu0 %v2824, 32
  %v2948 = vpop.permute.xlu0 %2947
  %2949 = vrot.lane.b32.xlu0 %v2825, 32
  %v2950 = vpop.permute.xlu0 %2949
  %2951 = vrot.lane.b32.xlu0 %v2826, 32
  %v2952 = vpop.permute.xlu0 %2951
  %2953 = vrot.lane.b32.xlu0 %v2827, 32
  %v2954 = vpop.permute.xlu0 %2953
  %2955 = vrot.lane.b32.xlu0 %v2828, 32
  %v2956 = vpop.permute.xlu0 %2955
  %2957 = vrot.lane.b32.xlu0 %v2829, 32
  %v2958 = vpop.permute.xlu0 %2957
  %2959 = vrot.lane.b32.xlu0 %v2830, 32
  %v2960 = vpop.permute.xlu0 %2959
  %2961 = vrot.lane.b32.xlu0 %v2831, 32
  %v2962 = vpop.permute.xlu0 %2961
  %2963 = vrot.lane.b32.xlu0 %v2832, 32
  %v2964 = vpop.permute.xlu0 %2963
  %2965 = vrot.lane.b32.xlu0 %v2833, 32
  %v2966 = vpop.permute.xlu0 %2965
  %2967 = vrot.lane.b32.xlu0 %v2834, 32
  %v2968 = vpop.permute.xlu0 %2967
  %2969 = vrot.lane.b32.xlu0 %v2835, 32
  %v2970 = vpop.permute.xlu0 %2969
  %2971 = vrot.lane.b32.xlu0 %v2836, 32
  %v2972 = vpop.permute.xlu0 %2971
  %2973 = vrot.lane.b32.xlu0 %v2837, 32
  %v2974 = vpop.permute.xlu0 %2973
  %2975 = vrot.lane.b32.xlu0 %v2838, 32
  %v2976 = vpop.permute.xlu0 %2975
  %2977 = vrot.lane.b32.xlu0 %v2839, 32
  %v2978 = vpop.permute.xlu0 %2977
  %2979 = vrot.lane.b32.xlu0 %v2840, 32
  %v2980 = vpop.permute.xlu0 %2979
  %2981 = vrot.lane.b32.xlu0 %v2841, 32
  %v2982 = vpop.permute.xlu0 %2981
  %2983 = vrot.lane.b32.xlu0 %v2842, 32
  %v2984 = vpop.permute.xlu0 %2983
  %2985 = vrot.lane.b32.xlu0 %v2843, 32
  %v2986 = vpop.permute.xlu0 %2985
  %2987 = vrot.lane.b32.xlu0 %v2844, 32
  %v2988 = vpop.permute.xlu0 %2987
  %2989 = vrot.lane.b32.xlu0 %v2845, 32
  %v2990 = vpop.permute.xlu0 %2989
  %2991 = vrot.lane.b32.xlu0 %v2846, 32
  %v2992 = vpop.permute.xlu0 %2991
  %2993 = vrot.lane.b32.xlu0 %v2847, 32
  %v2994 = vpop.permute.xlu0 %2993
  %2995 = vrot.lane.b32.xlu0 %v2848, 32
  %v2996 = vpop.permute.xlu0 %2995
  %2997 = vrot.lane.b32.xlu0 %v2849, 32
  %v2998 = vpop.permute.xlu0 %2997
  %2999 = vrot.lane.b32.xlu0 %v2850, 32
  %v3000 = vpop.permute.xlu0 %2999
  %3001 = vrot.lane.b32.xlu0 %v2851, 32
  %v3002 = vpop.permute.xlu0 %3001
  %3003 = vrot.lane.b32.xlu0 %v2852, 32
  %v3004 = vpop.permute.xlu0 %3003
  %3005 = vrot.lane.b32.xlu0 %v2853, 32
  %v3006 = vpop.permute.xlu0 %3005
  %3007 = vrot.lane.b32.xlu0 %v2854, 32
  %v3008 = vpop.permute.xlu0 %3007
  %3009 = vrot.lane.b32.xlu0 %v2855, 32
  %v3010 = vpop.permute.xlu0 %3009
  %3011 = vrot.lane.b32.xlu0 %v2856, 32
  %v3012 = vpop.permute.xlu0 %3011
  %3013 = vrot.lane.b32.xlu0 %v2857, 32
  %v3014 = vpop.permute.xlu0 %3013
  %3015 = vrot.lane.b32.xlu0 %v2858, 32
  %v3016 = vpop.permute.xlu0 %3015
  %3017 = vrot.lane.b32.xlu0 %v2859, 32
  %v3018 = vpop.permute.xlu0 %3017
  %3019 = vrot.lane.b32.xlu0 %v2860, 32
  %v3020 = vpop.permute.xlu0 %3019
  %3021 = vrot.lane.b32.xlu0 %v2861, 32
  %v3022 = vpop.permute.xlu0 %3021
  %3023 = vrot.lane.b32.xlu0 %v2862, 32
  %v3024 = vpop.permute.xlu0 %3023
  %3025 = vrot.lane.b32.xlu0 %v2863, 32
  %v3026 = vpop.permute.xlu0 %3025
  %3027 = vrot.lane.b32.xlu0 %v2864, 32
  %v3028 = vpop.permute.xlu0 %3027
  %3029 = vrot.lane.b32.xlu0 %v2865, 32
  %v3030 = vpop.permute.xlu0 %3029
  %3031 = vrot.lane.b32.xlu0 %v2866, 32
  %v3032 = vpop.permute.xlu0 %3031
  %3033 = vrot.lane.b32.xlu0 %v2867, 32
  %v3034 = vpop.permute.xlu0 %3033
  %3035 = vrot.lane.b32.xlu0 %v2868, 32
  %v3036 = vpop.permute.xlu0 %3035
  %3037 = vrot.lane.b32.xlu0 %v2869, 32
  %v3038 = vpop.permute.xlu0 %3037
  %3039 = vrot.lane.b32.xlu0 %v2870, 32
  %v3040 = vpop.permute.xlu0 %3039
  %3041 = vrot.lane.b32.xlu0 %v2871, 32
  %v3042 = vpop.permute.xlu0 %3041
  %3043 = vrot.lane.b32.xlu0 %v2872, 32
  %v3044 = vpop.permute.xlu0 %3043
  %3045 = vrot.lane.b32.xlu0 %v2873, 32
  %v3046 = vpop.permute.xlu0 %3045
  %3047 = vrot.lane.b32.xlu0 %v2874, 32
  %v3048 = vpop.permute.xlu0 %3047
  %3049 = vrot.lane.b32.xlu0 %v2875, 32
  %v3050 = vpop.permute.xlu0 %3049
  %3051 = vrot.lane.b32.xlu0 %v2876, 32
  %v3052 = vpop.permute.xlu0 %3051
  %3053 = vrot.lane.b32.xlu0 %v2877, 32
  %v3054 = vpop.permute.xlu0 %3053
  %3055 = vrot.lane.b32.xlu0 %v2878, 32
  %v3056 = vpop.permute.xlu0 %3055
  %3057 = vrot.lane.b32.xlu0 %v2879, 32
  %v3058 = vpop.permute.xlu0 %3057
  %3059 = vrot.lane.b32.xlu0 %v2880, 32
  %v3060 = vpop.permute.xlu0 %3059
  %vm3121 = vcmask 294144
  %3122 = vst.msk [vmem:[#allocation2] sm:$0xff] %vm3121, %v2942
  %vm3123 = vcmask 293120
  %3124 = vst.msk [vmem:[#allocation2 + $0x8] sm:$0x7f] %vm3123, %v2944
  %3125 = vst.msk [vmem:[#allocation2 + $0x10] sm:$0xff] %vm3121, %v2946
  %3126 = vst.msk [vmem:[#allocation2 + $0x18] sm:$0x7f] %vm3123, %v2948
  %3127 = vst.msk [vmem:[#allocation2 + $0x20] sm:$0xff] %vm3121, %v2950
  %3128 = vst.msk [vmem:[#allocation2 + $0x28] sm:$0x7f] %vm3123, %v2952
  %3129 = vst.msk [vmem:[#allocation2 + $0x30] sm:$0xff] %vm3121, %v2954
  %3130 = vst.msk [vmem:[#allocation2 + $0x38] sm:$0x7f] %vm3123, %v2956
  %3131 = vst.msk [vmem:[#allocation2 + $0x40] sm:$0xff] %vm3121, %v2958
  %3132 = vst.msk [vmem:[#allocation2 + $0x48] sm:$0x7f] %vm3123, %v2960
  %3133 = vst.msk [vmem:[#allocation2 + $0x50] sm:$0xff] %vm3121, %v2962
  %3134 = vst.msk [vmem:[#allocation2 + $0x58] sm:$0x7f] %vm3123, %v2964
  %3135 = vst.msk [vmem:[#allocation2 + $0x60] sm:$0xff] %vm3121, %v2966
  %3136 = vst.msk [vmem:[#allocation2 + $0x68] sm:$0x7f] %vm3123, %v2968
  %3137 = vst.msk [vmem:[#allocation2 + $0x70] sm:$0xff] %vm3121, %v2970
  %3138 = vst.msk [vmem:[#allocation2 + $0x78] sm:$0x7f] %vm3123, %v2972
  %3139 = vst.msk [vmem:[#allocation2 + $0x80] sm:$0xff] %vm3121, %v2974
  %3140 = vst.msk [vmem:[#allocation2 + $0x88] sm:$0x7f] %vm3123, %v2976
  %3141 = vst.msk [vmem:[#allocation2 + $0x90] sm:$0xff] %vm3121, %v2978
  %3142 = vst.msk [vmem:[#allocation2 + $0x98] sm:$0x7f] %vm3123, %v2980
  %3143 = vst.msk [vmem:[#allocation2 + $0xa0] sm:$0xff] %vm3121, %v2982
  %3144 = vst.msk [vmem:[#allocation2 + $0xa8] sm:$0x7f] %vm3123, %v2984
  %3145 = vst.msk [vmem:[#allocation2 + $0xb0] sm:$0xff] %vm3121, %v2986
  %3146 = vst.msk [vmem:[#allocation2 + $0xb8] sm:$0x7f] %vm3123, %v2988
  %3147 = vst.msk [vmem:[#allocation2 + $0xc0] sm:$0xff] %vm3121, %v2990
  %3148 = vst.msk [vmem:[#allocation2 + $0xc8] sm:$0x7f] %vm3123, %v2992
  %3149 = vst.msk [vmem:[#allocation2 + $0xd0] sm:$0xff] %vm3121, %v2994
  %3150 = vst.msk [vmem:[#allocation2 + $0xd8] sm:$0x7f] %vm3123, %v2996
  %3151 = vst.msk [vmem:[#allocation2 + $0xe0] sm:$0xff] %vm3121, %v2998
  %3152 = vst.msk [vmem:[#allocation2 + $0xe8] sm:$0x7f] %vm3123, %v3000
  %3153 = vst.msk [vmem:[#allocation2 + $0x100] sm:$0xff] %vm3121, %v3002
  %3154 = vst.msk [vmem:[#allocation2 + $0x108] sm:$0x7f] %vm3123, %v3004
  %3155 = vst.msk [vmem:[#allocation2 + $0x110] sm:$0xff] %vm3121, %v3006
  %3156 = vst.msk [vmem:[#allocation2 + $0x118] sm:$0x7f] %vm3123, %v3008
  %3157 = vst.msk [vmem:[#allocation2 + $0x120] sm:$0xff] %vm3121, %v3010
  %3158 = vst.msk [vmem:[#allocation2 + $0x128] sm:$0x7f] %vm3123, %v3012
  %3159 = vst.msk [vmem:[#allocation2 + $0x130] sm:$0xff] %vm3121, %v3014
  %3160 = vst.msk [vmem:[#allocation2 + $0x138] sm:$0x7f] %vm3123, %v3016
  %3161 = vst.msk [vmem:[#allocation2 + $0x140] sm:$0xff] %vm3121, %v3018
  %3162 = vst.msk [vmem:[#allocation2 + $0x148] sm:$0x7f] %vm3123, %v3020
  %3163 = vst.msk [vmem:[#allocation2 + $0x150] sm:$0xff] %vm3121, %v3022
  %3164 = vst.msk [vmem:[#allocation2 + $0x158] sm:$0x7f] %vm3123, %v3024
  %3165 = vst.msk [vmem:[#allocation2 + $0x160] sm:$0xff] %vm3121, %v3026
  %3166 = vst.msk [vmem:[#allocation2 + $0x168] sm:$0x7f] %vm3123, %v3028
  %3167 = vst.msk [vmem:[#allocation2 + $0x170] sm:$0xff] %vm3121, %v3030
  %3168 = vst.msk [vmem:[#allocation2 + $0x178] sm:$0x7f] %vm3123, %v3032
  %3169 = vst.msk [vmem:[#allocation2 + $0x180] sm:$0xff] %vm3121, %v3034
  %3170 = vst.msk [vmem:[#allocation2 + $0x188] sm:$0x7f] %vm3123, %v3036
  %3171 = vst.msk [vmem:[#allocation2 + $0x190] sm:$0xff] %vm3121, %v3038
  %3172 = vst.msk [vmem:[#allocation2 + $0x198] sm:$0x7f] %vm3123, %v3040
  %3173 = vst.msk [vmem:[#allocation2 + $0x1a0] sm:$0xff] %vm3121, %v3042
  %3174 = vst.msk [vmem:[#allocation2 + $0x1a8] sm:$0x7f] %vm3123, %v3044
  %3175 = vst.msk [vmem:[#allocation2 + $0x1b0] sm:$0xff] %vm3121, %v3046
  %3176 = vst.msk [vmem:[#allocation2 + $0x1b8] sm:$0x7f] %vm3123, %v3048
  %3177 = vst.msk [vmem:[#allocation2 + $0x1c0] sm:$0xff] %vm3121, %v3050
  %3178 = vst.msk [vmem:[#allocation2 + $0x1c8] sm:$0x7f] %vm3123, %v3052
  %3179 = vst.msk [vmem:[#allocation2 + $0x1d0] sm:$0xff] %vm3121, %v3054
  %3180 = vst.msk [vmem:[#allocation2 + $0x1d8] sm:$0x7f] %vm3123, %v3056
  %3181 = vst.msk [vmem:[#allocation2 + $0x1e0] sm:$0xff] %vm3121, %v3058
  %3182 = vst.msk [vmem:[#allocation2 + $0x1e8] sm:$0x7f] %vm3123, %v3060
  %v3183 = vld [vmem:[#allocation2] sm:$0xff]
  %v3184 = vld [vmem:[#allocation2 + $0x8] sm:$0xff]
  %v3185 = vld [vmem:[#allocation2 + $0x10] sm:$0xff]
  %v3186 = vld [vmem:[#allocation2 + $0x18] sm:$0xff]
  %v3187 = vld [vmem:[#allocation2 + $0x20] sm:$0xff]
  %v3188 = vld [vmem:[#allocation2 + $0x28] sm:$0xff]
  %v3189 = vld [vmem:[#allocation2 + $0x30] sm:$0xff]
  %v3190 = vld [vmem:[#allocation2 + $0x38] sm:$0xff]
  %v3191 = vld [vmem:[#allocation2 + $0x40] sm:$0xff]
  %v3192 = vld [vmem:[#allocation2 + $0x48] sm:$0xff]
  %v3193 = vld [vmem:[#allocation2 + $0x50] sm:$0xff]
  %v3194 = vld [vmem:[#allocation2 + $0x58] sm:$0xff]
  %v3195 = vld [vmem:[#allocation2 + $0x60] sm:$0xff]
  %v3196 = vld [vmem:[#allocation2 + $0x68] sm:$0xff]
  %v3197 = vld [vmem:[#allocation2 + $0x70] sm:$0xff]
  %v3198 = vld [vmem:[#allocation2 + $0x78] sm:$0xff]
  %v3199 = vld [vmem:[#allocation2 + $0x80] sm:$0xff]
  %v3200 = vld [vmem:[#allocation2 + $0x88] sm:$0xff]
  %v3201 = vld [vmem:[#allocation2 + $0x90] sm:$0xff]
  %v3202 = vld [vmem:[#allocation2 + $0x98] sm:$0xff]
  %v3203 = vld [vmem:[#allocation2 + $0xa0] sm:$0xff]
  %v3204 = vld [vmem:[#allocation2 + $0xa8] sm:$0xff]
  %v3205 = vld [vmem:[#allocation2 + $0xb0] sm:$0xff]
  %v3206 = vld [vmem:[#allocation2 + $0xb8] sm:$0xff]
  %v3207 = vld [vmem:[#allocation2 + $0xc0] sm:$0xff]
  %v3208 = vld [vmem:[#allocation2 + $0xc8] sm:$0xff]
  %v3209 = vld [vmem:[#allocation2 + $0xd0] sm:$0xff]
  %v3210 = vld [vmem:[#allocation2 + $0xd8] sm:$0xff]
  %v3211 = vld [vmem:[#allocation2 + $0xe0] sm:$0xff]
  %v3212 = vld [vmem:[#allocation2 + $0xe8] sm:$0xff]
  %v3213 = vld [vmem:[#allocation2 + $0xf0] sm:$0xff]
  %v3214 = vld [vmem:[#allocation2 + $0xf8] sm:$0xff]
  %v3215 = vld [vmem:[#allocation2 + $0x100] sm:$0xff]
  %v3216 = vld [vmem:[#allocation2 + $0x108] sm:$0xff]
  %v3217 = vld [vmem:[#allocation2 + $0x110] sm:$0xff]
  %v3218 = vld [vmem:[#allocation2 + $0x118] sm:$0xff]
  %v3219 = vld [vmem:[#allocation2 + $0x120] sm:$0xff]
  %v3220 = vld [vmem:[#allocation2 + $0x128] sm:$0xff]
  %v3221 = vld [vmem:[#allocation2 + $0x130] sm:$0xff]
  %v3222 = vld [vmem:[#allocation2 + $0x138] sm:$0xff]
  %v3223 = vld [vmem:[#allocation2 + $0x140] sm:$0xff]
  %v3224 = vld [vmem:[#allocation2 + $0x148] sm:$0xff]
  %v3225 = vld [vmem:[#allocation2 + $0x150] sm:$0xff]
  %v3226 = vld [vmem:[#allocation2 + $0x158] sm:$0xff]
  %v3227 = vld [vmem:[#allocation2 + $0x160] sm:$0xff]
  %v3228 = vld [vmem:[#allocation2 + $0x168] sm:$0xff]
  %v3229 = vld [vmem:[#allocation2 + $0x170] sm:$0xff]
  %v3230 = vld [vmem:[#allocation2 + $0x178] sm:$0xff]
  %v3231 = vld [vmem:[#allocation2 + $0x180] sm:$0xff]
  %v3232 = vld [vmem:[#allocation2 + $0x188] sm:$0xff]
  %v3233 = vld [vmem:[#allocation2 + $0x190] sm:$0xff]
  %v3234 = vld [vmem:[#allocation2 + $0x198] sm:$0xff]
  %v3235 = vld [vmem:[#allocation2 + $0x1a0] sm:$0xff]
  %v3236 = vld [vmem:[#allocation2 + $0x1a8] sm:$0xff]
  %v3237 = vld [vmem:[#allocation2 + $0x1b0] sm:$0xff]
  %v3238 = vld [vmem:[#allocation2 + $0x1b8] sm:$0xff]
  %v3239 = vld [vmem:[#allocation2 + $0x1c0] sm:$0xff]
  %v3240 = vld [vmem:[#allocation2 + $0x1c8] sm:$0xff]
  %v3241 = vld [vmem:[#allocation2 + $0x1d0] sm:$0xff]
  %v3242 = vld [vmem:[#allocation2 + $0x1d8] sm:$0xff]
  %v3243 = vld [vmem:[#allocation2 + $0x1e0] sm:$0xff]
  %v3244 = vld [vmem:[#allocation2 + $0x1e8] sm:$0xff]
  %v3245 = vld [vmem:[#allocation2 + $0x1f0] sm:$0xff]
  %v3246 = vld [vmem:[#allocation2 + $0x1f8] sm:$0xff]
  %v3247 = vpack.c.bf16 %v3184, %v3183
  %v3248 = vpack.c.bf16 %v3186, %v3185
  %v3249 = vpack.c.bf16 %v3188, %v3187
  %v3250 = vpack.c.bf16 %v3190, %v3189
  %v3251 = vpack.c.bf16 %v3192, %v3191
  %v3252 = vpack.c.bf16 %v3194, %v3193
  %v3253 = vpack.c.bf16 %v3196, %v3195
  %v3254 = vpack.c.bf16 %v3198, %v3197
  %v3255 = vpack.c.bf16 %v3200, %v3199
  %v3256 = vpack.c.bf16 %v3202, %v3201
  %v3257 = vpack.c.bf16 %v3204, %v3203
  %v3258 = vpack.c.bf16 %v3206, %v3205
  %v3259 = vpack.c.bf16 %v3208, %v3207
  %v3260 = vpack.c.bf16 %v3210, %v3209
  %v3261 = vpack.c.bf16 %v3212, %v3211
  %v3262 = vpack.c.bf16 %v3214, %v3213
  %v3263 = vpack.c.bf16 %v3216, %v3215
  %v3264 = vpack.c.bf16 %v3218, %v3217
  %v3265 = vpack.c.bf16 %v3220, %v3219
  %v3266 = vpack.c.bf16 %v3222, %v3221
  %v3267 = vpack.c.bf16 %v3224, %v3223
  %v3268 = vpack.c.bf16 %v3226, %v3225
  %v3269 = vpack.c.bf16 %v3228, %v3227
  %v3270 = vpack.c.bf16 %v3230, %v3229
  %v3271 = vpack.c.bf16 %v3232, %v3231
  %v3272 = vpack.c.bf16 %v3234, %v3233
  %v3273 = vpack.c.bf16 %v3236, %v3235
  %v3274 = vpack.c.bf16 %v3238, %v3237
  %v3275 = vpack.c.bf16 %v3240, %v3239
  %v3276 = vpack.c.bf16 %v3242, %v3241
  %v3277 = vpack.c.bf16 %v3244, %v3243
  %v3278 = vpack.c.bf16 %v3246, %v3245
  %v3279 = vld [vmem:[%s1] sm:$0xf]
  %v3280 = vld [vmem:[%s1 + $0x4] sm:$0xf]
  %v3281 = vld [vmem:[%s1 + $0x8] sm:$0xf]
  %v3282 = vld [vmem:[%s1 + $0xc] sm:$0xf]
  %v3283 = vld [vmem:[%s1 + $0x10] sm:$0xf]
  %v3289 = vunpack.c.l.b16 %v3279
  %v3290 = vunpack.c.l.b16 %v3280
  %v3291 = vunpack.c.l.b16 %v3281
  %v3292 = vunpack.c.l.b16 %v3282
  %v3293 = vunpack.c.l.b16 %v3283
  %v3294 = vpack.c.b16 %v3290, %v3289
  %v3295 = vpack.c.b16 %v3292, %v3291
  %v3296 = vpack.c.b16 %v3293, %v3293
  %v3300 = vsel %vm29, %v3247, 0
  %v3303 = vsel %vm29, %v3248, 0
  %v3306 = vsel %vm29, %v3249, 0
  %v3309 = vsel %vm29, %v3250, 0
  %v3312 = vsel %vm29, %v3251, 0
  %v3315 = vsel %vm29, %v3252, 0
  %v3318 = vsel %vm29, %v3253, 0
  %v3321 = vsel %vm29, %v3254, 0
  %v3324 = vsel %vm29, %v3255, 0
  %v3327 = vsel %vm29, %v3256, 0
  %v3330 = vsel %vm29, %v3257, 0
  %v3333 = vsel %vm29, %v3258, 0
  %v3336 = vsel %vm29, %v3259, 0
  %v3339 = vsel %vm29, %v3260, 0
  %v3342 = vsel %vm29, %v3261, 0
  %v3345 = vsel %vm29, %v3262, 0
  %v3348 = vsel %vm29, %v3263, 0
  %v3351 = vsel %vm29, %v3264, 0
  %v3354 = vsel %vm29, %v3265, 0
  %v3357 = vsel %vm29, %v3266, 0
  %v3360 = vsel %vm29, %v3267, 0
  %v3363 = vsel %vm29, %v3268, 0
  %v3366 = vsel %vm29, %v3269, 0
  %v3369 = vsel %vm29, %v3270, 0
  %v3372 = vsel %vm29, %v3271, 0
  %v3375 = vsel %vm29, %v3272, 0
  %v3378 = vsel %vm29, %v3273, 0
  %v3381 = vsel %vm29, %v3274, 0
  %v3384 = vsel %vm29, %v3275, 0
  %v3387 = vsel %vm29, %v3276, 0
  %v3390 = vsel %vm29, %v3277, 0
  %v3393 = vsel %vm29, %v3278, 0
  %vm3395 = vcmask 1043456
  %v3397 = vsel %vm3395, %v3296, 0
  %3399 = vmatprep.subr.bf16.mxu0 0
  %3400 = vmatpush1.bf16.msra.mxu0 %v3294
  %3401 = vmatprep.subr.bf16.mxu0 0
  %3402 = vmatpush1.bf16.msra.mxu0 %v3295
  %3403 = vmatprep.subr.bf16.mxu0 0
  %3404 = vmatpush1.bf16.msra.mxu0 %v3397
  %3405 = vmatprep.subr.bf16.mxu0 0
  %3406 = vmatpush1.bf16.msra.mxu0 0
  %3407 = vmatprep.subr.bf16.mxu0 0
  %3408 = vmatpush1.bf16.msra.mxu0 0
  %3409 = vmatprep.subr.bf16.mxu0 0
  %3410 = vmatpush1.bf16.msra.mxu0 0
  %3411 = vmatprep.subr.bf16.mxu0 0
  %3412 = vmatpush1.bf16.msra.mxu0 0
  %3413 = vmatprep.subr.bf16.mxu0 0
  %3414 = vmatpush1.bf16.msra.mxu0 0
  %3415 = vmatprep.subr.bf16.mxu0 0
  %3416 = vmatpush1.bf16.msra.mxu0 0
  %3417 = vmatprep.subr.bf16.mxu0 0
  %3418 = vmatpush1.bf16.msra.mxu0 0
  %3419 = vmatprep.subr.bf16.mxu0 0
  %3420 = vmatpush1.bf16.msra.mxu0 0
  %3421 = vmatprep.subr.bf16.mxu0 0
  %3422 = vmatpush1.bf16.msra.mxu0 0
  %3423 = vmatprep.subr.bf16.mxu0 0
  %3424 = vmatpush1.bf16.msra.mxu0 0
  %3425 = vmatprep.subr.bf16.mxu0 0
  %3426 = vmatpush1.bf16.msra.mxu0 0
  %3427 = vmatprep.subr.bf16.mxu0 0
  %3428 = vmatpush1.bf16.msra.mxu0 0
  %3429 = vmatprep.subr.bf16.mxu0 0
  %3430 = vmatpush1.bf16.msra.mxu0 0
  %3431 = vmatprep.mubr.bf16.mxu0 0
  %3432 = vmatmul.mubr.bf16.gmra.mrb[0].mxu0 %v3300
  %v3433 = vpop.f32.mrb[0].mxu0
  %v3434 = vadd.f32 0.0, %v3433
  %v3435 = vpop.f32.mrb[0].mxu0
  %v3436 = vpop.f32.mrb[0].mxu0
  %v3437 = vadd.f32 0.0, %v3436
  %v3438 = vpop.f32.mrb[0].mxu0
  %3439 = vmatprep.mubr.bf16.mxu0 0
  %3440 = vmatmul.mubr.bf16.gmra.mrb[0].mxu0 %v3303
  %v3441 = vpop.f32.mrb[0].mxu0
  %v3442 = vadd.f32 0.0, %v3441
  %v3443 = vpop.f32.mrb[0].mxu0
  %v3444 = vpop.f32.mrb[0].mxu0
  %v3445 = vadd.f32 0.0, %v3444
  %v3446 = vpop.f32.mrb[0].mxu0
  %3447 = vmatprep.mubr.bf16.mxu0 0
  %3448 = vmatmul.mubr.bf16.gmra.mrb[0].mxu0 %v3306
  %v3449 = vpop.f32.mrb[0].mxu0
  %v3450 = vadd.f32 0.0, %v3449
  %v3451 = vpop.f32.mrb[0].mxu0
  %v3452 = vpop.f32.mrb[0].mxu0
  %v3453 = vadd.f32 0.0, %v3452
  %v3454 = vpop.f32.mrb[0].mxu0
  %3455 = vmatprep.mubr.bf16.mxu0 0
  %3456 = vmatmul.mubr.bf16.gmra.mrb[0].mxu0 %v3309
  %v3457 = vpop.f32.mrb[0].mxu0
  %v3458 = vadd.f32 0.0, %v3457
  %v3459 = vpop.f32.mrb[0].mxu0
  %v3460 = vpop.f32.mrb[0].mxu0
  %v3461 = vadd.f32 0.0, %v3460
  %v3462 = vpop.f32.mrb[0].mxu0
  %3463 = vmatprep.mubr.bf16.mxu0 0
  %3464 = vmatmul.mubr.bf16.gmra.mrb[0].mxu0 %v3312
  %v3465 = vpop.f32.mrb[0].mxu0
  %v3466 = vadd.f32 0.0, %v3465
  %v3467 = vpop.f32.mrb[0].mxu0
  %v3468 = vpop.f32.mrb[0].mxu0
  %v3469 = vadd.f32 0.0, %v3468
  %v3470 = vpop.f32.mrb[0].mxu0
  %3471 = vmatprep.mubr.bf16.mxu0 0
  %3472 = vmatmul.mubr.bf16.gmra.mrb[0].mxu0 %v3315
  %v3473 = vpop.f32.mrb[0].mxu0
  %v3474 = vadd.f32 0.0, %v3473
  %v3475 = vpop.f32.mrb[0].mxu0
  %v3476 = vpop.f32.mrb[0].mxu0
  %v3477 = vadd.f32 0.0, %v3476
  %v3478 = vpop.f32.mrb[0].mxu0
  %3479 = vmatprep.mubr.bf16.mxu0 0
  %3480 = vmatmul.mubr.bf16.gmra.mrb[0].mxu0 %v3318
  %v3481 = vpop.f32.mrb[0].mxu0
  %v3482 = vadd.f32 0.0, %v3481
  %v3483 = vpop.f32.mrb[0].mxu0
  %v3484 = vpop.f32.mrb[0].mxu0
  %v3485 = vadd.f32 0.0, %v3484
  %v3486 = vpop.f32.mrb[0].mxu0
  %3487 = vmatprep.mubr.bf16.mxu0 0
  %3488 = vmatmul.mubr.bf16.gmra.mrb[0].mxu0 %v3321
  %v3489 = vpop.f32.mrb[0].mxu0
  %v3490 = vadd.f32 0.0, %v3489
  %v3491 = vpop.f32.mrb[0].mxu0
  %v3492 = vpop.f32.mrb[0].mxu0
  %v3493 = vadd.f32 0.0, %v3492
  %v3494 = vpop.f32.mrb[0].mxu0
  %3495 = vmatprep.mubr.bf16.mxu0 0
  %3496 = vmatmul.mubr.bf16.gmra.mrb[0].mxu0 %v3324
  %v3497 = vpop.f32.mrb[0].mxu0
  %v3498 = vadd.f32 0.0, %v3497
  %v3499 = vpop.f32.mrb[0].mxu0
  %v3500 = vpop.f32.mrb[0].mxu0
  %v3501 = vadd.f32 0.0, %v3500
  %v3502 = vpop.f32.mrb[0].mxu0
  %3503 = vmatprep.mubr.bf16.mxu0 0
  %3504 = vmatmul.mubr.bf16.gmra.mrb[0].mxu0 %v3327
  %v3505 = vpop.f32.mrb[0].mxu0
  %v3506 = vadd.f32 0.0, %v3505
  %v3507 = vpop.f32.mrb[0].mxu0
  %v3508 = vpop.f32.mrb[0].mxu0
  %v3509 = vadd.f32 0.0, %v3508
  %v3510 = vpop.f32.mrb[0].mxu0
  %3511 = vmatprep.mubr.bf16.mxu0 0
  %3512 = vmatmul.mubr.bf16.gmra.mrb[0].mxu0 %v3330
  %v3513 = vpop.f32.mrb[0].mxu0
  %v3514 = vadd.f32 0.0, %v3513
  %v3515 = vpop.f32.mrb[0].mxu0
  %v3516 = vpop.f32.mrb[0].mxu0
  %v3517 = vadd.f32 0.0, %v3516
  %v3518 = vpop.f32.mrb[0].mxu0
  %3519 = vmatprep.mubr.bf16.mxu0 0
  %3520 = vmatmul.mubr.bf16.gmra.mrb[0].mxu0 %v3333
  %v3521 = vpop.f32.mrb[0].mxu0
  %v3522 = vadd.f32 0.0, %v3521
  %v3523 = vpop.f32.mrb[0].mxu0
  %v3524 = vpop.f32.mrb[0].mxu0
  %v3525 = vadd.f32 0.0, %v3524
  %v3526 = vpop.f32.mrb[0].mxu0
  %3527 = vmatprep.mubr.bf16.mxu0 0
  %3528 = vmatmul.mubr.bf16.gmra.mrb[0].mxu0 %v3336
  %v3529 = vpop.f32.mrb[0].mxu0
  %v3530 = vadd.f32 0.0, %v3529
  %v3531 = vpop.f32.mrb[0].mxu0
  %v3532 = vpop.f32.mrb[0].mxu0
  %v3533 = vadd.f32 0.0, %v3532
  %v3534 = vpop.f32.mrb[0].mxu0
  %3535 = vmatprep.mubr.bf16.mxu0 0
  %3536 = vmatmul.mubr.bf16.gmra.mrb[0].mxu0 %v3339
  %v3537 = vpop.f32.mrb[0].mxu0
  %v3538 = vadd.f32 0.0, %v3537
  %v3539 = vpop.f32.mrb[0].mxu0
  %v3540 = vpop.f32.mrb[0].mxu0
  %v3541 = vadd.f32 0.0, %v3540
  %v3542 = vpop.f32.mrb[0].mxu0
  %3543 = vmatprep.mubr.bf16.mxu0 0
  %3544 = vmatmul.mubr.bf16.gmra.mrb[0].mxu0 %v3342
  %v3545 = vpop.f32.mrb[0].mxu0
  %v3546 = vadd.f32 0.0, %v3545
  %v3547 = vpop.f32.mrb[0].mxu0
  %v3548 = vpop.f32.mrb[0].mxu0
  %v3549 = vadd.f32 0.0, %v3548
  %v3550 = vpop.f32.mrb[0].mxu0
  %3551 = vmatprep.mubr.bf16.mxu0 0
  %3552 = vmatmul.mubr.bf16.gmra.mrb[0].mxu0 %v3345
  %v3553 = vpop.f32.mrb[0].mxu0
  %v3554 = vadd.f32 0.0, %v3553
  %v3555 = vpop.f32.mrb[0].mxu0
  %v3556 = vpop.f32.mrb[0].mxu0
  %v3557 = vadd.f32 0.0, %v3556
  %v3558 = vpop.f32.mrb[0].mxu0
  %3559 = vmatprep.mubr.bf16.mxu0 0
  %3560 = vmatmul.mubr.bf16.gmra.mrb[0].mxu0 %v3348
  %v3561 = vpop.f32.mrb[0].mxu0
  %v3562 = vadd.f32 0.0, %v3561
  %v3563 = vpop.f32.mrb[0].mxu0
  %v3564 = vpop.f32.mrb[0].mxu0
  %v3565 = vadd.f32 0.0, %v3564
  %v3566 = vpop.f32.mrb[0].mxu0
  %3567 = vmatprep.mubr.bf16.mxu0 0
  %3568 = vmatmul.mubr.bf16.gmra.mrb[0].mxu0 %v3351
  %v3569 = vpop.f32.mrb[0].mxu0
  %v3570 = vadd.f32 0.0, %v3569
  %v3571 = vpop.f32.mrb[0].mxu0
  %v3572 = vpop.f32.mrb[0].mxu0
  %v3573 = vadd.f32 0.0, %v3572
  %v3574 = vpop.f32.mrb[0].mxu0
  %3575 = vmatprep.mubr.bf16.mxu0 0
  %3576 = vmatmul.mubr.bf16.gmra.mrb[0].mxu0 %v3354
  %v3577 = vpop.f32.mrb[0].mxu0
  %v3578 = vadd.f32 0.0, %v3577
  %v3579 = vpop.f32.mrb[0].mxu0
  %v3580 = vpop.f32.mrb[0].mxu0
  %v3581 = vadd.f32 0.0, %v3580
  %v3582 = vpop.f32.mrb[0].mxu0
  %3583 = vmatprep.mubr.bf16.mxu0 0
  %3584 = vmatmul.mubr.bf16.gmra.mrb[0].mxu0 %v3357
  %v3585 = vpop.f32.mrb[0].mxu0
  %v3586 = vadd.f32 0.0, %v3585
  %v3587 = vpop.f32.mrb[0].mxu0
  %v3588 = vpop.f32.mrb[0].mxu0
  %v3589 = vadd.f32 0.0, %v3588
  %v3590 = vpop.f32.mrb[0].mxu0
  %3591 = vmatprep.mubr.bf16.mxu0 0
  %3592 = vmatmul.mubr.bf16.gmra.mrb[0].mxu0 %v3360
  %v3593 = vpop.f32.mrb[0].mxu0
  %v3594 = vadd.f32 0.0, %v3593
  %v3595 = vpop.f32.mrb[0].mxu0
  %v3596 = vpop.f32.mrb[0].mxu0
  %v3597 = vadd.f32 0.0, %v3596
  %v3598 = vpop.f32.mrb[0].mxu0
  %3599 = vmatprep.mubr.bf16.mxu0 0
  %3600 = vmatmul.mubr.bf16.gmra.mrb[0].mxu0 %v3363
  %v3601 = vpop.f32.mrb[0].mxu0
  %v3602 = vadd.f32 0.0, %v3601
  %v3603 = vpop.f32.mrb[0].mxu0
  %v3604 = vpop.f32.mrb[0].mxu0
  %v3605 = vadd.f32 0.0, %v3604
  %v3606 = vpop.f32.mrb[0].mxu0
  %3607 = vmatprep.mubr.bf16.mxu0 0
  %3608 = vmatmul.mubr.bf16.gmra.mrb[0].mxu0 %v3366
  %v3609 = vpop.f32.mrb[0].mxu0
  %v3610 = vadd.f32 0.0, %v3609
  %v3611 = vpop.f32.mrb[0].mxu0
  %v3612 = vpop.f32.mrb[0].mxu0
  %v3613 = vadd.f32 0.0, %v3612
  %v3614 = vpop.f32.mrb[0].mxu0
  %3615 = vmatprep.mubr.bf16.mxu0 0
  %3616 = vmatmul.mubr.bf16.gmra.mrb[0].mxu0 %v3369
  %v3617 = vpop.f32.mrb[0].mxu0
  %v3618 = vadd.f32 0.0, %v3617
  %v3619 = vpop.f32.mrb[0].mxu0
  %v3620 = vpop.f32.mrb[0].mxu0
  %v3621 = vadd.f32 0.0, %v3620
  %v3622 = vpop.f32.mrb[0].mxu0
  %3623 = vmatprep.mubr.bf16.mxu0 0
  %3624 = vmatmul.mubr.bf16.gmra.mrb[0].mxu0 %v3372
  %v3625 = vpop.f32.mrb[0].mxu0
  %v3626 = vadd.f32 0.0, %v3625
  %v3627 = vpop.f32.mrb[0].mxu0
  %v3628 = vpop.f32.mrb[0].mxu0
  %v3629 = vadd.f32 0.0, %v3628
  %v3630 = vpop.f32.mrb[0].mxu0
  %3631 = vmatprep.mubr.bf16.mxu0 0
  %3632 = vmatmul.mubr.bf16.gmra.mrb[0].mxu0 %v3375
  %v3633 = vpop.f32.mrb[0].mxu0
  %v3634 = vadd.f32 0.0, %v3633
  %v3635 = vpop.f32.mrb[0].mxu0
  %v3636 = vpop.f32.mrb[0].mxu0
  %v3637 = vadd.f32 0.0, %v3636
  %v3638 = vpop.f32.mrb[0].mxu0
  %3639 = vmatprep.mubr.bf16.mxu0 0
  %3640 = vmatmul.mubr.bf16.gmra.mrb[0].mxu0 %v3378
  %v3641 = vpop.f32.mrb[0].mxu0
  %v3642 = vadd.f32 0.0, %v3641
  %v3643 = vpop.f32.mrb[0].mxu0
  %v3644 = vpop.f32.mrb[0].mxu0
  %v3645 = vadd.f32 0.0, %v3644
  %v3646 = vpop.f32.mrb[0].mxu0
  %3647 = vmatprep.mubr.bf16.mxu0 0
  %3648 = vmatmul.mubr.bf16.gmra.mrb[0].mxu0 %v3381
  %v3649 = vpop.f32.mrb[0].mxu0
  %v3650 = vadd.f32 0.0, %v3649
  %v3651 = vpop.f32.mrb[0].mxu0
  %v3652 = vpop.f32.mrb[0].mxu0
  %v3653 = vadd.f32 0.0, %v3652
  %v3654 = vpop.f32.mrb[0].mxu0
  %3655 = vmatprep.mubr.bf16.mxu0 0
  %3656 = vmatmul.mubr.bf16.gmra.mrb[0].mxu0 %v3384
  %v3657 = vpop.f32.mrb[0].mxu0
  %v3658 = vadd.f32 0.0, %v3657
  %v3659 = vpop.f32.mrb[0].mxu0
  %v3660 = vpop.f32.mrb[0].mxu0
  %v3661 = vadd.f32 0.0, %v3660
  %v3662 = vpop.f32.mrb[0].mxu0
  %3663 = vmatprep.mubr.bf16.mxu0 0
  %3664 = vmatmul.mubr.bf16.gmra.mrb[0].mxu0 %v3387
  %v3665 = vpop.f32.mrb[0].mxu0
  %v3666 = vadd.f32 0.0, %v3665
  %v3667 = vpop.f32.mrb[0].mxu0
  %v3668 = vpop.f32.mrb[0].mxu0
  %v3669 = vadd.f32 0.0, %v3668
  %v3670 = vpop.f32.mrb[0].mxu0
  %3671 = vmatprep.mubr.bf16.mxu0 0
  %3672 = vmatmul.mubr.bf16.gmra.mrb[0].mxu0 %v3390
  %v3673 = vpop.f32.mrb[0].mxu0
  %v3674 = vadd.f32 0.0, %v3673
  %v3675 = vpop.f32.mrb[0].mxu0
  %v3676 = vpop.f32.mrb[0].mxu0
  %v3677 = vadd.f32 0.0, %v3676
  %v3678 = vpop.f32.mrb[0].mxu0
  %3679 = vmatprep.mubr.bf16.mxu0 0
  %3680 = vmatmul.mubr.bf16.gmra.mrb[0].mxu0 %v3393
  %v3681 = vpop.f32.mrb[0].mxu0
  %v3682 = vadd.f32 0.0, %v3681
  %v3683 = vpop.f32.mrb[0].mxu0
  %v3684 = vpop.f32.mrb[0].mxu0
  %v3685 = vadd.f32 0.0, %v3684
  %v3686 = vpop.f32.mrb[0].mxu0
  %3687 = vdwg.mxu0
  %vm3688 = vcmask 64512
  %v3689 = vsel %vm3688, %v3434, 0.0
  %v3690 = vsel %vm3688, %v3437, 0.0
  %v3691 = vadd.f32 %v3689, %v3690
  %v3692 = vsel %vm3688, %v3442, 0.0
  %v3693 = vadd.f32 %v3691, %v3692
  %v3694 = vsel %vm3688, %v3445, 0.0
  %v3695 = vadd.f32 %v3693, %v3694
  %v3696 = vsel %vm3688, %v3450, 0.0
  %v3697 = vadd.f32 %v3695, %v3696
  %v3698 = vsel %vm3688, %v3453, 0.0
  %v3699 = vadd.f32 %v3697, %v3698
  %v3700 = vsel %vm3688, %v3458, 0.0
  %v3701 = vadd.f32 %v3699, %v3700
  %v3702 = vsel %vm3688, %v3461, 0.0
  %v3703 = vadd.f32 %v3701, %v3702
  %v3704 = vsel %vm3688, %v3466, 0.0
  %v3705 = vadd.f32 %v3703, %v3704
  %v3706 = vsel %vm3688, %v3469, 0.0
  %v3707 = vadd.f32 %v3705, %v3706
  %v3708 = vsel %vm3688, %v3474, 0.0
  %v3709 = vadd.f32 %v3707, %v3708
  %v3710 = vsel %vm3688, %v3477, 0.0
  %v3711 = vadd.f32 %v3709, %v3710
  %v3712 = vsel %vm3688, %v3482, 0.0
  %v3713 = vadd.f32 %v3711, %v3712
  %v3714 = vsel %vm3688, %v3485, 0.0
  %v3715 = vadd.f32 %v3713, %v3714
  %v3716 = vsel %vm3688, %v3490, 0.0
  %v3717 = vadd.f32 %v3715, %v3716
  %v3718 = vsel %vm3688, %v3493, 0.0
  %v3719 = vadd.f32 %v3717, %v3718
  %v3720 = vsel %vm3688, %v3498, 0.0
  %v3721 = vadd.f32 %v3719, %v3720
  %v3722 = vsel %vm3688, %v3501, 0.0
  %v3723 = vadd.f32 %v3721, %v3722
  %v3724 = vsel %vm3688, %v3506, 0.0
  %v3725 = vadd.f32 %v3723, %v3724
  %v3726 = vsel %vm3688, %v3509, 0.0
  %v3727 = vadd.f32 %v3725, %v3726
  %v3728 = vsel %vm3688, %v3514, 0.0
  %v3729 = vadd.f32 %v3727, %v3728
  %v3730 = vsel %vm3688, %v3517, 0.0
  %v3731 = vadd.f32 %v3729, %v3730
  %v3732 = vsel %vm3688, %v3522, 0.0
  %v3733 = vadd.f32 %v3731, %v3732
  %v3734 = vsel %vm3688, %v3525, 0.0
  %v3735 = vadd.f32 %v3733, %v3734
  %v3736 = vsel %vm3688, %v3530, 0.0
  %v3737 = vadd.f32 %v3735, %v3736
  %v3738 = vsel %vm3688, %v3533, 0.0
  %v3739 = vadd.f32 %v3737, %v3738
  %v3740 = vsel %vm3688, %v3538, 0.0
  %v3741 = vadd.f32 %v3739, %v3740
  %v3742 = vsel %vm3688, %v3541, 0.0
  %v3743 = vadd.f32 %v3741, %v3742
  %v3744 = vsel %vm3688, %v3546, 0.0
  %v3745 = vadd.f32 %v3743, %v3744
  %v3746 = vsel %vm3688, %v3549, 0.0
  %v3747 = vadd.f32 %v3745, %v3746
  %v3748 = vsel %vm3688, %v3554, 0.0
  %v3749 = vadd.f32 %v3747, %v3748
  %v3750 = vsel %vm3688, %v3557, 0.0
  %v3751 = vadd.f32 %v3749, %v3750
  %v3752 = vsel %vm3688, %v3562, 0.0
  %v3753 = vadd.f32 %v3751, %v3752
  %v3754 = vsel %vm3688, %v3565, 0.0
  %v3755 = vadd.f32 %v3753, %v3754
  %v3756 = vsel %vm3688, %v3570, 0.0
  %v3757 = vadd.f32 %v3755, %v3756
  %v3758 = vsel %vm3688, %v3573, 0.0
  %v3759 = vadd.f32 %v3757, %v3758
  %v3760 = vsel %vm3688, %v3578, 0.0
  %v3761 = vadd.f32 %v3759, %v3760
  %v3762 = vsel %vm3688, %v3581, 0.0
  %v3763 = vadd.f32 %v3761, %v3762
  %v3764 = vsel %vm3688, %v3586, 0.0
  %v3765 = vadd.f32 %v3763, %v3764
  %v3766 = vsel %vm3688, %v3589, 0.0
  %v3767 = vadd.f32 %v3765, %v3766
  %v3768 = vsel %vm3688, %v3594, 0.0
  %v3769 = vadd.f32 %v3767, %v3768
  %v3770 = vsel %vm3688, %v3597, 0.0
  %v3771 = vadd.f32 %v3769, %v3770
  %v3772 = vsel %vm3688, %v3602, 0.0
  %v3773 = vadd.f32 %v3771, %v3772
  %v3774 = vsel %vm3688, %v3605, 0.0
  %v3775 = vadd.f32 %v3773, %v3774
  %v3776 = vsel %vm3688, %v3610, 0.0
  %v3777 = vadd.f32 %v3775, %v3776
  %v3778 = vsel %vm3688, %v3613, 0.0
  %v3779 = vadd.f32 %v3777, %v3778
  %v3780 = vsel %vm3688, %v3618, 0.0
  %v3781 = vadd.f32 %v3779, %v3780
  %v3782 = vsel %vm3688, %v3621, 0.0
  %v3783 = vadd.f32 %v3781, %v3782
  %v3784 = vsel %vm3688, %v3626, 0.0
  %v3785 = vadd.f32 %v3783, %v3784
  %v3786 = vsel %vm3688, %v3629, 0.0
  %v3787 = vadd.f32 %v3785, %v3786
  %v3788 = vsel %vm3688, %v3634, 0.0
  %v3789 = vadd.f32 %v3787, %v3788
  %v3790 = vsel %vm3688, %v3637, 0.0
  %v3791 = vadd.f32 %v3789, %v3790
  %v3792 = vsel %vm3688, %v3642, 0.0
  %v3793 = vadd.f32 %v3791, %v3792
  %v3794 = vsel %vm3688, %v3645, 0.0
  %v3795 = vadd.f32 %v3793, %v3794
  %v3796 = vsel %vm3688, %v3650, 0.0
  %v3797 = vadd.f32 %v3795, %v3796
  %v3798 = vsel %vm3688, %v3653, 0.0
  %v3799 = vadd.f32 %v3797, %v3798
  %v3800 = vsel %vm3688, %v3658, 0.0
  %v3801 = vadd.f32 %v3799, %v3800
  %v3802 = vsel %vm3688, %v3661, 0.0
  %v3803 = vadd.f32 %v3801, %v3802
  %v3804 = vsel %vm3688, %v3666, 0.0
  %v3805 = vadd.f32 %v3803, %v3804
  %v3806 = vsel %vm3688, %v3669, 0.0
  %v3807 = vadd.f32 %v3805, %v3806
  %v3808 = vsel %vm3688, %v3674, 0.0
  %v3809 = vadd.f32 %v3807, %v3808
  %v3810 = vsel %vm3688, %v3677, 0.0
  %v3811 = vadd.f32 %v3809, %v3810
  %v3812 = vsel %vm3688, %v3682, 0.0
  %v3813 = vadd.f32 %v3811, %v3812
  %v3814 = vsel %vm3688, %v3685, 0.0
  %v3815 = vadd.f32 %v3813, %v3814
  %v3816 = vrot.slane %v3815, 4
  %v3817 = vadd.f32 %v3815, %v3816
  %v3818 = vrot.slane %v3817, 2
  %v3819 = vadd.f32 %v3817, %v3818
  %v3820 = vrot.slane %v3819, 1
  %v3821 = vadd.f32 %v3819, %v3820
  %v3822 = vrcp.pop 512.0
  %v3823 = vmul.f32 %v3821, %v3822
  %v3824 = vsub.f32 %v3434, %v3823
  %v3825 = vsub.f32 %v3437, %v3823
  %v3826 = vsub.f32 %v3442, %v3823
  %v3827 = vsub.f32 %v3445, %v3823
  %v3828 = vsub.f32 %v3450, %v3823
  %v3829 = vsub.f32 %v3453, %v3823
  %v3830 = vsub.f32 %v3458, %v3823
  %v3831 = vsub.f32 %v3461, %v3823
  %v3832 = vsub.f32 %v3466, %v3823
  %v3833 = vsub.f32 %v3469, %v3823
  %v3834 = vsub.f32 %v3474, %v3823
  %v3835 = vsub.f32 %v3477, %v3823
  %v3836 = vsub.f32 %v3482, %v3823
  %v3837 = vsub.f32 %v3485, %v3823
  %v3838 = vsub.f32 %v3490, %v3823
  %v3839 = vsub.f32 %v3493, %v3823
  %v3840 = vsub.f32 %v3498, %v3823
  %v3841 = vsub.f32 %v3501, %v3823
  %v3842 = vsub.f32 %v3506, %v3823
  %v3843 = vsub.f32 %v3509, %v3823
  %v3844 = vsub.f32 %v3514, %v3823
  %v3845 = vsub.f32 %v3517, %v3823
  %v3846 = vsub.f32 %v3522, %v3823
  %v3847 = vsub.f32 %v3525, %v3823
  %v3848 = vsub.f32 %v3530, %v3823
  %v3849 = vsub.f32 %v3533, %v3823
  %v3850 = vsub.f32 %v3538, %v3823
  %v3851 = vsub.f32 %v3541, %v3823
  %v3852 = vsub.f32 %v3546, %v3823
  %v3853 = vsub.f32 %v3549, %v3823
  %v3854 = vsub.f32 %v3554, %v3823
  %v3855 = vsub.f32 %v3557, %v3823
  %v3856 = vsub.f32 %v3562, %v3823
  %v3857 = vsub.f32 %v3565, %v3823
  %v3858 = vsub.f32 %v3570, %v3823
  %v3859 = vsub.f32 %v3573, %v3823
  %v3860 = vsub.f32 %v3578, %v3823
  %v3861 = vsub.f32 %v3581, %v3823
  %v3862 = vsub.f32 %v3586, %v3823
  %v3863 = vsub.f32 %v3589, %v3823
  %v3864 = vsub.f32 %v3594, %v3823
  %v3865 = vsub.f32 %v3597, %v3823
  %v3866 = vsub.f32 %v3602, %v3823
  %v3867 = vsub.f32 %v3605, %v3823
  %v3868 = vsub.f32 %v3610, %v3823
  %v3869 = vsub.f32 %v3613, %v3823
  %v3870 = vsub.f32 %v3618, %v3823
  %v3871 = vsub.f32 %v3621, %v3823
  %v3872 = vsub.f32 %v3626, %v3823
  %v3873 = vsub.f32 %v3629, %v3823
  %v3874 = vsub.f32 %v3634, %v3823
  %v3875 = vsub.f32 %v3637, %v3823
  %v3876 = vsub.f32 %v3642, %v3823
  %v3877 = vsub.f32 %v3645, %v3823
  %v3878 = vsub.f32 %v3650, %v3823
  %v3879 = vsub.f32 %v3653, %v3823
  %v3880 = vsub.f32 %v3658, %v3823
  %v3881 = vsub.f32 %v3661, %v3823
  %v3882 = vsub.f32 %v3666, %v3823
  %v3883 = vsub.f32 %v3669, %v3823
  %v3884 = vsub.f32 %v3674, %v3823
  %v3885 = vsub.f32 %v3677, %v3823
  %v3886 = vsub.f32 %v3682, %v3823
  %v3887 = vsub.f32 %v3685, %v3823
  %v3888 = vmul.f32 %v3824, %v3824
  %v3889 = vmul.f32 %v3825, %v3825
  %v3890 = vmul.f32 %v3826, %v3826
  %v3891 = vmul.f32 %v3827, %v3827
  %v3892 = vmul.f32 %v3828, %v3828
  %v3893 = vmul.f32 %v3829, %v3829
  %v3894 = vmul.f32 %v3830, %v3830
  %v3895 = vmul.f32 %v3831, %v3831
  %v3896 = vmul.f32 %v3832, %v3832
  %v3897 = vmul.f32 %v3833, %v3833
  %v3898 = vmul.f32 %v3834, %v3834
  %v3899 = vmul.f32 %v3835, %v3835
  %v3900 = vmul.f32 %v3836, %v3836
  %v3901 = vmul.f32 %v3837, %v3837
  %v3902 = vmul.f32 %v3838, %v3838
  %v3903 = vmul.f32 %v3839, %v3839
  %v3904 = vmul.f32 %v3840, %v3840
  %v3905 = vmul.f32 %v3841, %v3841
  %v3906 = vmul.f32 %v3842, %v3842
  %v3907 = vmul.f32 %v3843, %v3843
  %v3908 = vmul.f32 %v3844, %v3844
  %v3909 = vmul.f32 %v3845, %v3845
  %v3910 = vmul.f32 %v3846, %v3846
  %v3911 = vmul.f32 %v3847, %v3847
  %v3912 = vmul.f32 %v3848, %v3848
  %v3913 = vmul.f32 %v3849, %v3849
  %v3914 = vmul.f32 %v3850, %v3850
  %v3915 = vmul.f32 %v3851, %v3851
  %v3916 = vmul.f32 %v3852, %v3852
  %v3917 = vmul.f32 %v3853, %v3853
  %v3918 = vmul.f32 %v3854, %v3854
  %v3919 = vmul.f32 %v3855, %v3855
  %v3920 = vmul.f32 %v3856, %v3856
  %v3921 = vmul.f32 %v3857, %v3857
  %v3922 = vmul.f32 %v3858, %v3858
  %v3923 = vmul.f32 %v3859, %v3859
  %v3924 = vmul.f32 %v3860, %v3860
  %v3925 = vmul.f32 %v3861, %v3861
  %v3926 = vmul.f32 %v3862, %v3862
  %v3927 = vmul.f32 %v3863, %v3863
  %v3928 = vmul.f32 %v3864, %v3864
  %v3929 = vmul.f32 %v3865, %v3865
  %v3930 = vmul.f32 %v3866, %v3866
  %v3931 = vmul.f32 %v3867, %v3867
  %v3932 = vmul.f32 %v3868, %v3868
  %v3933 = vmul.f32 %v3869, %v3869
  %v3934 = vmul.f32 %v3870, %v3870
  %v3935 = vmul.f32 %v3871, %v3871
  %v3936 = vmul.f32 %v3872, %v3872
  %v3937 = vmul.f32 %v3873, %v3873
  %v3938 = vmul.f32 %v3874, %v3874
  %v3939 = vmul.f32 %v3875, %v3875
  %v3940 = vmul.f32 %v3876, %v3876
  %v3941 = vmul.f32 %v3877, %v3877
  %v3942 = vmul.f32 %v3878, %v3878
  %v3943 = vmul.f32 %v3879, %v3879
  %v3944 = vmul.f32 %v3880, %v3880
  %v3945 = vmul.f32 %v3881, %v3881
  %v3946 = vmul.f32 %v3882, %v3882
  %v3947 = vmul.f32 %v3883, %v3883
  %v3948 = vmul.f32 %v3884, %v3884
  %v3949 = vmul.f32 %v3885, %v3885
  %v3950 = vmul.f32 %v3886, %v3886
  %v3951 = vmul.f32 %v3887, %v3887
  %v3952 = vsel %vm3688, %v3888, 0.0
  %v3953 = vsel %vm3688, %v3889, 0.0
  %v3954 = vadd.f32 %v3952, %v3953
  %v3955 = vsel %vm3688, %v3890, 0.0
  %v3956 = vadd.f32 %v3954, %v3955
  %v3957 = vsel %vm3688, %v3891, 0.0
  %v3958 = vadd.f32 %v3956, %v3957
  %v3959 = vsel %vm3688, %v3892, 0.0
  %v3960 = vadd.f32 %v3958, %v3959
  %v3961 = vsel %vm3688, %v3893, 0.0
  %v3962 = vadd.f32 %v3960, %v3961
  %v3963 = vsel %vm3688, %v3894, 0.0
  %v3964 = vadd.f32 %v3962, %v3963
  %v3965 = vsel %vm3688, %v3895, 0.0
  %v3966 = vadd.f32 %v3964, %v3965
  %v3967 = vsel %vm3688, %v3896, 0.0
  %v3968 = vadd.f32 %v3966, %v3967
  %v3969 = vsel %vm3688, %v3897, 0.0
  %v3970 = vadd.f32 %v3968, %v3969
  %v3971 = vsel %vm3688, %v3898, 0.0
  %v3972 = vadd.f32 %v3970, %v3971
  %v3973 = vsel %vm3688, %v3899, 0.0
  %v3974 = vadd.f32 %v3972, %v3973
  %v3975 = vsel %vm3688, %v3900, 0.0
  %v3976 = vadd.f32 %v3974, %v3975
  %v3977 = vsel %vm3688, %v3901, 0.0
  %v3978 = vadd.f32 %v3976, %v3977
  %v3979 = vsel %vm3688, %v3902, 0.0
  %v3980 = vadd.f32 %v3978, %v3979
  %v3981 = vsel %vm3688, %v3903, 0.0
  %v3982 = vadd.f32 %v3980, %v3981
  %v3983 = vsel %vm3688, %v3904, 0.0
  %v3984 = vadd.f32 %v3982, %v3983
  %v3985 = vsel %vm3688, %v3905, 0.0
  %v3986 = vadd.f32 %v3984, %v3985
  %v3987 = vsel %vm3688, %v3906, 0.0
  %v3988 = vadd.f32 %v3986, %v3987
  %v3989 = vsel %vm3688, %v3907, 0.0
  %v3990 = vadd.f32 %v3988, %v3989
  %v3991 = vsel %vm3688, %v3908, 0.0
  %v3992 = vadd.f32 %v3990, %v3991
  %v3993 = vsel %vm3688, %v3909, 0.0
  %v3994 = vadd.f32 %v3992, %v3993
  %v3995 = vsel %vm3688, %v3910, 0.0
  %v3996 = vadd.f32 %v3994, %v3995
  %v3997 = vsel %vm3688, %v3911, 0.0
  %v3998 = vadd.f32 %v3996, %v3997
  %v3999 = vsel %vm3688, %v3912, 0.0
  %v4000 = vadd.f32 %v3998, %v3999
  %v4001 = vsel %vm3688, %v3913, 0.0
  %v4002 = vadd.f32 %v4000, %v4001
  %v4003 = vsel %vm3688, %v3914, 0.0
  %v4004 = vadd.f32 %v4002, %v4003
  %v4005 = vsel %vm3688, %v3915, 0.0
  %v4006 = vadd.f32 %v4004, %v4005
  %v4007 = vsel %vm3688, %v3916, 0.0
  %v4008 = vadd.f32 %v4006, %v4007
  %v4009 = vsel %vm3688, %v3917, 0.0
  %v4010 = vadd.f32 %v4008, %v4009
  %v4011 = vsel %vm3688, %v3918, 0.0
  %v4012 = vadd.f32 %v4010, %v4011
  %v4013 = vsel %vm3688, %v3919, 0.0
  %v4014 = vadd.f32 %v4012, %v4013
  %v4015 = vsel %vm3688, %v3920, 0.0
  %v4016 = vadd.f32 %v4014, %v4015
  %v4017 = vsel %vm3688, %v3921, 0.0
  %v4018 = vadd.f32 %v4016, %v4017
  %v4019 = vsel %vm3688, %v3922, 0.0
  %v4020 = vadd.f32 %v4018, %v4019
  %v4021 = vsel %vm3688, %v3923, 0.0
  %v4022 = vadd.f32 %v4020, %v4021
  %v4023 = vsel %vm3688, %v3924, 0.0
  %v4024 = vadd.f32 %v4022, %v4023
  %v4025 = vsel %vm3688, %v3925, 0.0
  %v4026 = vadd.f32 %v4024, %v4025
  %v4027 = vsel %vm3688, %v3926, 0.0
  %v4028 = vadd.f32 %v4026, %v4027
  %v4029 = vsel %vm3688, %v3927, 0.0
  %v4030 = vadd.f32 %v4028, %v4029
  %v4031 = vsel %vm3688, %v3928, 0.0
  %v4032 = vadd.f32 %v4030, %v4031
  %v4033 = vsel %vm3688, %v3929, 0.0
  %v4034 = vadd.f32 %v4032, %v4033
  %v4035 = vsel %vm3688, %v3930, 0.0
  %v4036 = vadd.f32 %v4034, %v4035
  %v4037 = vsel %vm3688, %v3931, 0.0
  %v4038 = vadd.f32 %v4036, %v4037
  %v4039 = vsel %vm3688, %v3932, 0.0
  %v4040 = vadd.f32 %v4038, %v4039
  %v4041 = vsel %vm3688, %v3933, 0.0
  %v4042 = vadd.f32 %v4040, %v4041
  %v4043 = vsel %vm3688, %v3934, 0.0
  %v4044 = vadd.f32 %v4042, %v4043
  %v4045 = vsel %vm3688, %v3935, 0.0
  %v4046 = vadd.f32 %v4044, %v4045
  %v4047 = vsel %vm3688, %v3936, 0.0
  %v4048 = vadd.f32 %v4046, %v4047
  %v4049 = vsel %vm3688, %v3937, 0.0
  %v4050 = vadd.f32 %v4048, %v4049
  %v4051 = vsel %vm3688, %v3938, 0.0
  %v4052 = vadd.f32 %v4050, %v4051
  %v4053 = vsel %vm3688, %v3939, 0.0
  %v4054 = vadd.f32 %v4052, %v4053
  %v4055 = vsel %vm3688, %v3940, 0.0
  %v4056 = vadd.f32 %v4054, %v4055
  %v4057 = vsel %vm3688, %v3941, 0.0
  %v4058 = vadd.f32 %v4056, %v4057
  %v4059 = vsel %vm3688, %v3942, 0.0
  %v4060 = vadd.f32 %v4058, %v4059
  %v4061 = vsel %vm3688, %v3943, 0.0
  %v4062 = vadd.f32 %v4060, %v4061
  %v4063 = vsel %vm3688, %v3944, 0.0
  %v4064 = vadd.f32 %v4062, %v4063
  %v4065 = vsel %vm3688, %v3945, 0.0
  %v4066 = vadd.f32 %v4064, %v4065
  %v4067 = vsel %vm3688, %v3946, 0.0
  %v4068 = vadd.f32 %v4066, %v4067
  %v4069 = vsel %vm3688, %v3947, 0.0
  %v4070 = vadd.f32 %v4068, %v4069
  %v4071 = vsel %vm3688, %v3948, 0.0
  %v4072 = vadd.f32 %v4070, %v4071
  %v4073 = vsel %vm3688, %v3949, 0.0
  %v4074 = vadd.f32 %v4072, %v4073
  %v4075 = vsel %vm3688, %v3950, 0.0
  %v4076 = vadd.f32 %v4074, %v4075
  %v4077 = vsel %vm3688, %v3951, 0.0
  %v4078 = vadd.f32 %v4076, %v4077
  %v4079 = vrot.slane %v4078, 4
  %v4080 = vadd.f32 %v4078, %v4079
  %v4081 = vrot.slane %v4080, 2
  %v4082 = vadd.f32 %v4080, %v4081
  %v4083 = vrot.slane %v4082, 1
  %v4084 = vadd.f32 %v4082, %v4083
  %v4085 = vmul.f32 %v4084, %v3822
  %v4086 = vadd.f32 %v4085, 1e-05
  %v4087 = vrsqrt.pop %v4086
  %v4088 = vmul.f32 %v27, %v4087
  %v4089 = vmul.f32 %v3823, %v4088
  %v4090 = vsub.f32 %v28, %v4089
  %v4092 = vlaneseq
  %v4093 = vshrl.u32 %v4092, 7
  %v4094 = vsub.s32 0, %v4093
  %v4095 = vrot.slane %v4088, %v4094
  %v4097 = vmul.f32 %v3434, %v4095
  %v4098 = vmul.f32 %v3437, %v4095
  %v4099 = vmul.f32 %v3442, %v4095
  %v4100 = vmul.f32 %v3445, %v4095
  %v4101 = vmul.f32 %v3450, %v4095
  %v4102 = vmul.f32 %v3453, %v4095
  %v4103 = vmul.f32 %v3458, %v4095
  %v4104 = vmul.f32 %v3461, %v4095
  %v4105 = vmul.f32 %v3466, %v4095
  %v4106 = vmul.f32 %v3469, %v4095
  %v4107 = vmul.f32 %v3474, %v4095
  %v4108 = vmul.f32 %v3477, %v4095
  %v4109 = vmul.f32 %v3482, %v4095
  %v4110 = vmul.f32 %v3485, %v4095
  %v4111 = vmul.f32 %v3490, %v4095
  %v4112 = vmul.f32 %v3493, %v4095
  %v4113 = vmul.f32 %v3498, %v4095
  %v4114 = vmul.f32 %v3501, %v4095
  %v4115 = vmul.f32 %v3506, %v4095
  %v4116 = vmul.f32 %v3509, %v4095
  %v4117 = vmul.f32 %v3514, %v4095
  %v4118 = vmul.f32 %v3517, %v4095
  %v4119 = vmul.f32 %v3522, %v4095
  %v4120 = vmul.f32 %v3525, %v4095
  %v4121 = vmul.f32 %v3530, %v4095
  %v4122 = vmul.f32 %v3533, %v4095
  %v4123 = vmul.f32 %v3538, %v4095
  %v4124 = vmul.f32 %v3541, %v4095
  %v4125 = vmul.f32 %v3546, %v4095
  %v4126 = vmul.f32 %v3549, %v4095
  %v4127 = vmul.f32 %v3554, %v4095
  %v4128 = vmul.f32 %v3557, %v4095
  %v4129 = vmul.f32 %v3562, %v4095
  %v4130 = vmul.f32 %v3565, %v4095
  %v4131 = vmul.f32 %v3570, %v4095
  %v4132 = vmul.f32 %v3573, %v4095
  %v4133 = vmul.f32 %v3578, %v4095
  %v4134 = vmul.f32 %v3581, %v4095
  %v4135 = vmul.f32 %v3586, %v4095
  %v4136 = vmul.f32 %v3589, %v4095
  %v4137 = vmul.f32 %v3594, %v4095
  %v4138 = vmul.f32 %v3597, %v4095
  %v4139 = vmul.f32 %v3602, %v4095
  %v4140 = vmul.f32 %v3605, %v4095
  %v4141 = vmul.f32 %v3610, %v4095
  %v4142 = vmul.f32 %v3613, %v4095
  %v4143 = vmul.f32 %v3618, %v4095
  %v4144 = vmul.f32 %v3621, %v4095
  %v4145 = vmul.f32 %v3626, %v4095
  %v4146 = vmul.f32 %v3629, %v4095
  %v4147 = vmul.f32 %v3634, %v4095
  %v4148 = vmul.f32 %v3637, %v4095
  %v4149 = vmul.f32 %v3642, %v4095
  %v4150 = vmul.f32 %v3645, %v4095
  %v4151 = vmul.f32 %v3650, %v4095
  %v4152 = vmul.f32 %v3653, %v4095
  %v4153 = vmul.f32 %v3658, %v4095
  %v4154 = vmul.f32 %v3661, %v4095
  %v4155 = vmul.f32 %v3666, %v4095
  %v4156 = vmul.f32 %v3669, %v4095
  %v4157 = vmul.f32 %v3674, %v4095
  %v4158 = vmul.f32 %v3677, %v4095
  %v4159 = vmul.f32 %v3682, %v4095
  %v4160 = vmul.f32 %v3685, %v4095
  %v4162 = vlaneseq
  %v4163 = vshrl.u32 %v4162, 7
  %v4164 = vsub.s32 0, %v4163
  %v4165 = vrot.slane %v4090, %v4164
  %v4167 = vadd.f32 %v4097, %v4165
  %v4168 = vadd.f32 %v4098, %v4165
  %v4169 = vadd.f32 %v4099, %v4165
  %v4170 = vadd.f32 %v4100, %v4165
  %v4171 = vadd.f32 %v4101, %v4165
  %v4172 = vadd.f32 %v4102, %v4165
  %v4173 = vadd.f32 %v4103, %v4165
  %v4174 = vadd.f32 %v4104, %v4165
  %v4175 = vadd.f32 %v4105, %v4165
  %v4176 = vadd.f32 %v4106, %v4165
  %v4177 = vadd.f32 %v4107, %v4165
  %v4178 = vadd.f32 %v4108, %v4165
  %v4179 = vadd.f32 %v4109, %v4165
  %v4180 = vadd.f32 %v4110, %v4165
  %v4181 = vadd.f32 %v4111, %v4165
  %v4182 = vadd.f32 %v4112, %v4165
  %v4183 = vadd.f32 %v4113, %v4165
  %v4184 = vadd.f32 %v4114, %v4165
  %v4185 = vadd.f32 %v4115, %v4165
  %v4186 = vadd.f32 %v4116, %v4165
  %v4187 = vadd.f32 %v4117, %v4165
  %v4188 = vadd.f32 %v4118, %v4165
  %v4189 = vadd.f32 %v4119, %v4165
  %v4190 = vadd.f32 %v4120, %v4165
  %v4191 = vadd.f32 %v4121, %v4165
  %v4192 = vadd.f32 %v4122, %v4165
  %v4193 = vadd.f32 %v4123, %v4165
  %v4194 = vadd.f32 %v4124, %v4165
  %v4195 = vadd.f32 %v4125, %v4165
  %v4196 = vadd.f32 %v4126, %v4165
  %v4197 = vadd.f32 %v4127, %v4165
  %v4198 = vadd.f32 %v4128, %v4165
  %v4199 = vadd.f32 %v4129, %v4165
  %v4200 = vadd.f32 %v4130, %v4165
  %v4201 = vadd.f32 %v4131, %v4165
  %v4202 = vadd.f32 %v4132, %v4165
  %v4203 = vadd.f32 %v4133, %v4165
  %v4204 = vadd.f32 %v4134, %v4165
  %v4205 = vadd.f32 %v4135, %v4165
  %v4206 = vadd.f32 %v4136, %v4165
  %v4207 = vadd.f32 %v4137, %v4165
  %v4208 = vadd.f32 %v4138, %v4165
  %v4209 = vadd.f32 %v4139, %v4165
  %v4210 = vadd.f32 %v4140, %v4165
  %v4211 = vadd.f32 %v4141, %v4165
  %v4212 = vadd.f32 %v4142, %v4165
  %v4213 = vadd.f32 %v4143, %v4165
  %v4214 = vadd.f32 %v4144, %v4165
  %v4215 = vadd.f32 %v4145, %v4165
  %v4216 = vadd.f32 %v4146, %v4165
  %v4217 = vadd.f32 %v4147, %v4165
  %v4218 = vadd.f32 %v4148, %v4165
  %v4219 = vadd.f32 %v4149, %v4165
  %v4220 = vadd.f32 %v4150, %v4165
  %v4221 = vadd.f32 %v4151, %v4165
  %v4222 = vadd.f32 %v4152, %v4165
  %v4223 = vadd.f32 %v4153, %v4165
  %v4224 = vadd.f32 %v4154, %v4165
  %v4225 = vadd.f32 %v4155, %v4165
  %v4226 = vadd.f32 %v4156, %v4165
  %v4227 = vadd.f32 %v4157, %v4165
  %v4228 = vadd.f32 %v4158, %v4165
  %v4229 = vadd.f32 %v4159, %v4165
  %v4230 = vadd.f32 %v4160, %v4165
  %v4231 = vmax.f32 %v4167, 0.0
  %v4232 = vmax.f32 %v4168, 0.0
  %v4233 = vmax.f32 %v4169, 0.0
  %v4234 = vmax.f32 %v4170, 0.0
  %v4235 = vmax.f32 %v4171, 0.0
  %v4236 = vmax.f32 %v4172, 0.0
  %v4237 = vmax.f32 %v4173, 0.0
  %v4238 = vmax.f32 %v4174, 0.0
  %v4239 = vmax.f32 %v4175, 0.0
  %v4240 = vmax.f32 %v4176, 0.0
  %v4241 = vmax.f32 %v4177, 0.0
  %v4242 = vmax.f32 %v4178, 0.0
  %v4243 = vmax.f32 %v4179, 0.0
  %v4244 = vmax.f32 %v4180, 0.0
  %v4245 = vmax.f32 %v4181, 0.0
  %v4246 = vmax.f32 %v4182, 0.0
  %v4247 = vmax.f32 %v4183, 0.0
  %v4248 = vmax.f32 %v4184, 0.0
  %v4249 = vmax.f32 %v4185, 0.0
  %v4250 = vmax.f32 %v4186, 0.0
  %v4251 = vmax.f32 %v4187, 0.0
  %v4252 = vmax.f32 %v4188, 0.0
  %v4253 = vmax.f32 %v4189, 0.0
  %v4254 = vmax.f32 %v4190, 0.0
  %v4255 = vmax.f32 %v4191, 0.0
  %v4256 = vmax.f32 %v4192, 0.0
  %v4257 = vmax.f32 %v4193, 0.0
  %v4258 = vmax.f32 %v4194, 0.0
  %v4259 = vmax.f32 %v4195, 0.0
  %v4260 = vmax.f32 %v4196, 0.0
  %v4261 = vmax.f32 %v4197, 0.0
  %v4262 = vmax.f32 %v4198, 0.0
  %v4263 = vmax.f32 %v4199, 0.0
  %v4264 = vmax.f32 %v4200, 0.0
  %v4265 = vmax.f32 %v4201, 0.0
  %v4266 = vmax.f32 %v4202, 0.0
  %v4267 = vmax.f32 %v4203, 0.0
  %v4268 = vmax.f32 %v4204, 0.0
  %v4269 = vmax.f32 %v4205, 0.0
  %v4270 = vmax.f32 %v4206, 0.0
  %v4271 = vmax.f32 %v4207, 0.0
  %v4272 = vmax.f32 %v4208, 0.0
  %v4273 = vmax.f32 %v4209, 0.0
  %v4274 = vmax.f32 %v4210, 0.0
  %v4275 = vmax.f32 %v4211, 0.0
  %v4276 = vmax.f32 %v4212, 0.0
  %v4277 = vmax.f32 %v4213, 0.0
  %v4278 = vmax.f32 %v4214, 0.0
  %v4279 = vmax.f32 %v4215, 0.0
  %v4280 = vmax.f32 %v4216, 0.0
  %v4281 = vmax.f32 %v4217, 0.0
  %v4282 = vmax.f32 %v4218, 0.0
  %v4283 = vmax.f32 %v4219, 0.0
  %v4284 = vmax.f32 %v4220, 0.0
  %v4285 = vmax.f32 %v4221, 0.0
  %v4286 = vmax.f32 %v4222, 0.0
  %v4287 = vmax.f32 %v4223, 0.0
  %v4288 = vmax.f32 %v4224, 0.0
  %v4289 = vmax.f32 %v4225, 0.0
  %v4290 = vmax.f32 %v4226, 0.0
  %v4291 = vmax.f32 %v4227, 0.0
  %v4292 = vmax.f32 %v4228, 0.0
  %v4293 = vmax.f32 %v4229, 0.0
  %v4294 = vmax.f32 %v4230, 0.0
  %v4295 = vld [vmem:[%s5] sm:$0x1]
  %v4296 = vld [vmem:[%s6] sm:$0x1]
  %vm4297 = vcmask 588800
  %4298 = vst.msk [vmem:[#allocation3] sm:$0xff] %vm4297, 0.0
  %4299 = vst.msk [vmem:[#allocation3 + $0x8] sm:$0xff] %vm4297, 0.0
  %4300 = vst.msk [vmem:[#allocation3 + $0x10] sm:$0xff] %vm4297, 0.0
  %4301 = vst.msk [vmem:[#allocation3 + $0x18] sm:$0xff] %vm4297, 0.0
  %4302 = vst.msk [vmem:[#allocation3 + $0x20] sm:$0xff] %vm4297, 0.0
  %4303 = vst.msk [vmem:[#allocation3 + $0x28] sm:$0xff] %vm4297, 0.0
  %4304 = vst.msk [vmem:[#allocation3 + $0x30] sm:$0xff] %vm4297, 0.0
  %4305 = vst.msk [vmem:[#allocation3 + $0x38] sm:$0xff] %vm4297, 0.0
  %4306 = vst.msk [vmem:[#allocation3 + $0x40] sm:$0xff] %vm4297, 0.0
  %4307 = vst.msk [vmem:[#allocation3 + $0x48] sm:$0xff] %vm4297, 0.0
  %4308 = vst.msk [vmem:[#allocation3 + $0x50] sm:$0xff] %vm4297, 0.0
  %4309 = vst.msk [vmem:[#allocation3 + $0x58] sm:$0xff] %vm4297, 0.0
  %4310 = vst.msk [vmem:[#allocation3 + $0x60] sm:$0xff] %vm4297, 0.0
  %4311 = vst.msk [vmem:[#allocation3 + $0x68] sm:$0xff] %vm4297, 0.0
  %4312 = vst.msk [vmem:[#allocation3 + $0x70] sm:$0xff] %vm4297, 0.0
  %4313 = vst.msk [vmem:[#allocation3 + $0x78] sm:$0xff] %vm4297, 0.0
  %4314 = vst.msk [vmem:[#allocation3 + $0x80] sm:$0xff] %vm4297, 0.0
  %4315 = vst.msk [vmem:[#allocation3 + $0x88] sm:$0xff] %vm4297, 0.0
  %4316 = vst.msk [vmem:[#allocation3 + $0x90] sm:$0xff] %vm4297, 0.0
  %4317 = vst.msk [vmem:[#allocation3 + $0x98] sm:$0xff] %vm4297, 0.0
  %4318 = vst.msk [vmem:[#allocation3 + $0xa0] sm:$0xff] %vm4297, 0.0
  %4319 = vst.msk [vmem:[#allocation3 + $0xa8] sm:$0xff] %vm4297, 0.0
  %4320 = vst.msk [vmem:[#allocation3 + $0xb0] sm:$0xff] %vm4297, 0.0
  %4321 = vst.msk [vmem:[#allocation3 + $0xb8] sm:$0xff] %vm4297, 0.0
  %4322 = vst.msk [vmem:[#allocation3 + $0xc0] sm:$0xff] %vm4297, 0.0
  %4323 = vst.msk [vmem:[#allocation3 + $0xc8] sm:$0xff] %vm4297, 0.0
  %4324 = vst.msk [vmem:[#allocation3 + $0xd0] sm:$0xff] %vm4297, 0.0
  %4325 = vst.msk [vmem:[#allocation3 + $0xd8] sm:$0xff] %vm4297, 0.0
  %4326 = vst.msk [vmem:[#allocation3 + $0xe0] sm:$0xff] %vm4297, 0.0
  %4327 = vst.msk [vmem:[#allocation3 + $0xe8] sm:$0xff] %vm4297, 0.0
  %4328 = vst.msk [vmem:[#allocation3 + $0xf0] sm:$0xff] %vm4297, 0.0
  %4329 = vst.msk [vmem:[#allocation3 + $0xf8] sm:$0xff] %vm4297, 0.0
  %4330 = vst.msk [vmem:[#allocation3 + $0x100] sm:$0xff] %vm4297, 0.0
  %4331 = vst.msk [vmem:[#allocation3 + $0x108] sm:$0xff] %vm4297, 0.0
  %4332 = vst.msk [vmem:[#allocation3 + $0x110] sm:$0xff] %vm4297, 0.0
  %4333 = vst.msk [vmem:[#allocation3 + $0x118] sm:$0xff] %vm4297, 0.0
  %4334 = vst.msk [vmem:[#allocation3 + $0x120] sm:$0xff] %vm4297, 0.0
  %4335 = vst.msk [vmem:[#allocation3 + $0x128] sm:$0xff] %vm4297, 0.0
  %4336 = vst.msk [vmem:[#allocation3 + $0x130] sm:$0xff] %vm4297, 0.0
  %4337 = vst.msk [vmem:[#allocation3 + $0x138] sm:$0xff] %vm4297, 0.0
  %4338 = vst.msk [vmem:[#allocation3 + $0x140] sm:$0xff] %vm4297, 0.0
  %4339 = vst.msk [vmem:[#allocation3 + $0x148] sm:$0xff] %vm4297, 0.0
  %4340 = vst.msk [vmem:[#allocation3 + $0x150] sm:$0xff] %vm4297, 0.0
  %4341 = vst.msk [vmem:[#allocation3 + $0x158] sm:$0xff] %vm4297, 0.0
  %4342 = vst.msk [vmem:[#allocation3 + $0x160] sm:$0xff] %vm4297, 0.0
  %4343 = vst.msk [vmem:[#allocation3 + $0x168] sm:$0xff] %vm4297, 0.0
  %4344 = vst.msk [vmem:[#allocation3 + $0x170] sm:$0xff] %vm4297, 0.0
  %4345 = vst.msk [vmem:[#allocation3 + $0x178] sm:$0xff] %vm4297, 0.0
  %4346 = vst.msk [vmem:[#allocation3 + $0x180] sm:$0xff] %vm4297, 0.0
  %4347 = vst.msk [vmem:[#allocation3 + $0x188] sm:$0xff] %vm4297, 0.0
  %4348 = vst.msk [vmem:[#allocation3 + $0x190] sm:$0xff] %vm4297, 0.0
  %4349 = vst.msk [vmem:[#allocation3 + $0x198] sm:$0xff] %vm4297, 0.0
  %4350 = vst.msk [vmem:[#allocation3 + $0x1a0] sm:$0xff] %vm4297, 0.0
  %4351 = vst.msk [vmem:[#allocation3 + $0x1a8] sm:$0xff] %vm4297, 0.0
  %4352 = vst.msk [vmem:[#allocation3 + $0x1b0] sm:$0xff] %vm4297, 0.0
  %4353 = vst.msk [vmem:[#allocation3 + $0x1b8] sm:$0xff] %vm4297, 0.0
  %4354 = vst.msk [vmem:[#allocation3 + $0x1c0] sm:$0xff] %vm4297, 0.0
  %4355 = vst.msk [vmem:[#allocation3 + $0x1c8] sm:$0xff] %vm4297, 0.0
  %4356 = vst.msk [vmem:[#allocation3 + $0x1d0] sm:$0xff] %vm4297, 0.0
  %4357 = vst.msk [vmem:[#allocation3 + $0x1d8] sm:$0xff] %vm4297, 0.0
  %4358 = vst.msk [vmem:[#allocation3 + $0x1e0] sm:$0xff] %vm4297, 0.0
  %4359 = vst.msk [vmem:[#allocation3 + $0x1e8] sm:$0xff] %vm4297, 0.0
  %4360 = vst.msk [vmem:[#allocation3 + $0x1f0] sm:$0xff] %vm4297, 0.0
  %4361 = vst.msk [vmem:[#allocation3 + $0x1f8] sm:$0xff] %vm4297, 0.0
  %s4362 = scalar_lea.vmem [#allocation3], 16
  %4363 = vst.msk [vmem:[%s4362 + $0x1] sm:$0xff] %vm3688, %v4231
  %vm4364 = vcmask 63488
  %4365 = vst.msk [vmem:[%s4362 + $0x9] sm:$0x7f] %vm4364, %v4232
  %4366 = vst.msk [vmem:[%s4362 + $0x11] sm:$0xff] %vm3688, %v4233
  %4367 = vst.msk [vmem:[%s4362 + $0x19] sm:$0x7f] %vm4364, %v4234
  %4368 = vst.msk [vmem:[%s4362 + $0x21] sm:$0xff] %vm3688, %v4235
  %4369 = vst.msk [vmem:[%s4362 + $0x29] sm:$0x7f] %vm4364, %v4236
  %4370 = vst.msk [vmem:[%s4362 + $0x31] sm:$0xff] %vm3688, %v4237
  %4371 = vst.msk [vmem:[%s4362 + $0x39] sm:$0x7f] %vm4364, %v4238
  %4372 = vst.msk [vmem:[%s4362 + $0x41] sm:$0xff] %vm3688, %v4239
  %4373 = vst.msk [vmem:[%s4362 + $0x49] sm:$0x7f] %vm4364, %v4240
  %4374 = vst.msk [vmem:[%s4362 + $0x51] sm:$0xff] %vm3688, %v4241
  %4375 = vst.msk [vmem:[%s4362 + $0x59] sm:$0x7f] %vm4364, %v4242
  %4376 = vst.msk [vmem:[%s4362 + $0x61] sm:$0xff] %vm3688, %v4243
  %4377 = vst.msk [vmem:[%s4362 + $0x69] sm:$0x7f] %vm4364, %v4244
  %4378 = vst.msk [vmem:[%s4362 + $0x71] sm:$0xff] %vm3688, %v4245
  %4379 = vst.msk [vmem:[%s4362 + $0x79] sm:$0x7f] %vm4364, %v4246
  %4380 = vst.msk [vmem:[%s4362 + $0x81] sm:$0xff] %vm3688, %v4247
  %4381 = vst.msk [vmem:[%s4362 + $0x89] sm:$0x7f] %vm4364, %v4248
  %4382 = vst.msk [vmem:[%s4362 + $0x91] sm:$0xff] %vm3688, %v4249
  %4383 = vst.msk [vmem:[%s4362 + $0x99] sm:$0x7f] %vm4364, %v4250
  %4384 = vst.msk [vmem:[%s4362 + $0xa1] sm:$0xff] %vm3688, %v4251
  %4385 = vst.msk [vmem:[%s4362 + $0xa9] sm:$0x7f] %vm4364, %v4252
  %4386 = vst.msk [vmem:[%s4362 + $0xb1] sm:$0xff] %vm3688, %v4253
  %4387 = vst.msk [vmem:[%s4362 + $0xb9] sm:$0x7f] %vm4364, %v4254
  %4388 = vst.msk [vmem:[%s4362 + $0xc1] sm:$0xff] %vm3688, %v4255
  %4389 = vst.msk [vmem:[%s4362 + $0xc9] sm:$0x7f] %vm4364, %v4256
  %4390 = vst.msk [vmem:[%s4362 + $0xd1] sm:$0xff] %vm3688, %v4257
  %4391 = vst.msk [vmem:[%s4362 + $0xd9] sm:$0x7f] %vm4364, %v4258
  %4392 = vst.msk [vmem:[%s4362 + $0xe1] sm:$0xff] %vm3688, %v4259
  %4393 = vst.msk [vmem:[%s4362 + $0xe9] sm:$0x7f] %vm4364, %v4260
  %4394 = vst.msk [vmem:[%s4362 + $0x101] sm:$0xff] %vm3688, %v4263
  %4395 = vst.msk [vmem:[%s4362 + $0x109] sm:$0x7f] %vm4364, %v4264
  %4396 = vst.msk [vmem:[%s4362 + $0x111] sm:$0xff] %vm3688, %v4265
  %4397 = vst.msk [vmem:[%s4362 + $0x119] sm:$0x7f] %vm4364, %v4266
  %4398 = vst.msk [vmem:[%s4362 + $0x121] sm:$0xff] %vm3688, %v4267
  %4399 = vst.msk [vmem:[%s4362 + $0x129] sm:$0x7f] %vm4364, %v4268
  %4400 = vst.msk [vmem:[%s4362 + $0x131] sm:$0xff] %vm3688, %v4269
  %4401 = vst.msk [vmem:[%s4362 + $0x139] sm:$0x7f] %vm4364, %v4270
  %4402 = vst.msk [vmem:[%s4362 + $0x141] sm:$0xff] %vm3688, %v4271
  %4403 = vst.msk [vmem:[%s4362 + $0x149] sm:$0x7f] %vm4364, %v4272
  %4404 = vst.msk [vmem:[%s4362 + $0x151] sm:$0xff] %vm3688, %v4273
  %4405 = vst.msk [vmem:[%s4362 + $0x159] sm:$0x7f] %vm4364, %v4274
  %4406 = vst.msk [vmem:[%s4362 + $0x161] sm:$0xff] %vm3688, %v4275
  %4407 = vst.msk [vmem:[%s4362 + $0x169] sm:$0x7f] %vm4364, %v4276
  %4408 = vst.msk [vmem:[%s4362 + $0x171] sm:$0xff] %vm3688, %v4277
  %4409 = vst.msk [vmem:[%s4362 + $0x179] sm:$0x7f] %vm4364, %v4278
  %4410 = vst.msk [vmem:[%s4362 + $0x181] sm:$0xff] %vm3688, %v4279
  %4411 = vst.msk [vmem:[%s4362 + $0x189] sm:$0x7f] %vm4364, %v4280
  %4412 = vst.msk [vmem:[%s4362 + $0x191] sm:$0xff] %vm3688, %v4281
  %4413 = vst.msk [vmem:[%s4362 + $0x199] sm:$0x7f] %vm4364, %v4282
  %4414 = vst.msk [vmem:[%s4362 + $0x1a1] sm:$0xff] %vm3688, %v4283
  %4415 = vst.msk [vmem:[%s4362 + $0x1a9] sm:$0x7f] %vm4364, %v4284
  %4416 = vst.msk [vmem:[%s4362 + $0x1b1] sm:$0xff] %vm3688, %v4285
  %4417 = vst.msk [vmem:[%s4362 + $0x1b9] sm:$0x7f] %vm4364, %v4286
  %4418 = vst.msk [vmem:[%s4362 + $0x1c1] sm:$0xff] %vm3688, %v4287
  %4419 = vst.msk [vmem:[%s4362 + $0x1c9] sm:$0x7f] %vm4364, %v4288
  %4420 = vst.msk [vmem:[%s4362 + $0x1d1] sm:$0xff] %vm3688, %v4289
  %4421 = vst.msk [vmem:[%s4362 + $0x1d9] sm:$0x7f] %vm4364, %v4290
  %4422 = vst.msk [vmem:[%s4362 + $0x1e1] sm:$0xff] %vm3688, %v4291
  %4423 = vst.msk [vmem:[%s4362 + $0x1e9] sm:$0x7f] %vm4364, %v4292
  %4484 = vrot.lane.b32.xlu0 %v4231, 8
  %v4485 = vpop.permute.xlu0 %4484
  %4486 = vrot.lane.b32.xlu0 %v4232, 8
  %v4487 = vpop.permute.xlu0 %4486
  %4488 = vrot.lane.b32.xlu0 %v4233, 8
  %v4489 = vpop.permute.xlu0 %4488
  %4490 = vrot.lane.b32.xlu0 %v4234, 8
  %v4491 = vpop.permute.xlu0 %4490
  %4492 = vrot.lane.b32.xlu0 %v4235, 8
  %v4493 = vpop.permute.xlu0 %4492
  %4494 = vrot.lane.b32.xlu0 %v4236, 8
  %v4495 = vpop.permute.xlu0 %4494
  %4496 = vrot.lane.b32.xlu0 %v4237, 8
  %v4497 = vpop.permute.xlu0 %4496
  %4498 = vrot.lane.b32.xlu0 %v4238, 8
  %v4499 = vpop.permute.xlu0 %4498
  %4500 = vrot.lane.b32.xlu0 %v4239, 8
  %v4501 = vpop.permute.xlu0 %4500
  %4502 = vrot.lane.b32.xlu0 %v4240, 8
  %v4503 = vpop.permute.xlu0 %4502
  %4504 = vrot.lane.b32.xlu0 %v4241, 8
  %v4505 = vpop.permute.xlu0 %4504
  %4506 = vrot.lane.b32.xlu0 %v4242, 8
  %v4507 = vpop.permute.xlu0 %4506
  %4508 = vrot.lane.b32.xlu0 %v4243, 8
  %v4509 = vpop.permute.xlu0 %4508
  %4510 = vrot.lane.b32.xlu0 %v4244, 8
  %v4511 = vpop.permute.xlu0 %4510
  %4512 = vrot.lane.b32.xlu0 %v4245, 8
  %v4513 = vpop.permute.xlu0 %4512
  %4514 = vrot.lane.b32.xlu0 %v4246, 8
  %v4515 = vpop.permute.xlu0 %4514
  %4516 = vrot.lane.b32.xlu0 %v4247, 8
  %v4517 = vpop.permute.xlu0 %4516
  %4518 = vrot.lane.b32.xlu0 %v4248, 8
  %v4519 = vpop.permute.xlu0 %4518
  %4520 = vrot.lane.b32.xlu0 %v4249, 8
  %v4521 = vpop.permute.xlu0 %4520
  %4522 = vrot.lane.b32.xlu0 %v4250, 8
  %v4523 = vpop.permute.xlu0 %4522
  %4524 = vrot.lane.b32.xlu0 %v4251, 8
  %v4525 = vpop.permute.xlu0 %4524
  %4526 = vrot.lane.b32.xlu0 %v4252, 8
  %v4527 = vpop.permute.xlu0 %4526
  %4528 = vrot.lane.b32.xlu0 %v4253, 8
  %v4529 = vpop.permute.xlu0 %4528
  %4530 = vrot.lane.b32.xlu0 %v4254, 8
  %v4531 = vpop.permute.xlu0 %4530
  %4532 = vrot.lane.b32.xlu0 %v4255, 8
  %v4533 = vpop.permute.xlu0 %4532
  %4534 = vrot.lane.b32.xlu0 %v4256, 8
  %v4535 = vpop.permute.xlu0 %4534
  %4536 = vrot.lane.b32.xlu0 %v4257, 8
  %v4537 = vpop.permute.xlu0 %4536
  %4538 = vrot.lane.b32.xlu0 %v4258, 8
  %v4539 = vpop.permute.xlu0 %4538
  %4540 = vrot.lane.b32.xlu0 %v4259, 8
  %v4541 = vpop.permute.xlu0 %4540
  %4542 = vrot.lane.b32.xlu0 %v4260, 8
  %v4543 = vpop.permute.xlu0 %4542
  %4544 = vrot.lane.b32.xlu0 %v4263, 8
  %v4545 = vpop.permute.xlu0 %4544
  %4546 = vrot.lane.b32.xlu0 %v4264, 8
  %v4547 = vpop.permute.xlu0 %4546
  %4548 = vrot.lane.b32.xlu0 %v4265, 8
  %v4549 = vpop.permute.xlu0 %4548
  %4550 = vrot.lane.b32.xlu0 %v4266, 8
  %v4551 = vpop.permute.xlu0 %4550
  %4552 = vrot.lane.b32.xlu0 %v4267, 8
  %v4553 = vpop.permute.xlu0 %4552
  %4554 = vrot.lane.b32.xlu0 %v4268, 8
  %v4555 = vpop.permute.xlu0 %4554
  %4556 = vrot.lane.b32.xlu0 %v4269, 8
  %v4557 = vpop.permute.xlu0 %4556
  %4558 = vrot.lane.b32.xlu0 %v4270, 8
  %v4559 = vpop.permute.xlu0 %4558
  %4560 = vrot.lane.b32.xlu0 %v4271, 8
  %v4561 = vpop.permute.xlu0 %4560
  %4562 = vrot.lane.b32.xlu0 %v4272, 8
  %v4563 = vpop.permute.xlu0 %4562
  %4564 = vrot.lane.b32.xlu0 %v4273, 8
  %v4565 = vpop.permute.xlu0 %4564
  %4566 = vrot.lane.b32.xlu0 %v4274, 8
  %v4567 = vpop.permute.xlu0 %4566
  %4568 = vrot.lane.b32.xlu0 %v4275, 8
  %v4569 = vpop.permute.xlu0 %4568
  %4570 = vrot.lane.b32.xlu0 %v4276, 8
  %v4571 = vpop.permute.xlu0 %4570
  %4572 = vrot.lane.b32.xlu0 %v4277, 8
  %v4573 = vpop.permute.xlu0 %4572
  %4574 = vrot.lane.b32.xlu0 %v4278, 8
  %v4575 = vpop.permute.xlu0 %4574
  %4576 = vrot.lane.b32.xlu0 %v4279, 8
  %v4577 = vpop.permute.xlu0 %4576
  %4578 = vrot.lane.b32.xlu0 %v4280, 8
  %v4579 = vpop.permute.xlu0 %4578
  %4580 = vrot.lane.b32.xlu0 %v4281, 8
  %v4581 = vpop.permute.xlu0 %4580
  %4582 = vrot.lane.b32.xlu0 %v4282, 8
  %v4583 = vpop.permute.xlu0 %4582
  %4584 = vrot.lane.b32.xlu0 %v4283, 8
  %v4585 = vpop.permute.xlu0 %4584
  %4586 = vrot.lane.b32.xlu0 %v4284, 8
  %v4587 = vpop.permute.xlu0 %4586
  %4588 = vrot.lane.b32.xlu0 %v4285, 8
  %v4589 = vpop.permute.xlu0 %4588
  %4590 = vrot.lane.b32.xlu0 %v4286, 8
  %v4591 = vpop.permute.xlu0 %4590
  %4592 = vrot.lane.b32.xlu0 %v4287, 8
  %v4593 = vpop.permute.xlu0 %4592
  %4594 = vrot.lane.b32.xlu0 %v4288, 8
  %v4595 = vpop.permute.xlu0 %4594
  %4596 = vrot.lane.b32.xlu0 %v4289, 8
  %v4597 = vpop.permute.xlu0 %4596
  %4598 = vrot.lane.b32.xlu0 %v4290, 8
  %v4599 = vpop.permute.xlu0 %4598
  %4600 = vrot.lane.b32.xlu0 %v4291, 8
  %v4601 = vpop.permute.xlu0 %4600
  %4602 = vrot.lane.b32.xlu0 %v4292, 8
  %v4603 = vpop.permute.xlu0 %4602
  %vm4664 = vcmask 130112
  %4665 = vst.msk [vmem:[%s4362] sm:$0xff] %vm4664, %v4485
  %4666 = vst.msk [vmem:[%s4362 + $0x8] sm:$0xff] %vm4664, %v4487
  %4667 = vst.msk [vmem:[%s4362 + $0x10] sm:$0xff] %vm4664, %v4489
  %4668 = vst.msk [vmem:[%s4362 + $0x18] sm:$0xff] %vm4664, %v4491
  %4669 = vst.msk [vmem:[%s4362 + $0x20] sm:$0xff] %vm4664, %v4493
  %4670 = vst.msk [vmem:[%s4362 + $0x28] sm:$0xff] %vm4664, %v4495
  %4671 = vst.msk [vmem:[%s4362 + $0x30] sm:$0xff] %vm4664, %v4497
  %4672 = vst.msk [vmem:[%s4362 + $0x38] sm:$0xff] %vm4664, %v4499
  %4673 = vst.msk [vmem:[%s4362 + $0x40] sm:$0xff] %vm4664, %v4501
  %4674 = vst.msk [vmem:[%s4362 + $0x48] sm:$0xff] %vm4664, %v4503
  %4675 = vst.msk [vmem:[%s4362 + $0x50] sm:$0xff] %vm4664, %v4505
  %4676 = vst.msk [vmem:[%s4362 + $0x58] sm:$0xff] %vm4664, %v4507
  %4677 = vst.msk [vmem:[%s4362 + $0x60] sm:$0xff] %vm4664, %v4509
  %4678 = vst.msk [vmem:[%s4362 + $0x68] sm:$0xff] %vm4664, %v4511
  %4679 = vst.msk [vmem:[%s4362 + $0x70] sm:$0xff] %vm4664, %v4513
  %4680 = vst.msk [vmem:[%s4362 + $0x78] sm:$0xff] %vm4664, %v4515
  %4681 = vst.msk [vmem:[%s4362 + $0x80] sm:$0xff] %vm4664, %v4517
  %4682 = vst.msk [vmem:[%s4362 + $0x88] sm:$0xff] %vm4664, %v4519
  %4683 = vst.msk [vmem:[%s4362 + $0x90] sm:$0xff] %vm4664, %v4521
  %4684 = vst.msk [vmem:[%s4362 + $0x98] sm:$0xff] %vm4664, %v4523
  %4685 = vst.msk [vmem:[%s4362 + $0xa0] sm:$0xff] %vm4664, %v4525
  %4686 = vst.msk [vmem:[%s4362 + $0xa8] sm:$0xff] %vm4664, %v4527
  %4687 = vst.msk [vmem:[%s4362 + $0xb0] sm:$0xff] %vm4664, %v4529
  %4688 = vst.msk [vmem:[%s4362 + $0xb8] sm:$0xff] %vm4664, %v4531
  %4689 = vst.msk [vmem:[%s4362 + $0xc0] sm:$0xff] %vm4664, %v4533
  %4690 = vst.msk [vmem:[%s4362 + $0xc8] sm:$0xff] %vm4664, %v4535
  %4691 = vst.msk [vmem:[%s4362 + $0xd0] sm:$0xff] %vm4664, %v4537
  %4692 = vst.msk [vmem:[%s4362 + $0xd8] sm:$0xff] %vm4664, %v4539
  %4693 = vst.msk [vmem:[%s4362 + $0xe0] sm:$0xff] %vm4664, %v4541
  %4694 = vst.msk [vmem:[%s4362 + $0xe8] sm:$0xff] %vm4664, %v4543
  %4695 = vst.msk [vmem:[%s4362 + $0x100] sm:$0xff] %vm4664, %v4545
  %4696 = vst.msk [vmem:[%s4362 + $0x108] sm:$0xff] %vm4664, %v4547
  %4697 = vst.msk [vmem:[%s4362 + $0x110] sm:$0xff] %vm4664, %v4549
  %4698 = vst.msk [vmem:[%s4362 + $0x118] sm:$0xff] %vm4664, %v4551
  %4699 = vst.msk [vmem:[%s4362 + $0x120] sm:$0xff] %vm4664, %v4553
  %4700 = vst.msk [vmem:[%s4362 + $0x128] sm:$0xff] %vm4664, %v4555
  %4701 = vst.msk [vmem:[%s4362 + $0x130] sm:$0xff] %vm4664, %v4557
  %4702 = vst.msk [vmem:[%s4362 + $0x138] sm:$0xff] %vm4664, %v4559
  %4703 = vst.msk [vmem:[%s4362 + $0x140] sm:$0xff] %vm4664, %v4561
  %4704 = vst.msk [vmem:[%s4362 + $0x148] sm:$0xff] %vm4664, %v4563
  %4705 = vst.msk [vmem:[%s4362 + $0x150] sm:$0xff] %vm4664, %v4565
  %4706 = vst.msk [vmem:[%s4362 + $0x158] sm:$0xff] %vm4664, %v4567
  %4707 = vst.msk [vmem:[%s4362 + $0x160] sm:$0xff] %vm4664, %v4569
  %4708 = vst.msk [vmem:[%s4362 + $0x168] sm:$0xff] %vm4664, %v4571
  %4709 = vst.msk [vmem:[%s4362 + $0x170] sm:$0xff] %vm4664, %v4573
  %4710 = vst.msk [vmem:[%s4362 + $0x178] sm:$0xff] %vm4664, %v4575
  %4711 = vst.msk [vmem:[%s4362 + $0x180] sm:$0xff] %vm4664, %v4577
  %4712 = vst.msk [vmem:[%s4362 + $0x188] sm:$0xff] %vm4664, %v4579
  %4713 = vst.msk [vmem:[%s4362 + $0x190] sm:$0xff] %vm4664, %v4581
  %4714 = vst.msk [vmem:[%s4362 + $0x198] sm:$0xff] %vm4664, %v4583
  %4715 = vst.msk [vmem:[%s4362 + $0x1a0] sm:$0xff] %vm4664, %v4585
  %4716 = vst.msk [vmem:[%s4362 + $0x1a8] sm:$0xff] %vm4664, %v4587
  %4717 = vst.msk [vmem:[%s4362 + $0x1b0] sm:$0xff] %vm4664, %v4589
  %4718 = vst.msk [vmem:[%s4362 + $0x1b8] sm:$0xff] %vm4664, %v4591
  %4719 = vst.msk [vmem:[%s4362 + $0x1c0] sm:$0xff] %vm4664, %v4593
  %4720 = vst.msk [vmem:[%s4362 + $0x1c8] sm:$0xff] %vm4664, %v4595
  %4721 = vst.msk [vmem:[%s4362 + $0x1d0] sm:$0xff] %vm4664, %v4597
  %4722 = vst.msk [vmem:[%s4362 + $0x1d8] sm:$0xff] %vm4664, %v4599
  %4723 = vst.msk [vmem:[%s4362 + $0x1e0] sm:$0xff] %vm4664, %v4601
  %4724 = vst.msk [vmem:[%s4362 + $0x1e8] sm:$0xff] %vm4664, %v4603
  %4725 = vrot.lane.b32.xlu0 %v4231, 16
  %v4726 = vpop.permute.xlu0 %4725
  %4727 = vrot.lane.b32.xlu0 %v4232, 16
  %v4728 = vpop.permute.xlu0 %4727
  %4729 = vrot.lane.b32.xlu0 %v4233, 16
  %v4730 = vpop.permute.xlu0 %4729
  %4731 = vrot.lane.b32.xlu0 %v4234, 16
  %v4732 = vpop.permute.xlu0 %4731
  %4733 = vrot.lane.b32.xlu0 %v4235, 16
  %v4734 = vpop.permute.xlu0 %4733
  %4735 = vrot.lane.b32.xlu0 %v4236, 16
  %v4736 = vpop.permute.xlu0 %4735
  %4737 = vrot.lane.b32.xlu0 %v4237, 16
  %v4738 = vpop.permute.xlu0 %4737
  %4739 = vrot.lane.b32.xlu0 %v4238, 16
  %v4740 = vpop.permute.xlu0 %4739
  %4741 = vrot.lane.b32.xlu0 %v4239, 16
  %v4742 = vpop.permute.xlu0 %4741
  %4743 = vrot.lane.b32.xlu0 %v4240, 16
  %v4744 = vpop.permute.xlu0 %4743
  %4745 = vrot.lane.b32.xlu0 %v4241, 16
  %v4746 = vpop.permute.xlu0 %4745
  %4747 = vrot.lane.b32.xlu0 %v4242, 16
  %v4748 = vpop.permute.xlu0 %4747
  %4749 = vrot.lane.b32.xlu0 %v4243, 16
  %v4750 = vpop.permute.xlu0 %4749
  %4751 = vrot.lane.b32.xlu0 %v4244, 16
  %v4752 = vpop.permute.xlu0 %4751
  %4753 = vrot.lane.b32.xlu0 %v4245, 16
  %v4754 = vpop.permute.xlu0 %4753
  %4755 = vrot.lane.b32.xlu0 %v4246, 16
  %v4756 = vpop.permute.xlu0 %4755
  %4757 = vrot.lane.b32.xlu0 %v4247, 16
  %v4758 = vpop.permute.xlu0 %4757
  %4759 = vrot.lane.b32.xlu0 %v4248, 16
  %v4760 = vpop.permute.xlu0 %4759
  %4761 = vrot.lane.b32.xlu0 %v4249, 16
  %v4762 = vpop.permute.xlu0 %4761
  %4763 = vrot.lane.b32.xlu0 %v4250, 16
  %v4764 = vpop.permute.xlu0 %4763
  %4765 = vrot.lane.b32.xlu0 %v4251, 16
  %v4766 = vpop.permute.xlu0 %4765
  %4767 = vrot.lane.b32.xlu0 %v4252, 16
  %v4768 = vpop.permute.xlu0 %4767
  %4769 = vrot.lane.b32.xlu0 %v4253, 16
  %v4770 = vpop.permute.xlu0 %4769
  %4771 = vrot.lane.b32.xlu0 %v4254, 16
  %v4772 = vpop.permute.xlu0 %4771
  %4773 = vrot.lane.b32.xlu0 %v4255, 16
  %v4774 = vpop.permute.xlu0 %4773
  %4775 = vrot.lane.b32.xlu0 %v4256, 16
  %v4776 = vpop.permute.xlu0 %4775
  %4777 = vrot.lane.b32.xlu0 %v4257, 16
  %v4778 = vpop.permute.xlu0 %4777
  %4779 = vrot.lane.b32.xlu0 %v4258, 16
  %v4780 = vpop.permute.xlu0 %4779
  %4781 = vrot.lane.b32.xlu0 %v4259, 16
  %v4782 = vpop.permute.xlu0 %4781
  %4783 = vrot.lane.b32.xlu0 %v4260, 16
  %v4784 = vpop.permute.xlu0 %4783
  %4785 = vrot.lane.b32.xlu0 %v4263, 16
  %v4786 = vpop.permute.xlu0 %4785
  %4787 = vrot.lane.b32.xlu0 %v4264, 16
  %v4788 = vpop.permute.xlu0 %4787
  %4789 = vrot.lane.b32.xlu0 %v4265, 16
  %v4790 = vpop.permute.xlu0 %4789
  %4791 = vrot.lane.b32.xlu0 %v4266, 16
  %v4792 = vpop.permute.xlu0 %4791
  %4793 = vrot.lane.b32.xlu0 %v4267, 16
  %v4794 = vpop.permute.xlu0 %4793
  %4795 = vrot.lane.b32.xlu0 %v4268, 16
  %v4796 = vpop.permute.xlu0 %4795
  %4797 = vrot.lane.b32.xlu0 %v4269, 16
  %v4798 = vpop.permute.xlu0 %4797
  %4799 = vrot.lane.b32.xlu0 %v4270, 16
  %v4800 = vpop.permute.xlu0 %4799
  %4801 = vrot.lane.b32.xlu0 %v4271, 16
  %v4802 = vpop.permute.xlu0 %4801
  %4803 = vrot.lane.b32.xlu0 %v4272, 16
  %v4804 = vpop.permute.xlu0 %4803
  %4805 = vrot.lane.b32.xlu0 %v4273, 16
  %v4806 = vpop.permute.xlu0 %4805
  %4807 = vrot.lane.b32.xlu0 %v4274, 16
  %v4808 = vpop.permute.xlu0 %4807
  %4809 = vrot.lane.b32.xlu0 %v4275, 16
  %v4810 = vpop.permute.xlu0 %4809
  %4811 = vrot.lane.b32.xlu0 %v4276, 16
  %v4812 = vpop.permute.xlu0 %4811
  %4813 = vrot.lane.b32.xlu0 %v4277, 16
  %v4814 = vpop.permute.xlu0 %4813
  %4815 = vrot.lane.b32.xlu0 %v4278, 16
  %v4816 = vpop.permute.xlu0 %4815
  %4817 = vrot.lane.b32.xlu0 %v4279, 16
  %v4818 = vpop.permute.xlu0 %4817
  %4819 = vrot.lane.b32.xlu0 %v4280, 16
  %v4820 = vpop.permute.xlu0 %4819
  %4821 = vrot.lane.b32.xlu0 %v4281, 16
  %v4822 = vpop.permute.xlu0 %4821
  %4823 = vrot.lane.b32.xlu0 %v4282, 16
  %v4824 = vpop.permute.xlu0 %4823
  %4825 = vrot.lane.b32.xlu0 %v4283, 16
  %v4826 = vpop.permute.xlu0 %4825
  %4827 = vrot.lane.b32.xlu0 %v4284, 16
  %v4828 = vpop.permute.xlu0 %4827
  %4829 = vrot.lane.b32.xlu0 %v4285, 16
  %v4830 = vpop.permute.xlu0 %4829
  %4831 = vrot.lane.b32.xlu0 %v4286, 16
  %v4832 = vpop.permute.xlu0 %4831
  %4833 = vrot.lane.b32.xlu0 %v4287, 16
  %v4834 = vpop.permute.xlu0 %4833
  %4835 = vrot.lane.b32.xlu0 %v4288, 16
  %v4836 = vpop.permute.xlu0 %4835
  %4837 = vrot.lane.b32.xlu0 %v4289, 16
  %v4838 = vpop.permute.xlu0 %4837
  %4839 = vrot.lane.b32.xlu0 %v4290, 16
  %v4840 = vpop.permute.xlu0 %4839
  %4841 = vrot.lane.b32.xlu0 %v4291, 16
  %v4842 = vpop.permute.xlu0 %4841
  %4843 = vrot.lane.b32.xlu0 %v4292, 16
  %v4844 = vpop.permute.xlu0 %4843
  %vm4905 = vcmask 195713
  %4906 = vst.msk [vmem:[%s4362 - $0x1] sm:$0xfe] %vm4905, %v4726
  %vm4907 = vcmask 195712
  %4908 = vst.msk [vmem:[%s4362 + $0x7] sm:$0xff] %vm4907, %v4728
  %4909 = vst.msk [vmem:[%s4362 + $0xf] sm:$0xfe] %vm4905, %v4730
  %4910 = vst.msk [vmem:[%s4362 + $0x17] sm:$0xff] %vm4907, %v4732
  %4911 = vst.msk [vmem:[%s4362 + $0x1f] sm:$0xfe] %vm4905, %v4734
  %4912 = vst.msk [vmem:[%s4362 + $0x27] sm:$0xff] %vm4907, %v4736
  %4913 = vst.msk [vmem:[%s4362 + $0x2f] sm:$0xfe] %vm4905, %v4738
  %4914 = vst.msk [vmem:[%s4362 + $0x37] sm:$0xff] %vm4907, %v4740
  %4915 = vst.msk [vmem:[%s4362 + $0x3f] sm:$0xfe] %vm4905, %v4742
  %4916 = vst.msk [vmem:[%s4362 + $0x47] sm:$0xff] %vm4907, %v4744
  %4917 = vst.msk [vmem:[%s4362 + $0x4f] sm:$0xfe] %vm4905, %v4746
  %4918 = vst.msk [vmem:[%s4362 + $0x57] sm:$0xff] %vm4907, %v4748
  %4919 = vst.msk [vmem:[%s4362 + $0x5f] sm:$0xfe] %vm4905, %v4750
  %4920 = vst.msk [vmem:[%s4362 + $0x67] sm:$0xff] %vm4907, %v4752
  %4921 = vst.msk [vmem:[%s4362 + $0x6f] sm:$0xfe] %vm4905, %v4754
  %4922 = vst.msk [vmem:[%s4362 + $0x77] sm:$0xff] %vm4907, %v4756
  %4923 = vst.msk [vmem:[%s4362 + $0x7f] sm:$0xfe] %vm4905, %v4758
  %4924 = vst.msk [vmem:[%s4362 + $0x87] sm:$0xff] %vm4907, %v4760
  %4925 = vst.msk [vmem:[%s4362 + $0x8f] sm:$0xfe] %vm4905, %v4762
  %4926 = vst.msk [vmem:[%s4362 + $0x97] sm:$0xff] %vm4907, %v4764
  %4927 = vst.msk [vmem:[%s4362 + $0x9f] sm:$0xfe] %vm4905, %v4766
  %4928 = vst.msk [vmem:[%s4362 + $0xa7] sm:$0xff] %vm4907, %v4768
  %4929 = vst.msk [vmem:[%s4362 + $0xaf] sm:$0xfe] %vm4905, %v4770
  %4930 = vst.msk [vmem:[%s4362 + $0xb7] sm:$0xff] %vm4907, %v4772
  %4931 = vst.msk [vmem:[%s4362 + $0xbf] sm:$0xfe] %vm4905, %v4774
  %4932 = vst.msk [vmem:[%s4362 + $0xc7] sm:$0xff] %vm4907, %v4776
  %4933 = vst.msk [vmem:[%s4362 + $0xcf] sm:$0xfe] %vm4905, %v4778
  %4934 = vst.msk [vmem:[%s4362 + $0xd7] sm:$0xff] %vm4907, %v4780
  %4935 = vst.msk [vmem:[%s4362 + $0xdf] sm:$0xfe] %vm4905, %v4782
  %4936 = vst.msk [vmem:[%s4362 + $0xe7] sm:$0xff] %vm4907, %v4784
  %4937 = vst.msk [vmem:[%s4362 + $0xff] sm:$0xfe] %vm4905, %v4786
  %4938 = vst.msk [vmem:[%s4362 + $0x107] sm:$0xff] %vm4907, %v4788
  %4939 = vst.msk [vmem:[%s4362 + $0x10f] sm:$0xfe] %vm4905, %v4790
  %4940 = vst.msk [vmem:[%s4362 + $0x117] sm:$0xff] %vm4907, %v4792
  %4941 = vst.msk [vmem:[%s4362 + $0x11f] sm:$0xfe] %vm4905, %v4794
  %4942 = vst.msk [vmem:[%s4362 + $0x127] sm:$0xff] %vm4907, %v4796
  %4943 = vst.msk [vmem:[%s4362 + $0x12f] sm:$0xfe] %vm4905, %v4798
  %4944 = vst.msk [vmem:[%s4362 + $0x137] sm:$0xff] %vm4907, %v4800
  %4945 = vst.msk [vmem:[%s4362 + $0x13f] sm:$0xfe] %vm4905, %v4802
  %4946 = vst.msk [vmem:[%s4362 + $0x147] sm:$0xff] %vm4907, %v4804
  %4947 = vst.msk [vmem:[%s4362 + $0x14f] sm:$0xfe] %vm4905, %v4806
  %4948 = vst.msk [vmem:[%s4362 + $0x157] sm:$0xff] %vm4907, %v4808
  %4949 = vst.msk [vmem:[%s4362 + $0x15f] sm:$0xfe] %vm4905, %v4810
  %4950 = vst.msk [vmem:[%s4362 + $0x167] sm:$0xff] %vm4907, %v4812
  %4951 = vst.msk [vmem:[%s4362 + $0x16f] sm:$0xfe] %vm4905, %v4814
  %4952 = vst.msk [vmem:[%s4362 + $0x177] sm:$0xff] %vm4907, %v4816
  %4953 = vst.msk [vmem:[%s4362 + $0x17f] sm:$0xfe] %vm4905, %v4818
  %4954 = vst.msk [vmem:[%s4362 + $0x187] sm:$0xff] %vm4907, %v4820
  %4955 = vst.msk [vmem:[%s4362 + $0x18f] sm:$0xfe] %vm4905, %v4822
  %4956 = vst.msk [vmem:[%s4362 + $0x197] sm:$0xff] %vm4907, %v4824
  %4957 = vst.msk [vmem:[%s4362 + $0x19f] sm:$0xfe] %vm4905, %v4826
  %4958 = vst.msk [vmem:[%s4362 + $0x1a7] sm:$0xff] %vm4907, %v4828
  %4959 = vst.msk [vmem:[%s4362 + $0x1af] sm:$0xfe] %vm4905, %v4830
  %4960 = vst.msk [vmem:[%s4362 + $0x1b7] sm:$0xff] %vm4907, %v4832
  %4961 = vst.msk [vmem:[%s4362 + $0x1bf] sm:$0xfe] %vm4905, %v4834
  %4962 = vst.msk [vmem:[%s4362 + $0x1c7] sm:$0xff] %vm4907, %v4836
  %4963 = vst.msk [vmem:[%s4362 + $0x1cf] sm:$0xfe] %vm4905, %v4838
  %4964 = vst.msk [vmem:[%s4362 + $0x1d7] sm:$0xff] %vm4907, %v4840
  %4965 = vst.msk [vmem:[%s4362 + $0x1df] sm:$0xfe] %vm4905, %v4842
  %4966 = vst.msk [vmem:[%s4362 + $0x1e7] sm:$0xff] %vm4907, %v4844
  %4971 = vrot.lane.b32.xlu0 %v4231, 24
  %v4972 = vpop.permute.xlu0 %4971
  %4973 = vrot.lane.b32.xlu0 %v4232, 24
  %v4974 = vpop.permute.xlu0 %4973
  %4975 = vrot.lane.b32.xlu0 %v4233, 24
  %v4976 = vpop.permute.xlu0 %4975
  %4977 = vrot.lane.b32.xlu0 %v4234, 24
  %v4978 = vpop.permute.xlu0 %4977
  %4979 = vrot.lane.b32.xlu0 %v4235, 24
  %v4980 = vpop.permute.xlu0 %4979
  %4981 = vrot.lane.b32.xlu0 %v4236, 24
  %v4982 = vpop.permute.xlu0 %4981
  %4983 = vrot.lane.b32.xlu0 %v4237, 24
  %v4984 = vpop.permute.xlu0 %4983
  %4985 = vrot.lane.b32.xlu0 %v4238, 24
  %v4986 = vpop.permute.xlu0 %4985
  %4987 = vrot.lane.b32.xlu0 %v4239, 24
  %v4988 = vpop.permute.xlu0 %4987
  %4989 = vrot.lane.b32.xlu0 %v4240, 24
  %v4990 = vpop.permute.xlu0 %4989
  %4991 = vrot.lane.b32.xlu0 %v4241, 24
  %v4992 = vpop.permute.xlu0 %4991
  %4993 = vrot.lane.b32.xlu0 %v4242, 24
  %v4994 = vpop.permute.xlu0 %4993
  %4995 = vrot.lane.b32.xlu0 %v4243, 24
  %v4996 = vpop.permute.xlu0 %4995
  %4997 = vrot.lane.b32.xlu0 %v4244, 24
  %v4998 = vpop.permute.xlu0 %4997
  %4999 = vrot.lane.b32.xlu0 %v4245, 24
  %v5000 = vpop.permute.xlu0 %4999
  %5001 = vrot.lane.b32.xlu0 %v4246, 24
  %v5002 = vpop.permute.xlu0 %5001
  %5003 = vrot.lane.b32.xlu0 %v4247, 24
  %v5004 = vpop.permute.xlu0 %5003
  %5005 = vrot.lane.b32.xlu0 %v4248, 24
  %v5006 = vpop.permute.xlu0 %5005
  %5007 = vrot.lane.b32.xlu0 %v4249, 24
  %v5008 = vpop.permute.xlu0 %5007
  %5009 = vrot.lane.b32.xlu0 %v4250, 24
  %v5010 = vpop.permute.xlu0 %5009
  %5011 = vrot.lane.b32.xlu0 %v4251, 24
  %v5012 = vpop.permute.xlu0 %5011
  %5013 = vrot.lane.b32.xlu0 %v4252, 24
  %v5014 = vpop.permute.xlu0 %5013
  %5015 = vrot.lane.b32.xlu0 %v4253, 24
  %v5016 = vpop.permute.xlu0 %5015
  %5017 = vrot.lane.b32.xlu0 %v4254, 24
  %v5018 = vpop.permute.xlu0 %5017
  %5019 = vrot.lane.b32.xlu0 %v4255, 24
  %v5020 = vpop.permute.xlu0 %5019
  %5021 = vrot.lane.b32.xlu0 %v4256, 24
  %v5022 = vpop.permute.xlu0 %5021
  %5023 = vrot.lane.b32.xlu0 %v4257, 24
  %v5024 = vpop.permute.xlu0 %5023
  %5025 = vrot.lane.b32.xlu0 %v4258, 24
  %v5026 = vpop.permute.xlu0 %5025
  %5027 = vrot.lane.b32.xlu0 %v4259, 24
  %v5028 = vpop.permute.xlu0 %5027
  %5029 = vrot.lane.b32.xlu0 %v4260, 24
  %v5030 = vpop.permute.xlu0 %5029
  %5031 = vrot.lane.b32.xlu0 %v4261, 24
  %v5032 = vpop.permute.xlu0 %5031
  %5033 = vrot.lane.b32.xlu0 %v4262, 24
  %v5034 = vpop.permute.xlu0 %5033
  %5035 = vrot.lane.b32.xlu0 %v4263, 24
  %v5036 = vpop.permute.xlu0 %5035
  %5037 = vrot.lane.b32.xlu0 %v4264, 24
  %v5038 = vpop.permute.xlu0 %5037
  %5039 = vrot.lane.b32.xlu0 %v4265, 24
  %v5040 = vpop.permute.xlu0 %5039
  %5041 = vrot.lane.b32.xlu0 %v4266, 24
  %v5042 = vpop.permute.xlu0 %5041
  %5043 = vrot.lane.b32.xlu0 %v4267, 24
  %v5044 = vpop.permute.xlu0 %5043
  %5045 = vrot.lane.b32.xlu0 %v4268, 24
  %v5046 = vpop.permute.xlu0 %5045
  %5047 = vrot.lane.b32.xlu0 %v4269, 24
  %v5048 = vpop.permute.xlu0 %5047
  %5049 = vrot.lane.b32.xlu0 %v4270, 24
  %v5050 = vpop.permute.xlu0 %5049
  %5051 = vrot.lane.b32.xlu0 %v4271, 24
  %v5052 = vpop.permute.xlu0 %5051
  %5053 = vrot.lane.b32.xlu0 %v4272, 24
  %v5054 = vpop.permute.xlu0 %5053
  %5055 = vrot.lane.b32.xlu0 %v4273, 24
  %v5056 = vpop.permute.xlu0 %5055
  %5057 = vrot.lane.b32.xlu0 %v4274, 24
  %v5058 = vpop.permute.xlu0 %5057
  %5059 = vrot.lane.b32.xlu0 %v4275, 24
  %v5060 = vpop.permute.xlu0 %5059
  %5061 = vrot.lane.b32.xlu0 %v4276, 24
  %v5062 = vpop.permute.xlu0 %5061
  %5063 = vrot.lane.b32.xlu0 %v4277, 24
  %v5064 = vpop.permute.xlu0 %5063
  %5065 = vrot.lane.b32.xlu0 %v4278, 24
  %v5066 = vpop.permute.xlu0 %5065
  %5067 = vrot.lane.b32.xlu0 %v4279, 24
  %v5068 = vpop.permute.xlu0 %5067
  %5069 = vrot.lane.b32.xlu0 %v4280, 24
  %v5070 = vpop.permute.xlu0 %5069
  %5071 = vrot.lane.b32.xlu0 %v4281, 24
  %v5072 = vpop.permute.xlu0 %5071
  %5073 = vrot.lane.b32.xlu0 %v4282, 24
  %v5074 = vpop.permute.xlu0 %5073
  %5075 = vrot.lane.b32.xlu0 %v4283, 24
  %v5076 = vpop.permute.xlu0 %5075
  %5077 = vrot.lane.b32.xlu0 %v4284, 24
  %v5078 = vpop.permute.xlu0 %5077
  %5079 = vrot.lane.b32.xlu0 %v4285, 24
  %v5080 = vpop.permute.xlu0 %5079
  %5081 = vrot.lane.b32.xlu0 %v4286, 24
  %v5082 = vpop.permute.xlu0 %5081
  %5083 = vrot.lane.b32.xlu0 %v4287, 24
  %v5084 = vpop.permute.xlu0 %5083
  %5085 = vrot.lane.b32.xlu0 %v4288, 24
  %v5086 = vpop.permute.xlu0 %5085
  %5087 = vrot.lane.b32.xlu0 %v4289, 24
  %v5088 = vpop.permute.xlu0 %5087
  %5089 = vrot.lane.b32.xlu0 %v4290, 24
  %v5090 = vpop.permute.xlu0 %5089
  %5091 = vrot.lane.b32.xlu0 %v4291, 24
  %v5092 = vpop.permute.xlu0 %5091
  %5093 = vrot.lane.b32.xlu0 %v4292, 24
  %v5094 = vpop.permute.xlu0 %5093
  %5095 = vrot.lane.b32.xlu0 %v4293, 24
  %v5096 = vpop.permute.xlu0 %5095
  %5097 = vrot.lane.b32.xlu0 %v4294, 24
  %v5098 = vpop.permute.xlu0 %5097
  %vm5163 = vcmask 261312
  %5164 = vst.msk [vmem:[#allocation3 + $0x1] sm:$0xff] %vm5163, %v4972
  %vm5165 = vcmask 260288
  %5166 = vst.msk [vmem:[#allocation3 + $0x9] sm:$0x7f] %vm5165, %v4974
  %5167 = vst.msk [vmem:[#allocation3 + $0x11] sm:$0xff] %vm5163, %v4976
  %5168 = vst.msk [vmem:[#allocation3 + $0x19] sm:$0x7f] %vm5165, %v4978
  %5169 = vst.msk [vmem:[#allocation3 + $0x21] sm:$0xff] %vm5163, %v4980
  %5170 = vst.msk [vmem:[#allocation3 + $0x29] sm:$0x7f] %vm5165, %v4982
  %5171 = vst.msk [vmem:[#allocation3 + $0x31] sm:$0xff] %vm5163, %v4984
  %5172 = vst.msk [vmem:[#allocation3 + $0x39] sm:$0x7f] %vm5165, %v4986
  %5173 = vst.msk [vmem:[#allocation3 + $0x41] sm:$0xff] %vm5163, %v4988
  %5174 = vst.msk [vmem:[#allocation3 + $0x49] sm:$0x7f] %vm5165, %v4990
  %5175 = vst.msk [vmem:[#allocation3 + $0x51] sm:$0xff] %vm5163, %v4992
  %5176 = vst.msk [vmem:[#allocation3 + $0x59] sm:$0x7f] %vm5165, %v4994
  %5177 = vst.msk [vmem:[#allocation3 + $0x61] sm:$0xff] %vm5163, %v4996
  %5178 = vst.msk [vmem:[#allocation3 + $0x69] sm:$0x7f] %vm5165, %v4998
  %5179 = vst.msk [vmem:[#allocation3 + $0x71] sm:$0xff] %vm5163, %v5000
  %5180 = vst.msk [vmem:[#allocation3 + $0x79] sm:$0x7f] %vm5165, %v5002
  %5181 = vst.msk [vmem:[#allocation3 + $0x81] sm:$0xff] %vm5163, %v5004
  %5182 = vst.msk [vmem:[#allocation3 + $0x89] sm:$0x7f] %vm5165, %v5006
  %5183 = vst.msk [vmem:[#allocation3 + $0x91] sm:$0xff] %vm5163, %v5008
  %5184 = vst.msk [vmem:[#allocation3 + $0x99] sm:$0x7f] %vm5165, %v5010
  %5185 = vst.msk [vmem:[#allocation3 + $0xa1] sm:$0xff] %vm5163, %v5012
  %5186 = vst.msk [vmem:[#allocation3 + $0xa9] sm:$0x7f] %vm5165, %v5014
  %5187 = vst.msk [vmem:[#allocation3 + $0xb1] sm:$0xff] %vm5163, %v5016
  %5188 = vst.msk [vmem:[#allocation3 + $0xb9] sm:$0x7f] %vm5165, %v5018
  %5189 = vst.msk [vmem:[#allocation3 + $0xc1] sm:$0xff] %vm5163, %v5020
  %5190 = vst.msk [vmem:[#allocation3 + $0xc9] sm:$0x7f] %vm5165, %v5022
  %5191 = vst.msk [vmem:[#allocation3 + $0xd1] sm:$0xff] %vm5163, %v5024
  %5192 = vst.msk [vmem:[#allocation3 + $0xd9] sm:$0x7f] %vm5165, %v5026
  %5193 = vst.msk [vmem:[#allocation3 + $0xe1] sm:$0xff] %vm5163, %v5028
  %5194 = vst.msk [vmem:[#allocation3 + $0xe9] sm:$0x7f] %vm5165, %v5030
  %5195 = vst.msk [vmem:[#allocation3 + $0xf1] sm:$0xff] %vm5163, %v5032
  %5196 = vst.msk [vmem:[#allocation3 + $0xf9] sm:$0x7f] %vm5165, %v5034
  %5197 = vst.msk [vmem:[#allocation3 + $0x101] sm:$0xff] %vm5163, %v5036
  %5198 = vst.msk [vmem:[#allocation3 + $0x109] sm:$0x7f] %vm5165, %v5038
  %5199 = vst.msk [vmem:[#allocation3 + $0x111] sm:$0xff] %vm5163, %v5040
  %5200 = vst.msk [vmem:[#allocation3 + $0x119] sm:$0x7f] %vm5165, %v5042
  %5201 = vst.msk [vmem:[#allocation3 + $0x121] sm:$0xff] %vm5163, %v5044
  %5202 = vst.msk [vmem:[#allocation3 + $0x129] sm:$0x7f] %vm5165, %v5046
  %5203 = vst.msk [vmem:[#allocation3 + $0x131] sm:$0xff] %vm5163, %v5048
  %5204 = vst.msk [vmem:[#allocation3 + $0x139] sm:$0x7f] %vm5165, %v5050
  %5205 = vst.msk [vmem:[#allocation3 + $0x141] sm:$0xff] %vm5163, %v5052
  %5206 = vst.msk [vmem:[#allocation3 + $0x149] sm:$0x7f] %vm5165, %v5054
  %5207 = vst.msk [vmem:[#allocation3 + $0x151] sm:$0xff] %vm5163, %v5056
  %5208 = vst.msk [vmem:[#allocation3 + $0x159] sm:$0x7f] %vm5165, %v5058
  %5209 = vst.msk [vmem:[#allocation3 + $0x161] sm:$0xff] %vm5163, %v5060
  %5210 = vst.msk [vmem:[#allocation3 + $0x169] sm:$0x7f] %vm5165, %v5062
  %5211 = vst.msk [vmem:[#allocation3 + $0x171] sm:$0xff] %vm5163, %v5064
  %5212 = vst.msk [vmem:[#allocation3 + $0x179] sm:$0x7f] %vm5165, %v5066
  %5213 = vst.msk [vmem:[#allocation3 + $0x181] sm:$0xff] %vm5163, %v5068
  %5214 = vst.msk [vmem:[#allocation3 + $0x189] sm:$0x7f] %vm5165, %v5070
  %5215 = vst.msk [vmem:[#allocation3 + $0x191] sm:$0xff] %vm5163, %v5072
  %5216 = vst.msk [vmem:[#allocation3 + $0x199] sm:$0x7f] %vm5165, %v5074
  %5217 = vst.msk [vmem:[#allocation3 + $0x1a1] sm:$0xff] %vm5163, %v5076
  %5218 = vst.msk [vmem:[#allocation3 + $0x1a9] sm:$0x7f] %vm5165, %v5078
  %5219 = vst.msk [vmem:[#allocation3 + $0x1b1] sm:$0xff] %vm5163, %v5080
  %5220 = vst.msk [vmem:[#allocation3 + $0x1b9] sm:$0x7f] %vm5165, %v5082
  %5221 = vst.msk [vmem:[#allocation3 + $0x1c1] sm:$0xff] %vm5163, %v5084
  %5222 = vst.msk [vmem:[#allocation3 + $0x1c9] sm:$0x7f] %vm5165, %v5086
  %5223 = vst.msk [vmem:[#allocation3 + $0x1d1] sm:$0xff] %vm5163, %v5088
  %5224 = vst.msk [vmem:[#allocation3 + $0x1d9] sm:$0x7f] %vm5165, %v5090
  %5225 = vst.msk [vmem:[#allocation3 + $0x1e1] sm:$0xff] %vm5163, %v5092
  %5226 = vst.msk [vmem:[#allocation3 + $0x1e9] sm:$0x7f] %vm5165, %v5094
  %5227 = vst.msk [vmem:[#allocation3 + $0x1f1] sm:$0xff] %vm5163, %v5096
  %5228 = vst.msk [vmem:[#allocation3 + $0x1f9] sm:$0x7f] %vm5165, %v5098
  %5229 = vrot.lane.b32.xlu0 %v4231, 32
  %v5230 = vpop.permute.xlu0 %5229
  %5231 = vrot.lane.b32.xlu0 %v4232, 32
  %v5232 = vpop.permute.xlu0 %5231
  %5233 = vrot.lane.b32.xlu0 %v4233, 32
  %v5234 = vpop.permute.xlu0 %5233
  %5235 = vrot.lane.b32.xlu0 %v4234, 32
  %v5236 = vpop.permute.xlu0 %5235
  %5237 = vrot.lane.b32.xlu0 %v4235, 32
  %v5238 = vpop.permute.xlu0 %5237
  %5239 = vrot.lane.b32.xlu0 %v4236, 32
  %v5240 = vpop.permute.xlu0 %5239
  %5241 = vrot.lane.b32.xlu0 %v4237, 32
  %v5242 = vpop.permute.xlu0 %5241
  %5243 = vrot.lane.b32.xlu0 %v4238, 32
  %v5244 = vpop.permute.xlu0 %5243
  %5245 = vrot.lane.b32.xlu0 %v4239, 32
  %v5246 = vpop.permute.xlu0 %5245
  %5247 = vrot.lane.b32.xlu0 %v4240, 32
  %v5248 = vpop.permute.xlu0 %5247
  %5249 = vrot.lane.b32.xlu0 %v4241, 32
  %v5250 = vpop.permute.xlu0 %5249
  %5251 = vrot.lane.b32.xlu0 %v4242, 32
  %v5252 = vpop.permute.xlu0 %5251
  %5253 = vrot.lane.b32.xlu0 %v4243, 32
  %v5254 = vpop.permute.xlu0 %5253
  %5255 = vrot.lane.b32.xlu0 %v4244, 32
  %v5256 = vpop.permute.xlu0 %5255
  %5257 = vrot.lane.b32.xlu0 %v4245, 32
  %v5258 = vpop.permute.xlu0 %5257
  %5259 = vrot.lane.b32.xlu0 %v4246, 32
  %v5260 = vpop.permute.xlu0 %5259
  %5261 = vrot.lane.b32.xlu0 %v4247, 32
  %v5262 = vpop.permute.xlu0 %5261
  %5263 = vrot.lane.b32.xlu0 %v4248, 32
  %v5264 = vpop.permute.xlu0 %5263
  %5265 = vrot.lane.b32.xlu0 %v4249, 32
  %v5266 = vpop.permute.xlu0 %5265
  %5267 = vrot.lane.b32.xlu0 %v4250, 32
  %v5268 = vpop.permute.xlu0 %5267
  %5269 = vrot.lane.b32.xlu0 %v4251, 32
  %v5270 = vpop.permute.xlu0 %5269
  %5271 = vrot.lane.b32.xlu0 %v4252, 32
  %v5272 = vpop.permute.xlu0 %5271
  %5273 = vrot.lane.b32.xlu0 %v4253, 32
  %v5274 = vpop.permute.xlu0 %5273
  %5275 = vrot.lane.b32.xlu0 %v4254, 32
  %v5276 = vpop.permute.xlu0 %5275
  %5277 = vrot.lane.b32.xlu0 %v4255, 32
  %v5278 = vpop.permute.xlu0 %5277
  %5279 = vrot.lane.b32.xlu0 %v4256, 32
  %v5280 = vpop.permute.xlu0 %5279
  %5281 = vrot.lane.b32.xlu0 %v4257, 32
  %v5282 = vpop.permute.xlu0 %5281
  %5283 = vrot.lane.b32.xlu0 %v4258, 32
  %v5284 = vpop.permute.xlu0 %5283
  %5285 = vrot.lane.b32.xlu0 %v4259, 32
  %v5286 = vpop.permute.xlu0 %5285
  %5287 = vrot.lane.b32.xlu0 %v4260, 32
  %v5288 = vpop.permute.xlu0 %5287
  %5289 = vrot.lane.b32.xlu0 %v4261, 32
  %v5290 = vpop.permute.xlu0 %5289
  %5291 = vrot.lane.b32.xlu0 %v4262, 32
  %v5292 = vpop.permute.xlu0 %5291
  %5293 = vrot.lane.b32.xlu0 %v4263, 32
  %v5294 = vpop.permute.xlu0 %5293
  %5295 = vrot.lane.b32.xlu0 %v4264, 32
  %v5296 = vpop.permute.xlu0 %5295
  %5297 = vrot.lane.b32.xlu0 %v4265, 32
  %v5298 = vpop.permute.xlu0 %5297
  %5299 = vrot.lane.b32.xlu0 %v4266, 32
  %v5300 = vpop.permute.xlu0 %5299
  %5301 = vrot.lane.b32.xlu0 %v4267, 32
  %v5302 = vpop.permute.xlu0 %5301
  %5303 = vrot.lane.b32.xlu0 %v4268, 32
  %v5304 = vpop.permute.xlu0 %5303
  %5305 = vrot.lane.b32.xlu0 %v4269, 32
  %v5306 = vpop.permute.xlu0 %5305
  %5307 = vrot.lane.b32.xlu0 %v4270, 32
  %v5308 = vpop.permute.xlu0 %5307
  %5309 = vrot.lane.b32.xlu0 %v4271, 32
  %v5310 = vpop.permute.xlu0 %5309
  %5311 = vrot.lane.b32.xlu0 %v4272, 32
  %v5312 = vpop.permute.xlu0 %5311
  %5313 = vrot.lane.b32.xlu0 %v4273, 32
  %v5314 = vpop.permute.xlu0 %5313
  %5315 = vrot.lane.b32.xlu0 %v4274, 32
  %v5316 = vpop.permute.xlu0 %5315
  %5317 = vrot.lane.b32.xlu0 %v4275, 32
  %v5318 = vpop.permute.xlu0 %5317
  %5319 = vrot.lane.b32.xlu0 %v4276, 32
  %v5320 = vpop.permute.xlu0 %5319
  %5321 = vrot.lane.b32.xlu0 %v4277, 32
  %v5322 = vpop.permute.xlu0 %5321
  %5323 = vrot.lane.b32.xlu0 %v4278, 32
  %v5324 = vpop.permute.xlu0 %5323
  %5325 = vrot.lane.b32.xlu0 %v4279, 32
  %v5326 = vpop.permute.xlu0 %5325
  %5327 = vrot.lane.b32.xlu0 %v4280, 32
  %v5328 = vpop.permute.xlu0 %5327
  %5329 = vrot.lane.b32.xlu0 %v4281, 32
  %v5330 = vpop.permute.xlu0 %5329
  %5331 = vrot.lane.b32.xlu0 %v4282, 32
  %v5332 = vpop.permute.xlu0 %5331
  %5333 = vrot.lane.b32.xlu0 %v4283, 32
  %v5334 = vpop.permute.xlu0 %5333
  %5335 = vrot.lane.b32.xlu0 %v4284, 32
  %v5336 = vpop.permute.xlu0 %5335
  %5337 = vrot.lane.b32.xlu0 %v4285, 32
  %v5338 = vpop.permute.xlu0 %5337
  %5339 = vrot.lane.b32.xlu0 %v4286, 32
  %v5340 = vpop.permute.xlu0 %5339
  %5341 = vrot.lane.b32.xlu0 %v4287, 32
  %v5342 = vpop.permute.xlu0 %5341
  %5343 = vrot.lane.b32.xlu0 %v4288, 32
  %v5344 = vpop.permute.xlu0 %5343
  %5345 = vrot.lane.b32.xlu0 %v4289, 32
  %v5346 = vpop.permute.xlu0 %5345
  %5347 = vrot.lane.b32.xlu0 %v4290, 32
  %v5348 = vpop.permute.xlu0 %5347
  %5349 = vrot.lane.b32.xlu0 %v4291, 32
  %v5350 = vpop.permute.xlu0 %5349
  %5351 = vrot.lane.b32.xlu0 %v4292, 32
  %v5352 = vpop.permute.xlu0 %5351
  %5353 = vrot.lane.b32.xlu0 %v4293, 32
  %v5354 = vpop.permute.xlu0 %5353
  %5355 = vrot.lane.b32.xlu0 %v4294, 32
  %v5356 = vpop.permute.xlu0 %5355
  %vm5421 = vcmask 326912
  %5422 = vst.msk [vmem:[#allocation3] sm:$0xff] %vm5421, %v5230
  %5423 = vst.msk [vmem:[#allocation3 + $0x8] sm:$0xff] %vm5421, %v5232
  %5424 = vst.msk [vmem:[#allocation3 + $0x10] sm:$0xff] %vm5421, %v5234
  %5425 = vst.msk [vmem:[#allocation3 + $0x18] sm:$0xff] %vm5421, %v5236
  %5426 = vst.msk [vmem:[#allocation3 + $0x20] sm:$0xff] %vm5421, %v5238
  %5427 = vst.msk [vmem:[#allocation3 + $0x28] sm:$0xff] %vm5421, %v5240
  %5428 = vst.msk [vmem:[#allocation3 + $0x30] sm:$0xff] %vm5421, %v5242
  %5429 = vst.msk [vmem:[#allocation3 + $0x38] sm:$0xff] %vm5421, %v5244
  %5430 = vst.msk [vmem:[#allocation3 + $0x40] sm:$0xff] %vm5421, %v5246
  %5431 = vst.msk [vmem:[#allocation3 + $0x48] sm:$0xff] %vm5421, %v5248
  %5432 = vst.msk [vmem:[#allocation3 + $0x50] sm:$0xff] %vm5421, %v5250
  %5433 = vst.msk [vmem:[#allocation3 + $0x58] sm:$0xff] %vm5421, %v5252
  %5434 = vst.msk [vmem:[#allocation3 + $0x60] sm:$0xff] %vm5421, %v5254
  %5435 = vst.msk [vmem:[#allocation3 + $0x68] sm:$0xff] %vm5421, %v5256
  %5436 = vst.msk [vmem:[#allocation3 + $0x70] sm:$0xff] %vm5421, %v5258
  %5437 = vst.msk [vmem:[#allocation3 + $0x78] sm:$0xff] %vm5421, %v5260
  %5438 = vst.msk [vmem:[#allocation3 + $0x80] sm:$0xff] %vm5421, %v5262
  %5439 = vst.msk [vmem:[#allocation3 + $0x88] sm:$0xff] %vm5421, %v5264
  %5440 = vst.msk [vmem:[#allocation3 + $0x90] sm:$0xff] %vm5421, %v5266
  %5441 = vst.msk [vmem:[#allocation3 + $0x98] sm:$0xff] %vm5421, %v5268
  %5442 = vst.msk [vmem:[#allocation3 + $0xa0] sm:$0xff] %vm5421, %v5270
  %5443 = vst.msk [vmem:[#allocation3 + $0xa8] sm:$0xff] %vm5421, %v5272
  %5444 = vst.msk [vmem:[#allocation3 + $0xb0] sm:$0xff] %vm5421, %v5274
  %5445 = vst.msk [vmem:[#allocation3 + $0xb8] sm:$0xff] %vm5421, %v5276
  %5446 = vst.msk [vmem:[#allocation3 + $0xc0] sm:$0xff] %vm5421, %v5278
  %5447 = vst.msk [vmem:[#allocation3 + $0xc8] sm:$0xff] %vm5421, %v5280
  %5448 = vst.msk [vmem:[#allocation3 + $0xd0] sm:$0xff] %vm5421, %v5282
  %5449 = vst.msk [vmem:[#allocation3 + $0xd8] sm:$0xff] %vm5421, %v5284
  %5450 = vst.msk [vmem:[#allocation3 + $0xe0] sm:$0xff] %vm5421, %v5286
  %5451 = vst.msk [vmem:[#allocation3 + $0xe8] sm:$0xff] %vm5421, %v5288
  %5452 = vst.msk [vmem:[#allocation3 + $0xf0] sm:$0xff] %vm5421, %v5290
  %5453 = vst.msk [vmem:[#allocation3 + $0xf8] sm:$0xff] %vm5421, %v5292
  %5454 = vst.msk [vmem:[#allocation3 + $0x100] sm:$0xff] %vm5421, %v5294
  %5455 = vst.msk [vmem:[#allocation3 + $0x108] sm:$0xff] %vm5421, %v5296
  %5456 = vst.msk [vmem:[#allocation3 + $0x110] sm:$0xff] %vm5421, %v5298
  %5457 = vst.msk [vmem:[#allocation3 + $0x118] sm:$0xff] %vm5421, %v5300
  %5458 = vst.msk [vmem:[#allocation3 + $0x120] sm:$0xff] %vm5421, %v5302
  %5459 = vst.msk [vmem:[#allocation3 + $0x128] sm:$0xff] %vm5421, %v5304
  %5460 = vst.msk [vmem:[#allocation3 + $0x130] sm:$0xff] %vm5421, %v5306
  %5461 = vst.msk [vmem:[#allocation3 + $0x138] sm:$0xff] %vm5421, %v5308
  %5462 = vst.msk [vmem:[#allocation3 + $0x140] sm:$0xff] %vm5421, %v5310
  %5463 = vst.msk [vmem:[#allocation3 + $0x148] sm:$0xff] %vm5421, %v5312
  %5464 = vst.msk [vmem:[#allocation3 + $0x150] sm:$0xff] %vm5421, %v5314
  %5465 = vst.msk [vmem:[#allocation3 + $0x158] sm:$0xff] %vm5421, %v5316
  %5466 = vst.msk [vmem:[#allocation3 + $0x160] sm:$0xff] %vm5421, %v5318
  %5467 = vst.msk [vmem:[#allocation3 + $0x168] sm:$0xff] %vm5421, %v5320
  %5468 = vst.msk [vmem:[#allocation3 + $0x170] sm:$0xff] %vm5421, %v5322
  %5469 = vst.msk [vmem:[#allocation3 + $0x178] sm:$0xff] %vm5421, %v5324
  %5470 = vst.msk [vmem:[#allocation3 + $0x180] sm:$0xff] %vm5421, %v5326
  %5471 = vst.msk [vmem:[#allocation3 + $0x188] sm:$0xff] %vm5421, %v5328
  %5472 = vst.msk [vmem:[#allocation3 + $0x190] sm:$0xff] %vm5421, %v5330
  %5473 = vst.msk [vmem:[#allocation3 + $0x198] sm:$0xff] %vm5421, %v5332
  %5474 = vst.msk [vmem:[#allocation3 + $0x1a0] sm:$0xff] %vm5421, %v5334
  %5475 = vst.msk [vmem:[#allocation3 + $0x1a8] sm:$0xff] %vm5421, %v5336
  %5476 = vst.msk [vmem:[#allocation3 + $0x1b0] sm:$0xff] %vm5421, %v5338
  %5477 = vst.msk [vmem:[#allocation3 + $0x1b8] sm:$0xff] %vm5421, %v5340
  %5478 = vst.msk [vmem:[#allocation3 + $0x1c0] sm:$0xff] %vm5421, %v5342
  %5479 = vst.msk [vmem:[#allocation3 + $0x1c8] sm:$0xff] %vm5421, %v5344
  %5480 = vst.msk [vmem:[#allocation3 + $0x1d0] sm:$0xff] %vm5421, %v5346
  %5481 = vst.msk [vmem:[#allocation3 + $0x1d8] sm:$0xff] %vm5421, %v5348
  %5482 = vst.msk [vmem:[#allocation3 + $0x1e0] sm:$0xff] %vm5421, %v5350
  %5483 = vst.msk [vmem:[#allocation3 + $0x1e8] sm:$0xff] %vm5421, %v5352
  %5484 = vst.msk [vmem:[#allocation3 + $0x1f0] sm:$0xff] %vm5421, %v5354
  %5485 = vst.msk [vmem:[#allocation3 + $0x1f8] sm:$0xff] %vm5421, %v5356
  %5486 = vrot.lane.b32.xlu0 %v4231, 40
  %v5487 = vpop.permute.xlu0 %5486
  %5488 = vrot.lane.b32.xlu0 %v4232, 40
  %v5489 = vpop.permute.xlu0 %5488
  %5490 = vrot.lane.b32.xlu0 %v4233, 40
  %v5491 = vpop.permute.xlu0 %5490
  %5492 = vrot.lane.b32.xlu0 %v4234, 40
  %v5493 = vpop.permute.xlu0 %5492
  %5494 = vrot.lane.b32.xlu0 %v4235, 40
  %v5495 = vpop.permute.xlu0 %5494
  %5496 = vrot.lane.b32.xlu0 %v4236, 40
  %v5497 = vpop.permute.xlu0 %5496
  %5498 = vrot.lane.b32.xlu0 %v4237, 40
  %v5499 = vpop.permute.xlu0 %5498
  %5500 = vrot.lane.b32.xlu0 %v4238, 40
  %v5501 = vpop.permute.xlu0 %5500
  %5502 = vrot.lane.b32.xlu0 %v4239, 40
  %v5503 = vpop.permute.xlu0 %5502
  %5504 = vrot.lane.b32.xlu0 %v4240, 40
  %v5505 = vpop.permute.xlu0 %5504
  %5506 = vrot.lane.b32.xlu0 %v4241, 40
  %v5507 = vpop.permute.xlu0 %5506
  %5508 = vrot.lane.b32.xlu0 %v4242, 40
  %v5509 = vpop.permute.xlu0 %5508
  %5510 = vrot.lane.b32.xlu0 %v4243, 40
  %v5511 = vpop.permute.xlu0 %5510
  %5512 = vrot.lane.b32.xlu0 %v4244, 40
  %v5513 = vpop.permute.xlu0 %5512
  %5514 = vrot.lane.b32.xlu0 %v4245, 40
  %v5515 = vpop.permute.xlu0 %5514
  %5516 = vrot.lane.b32.xlu0 %v4246, 40
  %v5517 = vpop.permute.xlu0 %5516
  %5518 = vrot.lane.b32.xlu0 %v4247, 40
  %v5519 = vpop.permute.xlu0 %5518
  %5520 = vrot.lane.b32.xlu0 %v4248, 40
  %v5521 = vpop.permute.xlu0 %5520
  %5522 = vrot.lane.b32.xlu0 %v4249, 40
  %v5523 = vpop.permute.xlu0 %5522
  %5524 = vrot.lane.b32.xlu0 %v4250, 40
  %v5525 = vpop.permute.xlu0 %5524
  %5526 = vrot.lane.b32.xlu0 %v4251, 40
  %v5527 = vpop.permute.xlu0 %5526
  %5528 = vrot.lane.b32.xlu0 %v4252, 40
  %v5529 = vpop.permute.xlu0 %5528
  %5530 = vrot.lane.b32.xlu0 %v4253, 40
  %v5531 = vpop.permute.xlu0 %5530
  %5532 = vrot.lane.b32.xlu0 %v4254, 40
  %v5533 = vpop.permute.xlu0 %5532
  %5534 = vrot.lane.b32.xlu0 %v4255, 40
  %v5535 = vpop.permute.xlu0 %5534
  %5536 = vrot.lane.b32.xlu0 %v4256, 40
  %v5537 = vpop.permute.xlu0 %5536
  %5538 = vrot.lane.b32.xlu0 %v4257, 40
  %v5539 = vpop.permute.xlu0 %5538
  %5540 = vrot.lane.b32.xlu0 %v4258, 40
  %v5541 = vpop.permute.xlu0 %5540
  %5542 = vrot.lane.b32.xlu0 %v4259, 40
  %v5543 = vpop.permute.xlu0 %5542
  %5544 = vrot.lane.b32.xlu0 %v4260, 40
  %v5545 = vpop.permute.xlu0 %5544
  %5546 = vrot.lane.b32.xlu0 %v4261, 40
  %v5547 = vpop.permute.xlu0 %5546
  %5548 = vrot.lane.b32.xlu0 %v4262, 40
  %v5549 = vpop.permute.xlu0 %5548
  %5550 = vrot.lane.b32.xlu0 %v4263, 40
  %v5551 = vpop.permute.xlu0 %5550
  %5552 = vrot.lane.b32.xlu0 %v4264, 40
  %v5553 = vpop.permute.xlu0 %5552
  %5554 = vrot.lane.b32.xlu0 %v4265, 40
  %v5555 = vpop.permute.xlu0 %5554
  %5556 = vrot.lane.b32.xlu0 %v4266, 40
  %v5557 = vpop.permute.xlu0 %5556
  %5558 = vrot.lane.b32.xlu0 %v4267, 40
  %v5559 = vpop.permute.xlu0 %5558
  %5560 = vrot.lane.b32.xlu0 %v4268, 40
  %v5561 = vpop.permute.xlu0 %5560
  %5562 = vrot.lane.b32.xlu0 %v4269, 40
  %v5563 = vpop.permute.xlu0 %5562
  %5564 = vrot.lane.b32.xlu0 %v4270, 40
  %v5565 = vpop.permute.xlu0 %5564
  %5566 = vrot.lane.b32.xlu0 %v4271, 40
  %v5567 = vpop.permute.xlu0 %5566
  %5568 = vrot.lane.b32.xlu0 %v4272, 40
  %v5569 = vpop.permute.xlu0 %5568
  %5570 = vrot.lane.b32.xlu0 %v4273, 40
  %v5571 = vpop.permute.xlu0 %5570
  %5572 = vrot.lane.b32.xlu0 %v4274, 40
  %v5573 = vpop.permute.xlu0 %5572
  %5574 = vrot.lane.b32.xlu0 %v4275, 40
  %v5575 = vpop.permute.xlu0 %5574
  %5576 = vrot.lane.b32.xlu0 %v4276, 40
  %v5577 = vpop.permute.xlu0 %5576
  %5578 = vrot.lane.b32.xlu0 %v4277, 40
  %v5579 = vpop.permute.xlu0 %5578
  %5580 = vrot.lane.b32.xlu0 %v4278, 40
  %v5581 = vpop.permute.xlu0 %5580
  %5582 = vrot.lane.b32.xlu0 %v4279, 40
  %v5583 = vpop.permute.xlu0 %5582
  %5584 = vrot.lane.b32.xlu0 %v4280, 40
  %v5585 = vpop.permute.xlu0 %5584
  %5586 = vrot.lane.b32.xlu0 %v4281, 40
  %v5587 = vpop.permute.xlu0 %5586
  %5588 = vrot.lane.b32.xlu0 %v4282, 40
  %v5589 = vpop.permute.xlu0 %5588
  %5590 = vrot.lane.b32.xlu0 %v4283, 40
  %v5591 = vpop.permute.xlu0 %5590
  %5592 = vrot.lane.b32.xlu0 %v4284, 40
  %v5593 = vpop.permute.xlu0 %5592
  %5594 = vrot.lane.b32.xlu0 %v4285, 40
  %v5595 = vpop.permute.xlu0 %5594
  %5596 = vrot.lane.b32.xlu0 %v4286, 40
  %v5597 = vpop.permute.xlu0 %5596
  %5598 = vrot.lane.b32.xlu0 %v4287, 40
  %v5599 = vpop.permute.xlu0 %5598
  %5600 = vrot.lane.b32.xlu0 %v4288, 40
  %v5601 = vpop.permute.xlu0 %5600
  %5602 = vrot.lane.b32.xlu0 %v4289, 40
  %v5603 = vpop.permute.xlu0 %5602
  %5604 = vrot.lane.b32.xlu0 %v4290, 40
  %v5605 = vpop.permute.xlu0 %5604
  %5606 = vrot.lane.b32.xlu0 %v4291, 40
  %v5607 = vpop.permute.xlu0 %5606
  %5608 = vrot.lane.b32.xlu0 %v4292, 40
  %v5609 = vpop.permute.xlu0 %5608
  %5610 = vrot.lane.b32.xlu0 %v4293, 40
  %v5611 = vpop.permute.xlu0 %5610
  %5612 = vrot.lane.b32.xlu0 %v4294, 40
  %v5613 = vpop.permute.xlu0 %5612
  %vm5678 = vcmask 392513
  %5679 = vst.msk [vmem:[#allocation3 - $0x1] sm:$0xfe] %vm5678, %v5487
  %vm5680 = vcmask 392512
  %5681 = vst.msk [vmem:[#allocation3 + $0x7] sm:$0xff] %vm5680, %v5489
  %5682 = vst.msk [vmem:[#allocation3 + $0xf] sm:$0xfe] %vm5678, %v5491
  %5683 = vst.msk [vmem:[#allocation3 + $0x17] sm:$0xff] %vm5680, %v5493
  %5684 = vst.msk [vmem:[#allocation3 + $0x1f] sm:$0xfe] %vm5678, %v5495
  %5685 = vst.msk [vmem:[#allocation3 + $0x27] sm:$0xff] %vm5680, %v5497
  %5686 = vst.msk [vmem:[#allocation3 + $0x2f] sm:$0xfe] %vm5678, %v5499
  %5687 = vst.msk [vmem:[#allocation3 + $0x37] sm:$0xff] %vm5680, %v5501
  %5688 = vst.msk [vmem:[#allocation3 + $0x3f] sm:$0xfe] %vm5678, %v5503
  %5689 = vst.msk [vmem:[#allocation3 + $0x47] sm:$0xff] %vm5680, %v5505
  %5690 = vst.msk [vmem:[#allocation3 + $0x4f] sm:$0xfe] %vm5678, %v5507
  %5691 = vst.msk [vmem:[#allocation3 + $0x57] sm:$0xff] %vm5680, %v5509
  %5692 = vst.msk [vmem:[#allocation3 + $0x5f] sm:$0xfe] %vm5678, %v5511
  %5693 = vst.msk [vmem:[#allocation3 + $0x67] sm:$0xff] %vm5680, %v5513
  %5694 = vst.msk [vmem:[#allocation3 + $0x6f] sm:$0xfe] %vm5678, %v5515
  %5695 = vst.msk [vmem:[#allocation3 + $0x77] sm:$0xff] %vm5680, %v5517
  %5696 = vst.msk [vmem:[#allocation3 + $0x7f] sm:$0xfe] %vm5678, %v5519
  %5697 = vst.msk [vmem:[#allocation3 + $0x87] sm:$0xff] %vm5680, %v5521
  %5698 = vst.msk [vmem:[#allocation3 + $0x8f] sm:$0xfe] %vm5678, %v5523
  %5699 = vst.msk [vmem:[#allocation3 + $0x97] sm:$0xff] %vm5680, %v5525
  %5700 = vst.msk [vmem:[#allocation3 + $0x9f] sm:$0xfe] %vm5678, %v5527
  %5701 = vst.msk [vmem:[#allocation3 + $0xa7] sm:$0xff] %vm5680, %v5529
  %5702 = vst.msk [vmem:[#allocation3 + $0xaf] sm:$0xfe] %vm5678, %v5531
  %5703 = vst.msk [vmem:[#allocation3 + $0xb7] sm:$0xff] %vm5680, %v5533
  %5704 = vst.msk [vmem:[#allocation3 + $0xbf] sm:$0xfe] %vm5678, %v5535
  %5705 = vst.msk [vmem:[#allocation3 + $0xc7] sm:$0xff] %vm5680, %v5537
  %5706 = vst.msk [vmem:[#allocation3 + $0xcf] sm:$0xfe] %vm5678, %v5539
  %5707 = vst.msk [vmem:[#allocation3 + $0xd7] sm:$0xff] %vm5680, %v5541
  %5708 = vst.msk [vmem:[#allocation3 + $0xdf] sm:$0xfe] %vm5678, %v5543
  %5709 = vst.msk [vmem:[#allocation3 + $0xe7] sm:$0xff] %vm5680, %v5545
  %5710 = vst.msk [vmem:[#allocation3 + $0xef] sm:$0xfe] %vm5678, %v5547
  %5711 = vst.msk [vmem:[#allocation3 + $0xf7] sm:$0xff] %vm5680, %v5549
  %5712 = vst.msk [vmem:[#allocation3 + $0xff] sm:$0xfe] %vm5678, %v5551
  %5713 = vst.msk [vmem:[#allocation3 + $0x107] sm:$0xff] %vm5680, %v5553
  %5714 = vst.msk [vmem:[#allocation3 + $0x10f] sm:$0xfe] %vm5678, %v5555
  %5715 = vst.msk [vmem:[#allocation3 + $0x117] sm:$0xff] %vm5680, %v5557
  %5716 = vst.msk [vmem:[#allocation3 + $0x11f] sm:$0xfe] %vm5678, %v5559
  %5717 = vst.msk [vmem:[#allocation3 + $0x127] sm:$0xff] %vm5680, %v5561
  %5718 = vst.msk [vmem:[#allocation3 + $0x12f] sm:$0xfe] %vm5678, %v5563
  %5719 = vst.msk [vmem:[#allocation3 + $0x137] sm:$0xff] %vm5680, %v5565
  %5720 = vst.msk [vmem:[#allocation3 + $0x13f] sm:$0xfe] %vm5678, %v5567
  %5721 = vst.msk [vmem:[#allocation3 + $0x147] sm:$0xff] %vm5680, %v5569
  %5722 = vst.msk [vmem:[#allocation3 + $0x14f] sm:$0xfe] %vm5678, %v5571
  %5723 = vst.msk [vmem:[#allocation3 + $0x157] sm:$0xff] %vm5680, %v5573
  %5724 = vst.msk [vmem:[#allocation3 + $0x15f] sm:$0xfe] %vm5678, %v5575
  %5725 = vst.msk [vmem:[#allocation3 + $0x167] sm:$0xff] %vm5680, %v5577
  %5726 = vst.msk [vmem:[#allocation3 + $0x16f] sm:$0xfe] %vm5678, %v5579
  %5727 = vst.msk [vmem:[#allocation3 + $0x177] sm:$0xff] %vm5680, %v5581
  %5728 = vst.msk [vmem:[#allocation3 + $0x17f] sm:$0xfe] %vm5678, %v5583
  %5729 = vst.msk [vmem:[#allocation3 + $0x187] sm:$0xff] %vm5680, %v5585
  %5730 = vst.msk [vmem:[#allocation3 + $0x18f] sm:$0xfe] %vm5678, %v5587
  %5731 = vst.msk [vmem:[#allocation3 + $0x197] sm:$0xff] %vm5680, %v5589
  %5732 = vst.msk [vmem:[#allocation3 + $0x19f] sm:$0xfe] %vm5678, %v5591
  %5733 = vst.msk [vmem:[#allocation3 + $0x1a7] sm:$0xff] %vm5680, %v5593
  %5734 = vst.msk [vmem:[#allocation3 + $0x1af] sm:$0xfe] %vm5678, %v5595
  %5735 = vst.msk [vmem:[#allocation3 + $0x1b7] sm:$0xff] %vm5680, %v5597
  %5736 = vst.msk [vmem:[#allocation3 + $0x1bf] sm:$0xfe] %vm5678, %v5599
  %5737 = vst.msk [vmem:[#allocation3 + $0x1c7] sm:$0xff] %vm5680, %v5601
  %5738 = vst.msk [vmem:[#allocation3 + $0x1cf] sm:$0xfe] %vm5678, %v5603
  %5739 = vst.msk [vmem:[#allocation3 + $0x1d7] sm:$0xff] %vm5680, %v5605
  %5740 = vst.msk [vmem:[#allocation3 + $0x1df] sm:$0xfe] %vm5678, %v5607
  %5741 = vst.msk [vmem:[#allocation3 + $0x1e7] sm:$0xff] %vm5680, %v5609
  %5742 = vst.msk [vmem:[#allocation3 + $0x1ef] sm:$0xfe] %vm5678, %v5611
  %5743 = vst.msk [vmem:[#allocation3 + $0x1f7] sm:$0xff] %vm5680, %v5613
  %5744 = vrot.lane.b32.xlu0 %v4233, 48
  %v5745 = vpop.permute.xlu0 %5744
  %5746 = vrot.lane.b32.xlu0 %v4234, 48
  %v5747 = vpop.permute.xlu0 %5746
  %5748 = vrot.lane.b32.xlu0 %v4235, 48
  %v5749 = vpop.permute.xlu0 %5748
  %5750 = vrot.lane.b32.xlu0 %v4236, 48
  %v5751 = vpop.permute.xlu0 %5750
  %5752 = vrot.lane.b32.xlu0 %v4237, 48
  %v5753 = vpop.permute.xlu0 %5752
  %5754 = vrot.lane.b32.xlu0 %v4238, 48
  %v5755 = vpop.permute.xlu0 %5754
  %5756 = vrot.lane.b32.xlu0 %v4239, 48
  %v5757 = vpop.permute.xlu0 %5756
  %5758 = vrot.lane.b32.xlu0 %v4240, 48
  %v5759 = vpop.permute.xlu0 %5758
  %5760 = vrot.lane.b32.xlu0 %v4241, 48
  %v5761 = vpop.permute.xlu0 %5760
  %5762 = vrot.lane.b32.xlu0 %v4242, 48
  %v5763 = vpop.permute.xlu0 %5762
  %5764 = vrot.lane.b32.xlu0 %v4243, 48
  %v5765 = vpop.permute.xlu0 %5764
  %5766 = vrot.lane.b32.xlu0 %v4244, 48
  %v5767 = vpop.permute.xlu0 %5766
  %5768 = vrot.lane.b32.xlu0 %v4245, 48
  %v5769 = vpop.permute.xlu0 %5768
  %5770 = vrot.lane.b32.xlu0 %v4246, 48
  %v5771 = vpop.permute.xlu0 %5770
  %5772 = vrot.lane.b32.xlu0 %v4247, 48
  %v5773 = vpop.permute.xlu0 %5772
  %5774 = vrot.lane.b32.xlu0 %v4248, 48
  %v5775 = vpop.permute.xlu0 %5774
  %5776 = vrot.lane.b32.xlu0 %v4249, 48
  %v5777 = vpop.permute.xlu0 %5776
  %5778 = vrot.lane.b32.xlu0 %v4250, 48
  %v5779 = vpop.permute.xlu0 %5778
  %5780 = vrot.lane.b32.xlu0 %v4251, 48
  %v5781 = vpop.permute.xlu0 %5780
  %5782 = vrot.lane.b32.xlu0 %v4252, 48
  %v5783 = vpop.permute.xlu0 %5782
  %5784 = vrot.lane.b32.xlu0 %v4253, 48
  %v5785 = vpop.permute.xlu0 %5784
  %5786 = vrot.lane.b32.xlu0 %v4254, 48
  %v5787 = vpop.permute.xlu0 %5786
  %5788 = vrot.lane.b32.xlu0 %v4255, 48
  %v5789 = vpop.permute.xlu0 %5788
  %5790 = vrot.lane.b32.xlu0 %v4256, 48
  %v5791 = vpop.permute.xlu0 %5790
  %5792 = vrot.lane.b32.xlu0 %v4257, 48
  %v5793 = vpop.permute.xlu0 %5792
  %5794 = vrot.lane.b32.xlu0 %v4258, 48
  %v5795 = vpop.permute.xlu0 %5794
  %5796 = vrot.lane.b32.xlu0 %v4259, 48
  %v5797 = vpop.permute.xlu0 %5796
  %5798 = vrot.lane.b32.xlu0 %v4260, 48
  %v5799 = vpop.permute.xlu0 %5798
  %5800 = vrot.lane.b32.xlu0 %v4261, 48
  %v5801 = vpop.permute.xlu0 %5800
  %5802 = vrot.lane.b32.xlu0 %v4262, 48
  %v5803 = vpop.permute.xlu0 %5802
  %5804 = vrot.lane.b32.xlu0 %v4265, 48
  %v5805 = vpop.permute.xlu0 %5804
  %5806 = vrot.lane.b32.xlu0 %v4266, 48
  %v5807 = vpop.permute.xlu0 %5806
  %5808 = vrot.lane.b32.xlu0 %v4267, 48
  %v5809 = vpop.permute.xlu0 %5808
  %5810 = vrot.lane.b32.xlu0 %v4268, 48
  %v5811 = vpop.permute.xlu0 %5810
  %5812 = vrot.lane.b32.xlu0 %v4269, 48
  %v5813 = vpop.permute.xlu0 %5812
  %5814 = vrot.lane.b32.xlu0 %v4270, 48
  %v5815 = vpop.permute.xlu0 %5814
  %5816 = vrot.lane.b32.xlu0 %v4271, 48
  %v5817 = vpop.permute.xlu0 %5816
  %5818 = vrot.lane.b32.xlu0 %v4272, 48
  %v5819 = vpop.permute.xlu0 %5818
  %5820 = vrot.lane.b32.xlu0 %v4273, 48
  %v5821 = vpop.permute.xlu0 %5820
  %5822 = vrot.lane.b32.xlu0 %v4274, 48
  %v5823 = vpop.permute.xlu0 %5822
  %5824 = vrot.lane.b32.xlu0 %v4275, 48
  %v5825 = vpop.permute.xlu0 %5824
  %5826 = vrot.lane.b32.xlu0 %v4276, 48
  %v5827 = vpop.permute.xlu0 %5826
  %5828 = vrot.lane.b32.xlu0 %v4277, 48
  %v5829 = vpop.permute.xlu0 %5828
  %5830 = vrot.lane.b32.xlu0 %v4278, 48
  %v5831 = vpop.permute.xlu0 %5830
  %5832 = vrot.lane.b32.xlu0 %v4279, 48
  %v5833 = vpop.permute.xlu0 %5832
  %5834 = vrot.lane.b32.xlu0 %v4280, 48
  %v5835 = vpop.permute.xlu0 %5834
  %5836 = vrot.lane.b32.xlu0 %v4281, 48
  %v5837 = vpop.permute.xlu0 %5836
  %5838 = vrot.lane.b32.xlu0 %v4282, 48
  %v5839 = vpop.permute.xlu0 %5838
  %5840 = vrot.lane.b32.xlu0 %v4283, 48
  %v5841 = vpop.permute.xlu0 %5840
  %5842 = vrot.lane.b32.xlu0 %v4284, 48
  %v5843 = vpop.permute.xlu0 %5842
  %5844 = vrot.lane.b32.xlu0 %v4285, 48
  %v5845 = vpop.permute.xlu0 %5844
  %5846 = vrot.lane.b32.xlu0 %v4286, 48
  %v5847 = vpop.permute.xlu0 %5846
  %5848 = vrot.lane.b32.xlu0 %v4287, 48
  %v5849 = vpop.permute.xlu0 %5848
  %5850 = vrot.lane.b32.xlu0 %v4288, 48
  %v5851 = vpop.permute.xlu0 %5850
  %5852 = vrot.lane.b32.xlu0 %v4289, 48
  %v5853 = vpop.permute.xlu0 %5852
  %5854 = vrot.lane.b32.xlu0 %v4290, 48
  %v5855 = vpop.permute.xlu0 %5854
  %5856 = vrot.lane.b32.xlu0 %v4291, 48
  %v5857 = vpop.permute.xlu0 %5856
  %5858 = vrot.lane.b32.xlu0 %v4292, 48
  %v5859 = vpop.permute.xlu0 %5858
  %5860 = vrot.lane.b32.xlu0 %v4293, 48
  %v5861 = vpop.permute.xlu0 %5860
  %5862 = vrot.lane.b32.xlu0 %v4294, 48
  %v5863 = vpop.permute.xlu0 %5862
  %vm5924 = vcmask 458112
  %5925 = vst.msk [vmem:[#allocation3 + $0x1] sm:$0xff] %vm5924, %v5745
  %vm5926 = vcmask 457088
  %5927 = vst.msk [vmem:[#allocation3 + $0x9] sm:$0x7f] %vm5926, %v5747
  %5928 = vst.msk [vmem:[#allocation3 + $0x11] sm:$0xff] %vm5924, %v5749
  %5929 = vst.msk [vmem:[#allocation3 + $0x19] sm:$0x7f] %vm5926, %v5751
  %5930 = vst.msk [vmem:[#allocation3 + $0x21] sm:$0xff] %vm5924, %v5753
  %5931 = vst.msk [vmem:[#allocation3 + $0x29] sm:$0x7f] %vm5926, %v5755
  %5932 = vst.msk [vmem:[#allocation3 + $0x31] sm:$0xff] %vm5924, %v5757
  %5933 = vst.msk [vmem:[#allocation3 + $0x39] sm:$0x7f] %vm5926, %v5759
  %5934 = vst.msk [vmem:[#allocation3 + $0x41] sm:$0xff] %vm5924, %v5761
  %5935 = vst.msk [vmem:[#allocation3 + $0x49] sm:$0x7f] %vm5926, %v5763
  %5936 = vst.msk [vmem:[#allocation3 + $0x51] sm:$0xff] %vm5924, %v5765
  %5937 = vst.msk [vmem:[#allocation3 + $0x59] sm:$0x7f] %vm5926, %v5767
  %5938 = vst.msk [vmem:[#allocation3 + $0x61] sm:$0xff] %vm5924, %v5769
  %5939 = vst.msk [vmem:[#allocation3 + $0x69] sm:$0x7f] %vm5926, %v5771
  %5940 = vst.msk [vmem:[#allocation3 + $0x71] sm:$0xff] %vm5924, %v5773
  %5941 = vst.msk [vmem:[#allocation3 + $0x79] sm:$0x7f] %vm5926, %v5775
  %5942 = vst.msk [vmem:[#allocation3 + $0x81] sm:$0xff] %vm5924, %v5777
  %5943 = vst.msk [vmem:[#allocation3 + $0x89] sm:$0x7f] %vm5926, %v5779
  %5944 = vst.msk [vmem:[#allocation3 + $0x91] sm:$0xff] %vm5924, %v5781
  %5945 = vst.msk [vmem:[#allocation3 + $0x99] sm:$0x7f] %vm5926, %v5783
  %5946 = vst.msk [vmem:[#allocation3 + $0xa1] sm:$0xff] %vm5924, %v5785
  %5947 = vst.msk [vmem:[#allocation3 + $0xa9] sm:$0x7f] %vm5926, %v5787
  %5948 = vst.msk [vmem:[#allocation3 + $0xb1] sm:$0xff] %vm5924, %v5789
  %5949 = vst.msk [vmem:[#allocation3 + $0xb9] sm:$0x7f] %vm5926, %v5791
  %5950 = vst.msk [vmem:[#allocation3 + $0xc1] sm:$0xff] %vm5924, %v5793
  %5951 = vst.msk [vmem:[#allocation3 + $0xc9] sm:$0x7f] %vm5926, %v5795
  %5952 = vst.msk [vmem:[#allocation3 + $0xd1] sm:$0xff] %vm5924, %v5797
  %5953 = vst.msk [vmem:[#allocation3 + $0xd9] sm:$0x7f] %vm5926, %v5799
  %5954 = vst.msk [vmem:[#allocation3 + $0xe1] sm:$0xff] %vm5924, %v5801
  %5955 = vst.msk [vmem:[#allocation3 + $0xe9] sm:$0x7f] %vm5926, %v5803
  %5956 = vst.msk [vmem:[#allocation3 + $0x101] sm:$0xff] %vm5924, %v5805
  %5957 = vst.msk [vmem:[#allocation3 + $0x109] sm:$0x7f] %vm5926, %v5807
  %5958 = vst.msk [vmem:[#allocation3 + $0x111] sm:$0xff] %vm5924, %v5809
  %5959 = vst.msk [vmem:[#allocation3 + $0x119] sm:$0x7f] %vm5926, %v5811
  %5960 = vst.msk [vmem:[#allocation3 + $0x121] sm:$0xff] %vm5924, %v5813
  %5961 = vst.msk [vmem:[#allocation3 + $0x129] sm:$0x7f] %vm5926, %v5815
  %5962 = vst.msk [vmem:[#allocation3 + $0x131] sm:$0xff] %vm5924, %v5817
  %5963 = vst.msk [vmem:[#allocation3 + $0x139] sm:$0x7f] %vm5926, %v5819
  %5964 = vst.msk [vmem:[#allocation3 + $0x141] sm:$0xff] %vm5924, %v5821
  %5965 = vst.msk [vmem:[#allocation3 + $0x149] sm:$0x7f] %vm5926, %v5823
  %5966 = vst.msk [vmem:[#allocation3 + $0x151] sm:$0xff] %vm5924, %v5825
  %5967 = vst.msk [vmem:[#allocation3 + $0x159] sm:$0x7f] %vm5926, %v5827
  %5968 = vst.msk [vmem:[#allocation3 + $0x161] sm:$0xff] %vm5924, %v5829
  %5969 = vst.msk [vmem:[#allocation3 + $0x169] sm:$0x7f] %vm5926, %v5831
  %5970 = vst.msk [vmem:[#allocation3 + $0x171] sm:$0xff] %vm5924, %v5833
  %5971 = vst.msk [vmem:[#allocation3 + $0x179] sm:$0x7f] %vm5926, %v5835
  %5972 = vst.msk [vmem:[#allocation3 + $0x181] sm:$0xff] %vm5924, %v5837
  %5973 = vst.msk [vmem:[#allocation3 + $0x189] sm:$0x7f] %vm5926, %v5839
  %5974 = vst.msk [vmem:[#allocation3 + $0x191] sm:$0xff] %vm5924, %v5841
  %5975 = vst.msk [vmem:[#allocation3 + $0x199] sm:$0x7f] %vm5926, %v5843
  %5976 = vst.msk [vmem:[#allocation3 + $0x1a1] sm:$0xff] %vm5924, %v5845
  %5977 = vst.msk [vmem:[#allocation3 + $0x1a9] sm:$0x7f] %vm5926, %v5847
  %5978 = vst.msk [vmem:[#allocation3 + $0x1b1] sm:$0xff] %vm5924, %v5849
  %5979 = vst.msk [vmem:[#allocation3 + $0x1b9] sm:$0x7f] %vm5926, %v5851
  %5980 = vst.msk [vmem:[#allocation3 + $0x1c1] sm:$0xff] %vm5924, %v5853
  %5981 = vst.msk [vmem:[#allocation3 + $0x1c9] sm:$0x7f] %vm5926, %v5855
  %5982 = vst.msk [vmem:[#allocation3 + $0x1d1] sm:$0xff] %vm5924, %v5857
  %5983 = vst.msk [vmem:[#allocation3 + $0x1d9] sm:$0x7f] %vm5926, %v5859
  %5984 = vst.msk [vmem:[#allocation3 + $0x1e1] sm:$0xff] %vm5924, %v5861
  %5985 = vst.msk [vmem:[#allocation3 + $0x1e9] sm:$0x7f] %vm5926, %v5863
  %5986 = vrot.lane.b32.xlu0 %v4233, 56
  %v5987 = vpop.permute.xlu0 %5986
  %5988 = vrot.lane.b32.xlu0 %v4234, 56
  %v5989 = vpop.permute.xlu0 %5988
  %5990 = vrot.lane.b32.xlu0 %v4235, 56
  %v5991 = vpop.permute.xlu0 %5990
  %5992 = vrot.lane.b32.xlu0 %v4236, 56
  %v5993 = vpop.permute.xlu0 %5992
  %5994 = vrot.lane.b32.xlu0 %v4237, 56
  %v5995 = vpop.permute.xlu0 %5994
  %5996 = vrot.lane.b32.xlu0 %v4238, 56
  %v5997 = vpop.permute.xlu0 %5996
  %5998 = vrot.lane.b32.xlu0 %v4239, 56
  %v5999 = vpop.permute.xlu0 %5998
  %6000 = vrot.lane.b32.xlu0 %v4240, 56
  %v6001 = vpop.permute.xlu0 %6000
  %6002 = vrot.lane.b32.xlu0 %v4241, 56
  %v6003 = vpop.permute.xlu0 %6002
  %6004 = vrot.lane.b32.xlu0 %v4242, 56
  %v6005 = vpop.permute.xlu0 %6004
  %6006 = vrot.lane.b32.xlu0 %v4243, 56
  %v6007 = vpop.permute.xlu0 %6006
  %6008 = vrot.lane.b32.xlu0 %v4244, 56
  %v6009 = vpop.permute.xlu0 %6008
  %6010 = vrot.lane.b32.xlu0 %v4245, 56
  %v6011 = vpop.permute.xlu0 %6010
  %6012 = vrot.lane.b32.xlu0 %v4246, 56
  %v6013 = vpop.permute.xlu0 %6012
  %6014 = vrot.lane.b32.xlu0 %v4247, 56
  %v6015 = vpop.permute.xlu0 %6014
  %6016 = vrot.lane.b32.xlu0 %v4248, 56
  %v6017 = vpop.permute.xlu0 %6016
  %6018 = vrot.lane.b32.xlu0 %v4249, 56
  %v6019 = vpop.permute.xlu0 %6018
  %6020 = vrot.lane.b32.xlu0 %v4250, 56
  %v6021 = vpop.permute.xlu0 %6020
  %6022 = vrot.lane.b32.xlu0 %v4251, 56
  %v6023 = vpop.permute.xlu0 %6022
  %6024 = vrot.lane.b32.xlu0 %v4252, 56
  %v6025 = vpop.permute.xlu0 %6024
  %6026 = vrot.lane.b32.xlu0 %v4253, 56
  %v6027 = vpop.permute.xlu0 %6026
  %6028 = vrot.lane.b32.xlu0 %v4254, 56
  %v6029 = vpop.permute.xlu0 %6028
  %6030 = vrot.lane.b32.xlu0 %v4255, 56
  %v6031 = vpop.permute.xlu0 %6030
  %6032 = vrot.lane.b32.xlu0 %v4256, 56
  %v6033 = vpop.permute.xlu0 %6032
  %6034 = vrot.lane.b32.xlu0 %v4257, 56
  %v6035 = vpop.permute.xlu0 %6034
  %6036 = vrot.lane.b32.xlu0 %v4258, 56
  %v6037 = vpop.permute.xlu0 %6036
  %6038 = vrot.lane.b32.xlu0 %v4259, 56
  %v6039 = vpop.permute.xlu0 %6038
  %6040 = vrot.lane.b32.xlu0 %v4260, 56
  %v6041 = vpop.permute.xlu0 %6040
  %6042 = vrot.lane.b32.xlu0 %v4261, 56
  %v6043 = vpop.permute.xlu0 %6042
  %6044 = vrot.lane.b32.xlu0 %v4262, 56
  %v6045 = vpop.permute.xlu0 %6044
  %6046 = vrot.lane.b32.xlu0 %v4265, 56
  %v6047 = vpop.permute.xlu0 %6046
  %6048 = vrot.lane.b32.xlu0 %v4266, 56
  %v6049 = vpop.permute.xlu0 %6048
  %6050 = vrot.lane.b32.xlu0 %v4267, 56
  %v6051 = vpop.permute.xlu0 %6050
  %6052 = vrot.lane.b32.xlu0 %v4268, 56
  %v6053 = vpop.permute.xlu0 %6052
  %6054 = vrot.lane.b32.xlu0 %v4269, 56
  %v6055 = vpop.permute.xlu0 %6054
  %6056 = vrot.lane.b32.xlu0 %v4270, 56
  %v6057 = vpop.permute.xlu0 %6056
  %6058 = vrot.lane.b32.xlu0 %v4271, 56
  %v6059 = vpop.permute.xlu0 %6058
  %6060 = vrot.lane.b32.xlu0 %v4272, 56
  %v6061 = vpop.permute.xlu0 %6060
  %6062 = vrot.lane.b32.xlu0 %v4273, 56
  %v6063 = vpop.permute.xlu0 %6062
  %6064 = vrot.lane.b32.xlu0 %v4274, 56
  %v6065 = vpop.permute.xlu0 %6064
  %6066 = vrot.lane.b32.xlu0 %v4275, 56
  %v6067 = vpop.permute.xlu0 %6066
  %6068 = vrot.lane.b32.xlu0 %v4276, 56
  %v6069 = vpop.permute.xlu0 %6068
  %6070 = vrot.lane.b32.xlu0 %v4277, 56
  %v6071 = vpop.permute.xlu0 %6070
  %6072 = vrot.lane.b32.xlu0 %v4278, 56
  %v6073 = vpop.permute.xlu0 %6072
  %6074 = vrot.lane.b32.xlu0 %v4279, 56
  %v6075 = vpop.permute.xlu0 %6074
  %6076 = vrot.lane.b32.xlu0 %v4280, 56
  %v6077 = vpop.permute.xlu0 %6076
  %6078 = vrot.lane.b32.xlu0 %v4281, 56
  %v6079 = vpop.permute.xlu0 %6078
  %6080 = vrot.lane.b32.xlu0 %v4282, 56
  %v6081 = vpop.permute.xlu0 %6080
  %6082 = vrot.lane.b32.xlu0 %v4283, 56
  %v6083 = vpop.permute.xlu0 %6082
  %6084 = vrot.lane.b32.xlu0 %v4284, 56
  %v6085 = vpop.permute.xlu0 %6084
  %6086 = vrot.lane.b32.xlu0 %v4285, 56
  %v6087 = vpop.permute.xlu0 %6086
  %6088 = vrot.lane.b32.xlu0 %v4286, 56
  %v6089 = vpop.permute.xlu0 %6088
  %6090 = vrot.lane.b32.xlu0 %v4287, 56
  %v6091 = vpop.permute.xlu0 %6090
  %6092 = vrot.lane.b32.xlu0 %v4288, 56
  %v6093 = vpop.permute.xlu0 %6092
  %6094 = vrot.lane.b32.xlu0 %v4289, 56
  %v6095 = vpop.permute.xlu0 %6094
  %6096 = vrot.lane.b32.xlu0 %v4290, 56
  %v6097 = vpop.permute.xlu0 %6096
  %6098 = vrot.lane.b32.xlu0 %v4291, 56
  %v6099 = vpop.permute.xlu0 %6098
  %6100 = vrot.lane.b32.xlu0 %v4292, 56
  %v6101 = vpop.permute.xlu0 %6100
  %6102 = vrot.lane.b32.xlu0 %v4293, 56
  %v6103 = vpop.permute.xlu0 %6102
  %6104 = vrot.lane.b32.xlu0 %v4294, 56
  %v6105 = vpop.permute.xlu0 %6104
  %vm6166 = vcmask 523712
  %6167 = vst.msk [vmem:[#allocation3] sm:$0xff] %vm6166, %v5987
  %6168 = vst.msk [vmem:[#allocation3 + $0x8] sm:$0xff] %vm6166, %v5989
  %6169 = vst.msk [vmem:[#allocation3 + $0x10] sm:$0xff] %vm6166, %v5991
  %6170 = vst.msk [vmem:[#allocation3 + $0x18] sm:$0xff] %vm6166, %v5993
  %6171 = vst.msk [vmem:[#allocation3 + $0x20] sm:$0xff] %vm6166, %v5995
  %6172 = vst.msk [vmem:[#allocation3 + $0x28] sm:$0xff] %vm6166, %v5997
  %6173 = vst.msk [vmem:[#allocation3 + $0x30] sm:$0xff] %vm6166, %v5999
  %6174 = vst.msk [vmem:[#allocation3 + $0x38] sm:$0xff] %vm6166, %v6001
  %6175 = vst.msk [vmem:[#allocation3 + $0x40] sm:$0xff] %vm6166, %v6003
  %6176 = vst.msk [vmem:[#allocation3 + $0x48] sm:$0xff] %vm6166, %v6005
  %6177 = vst.msk [vmem:[#allocation3 + $0x50] sm:$0xff] %vm6166, %v6007
  %6178 = vst.msk [vmem:[#allocation3 + $0x58] sm:$0xff] %vm6166, %v6009
  %6179 = vst.msk [vmem:[#allocation3 + $0x60] sm:$0xff] %vm6166, %v6011
  %6180 = vst.msk [vmem:[#allocation3 + $0x68] sm:$0xff] %vm6166, %v6013
  %6181 = vst.msk [vmem:[#allocation3 + $0x70] sm:$0xff] %vm6166, %v6015
  %6182 = vst.msk [vmem:[#allocation3 + $0x78] sm:$0xff] %vm6166, %v6017
  %6183 = vst.msk [vmem:[#allocation3 + $0x80] sm:$0xff] %vm6166, %v6019
  %6184 = vst.msk [vmem:[#allocation3 + $0x88] sm:$0xff] %vm6166, %v6021
  %6185 = vst.msk [vmem:[#allocation3 + $0x90] sm:$0xff] %vm6166, %v6023
  %6186 = vst.msk [vmem:[#allocation3 + $0x98] sm:$0xff] %vm6166, %v6025
  %6187 = vst.msk [vmem:[#allocation3 + $0xa0] sm:$0xff] %vm6166, %v6027
  %6188 = vst.msk [vmem:[#allocation3 + $0xa8] sm:$0xff] %vm6166, %v6029
  %6189 = vst.msk [vmem:[#allocation3 + $0xb0] sm:$0xff] %vm6166, %v6031
  %6190 = vst.msk [vmem:[#allocation3 + $0xb8] sm:$0xff] %vm6166, %v6033
  %6191 = vst.msk [vmem:[#allocation3 + $0xc0] sm:$0xff] %vm6166, %v6035
  %6192 = vst.msk [vmem:[#allocation3 + $0xc8] sm:$0xff] %vm6166, %v6037
  %6193 = vst.msk [vmem:[#allocation3 + $0xd0] sm:$0xff] %vm6166, %v6039
  %6194 = vst.msk [vmem:[#allocation3 + $0xd8] sm:$0xff] %vm6166, %v6041
  %6195 = vst.msk [vmem:[#allocation3 + $0xe0] sm:$0xff] %vm6166, %v6043
  %6196 = vst.msk [vmem:[#allocation3 + $0xe8] sm:$0xff] %vm6166, %v6045
  %6197 = vst.msk [vmem:[#allocation3 + $0x100] sm:$0xff] %vm6166, %v6047
  %6198 = vst.msk [vmem:[#allocation3 + $0x108] sm:$0xff] %vm6166, %v6049
  %6199 = vst.msk [vmem:[#allocation3 + $0x110] sm:$0xff] %vm6166, %v6051
  %6200 = vst.msk [vmem:[#allocation3 + $0x118] sm:$0xff] %vm6166, %v6053
  %6201 = vst.msk [vmem:[#allocation3 + $0x120] sm:$0xff] %vm6166, %v6055
  %6202 = vst.msk [vmem:[#allocation3 + $0x128] sm:$0xff] %vm6166, %v6057
  %6203 = vst.msk [vmem:[#allocation3 + $0x130] sm:$0xff] %vm6166, %v6059
  %6204 = vst.msk [vmem:[#allocation3 + $0x138] sm:$0xff] %vm6166, %v6061
  %6205 = vst.msk [vmem:[#allocation3 + $0x140] sm:$0xff] %vm6166, %v6063
  %6206 = vst.msk [vmem:[#allocation3 + $0x148] sm:$0xff] %vm6166, %v6065
  %6207 = vst.msk [vmem:[#allocation3 + $0x150] sm:$0xff] %vm6166, %v6067
  %6208 = vst.msk [vmem:[#allocation3 + $0x158] sm:$0xff] %vm6166, %v6069
  %6209 = vst.msk [vmem:[#allocation3 + $0x160] sm:$0xff] %vm6166, %v6071
  %6210 = vst.msk [vmem:[#allocation3 + $0x168] sm:$0xff] %vm6166, %v6073
  %6211 = vst.msk [vmem:[#allocation3 + $0x170] sm:$0xff] %vm6166, %v6075
  %6212 = vst.msk [vmem:[#allocation3 + $0x178] sm:$0xff] %vm6166, %v6077
  %6213 = vst.msk [vmem:[#allocation3 + $0x180] sm:$0xff] %vm6166, %v6079
  %6214 = vst.msk [vmem:[#allocation3 + $0x188] sm:$0xff] %vm6166, %v6081
  %6215 = vst.msk [vmem:[#allocation3 + $0x190] sm:$0xff] %vm6166, %v6083
  %6216 = vst.msk [vmem:[#allocation3 + $0x198] sm:$0xff] %vm6166, %v6085
  %6217 = vst.msk [vmem:[#allocation3 + $0x1a0] sm:$0xff] %vm6166, %v6087
  %6218 = vst.msk [vmem:[#allocation3 + $0x1a8] sm:$0xff] %vm6166, %v6089
  %6219 = vst.msk [vmem:[#allocation3 + $0x1b0] sm:$0xff] %vm6166, %v6091
  %6220 = vst.msk [vmem:[#allocation3 + $0x1b8] sm:$0xff] %vm6166, %v6093
  %6221 = vst.msk [vmem:[#allocation3 + $0x1c0] sm:$0xff] %vm6166, %v6095
  %6222 = vst.msk [vmem:[#allocation3 + $0x1c8] sm:$0xff] %vm6166, %v6097
  %6223 = vst.msk [vmem:[#allocation3 + $0x1d0] sm:$0xff] %vm6166, %v6099
  %6224 = vst.msk [vmem:[#allocation3 + $0x1d8] sm:$0xff] %vm6166, %v6101
  %6225 = vst.msk [vmem:[#allocation3 + $0x1e0] sm:$0xff] %vm6166, %v6103
  %6226 = vst.msk [vmem:[#allocation3 + $0x1e8] sm:$0xff] %vm6166, %v6105
  %6227 = vrot.lane.b32.xlu0 %v4233, 64
  %v6228 = vpop.permute.xlu0 %6227
  %6229 = vrot.lane.b32.xlu0 %v4234, 64
  %v6230 = vpop.permute.xlu0 %6229
  %6231 = vrot.lane.b32.xlu0 %v4235, 64
  %v6232 = vpop.permute.xlu0 %6231
  %6233 = vrot.lane.b32.xlu0 %v4236, 64
  %v6234 = vpop.permute.xlu0 %6233
  %6235 = vrot.lane.b32.xlu0 %v4237, 64
  %v6236 = vpop.permute.xlu0 %6235
  %6237 = vrot.lane.b32.xlu0 %v4238, 64
  %v6238 = vpop.permute.xlu0 %6237
  %6239 = vrot.lane.b32.xlu0 %v4239, 64
  %v6240 = vpop.permute.xlu0 %6239
  %6241 = vrot.lane.b32.xlu0 %v4240, 64
  %v6242 = vpop.permute.xlu0 %6241
  %6243 = vrot.lane.b32.xlu0 %v4241, 64
  %v6244 = vpop.permute.xlu0 %6243
  %6245 = vrot.lane.b32.xlu0 %v4242, 64
  %v6246 = vpop.permute.xlu0 %6245
  %6247 = vrot.lane.b32.xlu0 %v4243, 64
  %v6248 = vpop.permute.xlu0 %6247
  %6249 = vrot.lane.b32.xlu0 %v4244, 64
  %v6250 = vpop.permute.xlu0 %6249
  %6251 = vrot.lane.b32.xlu0 %v4245, 64
  %v6252 = vpop.permute.xlu0 %6251
  %6253 = vrot.lane.b32.xlu0 %v4246, 64
  %v6254 = vpop.permute.xlu0 %6253
  %6255 = vrot.lane.b32.xlu0 %v4247, 64
  %v6256 = vpop.permute.xlu0 %6255
  %6257 = vrot.lane.b32.xlu0 %v4248, 64
  %v6258 = vpop.permute.xlu0 %6257
  %6259 = vrot.lane.b32.xlu0 %v4249, 64
  %v6260 = vpop.permute.xlu0 %6259
  %6261 = vrot.lane.b32.xlu0 %v4250, 64
  %v6262 = vpop.permute.xlu0 %6261
  %6263 = vrot.lane.b32.xlu0 %v4251, 64
  %v6264 = vpop.permute.xlu0 %6263
  %6265 = vrot.lane.b32.xlu0 %v4252, 64
  %v6266 = vpop.permute.xlu0 %6265
  %6267 = vrot.lane.b32.xlu0 %v4253, 64
  %v6268 = vpop.permute.xlu0 %6267
  %6269 = vrot.lane.b32.xlu0 %v4254, 64
  %v6270 = vpop.permute.xlu0 %6269
  %6271 = vrot.lane.b32.xlu0 %v4255, 64
  %v6272 = vpop.permute.xlu0 %6271
  %6273 = vrot.lane.b32.xlu0 %v4256, 64
  %v6274 = vpop.permute.xlu0 %6273
  %6275 = vrot.lane.b32.xlu0 %v4257, 64
  %v6276 = vpop.permute.xlu0 %6275
  %6277 = vrot.lane.b32.xlu0 %v4258, 64
  %v6278 = vpop.permute.xlu0 %6277
  %6279 = vrot.lane.b32.xlu0 %v4259, 64
  %v6280 = vpop.permute.xlu0 %6279
  %6281 = vrot.lane.b32.xlu0 %v4260, 64
  %v6282 = vpop.permute.xlu0 %6281
  %6283 = vrot.lane.b32.xlu0 %v4261, 64
  %v6284 = vpop.permute.xlu0 %6283
  %6285 = vrot.lane.b32.xlu0 %v4262, 64
  %v6286 = vpop.permute.xlu0 %6285
  %6287 = vrot.lane.b32.xlu0 %v4265, 64
  %v6288 = vpop.permute.xlu0 %6287
  %6289 = vrot.lane.b32.xlu0 %v4266, 64
  %v6290 = vpop.permute.xlu0 %6289
  %6291 = vrot.lane.b32.xlu0 %v4267, 64
  %v6292 = vpop.permute.xlu0 %6291
  %6293 = vrot.lane.b32.xlu0 %v4268, 64
  %v6294 = vpop.permute.xlu0 %6293
  %6295 = vrot.lane.b32.xlu0 %v4269, 64
  %v6296 = vpop.permute.xlu0 %6295
  %6297 = vrot.lane.b32.xlu0 %v4270, 64
  %v6298 = vpop.permute.xlu0 %6297
  %6299 = vrot.lane.b32.xlu0 %v4271, 64
  %v6300 = vpop.permute.xlu0 %6299
  %6301 = vrot.lane.b32.xlu0 %v4272, 64
  %v6302 = vpop.permute.xlu0 %6301
  %6303 = vrot.lane.b32.xlu0 %v4273, 64
  %v6304 = vpop.permute.xlu0 %6303
  %6305 = vrot.lane.b32.xlu0 %v4274, 64
  %v6306 = vpop.permute.xlu0 %6305
  %6307 = vrot.lane.b32.xlu0 %v4275, 64
  %v6308 = vpop.permute.xlu0 %6307
  %6309 = vrot.lane.b32.xlu0 %v4276, 64
  %v6310 = vpop.permute.xlu0 %6309
  %6311 = vrot.lane.b32.xlu0 %v4277, 64
  %v6312 = vpop.permute.xlu0 %6311
  %6313 = vrot.lane.b32.xlu0 %v4278, 64
  %v6314 = vpop.permute.xlu0 %6313
  %6315 = vrot.lane.b32.xlu0 %v4279, 64
  %v6316 = vpop.permute.xlu0 %6315
  %6317 = vrot.lane.b32.xlu0 %v4280, 64
  %v6318 = vpop.permute.xlu0 %6317
  %6319 = vrot.lane.b32.xlu0 %v4281, 64
  %v6320 = vpop.permute.xlu0 %6319
  %6321 = vrot.lane.b32.xlu0 %v4282, 64
  %v6322 = vpop.permute.xlu0 %6321
  %6323 = vrot.lane.b32.xlu0 %v4283, 64
  %v6324 = vpop.permute.xlu0 %6323
  %6325 = vrot.lane.b32.xlu0 %v4284, 64
  %v6326 = vpop.permute.xlu0 %6325
  %6327 = vrot.lane.b32.xlu0 %v4285, 64
  %v6328 = vpop.permute.xlu0 %6327
  %6329 = vrot.lane.b32.xlu0 %v4286, 64
  %v6330 = vpop.permute.xlu0 %6329
  %6331 = vrot.lane.b32.xlu0 %v4287, 64
  %v6332 = vpop.permute.xlu0 %6331
  %6333 = vrot.lane.b32.xlu0 %v4288, 64
  %v6334 = vpop.permute.xlu0 %6333
  %6335 = vrot.lane.b32.xlu0 %v4289, 64
  %v6336 = vpop.permute.xlu0 %6335
  %6337 = vrot.lane.b32.xlu0 %v4290, 64
  %v6338 = vpop.permute.xlu0 %6337
  %6339 = vrot.lane.b32.xlu0 %v4291, 64
  %v6340 = vpop.permute.xlu0 %6339
  %6341 = vrot.lane.b32.xlu0 %v4292, 64
  %v6342 = vpop.permute.xlu0 %6341
  %6343 = vrot.lane.b32.xlu0 %v4293, 64
  %v6344 = vpop.permute.xlu0 %6343
  %6345 = vrot.lane.b32.xlu0 %v4294, 64
  %v6346 = vpop.permute.xlu0 %6345
  %vm6407 = vcmask 589313
  %6408 = vst.msk [vmem:[#allocation3 - $0x1] sm:$0xfe] %vm6407, %v6228
  %vm6409 = vcmask 589312
  %6410 = vst.msk [vmem:[#allocation3 + $0x7] sm:$0xff] %vm6409, %v6230
  %6411 = vst.msk [vmem:[#allocation3 + $0xf] sm:$0xfe] %vm6407, %v6232
  %6412 = vst.msk [vmem:[#allocation3 + $0x17] sm:$0xff] %vm6409, %v6234
  %6413 = vst.msk [vmem:[#allocation3 + $0x1f] sm:$0xfe] %vm6407, %v6236
  %6414 = vst.msk [vmem:[#allocation3 + $0x27] sm:$0xff] %vm6409, %v6238
  %6415 = vst.msk [vmem:[#allocation3 + $0x2f] sm:$0xfe] %vm6407, %v6240
  %6416 = vst.msk [vmem:[#allocation3 + $0x37] sm:$0xff] %vm6409, %v6242
  %6417 = vst.msk [vmem:[#allocation3 + $0x3f] sm:$0xfe] %vm6407, %v6244
  %6418 = vst.msk [vmem:[#allocation3 + $0x47] sm:$0xff] %vm6409, %v6246
  %6419 = vst.msk [vmem:[#allocation3 + $0x4f] sm:$0xfe] %vm6407, %v6248
  %6420 = vst.msk [vmem:[#allocation3 + $0x57] sm:$0xff] %vm6409, %v6250
  %6421 = vst.msk [vmem:[#allocation3 + $0x5f] sm:$0xfe] %vm6407, %v6252
  %6422 = vst.msk [vmem:[#allocation3 + $0x67] sm:$0xff] %vm6409, %v6254
  %6423 = vst.msk [vmem:[#allocation3 + $0x6f] sm:$0xfe] %vm6407, %v6256
  %6424 = vst.msk [vmem:[#allocation3 + $0x77] sm:$0xff] %vm6409, %v6258
  %6425 = vst.msk [vmem:[#allocation3 + $0x7f] sm:$0xfe] %vm6407, %v6260
  %6426 = vst.msk [vmem:[#allocation3 + $0x87] sm:$0xff] %vm6409, %v6262
  %6427 = vst.msk [vmem:[#allocation3 + $0x8f] sm:$0xfe] %vm6407, %v6264
  %6428 = vst.msk [vmem:[#allocation3 + $0x97] sm:$0xff] %vm6409, %v6266
  %6429 = vst.msk [vmem:[#allocation3 + $0x9f] sm:$0xfe] %vm6407, %v6268
  %6430 = vst.msk [vmem:[#allocation3 + $0xa7] sm:$0xff] %vm6409, %v6270
  %6431 = vst.msk [vmem:[#allocation3 + $0xaf] sm:$0xfe] %vm6407, %v6272
  %6432 = vst.msk [vmem:[#allocation3 + $0xb7] sm:$0xff] %vm6409, %v6274
  %6433 = vst.msk [vmem:[#allocation3 + $0xbf] sm:$0xfe] %vm6407, %v6276
  %6434 = vst.msk [vmem:[#allocation3 + $0xc7] sm:$0xff] %vm6409, %v6278
  %6435 = vst.msk [vmem:[#allocation3 + $0xcf] sm:$0xfe] %vm6407, %v6280
  %6436 = vst.msk [vmem:[#allocation3 + $0xd7] sm:$0xff] %vm6409, %v6282
  %6437 = vst.msk [vmem:[#allocation3 + $0xdf] sm:$0xfe] %vm6407, %v6284
  %6438 = vst.msk [vmem:[#allocation3 + $0xe7] sm:$0xff] %vm6409, %v6286
  %6439 = vst.msk [vmem:[#allocation3 + $0xff] sm:$0xfe] %vm6407, %v6288
  %6440 = vst.msk [vmem:[#allocation3 + $0x107] sm:$0xff] %vm6409, %v6290
  %6441 = vst.msk [vmem:[#allocation3 + $0x10f] sm:$0xfe] %vm6407, %v6292
  %6442 = vst.msk [vmem:[#allocation3 + $0x117] sm:$0xff] %vm6409, %v6294
  %6443 = vst.msk [vmem:[#allocation3 + $0x11f] sm:$0xfe] %vm6407, %v6296
  %6444 = vst.msk [vmem:[#allocation3 + $0x127] sm:$0xff] %vm6409, %v6298
  %6445 = vst.msk [vmem:[#allocation3 + $0x12f] sm:$0xfe] %vm6407, %v6300
  %6446 = vst.msk [vmem:[#allocation3 + $0x137] sm:$0xff] %vm6409, %v6302
  %6447 = vst.msk [vmem:[#allocation3 + $0x13f] sm:$0xfe] %vm6407, %v6304
  %6448 = vst.msk [vmem:[#allocation3 + $0x147] sm:$0xff] %vm6409, %v6306
  %6449 = vst.msk [vmem:[#allocation3 + $0x14f] sm:$0xfe] %vm6407, %v6308
  %6450 = vst.msk [vmem:[#allocation3 + $0x157] sm:$0xff] %vm6409, %v6310
  %6451 = vst.msk [vmem:[#allocation3 + $0x15f] sm:$0xfe] %vm6407, %v6312
  %6452 = vst.msk [vmem:[#allocation3 + $0x167] sm:$0xff] %vm6409, %v6314
  %6453 = vst.msk [vmem:[#allocation3 + $0x16f] sm:$0xfe] %vm6407, %v6316
  %6454 = vst.msk [vmem:[#allocation3 + $0x177] sm:$0xff] %vm6409, %v6318
  %6455 = vst.msk [vmem:[#allocation3 + $0x17f] sm:$0xfe] %vm6407, %v6320
  %6456 = vst.msk [vmem:[#allocation3 + $0x187] sm:$0xff] %vm6409, %v6322
  %6457 = vst.msk [vmem:[#allocation3 + $0x18f] sm:$0xfe] %vm6407, %v6324
  %6458 = vst.msk [vmem:[#allocation3 + $0x197] sm:$0xff] %vm6409, %v6326
  %6459 = vst.msk [vmem:[#allocation3 + $0x19f] sm:$0xfe] %vm6407, %v6328
  %6460 = vst.msk [vmem:[#allocation3 + $0x1a7] sm:$0xff] %vm6409, %v6330
  %6461 = vst.msk [vmem:[#allocation3 + $0x1af] sm:$0xfe] %vm6407, %v6332
  %6462 = vst.msk [vmem:[#allocation3 + $0x1b7] sm:$0xff] %vm6409, %v6334
  %6463 = vst.msk [vmem:[#allocation3 + $0x1bf] sm:$0xfe] %vm6407, %v6336
  %6464 = vst.msk [vmem:[#allocation3 + $0x1c7] sm:$0xff] %vm6409, %v6338
  %6465 = vst.msk [vmem:[#allocation3 + $0x1cf] sm:$0xfe] %vm6407, %v6340
  %6466 = vst.msk [vmem:[#allocation3 + $0x1d7] sm:$0xff] %vm6409, %v6342
  %6467 = vst.msk [vmem:[#allocation3 + $0x1df] sm:$0xfe] %vm6407, %v6344
  %6468 = vst.msk [vmem:[#allocation3 + $0x1e7] sm:$0xff] %vm6409, %v6346
  %v6469 = vld [vmem:[#allocation3] sm:$0xff]
  %v6470 = vld [vmem:[#allocation3 + $0x8] sm:$0xff]
  %v6471 = vld [vmem:[#allocation3 + $0x10] sm:$0xff]
  %v6472 = vld [vmem:[#allocation3 + $0x18] sm:$0xff]
  %v6473 = vld [vmem:[#allocation3 + $0x20] sm:$0xff]
  %v6474 = vld [vmem:[#allocation3 + $0x28] sm:$0xff]
  %v6475 = vld [vmem:[#allocation3 + $0x30] sm:$0xff]
  %v6476 = vld [vmem:[#allocation3 + $0x38] sm:$0xff]
  %v6477 = vld [vmem:[#allocation3 + $0x40] sm:$0xff]
  %v6478 = vld [vmem:[#allocation3 + $0x48] sm:$0xff]
  %v6479 = vld [vmem:[#allocation3 + $0x50] sm:$0xff]
  %v6480 = vld [vmem:[#allocation3 + $0x58] sm:$0xff]
  %v6481 = vld [vmem:[#allocation3 + $0x60] sm:$0xff]
  %v6482 = vld [vmem:[#allocation3 + $0x68] sm:$0xff]
  %v6483 = vld [vmem:[#allocation3 + $0x70] sm:$0xff]
  %v6484 = vld [vmem:[#allocation3 + $0x78] sm:$0xff]
  %v6485 = vld [vmem:[#allocation3 + $0x80] sm:$0xff]
  %v6486 = vld [vmem:[#allocation3 + $0x88] sm:$0xff]
  %v6487 = vld [vmem:[#allocation3 + $0x90] sm:$0xff]
  %v6488 = vld [vmem:[#allocation3 + $0x98] sm:$0xff]
  %v6489 = vld [vmem:[#allocation3 + $0xa0] sm:$0xff]
  %v6490 = vld [vmem:[#allocation3 + $0xa8] sm:$0xff]
  %v6491 = vld [vmem:[#allocation3 + $0xb0] sm:$0xff]
  %v6492 = vld [vmem:[#allocation3 + $0xb8] sm:$0xff]
  %v6493 = vld [vmem:[#allocation3 + $0xc0] sm:$0xff]
  %v6494 = vld [vmem:[#allocation3 + $0xc8] sm:$0xff]
  %v6495 = vld [vmem:[#allocation3 + $0xd0] sm:$0xff]
  %v6496 = vld [vmem:[#allocation3 + $0xd8] sm:$0xff]
  %v6497 = vld [vmem:[#allocation3 + $0xe0] sm:$0xff]
  %v6498 = vld [vmem:[#allocation3 + $0xe8] sm:$0xff]
  %v6499 = vld [vmem:[#allocation3 + $0xf0] sm:$0xff]
  %v6500 = vld [vmem:[#allocation3 + $0xf8] sm:$0xff]
  %v6501 = vld [vmem:[#allocation3 + $0x100] sm:$0xff]
  %v6502 = vld [vmem:[#allocation3 + $0x108] sm:$0xff]
  %v6503 = vld [vmem:[#allocation3 + $0x110] sm:$0xff]
  %v6504 = vld [vmem:[#allocation3 + $0x118] sm:$0xff]
  %v6505 = vld [vmem:[#allocation3 + $0x120] sm:$0xff]
  %v6506 = vld [vmem:[#allocation3 + $0x128] sm:$0xff]
  %v6507 = vld [vmem:[#allocation3 + $0x130] sm:$0xff]
  %v6508 = vld [vmem:[#allocation3 + $0x138] sm:$0xff]
  %v6509 = vld [vmem:[#allocation3 + $0x140] sm:$0xff]
  %v6510 = vld [vmem:[#allocation3 + $0x148] sm:$0xff]
  %v6511 = vld [vmem:[#allocation3 + $0x150] sm:$0xff]
  %v6512 = vld [vmem:[#allocation3 + $0x158] sm:$0xff]
  %v6513 = vld [vmem:[#allocation3 + $0x160] sm:$0xff]
  %v6514 = vld [vmem:[#allocation3 + $0x168] sm:$0xff]
  %v6515 = vld [vmem:[#allocation3 + $0x170] sm:$0xff]
  %v6516 = vld [vmem:[#allocation3 + $0x178] sm:$0xff]
  %v6517 = vld [vmem:[#allocation3 + $0x180] sm:$0xff]
  %v6518 = vld [vmem:[#allocation3 + $0x188] sm:$0xff]
  %v6519 = vld [vmem:[#allocation3 + $0x190] sm:$0xff]
  %v6520 = vld [vmem:[#allocation3 + $0x198] sm:$0xff]
  %v6521 = vld [vmem:[#allocation3 + $0x1a0] sm:$0xff]
  %v6522 = vld [vmem:[#allocation3 + $0x1a8] sm:$0xff]
  %v6523 = vld [vmem:[#allocation3 + $0x1b0] sm:$0xff]
  %v6524 = vld [vmem:[#allocation3 + $0x1b8] sm:$0xff]
  %v6525 = vld [vmem:[#allocation3 + $0x1c0] sm:$0xff]
  %v6526 = vld [vmem:[#allocation3 + $0x1c8] sm:$0xff]
  %v6527 = vld [vmem:[#allocation3 + $0x1d0] sm:$0xff]
  %v6528 = vld [vmem:[#allocation3 + $0x1d8] sm:$0xff]
  %v6529 = vld [vmem:[#allocation3 + $0x1e0] sm:$0xff]
  %v6530 = vld [vmem:[#allocation3 + $0x1e8] sm:$0xff]
  %v6531 = vld [vmem:[#allocation3 + $0x1f0] sm:$0xff]
  %v6532 = vld [vmem:[#allocation3 + $0x1f8] sm:$0xff]
  %v6533 = vpack.c.bf16 %v6470, %v6469
  %v6534 = vpack.c.bf16 %v6472, %v6471
  %v6535 = vpack.c.bf16 %v6474, %v6473
  %v6536 = vpack.c.bf16 %v6476, %v6475
  %v6537 = vpack.c.bf16 %v6478, %v6477
  %v6538 = vpack.c.bf16 %v6480, %v6479
  %v6539 = vpack.c.bf16 %v6482, %v6481
  %v6540 = vpack.c.bf16 %v6484, %v6483
  %v6541 = vpack.c.bf16 %v6486, %v6485
  %v6542 = vpack.c.bf16 %v6488, %v6487
  %v6543 = vpack.c.bf16 %v6490, %v6489
  %v6544 = vpack.c.bf16 %v6492, %v6491
  %v6545 = vpack.c.bf16 %v6494, %v6493
  %v6546 = vpack.c.bf16 %v6496, %v6495
  %v6547 = vpack.c.bf16 %v6498, %v6497
  %v6548 = vpack.c.bf16 %v6500, %v6499
  %v6549 = vpack.c.bf16 %v6502, %v6501
  %v6550 = vpack.c.bf16 %v6504, %v6503
  %v6551 = vpack.c.bf16 %v6506, %v6505
  %v6552 = vpack.c.bf16 %v6508, %v6507
  %v6553 = vpack.c.bf16 %v6510, %v6509
  %v6554 = vpack.c.bf16 %v6512, %v6511
  %v6555 = vpack.c.bf16 %v6514, %v6513
  %v6556 = vpack.c.bf16 %v6516, %v6515
  %v6557 = vpack.c.bf16 %v6518, %v6517
  %v6558 = vpack.c.bf16 %v6520, %v6519
  %v6559 = vpack.c.bf16 %v6522, %v6521
  %v6560 = vpack.c.bf16 %v6524, %v6523
  %v6561 = vpack.c.bf16 %v6526, %v6525
  %v6562 = vpack.c.bf16 %v6528, %v6527
  %v6563 = vpack.c.bf16 %v6530, %v6529
  %v6564 = vpack.c.bf16 %v6532, %v6531
  %v6565 = vld [vmem:[%s2] sm:$0xf]
  %v6566 = vld [vmem:[%s2 + $0x4] sm:$0xf]
  %v6567 = vld [vmem:[%s2 + $0x8] sm:$0xf]
  %v6568 = vld [vmem:[%s2 + $0xc] sm:$0xf]
  %v6569 = vld [vmem:[%s2 + $0x10] sm:$0xf]
  %v6570 = vld [vmem:[%s2 + $0x14] sm:$0xf]
  %v6571 = vld [vmem:[%s2 + $0x18] sm:$0xf]
  %v6572 = vld [vmem:[%s2 + $0x1c] sm:$0xf]
  %v6573 = vld [vmem:[%s2 + $0x20] sm:$0xf]
  %v6583 = vunpack.c.l.b16 %v6565
  %v6584 = vunpack.c.l.b16 %v6566
  %v6585 = vunpack.c.l.b16 %v6567
  %v6586 = vunpack.c.l.b16 %v6568
  %v6587 = vunpack.c.l.b16 %v6569
  %v6588 = vunpack.c.l.b16 %v6570
  %v6589 = vunpack.c.l.b16 %v6571
  %v6590 = vunpack.c.l.b16 %v6572
  %v6591 = vunpack.c.l.b16 %v6573
  %v6592 = vpack.c.b16 %v6584, %v6583
  %v6593 = vpack.c.b16 %v6586, %v6585
  %v6594 = vpack.c.b16 %v6588, %v6587
  %v6595 = vpack.c.b16 %v6590, %v6589
  %v6596 = vpack.c.b16 %v6591, %v6591
  %v6602 = vsel %vm4297, %v6533, 0
  %v6605 = vsel %vm4297, %v6534, 0
  %v6608 = vsel %vm4297, %v6535, 0
  %v6611 = vsel %vm4297, %v6536, 0
  %v6614 = vsel %vm4297, %v6537, 0
  %v6617 = vsel %vm4297, %v6538, 0
  %v6620 = vsel %vm4297, %v6539, 0
  %v6623 = vsel %vm4297, %v6540, 0
  %v6626 = vsel %vm4297, %v6541, 0
  %v6629 = vsel %vm4297, %v6542, 0
  %v6632 = vsel %vm4297, %v6543, 0
  %v6635 = vsel %vm4297, %v6544, 0
  %v6638 = vsel %vm4297, %v6545, 0
  %v6641 = vsel %vm4297, %v6546, 0
  %v6644 = vsel %vm4297, %v6547, 0
  %v6647 = vsel %vm4297, %v6548, 0
  %v6650 = vsel %vm4297, %v6549, 0
  %v6653 = vsel %vm4297, %v6550, 0
  %v6656 = vsel %vm4297, %v6551, 0
  %v6659 = vsel %vm4297, %v6552, 0
  %v6662 = vsel %vm4297, %v6553, 0
  %v6665 = vsel %vm4297, %v6554, 0
  %v6668 = vsel %vm4297, %v6555, 0
  %v6671 = vsel %vm4297, %v6556, 0
  %v6674 = vsel %vm4297, %v6557, 0
  %v6677 = vsel %vm4297, %v6558, 0
  %v6680 = vsel %vm4297, %v6559, 0
  %v6683 = vsel %vm4297, %v6560, 0
  %v6686 = vsel %vm4297, %v6561, 0
  %v6689 = vsel %vm4297, %v6562, 0
  %v6692 = vsel %vm4297, %v6563, 0
  %v6695 = vsel %vm4297, %v6564, 0
  %v6698 = vsel %vm3395, %v6596, 0
  %6700 = vmatprep.subr.bf16.mxu0 0
  %6701 = vmatpush1.bf16.msra.mxu0 %v6592
  %6702 = vmatprep.subr.bf16.mxu0 0
  %6703 = vmatpush1.bf16.msra.mxu0 %v6593
  %6704 = vmatprep.subr.bf16.mxu0 0
  %6705 = vmatpush1.bf16.msra.mxu0 %v6594
  %6706 = vmatprep.subr.bf16.mxu0 0
  %6707 = vmatpush1.bf16.msra.mxu0 %v6595
  %6708 = vmatprep.subr.bf16.mxu0 0
  %6709 = vmatpush1.bf16.msra.mxu0 %v6698
  %6710 = vmatprep.subr.bf16.mxu0 0
  %6711 = vmatpush1.bf16.msra.mxu0 0
  %6712 = vmatprep.subr.bf16.mxu0 0
  %6713 = vmatpush1.bf16.msra.mxu0 0
  %6714 = vmatprep.subr.bf16.mxu0 0
  %6715 = vmatpush1.bf16.msra.mxu0 0
  %6716 = vmatprep.subr.bf16.mxu0 0
  %6717 = vmatpush1.bf16.msra.mxu0 0
  %6718 = vmatprep.subr.bf16.mxu0 0
  %6719 = vmatpush1.bf16.msra.mxu0 0
  %6720 = vmatprep.subr.bf16.mxu0 0
  %6721 = vmatpush1.bf16.msra.mxu0 0
  %6722 = vmatprep.subr.bf16.mxu0 0
  %6723 = vmatpush1.bf16.msra.mxu0 0
  %6724 = vmatprep.subr.bf16.mxu0 0
  %6725 = vmatpush1.bf16.msra.mxu0 0
  %6726 = vmatprep.subr.bf16.mxu0 0
  %6727 = vmatpush1.bf16.msra.mxu0 0
  %6728 = vmatprep.subr.bf16.mxu0 0
  %6729 = vmatpush1.bf16.msra.mxu0 0
  %6730 = vmatprep.subr.bf16.mxu0 0
  %6731 = vmatpush1.bf16.msra.mxu0 0
  %6732 = vmatprep.mubr.bf16.mxu0 0
  %6733 = vmatmul.mubr.bf16.gmra.mrb[0].mxu0 %v6602
  %v6734 = vpop.f32.mrb[0].mxu0
  %v6735 = vadd.f32 0.0, %v6734
  %v6736 = vpop.f32.mrb[0].mxu0
  %v6737 = vpop.f32.mrb[0].mxu0
  %v6738 = vadd.f32 0.0, %v6737
  %v6739 = vpop.f32.mrb[0].mxu0
  %6740 = vmatprep.mubr.bf16.mxu0 0
  %6741 = vmatmul.mubr.bf16.gmra.mrb[0].mxu0 %v6605
  %v6742 = vpop.f32.mrb[0].mxu0
  %v6743 = vadd.f32 0.0, %v6742
  %v6744 = vpop.f32.mrb[0].mxu0
  %v6745 = vpop.f32.mrb[0].mxu0
  %v6746 = vadd.f32 0.0, %v6745
  %v6747 = vpop.f32.mrb[0].mxu0
  %6748 = vmatprep.mubr.bf16.mxu0 0
  %6749 = vmatmul.mubr.bf16.gmra.mrb[0].mxu0 %v6608
  %v6750 = vpop.f32.mrb[0].mxu0
  %v6751 = vadd.f32 0.0, %v6750
  %v6752 = vpop.f32.mrb[0].mxu0
  %v6753 = vpop.f32.mrb[0].mxu0
  %v6754 = vadd.f32 0.0, %v6753
  %v6755 = vpop.f32.mrb[0].mxu0
  %6756 = vmatprep.mubr.bf16.mxu0 0
  %6757 = vmatmul.mubr.bf16.gmra.mrb[0].mxu0 %v6611
  %v6758 = vpop.f32.mrb[0].mxu0
  %v6759 = vadd.f32 0.0, %v6758
  %v6760 = vpop.f32.mrb[0].mxu0
  %v6761 = vpop.f32.mrb[0].mxu0
  %v6762 = vadd.f32 0.0, %v6761
  %v6763 = vpop.f32.mrb[0].mxu0
  %6764 = vmatprep.mubr.bf16.mxu0 0
  %6765 = vmatmul.mubr.bf16.gmra.mrb[0].mxu0 %v6614
  %v6766 = vpop.f32.mrb[0].mxu0
  %v6767 = vadd.f32 0.0, %v6766
  %v6768 = vpop.f32.mrb[0].mxu0
  %v6769 = vpop.f32.mrb[0].mxu0
  %v6770 = vadd.f32 0.0, %v6769
  %v6771 = vpop.f32.mrb[0].mxu0
  %6772 = vmatprep.mubr.bf16.mxu0 0
  %6773 = vmatmul.mubr.bf16.gmra.mrb[0].mxu0 %v6617
  %v6774 = vpop.f32.mrb[0].mxu0
  %v6775 = vadd.f32 0.0, %v6774
  %v6776 = vpop.f32.mrb[0].mxu0
  %v6777 = vpop.f32.mrb[0].mxu0
  %v6778 = vadd.f32 0.0, %v6777
  %v6779 = vpop.f32.mrb[0].mxu0
  %6780 = vmatprep.mubr.bf16.mxu0 0
  %6781 = vmatmul.mubr.bf16.gmra.mrb[0].mxu0 %v6620
  %v6782 = vpop.f32.mrb[0].mxu0
  %v6783 = vadd.f32 0.0, %v6782
  %v6784 = vpop.f32.mrb[0].mxu0
  %v6785 = vpop.f32.mrb[0].mxu0
  %v6786 = vadd.f32 0.0, %v6785
  %v6787 = vpop.f32.mrb[0].mxu0
  %6788 = vmatprep.mubr.bf16.mxu0 0
  %6789 = vmatmul.mubr.bf16.gmra.mrb[0].mxu0 %v6623
  %v6790 = vpop.f32.mrb[0].mxu0
  %v6791 = vadd.f32 0.0, %v6790
  %v6792 = vpop.f32.mrb[0].mxu0
  %v6793 = vpop.f32.mrb[0].mxu0
  %v6794 = vadd.f32 0.0, %v6793
  %v6795 = vpop.f32.mrb[0].mxu0
  %6796 = vmatprep.mubr.bf16.mxu0 0
  %6797 = vmatmul.mubr.bf16.gmra.mrb[0].mxu0 %v6626
  %v6798 = vpop.f32.mrb[0].mxu0
  %v6799 = vadd.f32 0.0, %v6798
  %v6800 = vpop.f32.mrb[0].mxu0
  %v6801 = vpop.f32.mrb[0].mxu0
  %v6802 = vadd.f32 0.0, %v6801
  %v6803 = vpop.f32.mrb[0].mxu0
  %6804 = vmatprep.mubr.bf16.mxu0 0
  %6805 = vmatmul.mubr.bf16.gmra.mrb[0].mxu0 %v6629
  %v6806 = vpop.f32.mrb[0].mxu0
  %v6807 = vadd.f32 0.0, %v6806
  %v6808 = vpop.f32.mrb[0].mxu0
  %v6809 = vpop.f32.mrb[0].mxu0
  %v6810 = vadd.f32 0.0, %v6809
  %v6811 = vpop.f32.mrb[0].mxu0
  %6812 = vmatprep.mubr.bf16.mxu0 0
  %6813 = vmatmul.mubr.bf16.gmra.mrb[0].mxu0 %v6632
  %v6814 = vpop.f32.mrb[0].mxu0
  %v6815 = vadd.f32 0.0, %v6814
  %v6816 = vpop.f32.mrb[0].mxu0
  %v6817 = vpop.f32.mrb[0].mxu0
  %v6818 = vadd.f32 0.0, %v6817
  %v6819 = vpop.f32.mrb[0].mxu0
  %6820 = vmatprep.mubr.bf16.mxu0 0
  %6821 = vmatmul.mubr.bf16.gmra.mrb[0].mxu0 %v6635
  %v6822 = vpop.f32.mrb[0].mxu0
  %v6823 = vadd.f32 0.0, %v6822
  %v6824 = vpop.f32.mrb[0].mxu0
  %v6825 = vpop.f32.mrb[0].mxu0
  %v6826 = vadd.f32 0.0, %v6825
  %v6827 = vpop.f32.mrb[0].mxu0
  %6828 = vmatprep.mubr.bf16.mxu0 0
  %6829 = vmatmul.mubr.bf16.gmra.mrb[0].mxu0 %v6638
  %v6830 = vpop.f32.mrb[0].mxu0
  %v6831 = vadd.f32 0.0, %v6830
  %v6832 = vpop.f32.mrb[0].mxu0
  %v6833 = vpop.f32.mrb[0].mxu0
  %v6834 = vadd.f32 0.0, %v6833
  %v6835 = vpop.f32.mrb[0].mxu0
  %6836 = vmatprep.mubr.bf16.mxu0 0
  %6837 = vmatmul.mubr.bf16.gmra.mrb[0].mxu0 %v6641
  %v6838 = vpop.f32.mrb[0].mxu0
  %v6839 = vadd.f32 0.0, %v6838
  %v6840 = vpop.f32.mrb[0].mxu0
  %v6841 = vpop.f32.mrb[0].mxu0
  %v6842 = vadd.f32 0.0, %v6841
  %v6843 = vpop.f32.mrb[0].mxu0
  %6844 = vmatprep.mubr.bf16.mxu0 0
  %6845 = vmatmul.mubr.bf16.gmra.mrb[0].mxu0 %v6644
  %v6846 = vpop.f32.mrb[0].mxu0
  %v6847 = vadd.f32 0.0, %v6846
  %v6848 = vpop.f32.mrb[0].mxu0
  %v6849 = vpop.f32.mrb[0].mxu0
  %v6850 = vadd.f32 0.0, %v6849
  %v6851 = vpop.f32.mrb[0].mxu0
  %6852 = vmatprep.mubr.bf16.mxu0 0
  %6853 = vmatmul.mubr.bf16.gmra.mrb[0].mxu0 %v6647
  %v6854 = vpop.f32.mrb[0].mxu0
  %v6855 = vadd.f32 0.0, %v6854
  %v6856 = vpop.f32.mrb[0].mxu0
  %v6857 = vpop.f32.mrb[0].mxu0
  %v6858 = vadd.f32 0.0, %v6857
  %v6859 = vpop.f32.mrb[0].mxu0
  %6860 = vmatprep.mubr.bf16.mxu0 0
  %6861 = vmatmul.mubr.bf16.gmra.mrb[0].mxu0 %v6650
  %v6862 = vpop.f32.mrb[0].mxu0
  %v6863 = vadd.f32 0.0, %v6862
  %v6864 = vpop.f32.mrb[0].mxu0
  %v6865 = vpop.f32.mrb[0].mxu0
  %v6866 = vadd.f32 0.0, %v6865
  %v6867 = vpop.f32.mrb[0].mxu0
  %6868 = vmatprep.mubr.bf16.mxu0 0
  %6869 = vmatmul.mubr.bf16.gmra.mrb[0].mxu0 %v6653
  %v6870 = vpop.f32.mrb[0].mxu0
  %v6871 = vadd.f32 0.0, %v6870
  %v6872 = vpop.f32.mrb[0].mxu0
  %v6873 = vpop.f32.mrb[0].mxu0
  %v6874 = vadd.f32 0.0, %v6873
  %v6875 = vpop.f32.mrb[0].mxu0
  %6876 = vmatprep.mubr.bf16.mxu0 0
  %6877 = vmatmul.mubr.bf16.gmra.mrb[0].mxu0 %v6656
  %v6878 = vpop.f32.mrb[0].mxu0
  %v6879 = vadd.f32 0.0, %v6878
  %v6880 = vpop.f32.mrb[0].mxu0
  %v6881 = vpop.f32.mrb[0].mxu0
  %v6882 = vadd.f32 0.0, %v6881
  %v6883 = vpop.f32.mrb[0].mxu0
  %6884 = vmatprep.mubr.bf16.mxu0 0
  %6885 = vmatmul.mubr.bf16.gmra.mrb[0].mxu0 %v6659
  %v6886 = vpop.f32.mrb[0].mxu0
  %v6887 = vadd.f32 0.0, %v6886
  %v6888 = vpop.f32.mrb[0].mxu0
  %v6889 = vpop.f32.mrb[0].mxu0
  %v6890 = vadd.f32 0.0, %v6889
  %v6891 = vpop.f32.mrb[0].mxu0
  %6892 = vmatprep.mubr.bf16.mxu0 0
  %6893 = vmatmul.mubr.bf16.gmra.mrb[0].mxu0 %v6662
  %v6894 = vpop.f32.mrb[0].mxu0
  %v6895 = vadd.f32 0.0, %v6894
  %v6896 = vpop.f32.mrb[0].mxu0
  %v6897 = vpop.f32.mrb[0].mxu0
  %v6898 = vadd.f32 0.0, %v6897
  %v6899 = vpop.f32.mrb[0].mxu0
  %6900 = vmatprep.mubr.bf16.mxu0 0
  %6901 = vmatmul.mubr.bf16.gmra.mrb[0].mxu0 %v6665
  %v6902 = vpop.f32.mrb[0].mxu0
  %v6903 = vadd.f32 0.0, %v6902
  %v6904 = vpop.f32.mrb[0].mxu0
  %v6905 = vpop.f32.mrb[0].mxu0
  %v6906 = vadd.f32 0.0, %v6905
  %v6907 = vpop.f32.mrb[0].mxu0
  %6908 = vmatprep.mubr.bf16.mxu0 0
  %6909 = vmatmul.mubr.bf16.gmra.mrb[0].mxu0 %v6668
  %v6910 = vpop.f32.mrb[0].mxu0
  %v6911 = vadd.f32 0.0, %v6910
  %v6912 = vpop.f32.mrb[0].mxu0
  %v6913 = vpop.f32.mrb[0].mxu0
  %v6914 = vadd.f32 0.0, %v6913
  %v6915 = vpop.f32.mrb[0].mxu0
  %6916 = vmatprep.mubr.bf16.mxu0 0
  %6917 = vmatmul.mubr.bf16.gmra.mrb[0].mxu0 %v6671
  %v6918 = vpop.f32.mrb[0].mxu0
  %v6919 = vadd.f32 0.0, %v6918
  %v6920 = vpop.f32.mrb[0].mxu0
  %v6921 = vpop.f32.mrb[0].mxu0
  %v6922 = vadd.f32 0.0, %v6921
  %v6923 = vpop.f32.mrb[0].mxu0
  %6924 = vmatprep.mubr.bf16.mxu0 0
  %6925 = vmatmul.mubr.bf16.gmra.mrb[0].mxu0 %v6674
  %v6926 = vpop.f32.mrb[0].mxu0
  %v6927 = vadd.f32 0.0, %v6926
  %v6928 = vpop.f32.mrb[0].mxu0
  %v6929 = vpop.f32.mrb[0].mxu0
  %v6930 = vadd.f32 0.0, %v6929
  %v6931 = vpop.f32.mrb[0].mxu0
  %6932 = vmatprep.mubr.bf16.mxu0 0
  %6933 = vmatmul.mubr.bf16.gmra.mrb[0].mxu0 %v6677
  %v6934 = vpop.f32.mrb[0].mxu0
  %v6935 = vadd.f32 0.0, %v6934
  %v6936 = vpop.f32.mrb[0].mxu0
  %v6937 = vpop.f32.mrb[0].mxu0
  %v6938 = vadd.f32 0.0, %v6937
  %v6939 = vpop.f32.mrb[0].mxu0
  %6940 = vmatprep.mubr.bf16.mxu0 0
  %6941 = vmatmul.mubr.bf16.gmra.mrb[0].mxu0 %v6680
  %v6942 = vpop.f32.mrb[0].mxu0
  %v6943 = vadd.f32 0.0, %v6942
  %v6944 = vpop.f32.mrb[0].mxu0
  %v6945 = vpop.f32.mrb[0].mxu0
  %v6946 = vadd.f32 0.0, %v6945
  %v6947 = vpop.f32.mrb[0].mxu0
  %6948 = vmatprep.mubr.bf16.mxu0 0
  %6949 = vmatmul.mubr.bf16.gmra.mrb[0].mxu0 %v6683
  %v6950 = vpop.f32.mrb[0].mxu0
  %v6951 = vadd.f32 0.0, %v6950
  %v6952 = vpop.f32.mrb[0].mxu0
  %v6953 = vpop.f32.mrb[0].mxu0
  %v6954 = vadd.f32 0.0, %v6953
  %v6955 = vpop.f32.mrb[0].mxu0
  %6956 = vmatprep.mubr.bf16.mxu0 0
  %6957 = vmatmul.mubr.bf16.gmra.mrb[0].mxu0 %v6686
  %v6958 = vpop.f32.mrb[0].mxu0
  %v6959 = vadd.f32 0.0, %v6958
  %v6960 = vpop.f32.mrb[0].mxu0
  %v6961 = vpop.f32.mrb[0].mxu0
  %v6962 = vadd.f32 0.0, %v6961
  %v6963 = vpop.f32.mrb[0].mxu0
  %6964 = vmatprep.mubr.bf16.mxu0 0
  %6965 = vmatmul.mubr.bf16.gmra.mrb[0].mxu0 %v6689
  %v6966 = vpop.f32.mrb[0].mxu0
  %v6967 = vadd.f32 0.0, %v6966
  %v6968 = vpop.f32.mrb[0].mxu0
  %v6969 = vpop.f32.mrb[0].mxu0
  %v6970 = vadd.f32 0.0, %v6969
  %v6971 = vpop.f32.mrb[0].mxu0
  %6972 = vmatprep.mubr.bf16.mxu0 0
  %6973 = vmatmul.mubr.bf16.gmra.mrb[0].mxu0 %v6692
  %v6974 = vpop.f32.mrb[0].mxu0
  %v6975 = vadd.f32 0.0, %v6974
  %v6976 = vpop.f32.mrb[0].mxu0
  %v6977 = vpop.f32.mrb[0].mxu0
  %v6978 = vadd.f32 0.0, %v6977
  %v6979 = vpop.f32.mrb[0].mxu0
  %6980 = vmatprep.mubr.bf16.mxu0 0
  %6981 = vmatmul.mubr.bf16.gmra.mrb[0].mxu0 %v6695
  %v6982 = vpop.f32.mrb[0].mxu0
  %v6983 = vadd.f32 0.0, %v6982
  %v6984 = vpop.f32.mrb[0].mxu0
  %v6985 = vpop.f32.mrb[0].mxu0
  %v6986 = vadd.f32 0.0, %v6985
  %v6987 = vpop.f32.mrb[0].mxu0
  %6988 = vdwg.mxu0
  %v6989 = vsel %vm3688, %v6735, 0.0
  %v6990 = vsel %vm3688, %v6738, 0.0
  %v6991 = vadd.f32 %v6989, %v6990
  %v6992 = vsel %vm3688, %v6743, 0.0
  %v6993 = vadd.f32 %v6991, %v6992
  %v6994 = vsel %vm3688, %v6746, 0.0
  %v6995 = vadd.f32 %v6993, %v6994
  %v6996 = vsel %vm3688, %v6751, 0.0
  %v6997 = vadd.f32 %v6995, %v6996
  %v6998 = vsel %vm3688, %v6754, 0.0
  %v6999 = vadd.f32 %v6997, %v6998
  %v7000 = vsel %vm3688, %v6759, 0.0
  %v7001 = vadd.f32 %v6999, %v7000
  %v7002 = vsel %vm3688, %v6762, 0.0
  %v7003 = vadd.f32 %v7001, %v7002
  %v7004 = vsel %vm3688, %v6767, 0.0
  %v7005 = vadd.f32 %v7003, %v7004
  %v7006 = vsel %vm3688, %v6770, 0.0
  %v7007 = vadd.f32 %v7005, %v7006
  %v7008 = vsel %vm3688, %v6775, 0.0
  %v7009 = vadd.f32 %v7007, %v7008
  %v7010 = vsel %vm3688, %v6778, 0.0
  %v7011 = vadd.f32 %v7009, %v7010
  %v7012 = vsel %vm3688, %v6783, 0.0
  %v7013 = vadd.f32 %v7011, %v7012
  %v7014 = vsel %vm3688, %v6786, 0.0
  %v7015 = vadd.f32 %v7013, %v7014
  %v7016 = vsel %vm3688, %v6791, 0.0
  %v7017 = vadd.f32 %v7015, %v7016
  %v7018 = vsel %vm3688, %v6794, 0.0
  %v7019 = vadd.f32 %v7017, %v7018
  %v7020 = vsel %vm3688, %v6799, 0.0
  %v7021 = vadd.f32 %v7019, %v7020
  %v7022 = vsel %vm3688, %v6802, 0.0
  %v7023 = vadd.f32 %v7021, %v7022
  %v7024 = vsel %vm3688, %v6807, 0.0
  %v7025 = vadd.f32 %v7023, %v7024
  %v7026 = vsel %vm3688, %v6810, 0.0
  %v7027 = vadd.f32 %v7025, %v7026
  %v7028 = vsel %vm3688, %v6815, 0.0
  %v7029 = vadd.f32 %v7027, %v7028
  %v7030 = vsel %vm3688, %v6818, 0.0
  %v7031 = vadd.f32 %v7029, %v7030
  %v7032 = vsel %vm3688, %v6823, 0.0
  %v7033 = vadd.f32 %v7031, %v7032
  %v7034 = vsel %vm3688, %v6826, 0.0
  %v7035 = vadd.f32 %v7033, %v7034
  %v7036 = vsel %vm3688, %v6831, 0.0
  %v7037 = vadd.f32 %v7035, %v7036
  %v7038 = vsel %vm3688, %v6834, 0.0
  %v7039 = vadd.f32 %v7037, %v7038
  %v7040 = vsel %vm3688, %v6839, 0.0
  %v7041 = vadd.f32 %v7039, %v7040
  %v7042 = vsel %vm3688, %v6842, 0.0
  %v7043 = vadd.f32 %v7041, %v7042
  %v7044 = vsel %vm3688, %v6847, 0.0
  %v7045 = vadd.f32 %v7043, %v7044
  %v7046 = vsel %vm3688, %v6850, 0.0
  %v7047 = vadd.f32 %v7045, %v7046
  %v7048 = vsel %vm3688, %v6855, 0.0
  %v7049 = vadd.f32 %v7047, %v7048
  %v7050 = vsel %vm3688, %v6858, 0.0
  %v7051 = vadd.f32 %v7049, %v7050
  %v7052 = vsel %vm3688, %v6863, 0.0
  %v7053 = vadd.f32 %v7051, %v7052
  %v7054 = vsel %vm3688, %v6866, 0.0
  %v7055 = vadd.f32 %v7053, %v7054
  %v7056 = vsel %vm3688, %v6871, 0.0
  %v7057 = vadd.f32 %v7055, %v7056
  %v7058 = vsel %vm3688, %v6874, 0.0
  %v7059 = vadd.f32 %v7057, %v7058
  %v7060 = vsel %vm3688, %v6879, 0.0
  %v7061 = vadd.f32 %v7059, %v7060
  %v7062 = vsel %vm3688, %v6882, 0.0
  %v7063 = vadd.f32 %v7061, %v7062
  %v7064 = vsel %vm3688, %v6887, 0.0
  %v7065 = vadd.f32 %v7063, %v7064
  %v7066 = vsel %vm3688, %v6890, 0.0
  %v7067 = vadd.f32 %v7065, %v7066
  %v7068 = vsel %vm3688, %v6895, 0.0
  %v7069 = vadd.f32 %v7067, %v7068
  %v7070 = vsel %vm3688, %v6898, 0.0
  %v7071 = vadd.f32 %v7069, %v7070
  %v7072 = vsel %vm3688, %v6903, 0.0
  %v7073 = vadd.f32 %v7071, %v7072
  %v7074 = vsel %vm3688, %v6906, 0.0
  %v7075 = vadd.f32 %v7073, %v7074
  %v7076 = vsel %vm3688, %v6911, 0.0
  %v7077 = vadd.f32 %v7075, %v7076
  %v7078 = vsel %vm3688, %v6914, 0.0
  %v7079 = vadd.f32 %v7077, %v7078
  %v7080 = vsel %vm3688, %v6919, 0.0
  %v7081 = vadd.f32 %v7079, %v7080
  %v7082 = vsel %vm3688, %v6922, 0.0
  %v7083 = vadd.f32 %v7081, %v7082
  %v7084 = vsel %vm3688, %v6927, 0.0
  %v7085 = vadd.f32 %v7083, %v7084
  %v7086 = vsel %vm3688, %v6930, 0.0
  %v7087 = vadd.f32 %v7085, %v7086
  %v7088 = vsel %vm3688, %v6935, 0.0
  %v7089 = vadd.f32 %v7087, %v7088
  %v7090 = vsel %vm3688, %v6938, 0.0
  %v7091 = vadd.f32 %v7089, %v7090
  %v7092 = vsel %vm3688, %v6943, 0.0
  %v7093 = vadd.f32 %v7091, %v7092
  %v7094 = vsel %vm3688, %v6946, 0.0
  %v7095 = vadd.f32 %v7093, %v7094
  %v7096 = vsel %vm3688, %v6951, 0.0
  %v7097 = vadd.f32 %v7095, %v7096
  %v7098 = vsel %vm3688, %v6954, 0.0
  %v7099 = vadd.f32 %v7097, %v7098
  %v7100 = vsel %vm3688, %v6959, 0.0
  %v7101 = vadd.f32 %v7099, %v7100
  %v7102 = vsel %vm3688, %v6962, 0.0
  %v7103 = vadd.f32 %v7101, %v7102
  %v7104 = vsel %vm3688, %v6967, 0.0
  %v7105 = vadd.f32 %v7103, %v7104
  %v7106 = vsel %vm3688, %v6970, 0.0
  %v7107 = vadd.f32 %v7105, %v7106
  %v7108 = vsel %vm3688, %v6975, 0.0
  %v7109 = vadd.f32 %v7107, %v7108
  %v7110 = vsel %vm3688, %v6978, 0.0
  %v7111 = vadd.f32 %v7109, %v7110
  %v7112 = vsel %vm3688, %v6983, 0.0
  %v7113 = vadd.f32 %v7111, %v7112
  %v7114 = vsel %vm3688, %v6986, 0.0
  %v7115 = vadd.f32 %v7113, %v7114
  %v7116 = vrot.slane %v7115, 4
  %v7117 = vadd.f32 %v7115, %v7116
  %v7118 = vrot.slane %v7117, 2
  %v7119 = vadd.f32 %v7117, %v7118
  %v7120 = vrot.slane %v7119, 1
  %v7121 = vadd.f32 %v7119, %v7120
  %v7122 = vmul.f32 %v7121, %v3822
  %v7123 = vsub.f32 %v6735, %v7122
  %v7124 = vsub.f32 %v6738, %v7122
  %v7125 = vsub.f32 %v6743, %v7122
  %v7126 = vsub.f32 %v6746, %v7122
  %v7127 = vsub.f32 %v6751, %v7122
  %v7128 = vsub.f32 %v6754, %v7122
  %v7129 = vsub.f32 %v6759, %v7122
  %v7130 = vsub.f32 %v6762, %v7122
  %v7131 = vsub.f32 %v6767, %v7122
  %v7132 = vsub.f32 %v6770, %v7122
  %v7133 = vsub.f32 %v6775, %v7122
  %v7134 = vsub.f32 %v6778, %v7122
  %v7135 = vsub.f32 %v6783, %v7122
  %v7136 = vsub.f32 %v6786, %v7122
  %v7137 = vsub.f32 %v6791, %v7122
  %v7138 = vsub.f32 %v6794, %v7122
  %v7139 = vsub.f32 %v6799, %v7122
  %v7140 = vsub.f32 %v6802, %v7122
  %v7141 = vsub.f32 %v6807, %v7122
  %v7142 = vsub.f32 %v6810, %v7122
  %v7143 = vsub.f32 %v6815, %v7122
  %v7144 = vsub.f32 %v6818, %v7122
  %v7145 = vsub.f32 %v6823, %v7122
  %v7146 = vsub.f32 %v6826, %v7122
  %v7147 = vsub.f32 %v6831, %v7122
  %v7148 = vsub.f32 %v6834, %v7122
  %v7149 = vsub.f32 %v6839, %v7122
  %v7150 = vsub.f32 %v6842, %v7122
  %v7151 = vsub.f32 %v6847, %v7122
  %v7152 = vsub.f32 %v6850, %v7122
  %v7153 = vsub.f32 %v6855, %v7122
  %v7154 = vsub.f32 %v6858, %v7122
  %v7155 = vsub.f32 %v6863, %v7122
  %v7156 = vsub.f32 %v6866, %v7122
  %v7157 = vsub.f32 %v6871, %v7122
  %v7158 = vsub.f32 %v6874, %v7122
  %v7159 = vsub.f32 %v6879, %v7122
  %v7160 = vsub.f32 %v6882, %v7122
  %v7161 = vsub.f32 %v6887, %v7122
  %v7162 = vsub.f32 %v6890, %v7122
  %v7163 = vsub.f32 %v6895, %v7122
  %v7164 = vsub.f32 %v6898, %v7122
  %v7165 = vsub.f32 %v6903, %v7122
  %v7166 = vsub.f32 %v6906, %v7122
  %v7167 = vsub.f32 %v6911, %v7122
  %v7168 = vsub.f32 %v6914, %v7122
  %v7169 = vsub.f32 %v6919, %v7122
  %v7170 = vsub.f32 %v6922, %v7122
  %v7171 = vsub.f32 %v6927, %v7122
  %v7172 = vsub.f32 %v6930, %v7122
  %v7173 = vsub.f32 %v6935, %v7122
  %v7174 = vsub.f32 %v6938, %v7122
  %v7175 = vsub.f32 %v6943, %v7122
  %v7176 = vsub.f32 %v6946, %v7122
  %v7177 = vsub.f32 %v6951, %v7122
  %v7178 = vsub.f32 %v6954, %v7122
  %v7179 = vsub.f32 %v6959, %v7122
  %v7180 = vsub.f32 %v6962, %v7122
  %v7181 = vsub.f32 %v6967, %v7122
  %v7182 = vsub.f32 %v6970, %v7122
  %v7183 = vsub.f32 %v6975, %v7122
  %v7184 = vsub.f32 %v6978, %v7122
  %v7185 = vsub.f32 %v6983, %v7122
  %v7186 = vsub.f32 %v6986, %v7122
  %v7187 = vmul.f32 %v7123, %v7123
  %v7188 = vmul.f32 %v7124, %v7124
  %v7189 = vmul.f32 %v7125, %v7125
  %v7190 = vmul.f32 %v7126, %v7126
  %v7191 = vmul.f32 %v7127, %v7127
  %v7192 = vmul.f32 %v7128, %v7128
  %v7193 = vmul.f32 %v7129, %v7129
  %v7194 = vmul.f32 %v7130, %v7130
  %v7195 = vmul.f32 %v7131, %v7131
  %v7196 = vmul.f32 %v7132, %v7132
  %v7197 = vmul.f32 %v7133, %v7133
  %v7198 = vmul.f32 %v7134, %v7134
  %v7199 = vmul.f32 %v7135, %v7135
  %v7200 = vmul.f32 %v7136, %v7136
  %v7201 = vmul.f32 %v7137, %v7137
  %v7202 = vmul.f32 %v7138, %v7138
  %v7203 = vmul.f32 %v7139, %v7139
  %v7204 = vmul.f32 %v7140, %v7140
  %v7205 = vmul.f32 %v7141, %v7141
  %v7206 = vmul.f32 %v7142, %v7142
  %v7207 = vmul.f32 %v7143, %v7143
  %v7208 = vmul.f32 %v7144, %v7144
  %v7209 = vmul.f32 %v7145, %v7145
  %v7210 = vmul.f32 %v7146, %v7146
  %v7211 = vmul.f32 %v7147, %v7147
  %v7212 = vmul.f32 %v7148, %v7148
  %v7213 = vmul.f32 %v7149, %v7149
  %v7214 = vmul.f32 %v7150, %v7150
  %v7215 = vmul.f32 %v7151, %v7151
  %v7216 = vmul.f32 %v7152, %v7152
  %v7217 = vmul.f32 %v7153, %v7153
  %v7218 = vmul.f32 %v7154, %v7154
  %v7219 = vmul.f32 %v7155, %v7155
  %v7220 = vmul.f32 %v7156, %v7156
  %v7221 = vmul.f32 %v7157, %v7157
  %v7222 = vmul.f32 %v7158, %v7158
  %v7223 = vmul.f32 %v7159, %v7159
  %v7224 = vmul.f32 %v7160, %v7160
  %v7225 = vmul.f32 %v7161, %v7161
  %v7226 = vmul.f32 %v7162, %v7162
  %v7227 = vmul.f32 %v7163, %v7163
  %v7228 = vmul.f32 %v7164, %v7164
  %v7229 = vmul.f32 %v7165, %v7165
  %v7230 = vmul.f32 %v7166, %v7166
  %v7231 = vmul.f32 %v7167, %v7167
  %v7232 = vmul.f32 %v7168, %v7168
  %v7233 = vmul.f32 %v7169, %v7169
  %v7234 = vmul.f32 %v7170, %v7170
  %v7235 = vmul.f32 %v7171, %v7171
  %v7236 = vmul.f32 %v7172, %v7172
  %v7237 = vmul.f32 %v7173, %v7173
  %v7238 = vmul.f32 %v7174, %v7174
  %v7239 = vmul.f32 %v7175, %v7175
  %v7240 = vmul.f32 %v7176, %v7176
  %v7241 = vmul.f32 %v7177, %v7177
  %v7242 = vmul.f32 %v7178, %v7178
  %v7243 = vmul.f32 %v7179, %v7179
  %v7244 = vmul.f32 %v7180, %v7180
  %v7245 = vmul.f32 %v7181, %v7181
  %v7246 = vmul.f32 %v7182, %v7182
  %v7247 = vmul.f32 %v7183, %v7183
  %v7248 = vmul.f32 %v7184, %v7184
  %v7249 = vmul.f32 %v7185, %v7185
  %v7250 = vmul.f32 %v7186, %v7186
  %v7251 = vsel %vm3688, %v7187, 0.0
  %v7252 = vsel %vm3688, %v7188, 0.0
  %v7253 = vadd.f32 %v7251, %v7252
  %v7254 = vsel %vm3688, %v7189, 0.0
  %v7255 = vadd.f32 %v7253, %v7254
  %v7256 = vsel %vm3688, %v7190, 0.0
  %v7257 = vadd.f32 %v7255, %v7256
  %v7258 = vsel %vm3688, %v7191, 0.0
  %v7259 = vadd.f32 %v7257, %v7258
  %v7260 = vsel %vm3688, %v7192, 0.0
  %v7261 = vadd.f32 %v7259, %v7260
  %v7262 = vsel %vm3688, %v7193, 0.0
  %v7263 = vadd.f32 %v7261, %v7262
  %v7264 = vsel %vm3688, %v7194, 0.0
  %v7265 = vadd.f32 %v7263, %v7264
  %v7266 = vsel %vm3688, %v7195, 0.0
  %v7267 = vadd.f32 %v7265, %v7266
  %v7268 = vsel %vm3688, %v7196, 0.0
  %v7269 = vadd.f32 %v7267, %v7268
  %v7270 = vsel %vm3688, %v7197, 0.0
  %v7271 = vadd.f32 %v7269, %v7270
  %v7272 = vsel %vm3688, %v7198, 0.0
  %v7273 = vadd.f32 %v7271, %v7272
  %v7274 = vsel %vm3688, %v7199, 0.0
  %v7275 = vadd.f32 %v7273, %v7274
  %v7276 = vsel %vm3688, %v7200, 0.0
  %v7277 = vadd.f32 %v7275, %v7276
  %v7278 = vsel %vm3688, %v7201, 0.0
  %v7279 = vadd.f32 %v7277, %v7278
  %v7280 = vsel %vm3688, %v7202, 0.0
  %v7281 = vadd.f32 %v7279, %v7280
  %v7282 = vsel %vm3688, %v7203, 0.0
  %v7283 = vadd.f32 %v7281, %v7282
  %v7284 = vsel %vm3688, %v7204, 0.0
  %v7285 = vadd.f32 %v7283, %v7284
  %v7286 = vsel %vm3688, %v7205, 0.0
  %v7287 = vadd.f32 %v7285, %v7286
  %v7288 = vsel %vm3688, %v7206, 0.0
  %v7289 = vadd.f32 %v7287, %v7288
  %v7290 = vsel %vm3688, %v7207, 0.0
  %v7291 = vadd.f32 %v7289, %v7290
  %v7292 = vsel %vm3688, %v7208, 0.0
  %v7293 = vadd.f32 %v7291, %v7292
  %v7294 = vsel %vm3688, %v7209, 0.0
  %v7295 = vadd.f32 %v7293, %v7294
  %v7296 = vsel %vm3688, %v7210, 0.0
  %v7297 = vadd.f32 %v7295, %v7296
  %v7298 = vsel %vm3688, %v7211, 0.0
  %v7299 = vadd.f32 %v7297, %v7298
  %v7300 = vsel %vm3688, %v7212, 0.0
  %v7301 = vadd.f32 %v7299, %v7300
  %v7302 = vsel %vm3688, %v7213, 0.0
  %v7303 = vadd.f32 %v7301, %v7302
  %v7304 = vsel %vm3688, %v7214, 0.0
  %v7305 = vadd.f32 %v7303, %v7304
  %v7306 = vsel %vm3688, %v7215, 0.0
  %v7307 = vadd.f32 %v7305, %v7306
  %v7308 = vsel %vm3688, %v7216, 0.0
  %v7309 = vadd.f32 %v7307, %v7308
  %v7310 = vsel %vm3688, %v7217, 0.0
  %v7311 = vadd.f32 %v7309, %v7310
  %v7312 = vsel %vm3688, %v7218, 0.0
  %v7313 = vadd.f32 %v7311, %v7312
  %v7314 = vsel %vm3688, %v7219, 0.0
  %v7315 = vadd.f32 %v7313, %v7314
  %v7316 = vsel %vm3688, %v7220, 0.0
  %v7317 = vadd.f32 %v7315, %v7316
  %v7318 = vsel %vm3688, %v7221, 0.0
  %v7319 = vadd.f32 %v7317, %v7318
  %v7320 = vsel %vm3688, %v7222, 0.0
  %v7321 = vadd.f32 %v7319, %v7320
  %v7322 = vsel %vm3688, %v7223, 0.0
  %v7323 = vadd.f32 %v7321, %v7322
  %v7324 = vsel %vm3688, %v7224, 0.0
  %v7325 = vadd.f32 %v7323, %v7324
  %v7326 = vsel %vm3688, %v7225, 0.0
  %v7327 = vadd.f32 %v7325, %v7326
  %v7328 = vsel %vm3688, %v7226, 0.0
  %v7329 = vadd.f32 %v7327, %v7328
  %v7330 = vsel %vm3688, %v7227, 0.0
  %v7331 = vadd.f32 %v7329, %v7330
  %v7332 = vsel %vm3688, %v7228, 0.0
  %v7333 = vadd.f32 %v7331, %v7332
  %v7334 = vsel %vm3688, %v7229, 0.0
  %v7335 = vadd.f32 %v7333, %v7334
  %v7336 = vsel %vm3688, %v7230, 0.0
  %v7337 = vadd.f32 %v7335, %v7336
  %v7338 = vsel %vm3688, %v7231, 0.0
  %v7339 = vadd.f32 %v7337, %v7338
  %v7340 = vsel %vm3688, %v7232, 0.0
  %v7341 = vadd.f32 %v7339, %v7340
  %v7342 = vsel %vm3688, %v7233, 0.0
  %v7343 = vadd.f32 %v7341, %v7342
  %v7344 = vsel %vm3688, %v7234, 0.0
  %v7345 = vadd.f32 %v7343, %v7344
  %v7346 = vsel %vm3688, %v7235, 0.0
  %v7347 = vadd.f32 %v7345, %v7346
  %v7348 = vsel %vm3688, %v7236, 0.0
  %v7349 = vadd.f32 %v7347, %v7348
  %v7350 = vsel %vm3688, %v7237, 0.0
  %v7351 = vadd.f32 %v7349, %v7350
  %v7352 = vsel %vm3688, %v7238, 0.0
  %v7353 = vadd.f32 %v7351, %v7352
  %v7354 = vsel %vm3688, %v7239, 0.0
  %v7355 = vadd.f32 %v7353, %v7354
  %v7356 = vsel %vm3688, %v7240, 0.0
  %v7357 = vadd.f32 %v7355, %v7356
  %v7358 = vsel %vm3688, %v7241, 0.0
  %v7359 = vadd.f32 %v7357, %v7358
  %v7360 = vsel %vm3688, %v7242, 0.0
  %v7361 = vadd.f32 %v7359, %v7360
  %v7362 = vsel %vm3688, %v7243, 0.0
  %v7363 = vadd.f32 %v7361, %v7362
  %v7364 = vsel %vm3688, %v7244, 0.0
  %v7365 = vadd.f32 %v7363, %v7364
  %v7366 = vsel %vm3688, %v7245, 0.0
  %v7367 = vadd.f32 %v7365, %v7366
  %v7368 = vsel %vm3688, %v7246, 0.0
  %v7369 = vadd.f32 %v7367, %v7368
  %v7370 = vsel %vm3688, %v7247, 0.0
  %v7371 = vadd.f32 %v7369, %v7370
  %v7372 = vsel %vm3688, %v7248, 0.0
  %v7373 = vadd.f32 %v7371, %v7372
  %v7374 = vsel %vm3688, %v7249, 0.0
  %v7375 = vadd.f32 %v7373, %v7374
  %v7376 = vsel %vm3688, %v7250, 0.0
  %v7377 = vadd.f32 %v7375, %v7376
  %v7378 = vrot.slane %v7377, 4
  %v7379 = vadd.f32 %v7377, %v7378
  %v7380 = vrot.slane %v7379, 2
  %v7381 = vadd.f32 %v7379, %v7380
  %v7382 = vrot.slane %v7381, 1
  %v7383 = vadd.f32 %v7381, %v7382
  %v7384 = vmul.f32 %v7383, %v3822
  %v7385 = vadd.f32 %v7384, 1e-05
  %v7386 = vrsqrt.pop %v7385
  %v7387 = vmul.f32 %v4295, %v7386
  %v7388 = vmul.f32 %v7122, %v7387
  %v7389 = vsub.f32 %v4296, %v7388
  %v7391 = vlaneseq
  %v7392 = vshrl.u32 %v7391, 7
  %v7393 = vsub.s32 0, %v7392
  %v7394 = vrot.slane %v7387, %v7393
  %v7396 = vmul.f32 %v6735, %v7394
  %v7397 = vmul.f32 %v6738, %v7394
  %v7398 = vmul.f32 %v6743, %v7394
  %v7399 = vmul.f32 %v6746, %v7394
  %v7400 = vmul.f32 %v6751, %v7394
  %v7401 = vmul.f32 %v6754, %v7394
  %v7402 = vmul.f32 %v6759, %v7394
  %v7403 = vmul.f32 %v6762, %v7394
  %v7404 = vmul.f32 %v6767, %v7394
  %v7405 = vmul.f32 %v6770, %v7394
  %v7406 = vmul.f32 %v6775, %v7394
  %v7407 = vmul.f32 %v6778, %v7394
  %v7408 = vmul.f32 %v6783, %v7394
  %v7409 = vmul.f32 %v6786, %v7394
  %v7410 = vmul.f32 %v6791, %v7394
  %v7411 = vmul.f32 %v6794, %v7394
  %v7412 = vmul.f32 %v6799, %v7394
  %v7413 = vmul.f32 %v6802, %v7394
  %v7414 = vmul.f32 %v6807, %v7394
  %v7415 = vmul.f32 %v6810, %v7394
  %v7416 = vmul.f32 %v6815, %v7394
  %v7417 = vmul.f32 %v6818, %v7394
  %v7418 = vmul.f32 %v6823, %v7394
  %v7419 = vmul.f32 %v6826, %v7394
  %v7420 = vmul.f32 %v6831, %v7394
  %v7421 = vmul.f32 %v6834, %v7394
  %v7422 = vmul.f32 %v6839, %v7394
  %v7423 = vmul.f32 %v6842, %v7394
  %v7424 = vmul.f32 %v6847, %v7394
  %v7425 = vmul.f32 %v6850, %v7394
  %v7426 = vmul.f32 %v6855, %v7394
  %v7427 = vmul.f32 %v6858, %v7394
  %v7428 = vmul.f32 %v6863, %v7394
  %v7429 = vmul.f32 %v6866, %v7394
  %v7430 = vmul.f32 %v6871, %v7394
  %v7431 = vmul.f32 %v6874, %v7394
  %v7432 = vmul.f32 %v6879, %v7394
  %v7433 = vmul.f32 %v6882, %v7394
  %v7434 = vmul.f32 %v6887, %v7394
  %v7435 = vmul.f32 %v6890, %v7394
  %v7436 = vmul.f32 %v6895, %v7394
  %v7437 = vmul.f32 %v6898, %v7394
  %v7438 = vmul.f32 %v6903, %v7394
  %v7439 = vmul.f32 %v6906, %v7394
  %v7440 = vmul.f32 %v6911, %v7394
  %v7441 = vmul.f32 %v6914, %v7394
  %v7442 = vmul.f32 %v6919, %v7394
  %v7443 = vmul.f32 %v6922, %v7394
  %v7444 = vmul.f32 %v6927, %v7394
  %v7445 = vmul.f32 %v6930, %v7394
  %v7446 = vmul.f32 %v6935, %v7394
  %v7447 = vmul.f32 %v6938, %v7394
  %v7448 = vmul.f32 %v6943, %v7394
  %v7449 = vmul.f32 %v6946, %v7394
  %v7450 = vmul.f32 %v6951, %v7394
  %v7451 = vmul.f32 %v6954, %v7394
  %v7452 = vmul.f32 %v6959, %v7394
  %v7453 = vmul.f32 %v6962, %v7394
  %v7454 = vmul.f32 %v6967, %v7394
  %v7455 = vmul.f32 %v6970, %v7394
  %v7456 = vmul.f32 %v6975, %v7394
  %v7457 = vmul.f32 %v6978, %v7394
  %v7458 = vmul.f32 %v6983, %v7394
  %v7459 = vmul.f32 %v6986, %v7394
  %v7461 = vlaneseq
  %v7462 = vshrl.u32 %v7461, 7
  %v7463 = vsub.s32 0, %v7462
  %v7464 = vrot.slane %v7389, %v7463
  %v7466 = vadd.f32 %v7396, %v7464
  %v7467 = vadd.f32 %v7397, %v7464
  %v7468 = vadd.f32 %v7398, %v7464
  %v7469 = vadd.f32 %v7399, %v7464
  %v7470 = vadd.f32 %v7400, %v7464
  %v7471 = vadd.f32 %v7401, %v7464
  %v7472 = vadd.f32 %v7402, %v7464
  %v7473 = vadd.f32 %v7403, %v7464
  %v7474 = vadd.f32 %v7404, %v7464
  %v7475 = vadd.f32 %v7405, %v7464
  %v7476 = vadd.f32 %v7406, %v7464
  %v7477 = vadd.f32 %v7407, %v7464
  %v7478 = vadd.f32 %v7408, %v7464
  %v7479 = vadd.f32 %v7409, %v7464
  %v7480 = vadd.f32 %v7410, %v7464
  %v7481 = vadd.f32 %v7411, %v7464
  %v7482 = vadd.f32 %v7412, %v7464
  %v7483 = vadd.f32 %v7413, %v7464
  %v7484 = vadd.f32 %v7414, %v7464
  %v7485 = vadd.f32 %v7415, %v7464
  %v7486 = vadd.f32 %v7416, %v7464
  %v7487 = vadd.f32 %v7417, %v7464
  %v7488 = vadd.f32 %v7418, %v7464
  %v7489 = vadd.f32 %v7419, %v7464
  %v7490 = vadd.f32 %v7420, %v7464
  %v7491 = vadd.f32 %v7421, %v7464
  %v7492 = vadd.f32 %v7422, %v7464
  %v7493 = vadd.f32 %v7423, %v7464
  %v7494 = vadd.f32 %v7424, %v7464
  %v7495 = vadd.f32 %v7425, %v7464
  %v7496 = vadd.f32 %v7426, %v7464
  %v7497 = vadd.f32 %v7427, %v7464
  %v7498 = vadd.f32 %v7428, %v7464
  %v7499 = vadd.f32 %v7429, %v7464
  %v7500 = vadd.f32 %v7430, %v7464
  %v7501 = vadd.f32 %v7431, %v7464
  %v7502 = vadd.f32 %v7432, %v7464
  %v7503 = vadd.f32 %v7433, %v7464
  %v7504 = vadd.f32 %v7434, %v7464
  %v7505 = vadd.f32 %v7435, %v7464
  %v7506 = vadd.f32 %v7436, %v7464
  %v7507 = vadd.f32 %v7437, %v7464
  %v7508 = vadd.f32 %v7438, %v7464
  %v7509 = vadd.f32 %v7439, %v7464
  %v7510 = vadd.f32 %v7440, %v7464
  %v7511 = vadd.f32 %v7441, %v7464
  %v7512 = vadd.f32 %v7442, %v7464
  %v7513 = vadd.f32 %v7443, %v7464
  %v7514 = vadd.f32 %v7444, %v7464
  %v7515 = vadd.f32 %v7445, %v7464
  %v7516 = vadd.f32 %v7446, %v7464
  %v7517 = vadd.f32 %v7447, %v7464
  %v7518 = vadd.f32 %v7448, %v7464
  %v7519 = vadd.f32 %v7449, %v7464
  %v7520 = vadd.f32 %v7450, %v7464
  %v7521 = vadd.f32 %v7451, %v7464
  %v7522 = vadd.f32 %v7452, %v7464
  %v7523 = vadd.f32 %v7453, %v7464
  %v7524 = vadd.f32 %v7454, %v7464
  %v7525 = vadd.f32 %v7455, %v7464
  %v7526 = vadd.f32 %v7456, %v7464
  %v7527 = vadd.f32 %v7457, %v7464
  %v7528 = vadd.f32 %v7458, %v7464
  %v7529 = vadd.f32 %v7459, %v7464
  %v7530 = vmax.f32 %v7466, 0.0
  %v7531 = vmax.f32 %v7467, 0.0
  %v7532 = vmax.f32 %v7468, 0.0
  %v7533 = vmax.f32 %v7469, 0.0
  %v7534 = vmax.f32 %v7470, 0.0
  %v7535 = vmax.f32 %v7471, 0.0
  %v7536 = vmax.f32 %v7472, 0.0
  %v7537 = vmax.f32 %v7473, 0.0
  %v7538 = vmax.f32 %v7474, 0.0
  %v7539 = vmax.f32 %v7475, 0.0
  %v7540 = vmax.f32 %v7476, 0.0
  %v7541 = vmax.f32 %v7477, 0.0
  %v7542 = vmax.f32 %v7478, 0.0
  %v7543 = vmax.f32 %v7479, 0.0
  %v7544 = vmax.f32 %v7480, 0.0
  %v7545 = vmax.f32 %v7481, 0.0
  %v7546 = vmax.f32 %v7482, 0.0
  %v7547 = vmax.f32 %v7483, 0.0
  %v7548 = vmax.f32 %v7484, 0.0
  %v7549 = vmax.f32 %v7485, 0.0
  %v7550 = vmax.f32 %v7486, 0.0
  %v7551 = vmax.f32 %v7487, 0.0
  %v7552 = vmax.f32 %v7488, 0.0
  %v7553 = vmax.f32 %v7489, 0.0
  %v7554 = vmax.f32 %v7490, 0.0
  %v7555 = vmax.f32 %v7491, 0.0
  %v7556 = vmax.f32 %v7492, 0.0
  %v7557 = vmax.f32 %v7493, 0.0
  %v7558 = vmax.f32 %v7494, 0.0
  %v7559 = vmax.f32 %v7495, 0.0
  %v7560 = vmax.f32 %v7496, 0.0
  %v7561 = vmax.f32 %v7497, 0.0
  %v7562 = vmax.f32 %v7498, 0.0
  %v7563 = vmax.f32 %v7499, 0.0
  %v7564 = vmax.f32 %v7500, 0.0
  %v7565 = vmax.f32 %v7501, 0.0
  %v7566 = vmax.f32 %v7502, 0.0
  %v7567 = vmax.f32 %v7503, 0.0
  %v7568 = vmax.f32 %v7504, 0.0
  %v7569 = vmax.f32 %v7505, 0.0
  %v7570 = vmax.f32 %v7506, 0.0
  %v7571 = vmax.f32 %v7507, 0.0
  %v7572 = vmax.f32 %v7508, 0.0
  %v7573 = vmax.f32 %v7509, 0.0
  %v7574 = vmax.f32 %v7510, 0.0
  %v7575 = vmax.f32 %v7511, 0.0
  %v7576 = vmax.f32 %v7512, 0.0
  %v7577 = vmax.f32 %v7513, 0.0
  %v7578 = vmax.f32 %v7514, 0.0
  %v7579 = vmax.f32 %v7515, 0.0
  %v7580 = vmax.f32 %v7516, 0.0
  %v7581 = vmax.f32 %v7517, 0.0
  %v7582 = vmax.f32 %v7518, 0.0
  %v7583 = vmax.f32 %v7519, 0.0
  %v7584 = vmax.f32 %v7520, 0.0
  %v7585 = vmax.f32 %v7521, 0.0
  %v7586 = vmax.f32 %v7522, 0.0
  %v7587 = vmax.f32 %v7523, 0.0
  %v7588 = vmax.f32 %v7524, 0.0
  %v7589 = vmax.f32 %v7525, 0.0
  %v7590 = vmax.f32 %v7526, 0.0
  %v7591 = vmax.f32 %v7527, 0.0
  %v7592 = vmax.f32 %v7528, 0.0
  %v7593 = vmax.f32 %v7529, 0.0
  %7594 = vxpose.xlu0.b32.start [1/16] %v7530, 128
  %7595 = vxpose.xlu0.b32.cont [2/16] %v7531, 128
  %7596 = vxpose.xlu0.b32.cont [3/16] %v7532, 128
  %7597 = vxpose.xlu0.b32.cont [4/16] %v7533, 128
  %7598 = vxpose.xlu0.b32.cont [5/16] %v7534, 128
  %7599 = vxpose.xlu0.b32.cont [6/16] %v7535, 128
  %7600 = vxpose.xlu0.b32.cont [7/16] %v7536, 128
  %7601 = vxpose.xlu0.b32.cont [8/16] %v7537, 128
  %7602 = vxpose.xlu0.b32.cont [9/16] %v7538, 128
  %7603 = vxpose.xlu0.b32.cont [10/16] %v7539, 128
  %7604 = vxpose.xlu0.b32.cont [11/16] %v7540, 128
  %7605 = vxpose.xlu0.b32.cont [12/16] %v7541, 128
  %7606 = vxpose.xlu0.b32.cont [13/16] %v7542, 128
  %7607 = vxpose.xlu0.b32.cont [14/16] %v7543, 128
  %7608 = vxpose.xlu0.b32.cont [15/16] %v7544, 128
  %7609 = vxpose.xlu0.b32.end [16/16] %v7545, 128
  %v7610 = vpop.trf.xlu0
  %v7611 = vpop.trf.xlu0
  %v7612 = vpop.trf.xlu0
  %v7613 = vpop.trf.xlu0
  %v7614 = vpop.trf.xlu0
  %v7615 = vpop.trf.xlu0
  %v7616 = vpop.trf.xlu0
  %v7617 = vpop.trf.xlu0
  %v7618 = vpop.trf.xlu0
  %v7619 = vpop.trf.xlu0
  %v7620 = vpop.trf.xlu0
  %v7621 = vpop.trf.xlu0
  %v7622 = vpop.trf.xlu0
  %v7623 = vpop.trf.xlu0
  %v7624 = vpop.trf.xlu0
  %v7625 = vpop.trf.xlu0
  %7626 = vxpose.xlu0.b32.start [1/16] %v7546, 128
  %7627 = vxpose.xlu0.b32.cont [2/16] %v7547, 128
  %7628 = vxpose.xlu0.b32.cont [3/16] %v7548, 128
  %7629 = vxpose.xlu0.b32.cont [4/16] %v7549, 128
  %7630 = vxpose.xlu0.b32.cont [5/16] %v7550, 128
  %7631 = vxpose.xlu0.b32.cont [6/16] %v7551, 128
  %7632 = vxpose.xlu0.b32.cont [7/16] %v7552, 128
  %7633 = vxpose.xlu0.b32.cont [8/16] %v7553, 128
  %7634 = vxpose.xlu0.b32.cont [9/16] %v7554, 128
  %7635 = vxpose.xlu0.b32.cont [10/16] %v7555, 128
  %7636 = vxpose.xlu0.b32.cont [11/16] %v7556, 128
  %7637 = vxpose.xlu0.b32.cont [12/16] %v7557, 128
  %7638 = vxpose.xlu0.b32.cont [13/16] %v7558, 128
  %7639 = vxpose.xlu0.b32.cont [14/16] %v7559, 128
  %7640 = vxpose.xlu0.b32.cont [15/16] %v7560, 128
  %7641 = vxpose.xlu0.b32.end [16/16] %v7561, 128
  %v7642 = vpop.trf.xlu0
  %v7643 = vpop.trf.xlu0
  %v7644 = vpop.trf.xlu0
  %v7645 = vpop.trf.xlu0
  %v7646 = vpop.trf.xlu0
  %v7647 = vpop.trf.xlu0
  %v7648 = vpop.trf.xlu0
  %v7649 = vpop.trf.xlu0
  %v7650 = vpop.trf.xlu0
  %v7651 = vpop.trf.xlu0
  %v7652 = vpop.trf.xlu0
  %v7653 = vpop.trf.xlu0
  %v7654 = vpop.trf.xlu0
  %v7655 = vpop.trf.xlu0
  %v7656 = vpop.trf.xlu0
  %v7657 = vpop.trf.xlu0
  %7658 = vst [vmem:[%s7] sm:$0xff] %v7610
  %7659 = vst [vmem:[%s7 + $0x8] sm:$0xff] %v7642
  %7660 = vxpose.xlu0.b32.start [1/16] %v7562, 128
  %7661 = vxpose.xlu0.b32.cont [2/16] %v7563, 128
  %7662 = vxpose.xlu0.b32.cont [3/16] %v7564, 128
  %7663 = vxpose.xlu0.b32.cont [4/16] %v7565, 128
  %7664 = vxpose.xlu0.b32.cont [5/16] %v7566, 128
  %7665 = vxpose.xlu0.b32.cont [6/16] %v7567, 128
  %7666 = vxpose.xlu0.b32.cont [7/16] %v7568, 128
  %7667 = vxpose.xlu0.b32.cont [8/16] %v7569, 128
  %7668 = vxpose.xlu0.b32.cont [9/16] %v7570, 128
  %7669 = vxpose.xlu0.b32.cont [10/16] %v7571, 128
  %7670 = vxpose.xlu0.b32.cont [11/16] %v7572, 128
  %7671 = vxpose.xlu0.b32.cont [12/16] %v7573, 128
  %7672 = vxpose.xlu0.b32.cont [13/16] %v7574, 128
  %7673 = vxpose.xlu0.b32.cont [14/16] %v7575, 128
  %7674 = vxpose.xlu0.b32.cont [15/16] %v7576, 128
  %7675 = vxpose.xlu0.b32.end [16/16] %v7577, 128
  %v7676 = vpop.trf.xlu0
  %v7677 = vpop.trf.xlu0
  %v7678 = vpop.trf.xlu0
  %v7679 = vpop.trf.xlu0
  %v7680 = vpop.trf.xlu0
  %v7681 = vpop.trf.xlu0
  %v7682 = vpop.trf.xlu0
  %v7683 = vpop.trf.xlu0
  %v7684 = vpop.trf.xlu0
  %v7685 = vpop.trf.xlu0
  %v7686 = vpop.trf.xlu0
  %v7687 = vpop.trf.xlu0
  %v7688 = vpop.trf.xlu0
  %v7689 = vpop.trf.xlu0
  %v7690 = vpop.trf.xlu0
  %v7691 = vpop.trf.xlu0
  %7692 = vxpose.xlu0.b32.start [1/16] %v7578, 128
  %7693 = vxpose.xlu0.b32.cont [2/16] %v7579, 128
  %7694 = vxpose.xlu0.b32.cont [3/16] %v7580, 128
  %7695 = vxpose.xlu0.b32.cont [4/16] %v7581, 128
  %7696 = vxpose.xlu0.b32.cont [5/16] %v7582, 128
  %7697 = vxpose.xlu0.b32.cont [6/16] %v7583, 128
  %7698 = vxpose.xlu0.b32.cont [7/16] %v7584, 128
  %7699 = vxpose.xlu0.b32.cont [8/16] %v7585, 128
  %7700 = vxpose.xlu0.b32.cont [9/16] %v7586, 128
  %7701 = vxpose.xlu0.b32.cont [10/16] %v7587, 128
  %7702 = vxpose.xlu0.b32.cont [11/16] %v7588, 128
  %7703 = vxpose.xlu0.b32.cont [12/16] %v7589, 128
  %7704 = vxpose.xlu0.b32.cont [13/16] %v7590, 128
  %7705 = vxpose.xlu0.b32.cont [14/16] %v7591, 128
  %7706 = vxpose.xlu0.b32.cont [15/16] %v7592, 128
  %7707 = vxpose.xlu0.b32.end [16/16] %v7593, 128
  %v7708 = vpop.trf.xlu0
  %v7709 = vpop.trf.xlu0
  %v7710 = vpop.trf.xlu0
  %v7711 = vpop.trf.xlu0
  %v7712 = vpop.trf.xlu0
  %v7713 = vpop.trf.xlu0
  %v7714 = vpop.trf.xlu0
  %v7715 = vpop.trf.xlu0
  %v7716 = vpop.trf.xlu0
  %v7717 = vpop.trf.xlu0
  %v7718 = vpop.trf.xlu0
  %v7719 = vpop.trf.xlu0
  %v7720 = vpop.trf.xlu0
  %v7721 = vpop.trf.xlu0
  %v7722 = vpop.trf.xlu0
  %v7723 = vpop.trf.xlu0
  %s7724 = scalar_lea.vmem %s7, 16
  %7725 = vst [vmem:[%s7724] sm:$0xff] %v7676
  %7726 = vst [vmem:[%s7724 + $0x8] sm:$0xff] %v7708
  // Predicated region
  $region30: #{unet_block_forward.1} parent=0 // pred_check
    _
  $region31: #{unet_block_forward.1} parent=0 // pred_check_branch
    %7728 = sbr.rel (0) target = $region33
  $region32: #{unet_block_forward.1} parent=0 // pred_region
    _
  $region33: #{unet_block_forward.1} parent=0 // pred_fallthru
    _
  // Predicated region
  $region34: #{unet_block_forward.1} parent=0 // pred_check
    _
  $region35: #{unet_block_forward.1} parent=0 // pred_check_branch
    %7730 = sbr.rel (0) target = $region37
  $region36: #{unet_block_forward.1} parent=0 // pred_region
    _
  $region37: #{unet_block_forward.1} parent=0 // pred_fallthru
    _

</llo_original>
